<compile_context>
chip_gen: v7x
topology: tpu7x:2x2x1
jax: 0.10.0
libtpu: 0.0.40
codegen_flags: <defaults>
</compile_context>

<pallas_src>
import functools

import jax
import jax.numpy as jnp
from jax import lax
from jax.experimental import pallas as pl
from jax.experimental.pallas import tpu as pltpu

_HIGHEST = jax.lax.Precision.HIGHEST


def _layer_norm(y, gamma, beta, eps=1e-5):
    mu = jnp.mean(y, axis=-1, keepdims=True)
    var = jnp.mean((y - mu) ** 2, axis=-1, keepdims=True)   # biased var (PyTorch LN)
    return (y - mu) * lax.rsqrt(var + eps) * gamma + beta


def temporal_attention_kernel(x_ref, bias_ref, wqkv_ref, g1_ref, b1_ref,
                              wffn_a_ref, wffn_x_ref, g2_ref, b2_ref,
                              o_ref, *, n_heads, out_dim, n_time_steps):
    x = x_ref[...]                                     # (R, Din), R = NB * T rows
    hdo = n_heads * out_dim

    # Fused Q/K/V projection: one (R, Din) @ (Din, 3*HDo) MXU pass.
    qkv = jnp.dot(x, wqkv_ref[...], preferred_element_type=jnp.float32,
                  precision=_HIGHEST)                  # (R, 3*HDo)

    bias = bias_ref[...]                               # (R, R) additive mask bias
    scale = 1.0 / (float(n_time_steps) ** 0.5)
    contract_last = (((1,), (1,)), ((), ()))           # q @ k^T, no explicit transpose

    heads = []
    for h in range(n_heads):                           # static unroll, tiny H
        q_h = qkv[:, h * out_dim:(h + 1) * out_dim]
        k_h = qkv[:, hdo + h * out_dim: hdo + (h + 1) * out_dim]
        v_h = qkv[:, 2 * hdo + h * out_dim: 2 * hdo + (h + 1) * out_dim]
        e = lax.dot_general(q_h, k_h, contract_last,
                            preferred_element_type=jnp.float32,
                            precision=_HIGHEST) * scale + bias
        e = e - jnp.max(e, axis=-1, keepdims=True)     # masked lanes -> exp == 0
        p = jnp.exp(e)
        # EUP reciprocal instead of a VPU divide (accurate variant keeps the
        # 1e-3 parity with the f32 reference).
        p = p * pl.reciprocal(jnp.sum(p, axis=-1, keepdims=True))
        heads.append(jnp.dot(p, v_h, preferred_element_type=jnp.float32,
                             precision=_HIGHEST))

    # Single lane-concat of the head outputs (no scratch round-trip).
    y = jnp.concatenate(heads, axis=-1)                # (R, HDo)
    y = _layer_norm(y, g1_ref[...], b1_ref[...])
    # TODO(synk): dropout omitted — eval-mode semantics (torch.dropout(train=False) is identity)
    # FFN without the concat: cat([y, x]) @ W == y @ W[:HDo] + x @ W[HDo:].
    y = (jnp.dot(y, wffn_a_ref[...], preferred_element_type=jnp.float32,
                 precision=_HIGHEST)
         + jnp.dot(x, wffn_x_ref[...], preferred_element_type=jnp.float32,
                   precision=_HIGHEST))
    y = _layer_norm(y, g2_ref[...], b2_ref[...])
    o_ref[...] = y


def _tensorcores_per_device():
    """Best-effort TC-per-device count; fall back to 1 (always-safe path)."""
    try:
        kind = jax.devices()[0].device_kind.lower()
    except Exception:
        return 1
    # Single-TensorCore chips: v5e / v6e (the "lite" line).
    if any(tag in kind for tag in ("lite", "v5e", "v6e")):
        return 1
    # Dual-TensorCore / megacore chips: v2, v3, v4, v5p, v7x.
    if any(tag in kind for tag in ("v2", "v3", "v4", "v5", "v6p", "v7")):
        return 2
    return 1


def _choose_node_blocks(N, T, requested=None, max_rows_per_block=512):
    if requested is not None:
        nb = requested
    else:
        nb = _tensorcores_per_device()
        # Keep the per-block dense (rows, rows) score tile bounded as N grows
        # (caps VMEM; the real fix at large N is per-node (T,T) attention).
        while N % (nb * 2) == 0 and (N // nb) * T > max_rows_per_block:
            nb *= 2
    rows = (N // nb) * T if nb >= 1 and N % nb == 0 else 0
    if nb < 1 or N % nb != 0 or rows % 8 != 0:
        nb = 1
    return nb


def temporal_attention(x, params, *, n_heads, out_dim, n_time_steps,
                       num_node_blocks=None):
    N, T, Din = x.shape
    HDo = n_heads * out_dim

    nb = _choose_node_blocks(N, T, num_node_blocks)
    rows = (N // nb) * T

    x2 = x.reshape(N * T, Din)
    # Fuse the three projection weights once, outside the kernel.
    wqkv = jnp.concatenate([params["wq"], params["wk"], params["wv"]], axis=1)
    # Split the FFN weight so the kernel can skip cat([attn_out, x]).
    wffn_a = params["wffn"][:HDo, :]
    wffn_x = params["wffn"][HDo:, :]

    # Host-precomputed block-diagonal causal mask as an additive bias
    # (0 for valid, -9e15 for masked).  Identical for every node block.
    r = jnp.arange(rows, dtype=jnp.int32)
    valid = ((r[:, None] // T) == (r[None, :] // T)) & (r[None, :] <= r[:, None])
    bias = jnp.where(valid, 0.0, -9e15).astype(jnp.float32)

    kernel = functools.partial(temporal_attention_kernel,
                               n_heads=n_heads, out_dim=out_dim,
                               n_time_steps=n_time_steps)

    def resident(shape):
        # Whole-array, constant-index-map block: fetched once, stays VMEM
        # resident across grid steps (single-buffered in effect; nb is 1 on
        # single-TC chips so there is at most one extra revisit anyway).
        return pl.BlockSpec(shape, lambda i: (0,) * len(shape))

    out = pl.pallas_call(
        kernel,
        out_shape=jax.ShapeDtypeStruct((N * T, HDo), jnp.float32),
        grid=(nb,),
        in_specs=[
            pl.BlockSpec((rows, Din), lambda i: (i, 0)),    # this block's rows of x
            resident((rows, rows)),                          # additive mask bias
            resident((Din, 3 * HDo)),                        # fused W_qkv
            resident((1, HDo)), resident((1, HDo)),          # norm1 gamma / beta
            resident((HDo, HDo)),                            # ffn weight, attn half
            resident((Din, HDo)),                            # ffn weight, x half
            resident((1, HDo)), resident((1, HDo)),          # norm2 gamma / beta
        ],
        out_specs=pl.BlockSpec((rows, HDo), lambda i: (i, 0)),
        compiler_params=pltpu.CompilerParams(
            dimension_semantics=("parallel",) if nb > 1 else ("arbitrary",)),
    )(x2, bias, wqkv, params["g1"], params["b1"], wffn_a, wffn_x,
      params["g2"], params["b2"])
    return out.reshape(N, T, HDo)


def reference(x, params, *, n_heads, out_dim, n_time_steps):
    """Pure-JAX transcription of the PyTorch forward (eval mode), f32 matmuls."""
    q = jnp.matmul(x, params["wq"], precision=_HIGHEST)
    k = jnp.matmul(x, params["wk"], precision=_HIGHEST)
    v = jnp.matmul(x, params["wv"], precision=_HIGHEST)

    def split_heads(t):   # split last dim, cat along dim=-3 (node dim)
        return jnp.concatenate(jnp.split(t, n_heads, axis=-1), axis=-3)

    tq, tk, tv = split_heads(q), split_heads(k), split_heads(v)
    e = jnp.matmul(tq, jnp.swapaxes(tk, -1, -2),
                   precision=_HIGHEST) / (n_time_steps ** 0.5)
    T = x.shape[-2]
    mask = jnp.tril(jnp.ones((T, T), jnp.float32))
    attn = jnp.where(mask > 0, e, jnp.float32(-9e15))
    attn = jax.nn.softmax(attn, axis=-1)
    out = jnp.matmul(attn, tv, precision=_HIGHEST)
    out = jnp.concatenate(jnp.split(out, n_heads, axis=-3), axis=-1)
    out = _layer_norm(out, params["g1"][0], params["b1"][0])
    out = jnp.matmul(jnp.concatenate([out, x], axis=-1), params["wffn"],
                     precision=_HIGHEST)
    out = _layer_norm(out, params["g2"][0], params["b2"][0])
    return out


def init_params(key, in_dim, out_dim, n_heads):
    HDo = n_heads * out_dim
    keys = jax.random.split(key, 4)

    def xavier(k, shape, gain=1.414):
        bound = gain * (6.0 / (shape[0] + shape[1])) ** 0.5
        return jax.random.uniform(k, shape, jnp.float32, -bound, bound)

    fan_in = HDo + in_dim
    ffn_bound = 1.0 / (fan_in ** 0.5)
    return {
        "wq": xavier(keys[0], (in_dim, HDo)),
        "wk": xavier(keys[1], (in_dim, HDo)),
        "wv": xavier(keys[2], (in_dim, HDo)),
        "g1": jnp.ones((1, HDo), jnp.float32),
        "b1": jnp.zeros((1, HDo), jnp.float32),
        # nn.Linear weight is (out, in); forward does input @ W.T, so store W.T
        "wffn": jax.random.uniform(keys[3], (fan_in, HDo), jnp.float32,
                                   -ffn_bound, ffn_bound),
        "g2": jnp.ones((1, HDo), jnp.float32),
        "b2": jnp.zeros((1, HDo), jnp.float32),
    }


if __name__ == "__main__":
    N, T = 8, 8            # nodes, time steps
    in_dim, out_dim, n_heads = 32, 16, 4

    key = jax.random.PRNGKey(0)
    kx, kp = jax.random.split(key)
    x = jax.random.normal(kx, (N, T, in_dim), jnp.float32)
    params = init_params(kp, in_dim, out_dim, n_heads)

    out = temporal_attention(x, params, n_heads=n_heads,
                             out_dim=out_dim, n_time_steps=T)
    out = jax.block_until_ready(out)

    ref = reference(x, params, n_heads=n_heads, out_dim=out_dim, n_time_steps=T)
    assert out.shape == (N, T, n_heads * out_dim)
    assert jnp.allclose(out, ref, rtol=1e-3, atol=1e-3), "mismatch vs reference"

    print("KERNEL_OK")
</pallas_src>

<mosaic_0001>
module attributes {stable_mosaic.version = 11 : i64} {
  func.func @temporal_attention_kernel(%arg0: i32, %arg1: memref<64x32xf32, #tpu.memory_space<vmem>>, %arg2: memref<64x64xf32, #tpu.memory_space<vmem>>, %arg3: memref<32x192xf32, #tpu.memory_space<vmem>>, %arg4: memref<1x64xf32, #tpu.memory_space<vmem>>, %arg5: memref<1x64xf32, #tpu.memory_space<vmem>>, %arg6: memref<64x64xf32, #tpu.memory_space<vmem>>, %arg7: memref<32x64xf32, #tpu.memory_space<vmem>>, %arg8: memref<1x64xf32, #tpu.memory_space<vmem>>, %arg9: memref<1x64xf32, #tpu.memory_space<vmem>>, %arg10: memref<64x64xf32, #tpu.memory_space<vmem>>) attributes {dimension_semantics = [#tpu.dimension_semantics<arbitrary>], iteration_bounds = array<i64: 1>, scalar_prefetch = 0 : i64, scratch_operands = 0 : i64, tpu.core_type = #tpu.core_type<tc>, window_params = [{transform_indices = @transform_0, window_bounds = array<i64: 64, 32>}, {pipeline_mode = #tpu.pipeline_mode<synchronous>, transform_indices = @transform_1, window_bounds = array<i64: 64, 64>}, {pipeline_mode = #tpu.pipeline_mode<synchronous>, transform_indices = @transform_2, window_bounds = array<i64: 32, 192>}, {pipeline_mode = #tpu.pipeline_mode<synchronous>, transform_indices = @transform_3, window_bounds = array<i64: 1, 64>}, {pipeline_mode = #tpu.pipeline_mode<synchronous>, transform_indices = @transform_4, window_bounds = array<i64: 1, 64>}, {pipeline_mode = #tpu.pipeline_mode<synchronous>, transform_indices = @transform_5, window_bounds = array<i64: 64, 64>}, {pipeline_mode = #tpu.pipeline_mode<synchronous>, transform_indices = @transform_6, window_bounds = array<i64: 32, 64>}, {pipeline_mode = #tpu.pipeline_mode<synchronous>, transform_indices = @transform_7, window_bounds = array<i64: 1, 64>}, {pipeline_mode = #tpu.pipeline_mode<synchronous>, transform_indices = @transform_8, window_bounds = array<i64: 1, 64>}, {transform_indices = @transform_9, window_bounds = array<i64: 64, 64>}]} {
    %c0 = arith.constant 0 : index
    %c0_0 = arith.constant 0 : index
    %0 = vector.load %arg1[%c0, %c0_0] : memref<64x32xf32, #tpu.memory_space<vmem>>, vector<64x32xf32>
    %c0_1 = arith.constant 0 : index
    %c0_2 = arith.constant 0 : index
    %1 = vector.load %arg3[%c0_1, %c0_2] : memref<32x192xf32, #tpu.memory_space<vmem>>, vector<32x192xf32>
    %cst = arith.constant dense<0.000000e+00> : vector<64x192xf32>
    %2 = tpu.matmul %0, %1, %cst {dimension_numbers = #tpu.dot_dimension_numbers<[1], [0], [0], [1], [0, 0, 1, 1], [], []>, precision = #tpu.contract_precision<fp32>} : vector<64x32xf32>, vector<32x192xf32>, vector<64x192xf32> -> vector<64x192xf32>
    %c0_3 = arith.constant 0 : index
    %c0_4 = arith.constant 0 : index
    %3 = vector.load %arg2[%c0_3, %c0_4] : memref<64x64xf32, #tpu.memory_space<vmem>>, vector<64x64xf32>
    %4 = vector.extract_strided_slice %2 {offsets = [0, 0], sizes = [64, 16], strides = [1, 1]} : vector<64x192xf32> to vector<64x16xf32>
    %5 = vector.extract_strided_slice %2 {offsets = [0, 64], sizes = [64, 16], strides = [1, 1]} : vector<64x192xf32> to vector<64x16xf32>
    %6 = vector.extract_strided_slice %2 {offsets = [0, 128], sizes = [64, 16], strides = [1, 1]} : vector<64x192xf32> to vector<64x16xf32>
    %cst_5 = arith.constant dense<0.000000e+00> : vector<64x64xf32>
    %7 = tpu.matmul %4, %5, %cst_5 {dimension_numbers = #tpu.dot_dimension_numbers<[1], [1], [0], [0], [0, 0, 1, 0], [], []>, precision = #tpu.contract_precision<fp32>} : vector<64x16xf32>, vector<64x16xf32>, vector<64x64xf32> -> vector<64x64xf32>
    %cst_6 = arith.constant 0.353553385 : f32
    %8 = vector.broadcast %cst_6 : f32 to vector<64x64xf32>
    %9 = arith.mulf %7, %8 : vector<64x64xf32>
    %10 = arith.addf %9, %3 : vector<64x64xf32>
    %cst_7 = arith.constant dense<0xFF800000> : vector<64xf32>
    %11 = vector.multi_reduction <maximumf>, %10, %cst_7 [1] : vector<64x64xf32> to vector<64xf32>
    %12 = vector.shape_cast %11 : vector<64xf32> to vector<64x1xf32>
    %13 = vector.broadcast %12 : vector<64x1xf32> to vector<64x64xf32>
    %14 = arith.subf %10, %13 : vector<64x64xf32>
    %15 = math.exp %14 : vector<64x64xf32>
    %cst_8 = arith.constant dense<0.000000e+00> : vector<64xf32>
    %16 = vector.multi_reduction <add>, %15, %cst_8 [1] : vector<64x64xf32> to vector<64xf32>
    %17 = vector.shape_cast %16 : vector<64xf32> to vector<64x1xf32>
    %18 = tpu.reciprocal %17 : vector<64x1xf32> -> vector<64x1xf32>
    %19 = vector.broadcast %18 : vector<64x1xf32> to vector<64x64xf32>
    %20 = arith.mulf %15, %19 : vector<64x64xf32>
    %cst_9 = arith.constant dense<0.000000e+00> : vector<64x16xf32>
    %21 = tpu.matmul %20, %6, %cst_9 {dimension_numbers = #tpu.dot_dimension_numbers<[1], [0], [0], [1], [0, 0, 1, 1], [], []>, precision = #tpu.contract_precision<fp32>} : vector<64x64xf32>, vector<64x16xf32>, vector<64x16xf32> -> vector<64x16xf32>
    %22 = vector.extract_strided_slice %2 {offsets = [0, 16], sizes = [64, 16], strides = [1, 1]} : vector<64x192xf32> to vector<64x16xf32>
    %23 = vector.extract_strided_slice %2 {offsets = [0, 80], sizes = [64, 16], strides = [1, 1]} : vector<64x192xf32> to vector<64x16xf32>
    %24 = vector.extract_strided_slice %2 {offsets = [0, 144], sizes = [64, 16], strides = [1, 1]} : vector<64x192xf32> to vector<64x16xf32>
    %cst_10 = arith.constant dense<0.000000e+00> : vector<64x64xf32>
    %25 = tpu.matmul %22, %23, %cst_10 {dimension_numbers = #tpu.dot_dimension_numbers<[1], [1], [0], [0], [0, 0, 1, 0], [], []>, precision = #tpu.contract_precision<fp32>} : vector<64x16xf32>, vector<64x16xf32>, vector<64x64xf32> -> vector<64x64xf32>
    %cst_11 = arith.constant 0.353553385 : f32
    %26 = vector.broadcast %cst_11 : f32 to vector<64x64xf32>
    %27 = arith.mulf %25, %26 : vector<64x64xf32>
    %28 = arith.addf %27, %3 : vector<64x64xf32>
    %cst_12 = arith.constant dense<0xFF800000> : vector<64xf32>
    %29 = vector.multi_reduction <maximumf>, %28, %cst_12 [1] : vector<64x64xf32> to vector<64xf32>
    %30 = vector.shape_cast %29 : vector<64xf32> to vector<64x1xf32>
    %31 = vector.broadcast %30 : vector<64x1xf32> to vector<64x64xf32>
    %32 = arith.subf %28, %31 : vector<64x64xf32>
    %33 = math.exp %32 : vector<64x64xf32>
    %cst_13 = arith.constant dense<0.000000e+00> : vector<64xf32>
    %34 = vector.multi_reduction <add>, %33, %cst_13 [1] : vector<64x64xf32> to vector<64xf32>
    %35 = vector.shape_cast %34 : vector<64xf32> to vector<64x1xf32>
    %36 = tpu.reciprocal %35 : vector<64x1xf32> -> vector<64x1xf32>
    %37 = vector.broadcast %36 : vector<64x1xf32> to vector<64x64xf32>
    %38 = arith.mulf %33, %37 : vector<64x64xf32>
    %cst_14 = arith.constant dense<0.000000e+00> : vector<64x16xf32>
    %39 = tpu.matmul %38, %24, %cst_14 {dimension_numbers = #tpu.dot_dimension_numbers<[1], [0], [0], [1], [0, 0, 1, 1], [], []>, precision = #tpu.contract_precision<fp32>} : vector<64x64xf32>, vector<64x16xf32>, vector<64x16xf32> -> vector<64x16xf32>
    %40 = vector.extract_strided_slice %2 {offsets = [0, 32], sizes = [64, 16], strides = [1, 1]} : vector<64x192xf32> to vector<64x16xf32>
    %41 = vector.extract_strided_slice %2 {offsets = [0, 96], sizes = [64, 16], strides = [1, 1]} : vector<64x192xf32> to vector<64x16xf32>
    %42 = vector.extract_strided_slice %2 {offsets = [0, 160], sizes = [64, 16], strides = [1, 1]} : vector<64x192xf32> to vector<64x16xf32>
    %cst_15 = arith.constant dense<0.000000e+00> : vector<64x64xf32>
    %43 = tpu.matmul %40, %41, %cst_15 {dimension_numbers = #tpu.dot_dimension_numbers<[1], [1], [0], [0], [0, 0, 1, 0], [], []>, precision = #tpu.contract_precision<fp32>} : vector<64x16xf32>, vector<64x16xf32>, vector<64x64xf32> -> vector<64x64xf32>
    %cst_16 = arith.constant 0.353553385 : f32
    %44 = vector.broadcast %cst_16 : f32 to vector<64x64xf32>
    %45 = arith.mulf %43, %44 : vector<64x64xf32>
    %46 = arith.addf %45, %3 : vector<64x64xf32>
    %cst_17 = arith.constant dense<0xFF800000> : vector<64xf32>
    %47 = vector.multi_reduction <maximumf>, %46, %cst_17 [1] : vector<64x64xf32> to vector<64xf32>
    %48 = vector.shape_cast %47 : vector<64xf32> to vector<64x1xf32>
    %49 = vector.broadcast %48 : vector<64x1xf32> to vector<64x64xf32>
    %50 = arith.subf %46, %49 : vector<64x64xf32>
    %51 = math.exp %50 : vector<64x64xf32>
    %cst_18 = arith.constant dense<0.000000e+00> : vector<64xf32>
    %52 = vector.multi_reduction <add>, %51, %cst_18 [1] : vector<64x64xf32> to vector<64xf32>
    %53 = vector.shape_cast %52 : vector<64xf32> to vector<64x1xf32>
    %54 = tpu.reciprocal %53 : vector<64x1xf32> -> vector<64x1xf32>
    %55 = vector.broadcast %54 : vector<64x1xf32> to vector<64x64xf32>
    %56 = arith.mulf %51, %55 : vector<64x64xf32>
    %cst_19 = arith.constant dense<0.000000e+00> : vector<64x16xf32>
    %57 = tpu.matmul %56, %42, %cst_19 {dimension_numbers = #tpu.dot_dimension_numbers<[1], [0], [0], [1], [0, 0, 1, 1], [], []>, precision = #tpu.contract_precision<fp32>} : vector<64x64xf32>, vector<64x16xf32>, vector<64x16xf32> -> vector<64x16xf32>
    %58 = vector.extract_strided_slice %2 {offsets = [0, 48], sizes = [64, 16], strides = [1, 1]} : vector<64x192xf32> to vector<64x16xf32>
    %59 = vector.extract_strided_slice %2 {offsets = [0, 112], sizes = [64, 16], strides = [1, 1]} : vector<64x192xf32> to vector<64x16xf32>
    %60 = vector.extract_strided_slice %2 {offsets = [0, 176], sizes = [64, 16], strides = [1, 1]} : vector<64x192xf32> to vector<64x16xf32>
    %cst_20 = arith.constant dense<0.000000e+00> : vector<64x64xf32>
    %61 = tpu.matmul %58, %59, %cst_20 {dimension_numbers = #tpu.dot_dimension_numbers<[1], [1], [0], [0], [0, 0, 1, 0], [], []>, precision = #tpu.contract_precision<fp32>} : vector<64x16xf32>, vector<64x16xf32>, vector<64x64xf32> -> vector<64x64xf32>
    %cst_21 = arith.constant 0.353553385 : f32
    %62 = vector.broadcast %cst_21 : f32 to vector<64x64xf32>
    %63 = arith.mulf %61, %62 : vector<64x64xf32>
    %64 = arith.addf %63, %3 : vector<64x64xf32>
    %cst_22 = arith.constant dense<0xFF800000> : vector<64xf32>
    %65 = vector.multi_reduction <maximumf>, %64, %cst_22 [1] : vector<64x64xf32> to vector<64xf32>
    %66 = vector.shape_cast %65 : vector<64xf32> to vector<64x1xf32>
    %67 = vector.broadcast %66 : vector<64x1xf32> to vector<64x64xf32>
    %68 = arith.subf %64, %67 : vector<64x64xf32>
    %69 = math.exp %68 : vector<64x64xf32>
    %cst_23 = arith.constant dense<0.000000e+00> : vector<64xf32>
    %70 = vector.multi_reduction <add>, %69, %cst_23 [1] : vector<64x64xf32> to vector<64xf32>
    %71 = vector.shape_cast %70 : vector<64xf32> to vector<64x1xf32>
    %72 = tpu.reciprocal %71 : vector<64x1xf32> -> vector<64x1xf32>
    %73 = vector.broadcast %72 : vector<64x1xf32> to vector<64x64xf32>
    %74 = arith.mulf %69, %73 : vector<64x64xf32>
    %cst_24 = arith.constant dense<0.000000e+00> : vector<64x16xf32>
    %75 = tpu.matmul %74, %60, %cst_24 {dimension_numbers = #tpu.dot_dimension_numbers<[1], [0], [0], [1], [0, 0, 1, 1], [], []>, precision = #tpu.contract_precision<fp32>} : vector<64x64xf32>, vector<64x16xf32>, vector<64x16xf32> -> vector<64x16xf32>
    %76 = tpu.concatenate %21, %39, %57, %75 in 1 : vector<64x16xf32>, vector<64x16xf32>, vector<64x16xf32>, vector<64x16xf32> -> vector<64x64xf32>
    %c0_25 = arith.constant 0 : index
    %c0_26 = arith.constant 0 : index
    %77 = vector.load %arg4[%c0_25, %c0_26] : memref<1x64xf32, #tpu.memory_space<vmem>>, vector<1x64xf32>
    %c0_27 = arith.constant 0 : index
    %c0_28 = arith.constant 0 : index
    %78 = vector.load %arg5[%c0_27, %c0_28] : memref<1x64xf32, #tpu.memory_space<vmem>>, vector<1x64xf32>
    %cst_29 = arith.constant dense<0.000000e+00> : vector<64xf32>
    %79 = vector.multi_reduction <add>, %76, %cst_29 [1] : vector<64x64xf32> to vector<64xf32>
    %80 = vector.shape_cast %79 : vector<64xf32> to vector<64x1xf32>
    %cst_30 = arith.constant 6.400000e+01 : f32
    %81 = vector.broadcast %cst_30 : f32 to vector<64x1xf32>
    %82 = arith.divf %80, %81 : vector<64x1xf32>
    %83 = vector.broadcast %82 : vector<64x1xf32> to vector<64x64xf32>
    %84 = arith.subf %76, %83 : vector<64x64xf32>
    %85 = arith.mulf %84, %84 : vector<64x64xf32>
    %cst_31 = arith.constant dense<0.000000e+00> : vector<64xf32>
    %86 = vector.multi_reduction <add>, %85, %cst_31 [1] : vector<64x64xf32> to vector<64xf32>
    %87 = vector.shape_cast %86 : vector<64xf32> to vector<64x1xf32>
    %cst_32 = arith.constant 6.400000e+01 : f32
    %88 = vector.broadcast %cst_32 : f32 to vector<64x1xf32>
    %89 = arith.divf %87, %88 : vector<64x1xf32>
    %90 = vector.broadcast %82 : vector<64x1xf32> to vector<64x64xf32>
    %91 = arith.subf %76, %90 : vector<64x64xf32>
    %cst_33 = arith.constant 9.99999974E-6 : f32
    %92 = vector.broadcast %cst_33 : f32 to vector<64x1xf32>
    %93 = arith.addf %89, %92 : vector<64x1xf32>
    %94 = math.rsqrt %93 : vector<64x1xf32>
    %95 = vector.broadcast %94 : vector<64x1xf32> to vector<64x64xf32>
    %96 = arith.mulf %91, %95 : vector<64x64xf32>
    %97 = vector.broadcast %77 : vector<1x64xf32> to vector<64x64xf32>
    %98 = arith.mulf %96, %97 : vector<64x64xf32>
    %99 = vector.broadcast %78 : vector<1x64xf32> to vector<64x64xf32>
    %100 = arith.addf %98, %99 : vector<64x64xf32>
    %c0_34 = arith.constant 0 : index
    %c0_35 = arith.constant 0 : index
    %101 = vector.load %arg6[%c0_34, %c0_35] : memref<64x64xf32, #tpu.memory_space<vmem>>, vector<64x64xf32>
    %cst_36 = arith.constant dense<0.000000e+00> : vector<64x64xf32>
    %102 = tpu.matmul %100, %101, %cst_36 {dimension_numbers = #tpu.dot_dimension_numbers<[1], [0], [0], [1], [0, 0, 1, 1], [], []>, precision = #tpu.contract_precision<fp32>} : vector<64x64xf32>, vector<64x64xf32>, vector<64x64xf32> -> vector<64x64xf32>
    %c0_37 = arith.constant 0 : index
    %c0_38 = arith.constant 0 : index
    %103 = vector.load %arg7[%c0_37, %c0_38] : memref<32x64xf32, #tpu.memory_space<vmem>>, vector<32x64xf32>
    %cst_39 = arith.constant dense<0.000000e+00> : vector<64x64xf32>
    %104 = tpu.matmul %0, %103, %cst_39 {dimension_numbers = #tpu.dot_dimension_numbers<[1], [0], [0], [1], [0, 0, 1, 1], [], []>, precision = #tpu.contract_precision<fp32>} : vector<64x32xf32>, vector<32x64xf32>, vector<64x64xf32> -> vector<64x64xf32>
    %105 = arith.addf %102, %104 : vector<64x64xf32>
    %c0_40 = arith.constant 0 : index
    %c0_41 = arith.constant 0 : index
    %106 = vector.load %arg8[%c0_40, %c0_41] : memref<1x64xf32, #tpu.memory_space<vmem>>, vector<1x64xf32>
    %c0_42 = arith.constant 0 : index
    %c0_43 = arith.constant 0 : index
    %107 = vector.load %arg9[%c0_42, %c0_43] : memref<1x64xf32, #tpu.memory_space<vmem>>, vector<1x64xf32>
    %cst_44 = arith.constant dense<0.000000e+00> : vector<64xf32>
    %108 = vector.multi_reduction <add>, %105, %cst_44 [1] : vector<64x64xf32> to vector<64xf32>
    %109 = vector.shape_cast %108 : vector<64xf32> to vector<64x1xf32>
    %cst_45 = arith.constant 6.400000e+01 : f32
    %110 = vector.broadcast %cst_45 : f32 to vector<64x1xf32>
    %111 = arith.divf %109, %110 : vector<64x1xf32>
    %112 = vector.broadcast %111 : vector<64x1xf32> to vector<64x64xf32>
    %113 = arith.subf %105, %112 : vector<64x64xf32>
    %114 = arith.mulf %113, %113 : vector<64x64xf32>
    %cst_46 = arith.constant dense<0.000000e+00> : vector<64xf32>
    %115 = vector.multi_reduction <add>, %114, %cst_46 [1] : vector<64x64xf32> to vector<64xf32>
    %116 = vector.shape_cast %115 : vector<64xf32> to vector<64x1xf32>
    %cst_47 = arith.constant 6.400000e+01 : f32
    %117 = vector.broadcast %cst_47 : f32 to vector<64x1xf32>
    %118 = arith.divf %116, %117 : vector<64x1xf32>
    %119 = vector.broadcast %111 : vector<64x1xf32> to vector<64x64xf32>
    %120 = arith.subf %105, %119 : vector<64x64xf32>
    %cst_48 = arith.constant 9.99999974E-6 : f32
    %121 = vector.broadcast %cst_48 : f32 to vector<64x1xf32>
    %122 = arith.addf %118, %121 : vector<64x1xf32>
    %123 = math.rsqrt %122 : vector<64x1xf32>
    %124 = vector.broadcast %123 : vector<64x1xf32> to vector<64x64xf32>
    %125 = arith.mulf %120, %124 : vector<64x64xf32>
    %126 = vector.broadcast %106 : vector<1x64xf32> to vector<64x64xf32>
    %127 = arith.mulf %125, %126 : vector<64x64xf32>
    %128 = vector.broadcast %107 : vector<1x64xf32> to vector<64x64xf32>
    %129 = arith.addf %127, %128 : vector<64x64xf32>
    %c0_49 = arith.constant 0 : index
    %c0_50 = arith.constant 0 : index
    %130 = vector.load %arg10[%c0_49, %c0_50] : memref<64x64xf32, #tpu.memory_space<vmem>>, vector<64x64xf32>
    tpu.vector_store %arg10[%c0_49, %c0_50], %129 {strides = array<i32>} : memref<64x64xf32, #tpu.memory_space<vmem>>, vector<64x64xf32>,
    return
  }
  func.func @transform_0(%arg0: i32) -> (i32, i32) {
    %c0_i32 = arith.constant 0 : i32
    %c0_i32_0 = arith.constant 0 : i32
    return %arg0, %c0_i32 : i32, i32
  }
  func.func @transform_1(%arg0: i32) -> (i32, i32) {
    %c0_i32 = arith.constant 0 : i32
    %c0_i32_0 = arith.constant 0 : i32
    %c0_i32_1 = arith.constant 0 : i32
    return %c0_i32, %c0_i32_0 : i32, i32
  }
  func.func @transform_2(%arg0: i32) -> (i32, i32) {
    %c0_i32 = arith.constant 0 : i32
    %c0_i32_0 = arith.constant 0 : i32
    %c0_i32_1 = arith.constant 0 : i32
    return %c0_i32, %c0_i32_0 : i32, i32
  }
  func.func @transform_3(%arg0: i32) -> (i32, i32) {
    %c0_i32 = arith.constant 0 : i32
    %c0_i32_0 = arith.constant 0 : i32
    %c0_i32_1 = arith.constant 0 : i32
    return %c0_i32, %c0_i32_0 : i32, i32
  }
  func.func @transform_4(%arg0: i32) -> (i32, i32) {
    %c0_i32 = arith.constant 0 : i32
    %c0_i32_0 = arith.constant 0 : i32
    %c0_i32_1 = arith.constant 0 : i32
    return %c0_i32, %c0_i32_0 : i32, i32
  }
  func.func @transform_5(%arg0: i32) -> (i32, i32) {
    %c0_i32 = arith.constant 0 : i32
    %c0_i32_0 = arith.constant 0 : i32
    %c0_i32_1 = arith.constant 0 : i32
    return %c0_i32, %c0_i32_0 : i32, i32
  }
  func.func @transform_6(%arg0: i32) -> (i32, i32) {
    %c0_i32 = arith.constant 0 : i32
    %c0_i32_0 = arith.constant 0 : i32
    %c0_i32_1 = arith.constant 0 : i32
    return %c0_i32, %c0_i32_0 : i32, i32
  }
  func.func @transform_7(%arg0: i32) -> (i32, i32) {
    %c0_i32 = arith.constant 0 : i32
    %c0_i32_0 = arith.constant 0 : i32
    %c0_i32_1 = arith.constant 0 : i32
    return %c0_i32, %c0_i32_0 : i32, i32
  }
  func.func @transform_8(%arg0: i32) -> (i32, i32) {
    %c0_i32 = arith.constant 0 : i32
    %c0_i32_0 = arith.constant 0 : i32
    %c0_i32_1 = arith.constant 0 : i32
    return %c0_i32, %c0_i32_0 : i32, i32
  }
  func.func @transform_9(%arg0: i32) -> (i32, i32) {
    %c0_i32 = arith.constant 0 : i32
    %c0_i32_0 = arith.constant 0 : i32
    return %arg0, %c0_i32 : i32, i32
  }
}

</mosaic_0001>

<llo_original>
// kernel: tpu_custom_call.1
$region0: #{tpu_custom_call.1}
  #allocation0 [shape = 'u32[]', space=smem, size = 0x4, offset = 0x4, fixed_abs, tag = 'smem constant byte address 0x4 - core index']
  #allocation1 [shape = 'u32[144,128]{1,0:T(1,128)}', space=vmem, size = 0x12000, scoped, tag = 'internal scratch']
  %s0 = inlined_call_operand.vmem [shape: f32[64,32], index: 0, kind: input, shape index: {}]
  %s1 = inlined_call_operand.vmem [shape: f32[64,64], index: 1, kind: input, shape index: {}]
  %s2 = inlined_call_operand.hbm [shape: f32[32,192], index: 2, kind: input, shape index: {}]
  %s3 = inlined_call_operand.vmem [shape: f32[1,64], index: 3, kind: input, shape index: {}]
  %s4 = inlined_call_operand.vmem [shape: f32[1,64], index: 4, kind: input, shape index: {}]
  %s5 = inlined_call_operand.hbm [shape: f32[64,64], index: 5, kind: input, shape index: {}]
  %s6 = inlined_call_operand.vmem [shape: f32[32,64], index: 6, kind: input, shape index: {}]
  %s7 = inlined_call_operand.vmem [shape: f32[1,64], index: 7, kind: input, shape index: {}]
  %s8 = inlined_call_operand.vmem [shape: f32[1,64], index: 8, kind: input, shape index: {}]
  %s9 = inlined_call_operand.hbm [shape: f32[64,64], index: 9, kind: output, shape index: {}]
  %s10 = sld [smem:[#allocation0]]
  $region54: #{tpu_custom_call.1} parent=0
    _
  %s12 = ssub.s32 1, %s10
  %s13 = scalar_select 0, %s12, %s10
  $region1: #{tpu_custom_call.1} parent=0
    #allocation2 [shape = 'u8[32768]{0}', space=vmem, size = 0x8000, scoped, tag = 'input window, operand 2, single buffered']
    #allocation3 [shape = 's32[1]{0}', space=sflag, size = 0x4, scoped, tag = 'scoped memory for tpu_custom_call.1']
    #allocation4 [shape = 's32[1]{0}', space=sflag, size = 0x4, scoped, tag = 'scoped memory for tpu_custom_call.1']
    #allocation5 [shape = 'u8[32768]{0}', space=vmem, size = 0x8000, scoped, tag = 'input window, operand 5, single buffered']
    #allocation6 [shape = 's32[1]{0}', space=sflag, size = 0x4, scoped, tag = 'scoped memory for tpu_custom_call.1']
    #allocation7 [shape = 'u8[32768]{0}', space=vmem, size = 0x8000, scoped, tag = 'output window, operand 0, single buffered']
    %14 = vsyncpa [#allocation3], 0
    %15 = vsyncpa [#allocation6], 0
    %16 = vsyncpa [#allocation4], 0
    // Predicated region
    $region2: #{tpu_custom_call.1} parent=1 // pred_check
      _
    $region3: #{tpu_custom_call.1} parent=1 // pred_check_branch
      %18 = sbr.rel (0) target = $region5
    $region4: #{tpu_custom_call.1} parent=1 // pred_region
      _
    $region5: #{tpu_custom_call.1} parent=1 // pred_fallthru
      _
    // Predicated region
    $region6: #{tpu_custom_call.1} parent=1 // pred_check
      _
    $region7: #{tpu_custom_call.1} parent=1 // pred_check_branch
      %20 = sbr.rel (0) target = $region9
    $region8: #{tpu_custom_call.1} parent=1 // pred_region
      _
    $region9: #{tpu_custom_call.1} parent=1 // pred_fallthru
      _
    // Predicated region
    $region10: #{tpu_custom_call.1} parent=1 // pred_check
      _
    $region11: #{tpu_custom_call.1} parent=1 // pred_check_branch
      %22 = sbr.rel (0) target = $region13
    $region12: #{tpu_custom_call.1} parent=1 // pred_region
      %s24 = ssub.s32 1024, 1024
      %25 = vsyncadd [#allocation3], %s24
      %s26 = sshll.u32 [#allocation2], 4
      %s27 = int_to_ptr.vmem [resolvable:$true] %s26
      %32 = dma.hbm_to_vmem [thread:$0]  %s2, 1024, %s27, [#allocation3], 256, 256, 16
    $region13: #{tpu_custom_call.1} parent=1 // pred_fallthru
      _
    // Predicated region
    $region14: #{tpu_custom_call.1} parent=1 // pred_check
      _
    $region15: #{tpu_custom_call.1} parent=1 // pred_check_branch
      %34 = sbr.rel (0) target = $region17
    $region16: #{tpu_custom_call.1} parent=1 // pred_region
      _
    $region17: #{tpu_custom_call.1} parent=1 // pred_fallthru
      _
    // Predicated region
    $region18: #{tpu_custom_call.1} parent=1 // pred_check
      _
    $region19: #{tpu_custom_call.1} parent=1 // pred_check_branch
      %36 = sbr.rel (0) target = $region21
    $region20: #{tpu_custom_call.1} parent=1 // pred_region
      _
    $region21: #{tpu_custom_call.1} parent=1 // pred_fallthru
      _
    // Predicated region
    $region22: #{tpu_custom_call.1} parent=1 // pred_check
      _
    $region23: #{tpu_custom_call.1} parent=1 // pred_check_branch
      %38 = sbr.rel (0) target = $region25
    $region24: #{tpu_custom_call.1} parent=1 // pred_region
      %s40 = ssub.s32 1024, 1024
      %41 = vsyncadd [#allocation6], %s40
      %s42 = sshll.u32 [#allocation5], 4
      %s43 = int_to_ptr.vmem [resolvable:$true] %s42
      %48 = dma.hbm_to_vmem [thread:$0]  %s5, 1024, %s43, [#allocation6], 128, 128, 8
    $region25: #{tpu_custom_call.1} parent=1 // pred_fallthru
      _
    // Predicated region
    $region26: #{tpu_custom_call.1} parent=1 // pred_check
      _
    $region27: #{tpu_custom_call.1} parent=1 // pred_check_branch
      %50 = sbr.rel (0) target = $region29
    $region28: #{tpu_custom_call.1} parent=1 // pred_region
      _
    $region29: #{tpu_custom_call.1} parent=1 // pred_fallthru
      _
    // Predicated region
    $region30: #{tpu_custom_call.1} parent=1 // pred_check
      _
    $region31: #{tpu_custom_call.1} parent=1 // pred_check_branch
      %52 = sbr.rel (0) target = $region33
    $region32: #{tpu_custom_call.1} parent=1 // pred_region
      _
    $region33: #{tpu_custom_call.1} parent=1 // pred_fallthru
      _
    // Predicated region
    $region34: #{tpu_custom_call.1} parent=1 // pred_check
      _
    $region35: #{tpu_custom_call.1} parent=1 // pred_check_branch
      %54 = sbr.rel (0) target = $region37
    $region36: #{tpu_custom_call.1} parent=1 // pred_region
      _
    $region37: #{tpu_custom_call.1} parent=1 // pred_fallthru
      _
    // Predicated region
    $region38: #{tpu_custom_call.1} parent=1 // pred_check
      _
    $region39: #{tpu_custom_call.1} parent=1 // pred_check_branch
      %56 = sbr.rel (0) target = $region41
    $region40: #{tpu_custom_call.1} parent=1 // pred_region
      %57 = dma.done [#allocation3], 1024
    $region41: #{tpu_custom_call.1} parent=1 // pred_fallthru
      _
    // Predicated region
    $region42: #{tpu_custom_call.1} parent=1 // pred_check
      _
    $region43: #{tpu_custom_call.1} parent=1 // pred_check_branch
      %59 = sbr.rel (0) target = $region45
    $region44: #{tpu_custom_call.1} parent=1 // pred_region
      %60 = dma.done [#allocation6], 1024
    $region45: #{tpu_custom_call.1} parent=1 // pred_fallthru
      _
    %v61 = vld [vmem:[%s0] sm:$0xff]
    %v62 = vld [vmem:[%s0 + $0x8] sm:$0xff]
    %v63 = vld [vmem:[%s0 + $0x10] sm:$0xff]
    %v64 = vld [vmem:[%s0 + $0x18] sm:$0xff]
    %v65 = vld [vmem:[%s0 + $0x20] sm:$0xff]
    %v66 = vld [vmem:[%s0 + $0x28] sm:$0xff]
    %v67 = vld [vmem:[%s0 + $0x30] sm:$0xff]
    %v68 = vld [vmem:[%s0 + $0x38] sm:$0xff]
    %v69 = vld [vmem:[#allocation2] sm:$0xff]
    %v70 = vld [vmem:[#allocation2 + $0x8] sm:$0xff]
    %v71 = vld [vmem:[#allocation2 + $0x10] sm:$0xff]
    %v72 = vld [vmem:[#allocation2 + $0x18] sm:$0xff]
    %v73 = vld [vmem:[#allocation2 + $0x20] sm:$0xff]
    %v74 = vld [vmem:[#allocation2 + $0x28] sm:$0xff]
    %v75 = vld [vmem:[#allocation2 + $0x30] sm:$0xff]
    %v76 = vld [vmem:[#allocation2 + $0x38] sm:$0xff]
    %vm77 = vcmask 261120
    %v79 = vsel %vm77, %v61, 0
    %v82 = vsel %vm77, %v62, 0
    %v85 = vsel %vm77, %v63, 0
    %v88 = vsel %vm77, %v64, 0
    %v91 = vsel %vm77, %v65, 0
    %v94 = vsel %vm77, %v66, 0
    %v97 = vsel %vm77, %v67, 0
    %v100 = vsel %vm77, %v68, 0
    %v102 = vand.u32 %v70, 4294901760
    %103 = vmatprep.subr.mxu0 %v102
    %v104 = vand.u32 %v69, 4294901760
    %105 = vmatpush1.msra.mxu0 %v104
    %v106 = vand.u32 %v72, 4294901760
    %107 = vmatprep.subr.mxu0 %v106
    %v108 = vand.u32 %v71, 4294901760
    %109 = vmatpush1.msra.mxu0 %v108
    %v110 = vand.u32 %v74, 4294901760
    %111 = vmatprep.subr.mxu0 %v110
    %v112 = vand.u32 %v73, 4294901760
    %113 = vmatpush1.msra.mxu0 %v112
    %v114 = vand.u32 %v76, 4294901760
    %115 = vmatprep.subr.mxu0 %v114
    %v116 = vand.u32 %v75, 4294901760
    %117 = vmatpush1.msra.mxu0 %v116
    %118 = vmatprep.subr.mxu0 0.0
    %119 = vmatpush1.msra.mxu0 0.0
    %120 = vmatprep.subr.mxu0 0.0
    %121 = vmatpush1.msra.mxu0 0.0
    %122 = vmatprep.subr.mxu0 0.0
    %123 = vmatpush1.msra.mxu0 0.0
    %124 = vmatprep.subr.mxu0 0.0
    %125 = vmatpush1.msra.mxu0 0.0
    %126 = vmatprep.subr.mxu0 0.0
    %127 = vmatpush1.msra.mxu0 0.0
    %128 = vmatprep.subr.mxu0 0.0
    %129 = vmatpush1.msra.mxu0 0.0
    %130 = vmatprep.subr.mxu0 0.0
    %131 = vmatpush1.msra.mxu0 0.0
    %132 = vmatprep.subr.mxu0 0.0
    %133 = vmatpush1.msra.mxu0 0.0
    %134 = vmatprep.subr.mxu0 0.0
    %135 = vmatpush1.msra.mxu0 0.0
    %136 = vmatprep.subr.mxu0 0.0
    %137 = vmatpush1.msra.mxu0 0.0
    %138 = vmatprep.subr.mxu0 0.0
    %139 = vmatpush1.msra.mxu0 0.0
    %140 = vmatprep.subr.mxu0 0.0
    %141 = vmatpush1.msra.mxu0 0.0
    %142 = vmatprep.subr.mxu0 0.0
    %143 = vmatpush1.msra.mxu0 0.0
    %144 = vmatprep.subr.mxu0 0.0
    %145 = vmatpush1.msra.mxu0 0.0
    %146 = vmatprep.subr.mxu0 0.0
    %147 = vmatpush1.msra.mxu0 0.0
    %148 = vmatprep.subr.mxu0 0.0
    %149 = vmatpush1.msra.mxu0 0.0
    %150 = vmatprep.subr.mxu0 0.0
    %151 = vmatpush1.msra.mxu0 0.0
    %152 = vmatprep.subr.mxu0 0.0
    %153 = vmatpush1.msra.mxu0 0.0
    %154 = vmatprep.subr.mxu0 0.0
    %155 = vmatpush1.msra.mxu0 0.0
    %156 = vmatprep.subr.mxu0 0.0
    %157 = vmatpush1.msra.mxu0 0.0
    %158 = vmatprep.subr.mxu0 0.0
    %159 = vmatpush1.msra.mxu0 0.0
    %160 = vmatprep.subr.mxu0 0.0
    %161 = vmatpush1.msra.mxu0 0.0
    %162 = vmatprep.subr.mxu0 0.0
    %163 = vmatpush1.msra.mxu0 0.0
    %164 = vmatprep.subr.mxu0 0.0
    %165 = vmatpush1.msra.mxu0 0.0
    %166 = vmatprep.subr.mxu0 0.0
    %167 = vmatpush1.msra.mxu0 0.0
    %168 = vmatprep.subr.mxu0 0.0
    %169 = vmatpush1.msra.mxu0 0.0
    %170 = vmatprep.subr.mxu0 0.0
    %171 = vmatpush1.msra.mxu0 0.0
    %172 = vmatprep.subr.mxu0 0.0
    %173 = vmatpush1.msra.mxu0 0.0
    %174 = vmatprep.mubr.f32.mxu0 0.0
    %v175 = vand.u32 %v79, 4294901760
    %v176 = vsub.f32 %v79, %v175
    %v177 = vand.u32 %v176, 4294901760
    %v178 = vsub.f32 %v176, %v177
    %v179 = vand.u32 %v178, 4294901760
    %180 = vmatmul.mubr.f32.gmra.mrb[0].mxu0 %v179
    %v181 = vpop.f32.mrb[0].mxu0
    %v182 = vadd.f32 0.0, %v181
    %v183 = vpop.f32.mrb[0].mxu0
    %v184 = vadd.f32 0.0, %v183
    %185 = vmatprep.mubr.f32.mxu0 0.0
    %v186 = vand.u32 %v82, 4294901760
    %v187 = vsub.f32 %v82, %v186
    %v188 = vand.u32 %v187, 4294901760
    %v189 = vsub.f32 %v187, %v188
    %v190 = vand.u32 %v189, 4294901760
    %191 = vmatmul.mubr.f32.gmra.mrb[0].mxu0 %v190
    %v192 = vpop.f32.mrb[0].mxu0
    %v193 = vadd.f32 0.0, %v192
    %v194 = vpop.f32.mrb[0].mxu0
    %v195 = vadd.f32 0.0, %v194
    %196 = vmatprep.mubr.f32.mxu0 0.0
    %v197 = vand.u32 %v85, 4294901760
    %v198 = vsub.f32 %v85, %v197
    %v199 = vand.u32 %v198, 4294901760
    %v200 = vsub.f32 %v198, %v199
    %v201 = vand.u32 %v200, 4294901760
    %202 = vmatmul.mubr.f32.gmra.mrb[0].mxu0 %v201
    %v203 = vpop.f32.mrb[0].mxu0
    %v204 = vadd.f32 0.0, %v203
    %v205 = vpop.f32.mrb[0].mxu0
    %v206 = vadd.f32 0.0, %v205
    %207 = vmatprep.mubr.f32.mxu0 0.0
    %v208 = vand.u32 %v88, 4294901760
    %v209 = vsub.f32 %v88, %v208
    %v210 = vand.u32 %v209, 4294901760
    %v211 = vsub.f32 %v209, %v210
    %v212 = vand.u32 %v211, 4294901760
    %213 = vmatmul.mubr.f32.gmra.mrb[0].mxu0 %v212
    %v214 = vpop.f32.mrb[0].mxu0
    %v215 = vadd.f32 0.0, %v214
    %v216 = vpop.f32.mrb[0].mxu0
    %v217 = vadd.f32 0.0, %v216
    %218 = vmatprep.mubr.f32.mxu0 0.0
    %v219 = vand.u32 %v91, 4294901760
    %v220 = vsub.f32 %v91, %v219
    %v221 = vand.u32 %v220, 4294901760
    %v222 = vsub.f32 %v220, %v221
    %v223 = vand.u32 %v222, 4294901760
    %224 = vmatmul.mubr.f32.gmra.mrb[0].mxu0 %v223
    %v225 = vpop.f32.mrb[0].mxu0
    %v226 = vadd.f32 0.0, %v225
    %v227 = vpop.f32.mrb[0].mxu0
    %v228 = vadd.f32 0.0, %v227
    %229 = vmatprep.mubr.f32.mxu0 0.0
    %v230 = vand.u32 %v94, 4294901760
    %v231 = vsub.f32 %v94, %v230
    %v232 = vand.u32 %v231, 4294901760
    %v233 = vsub.f32 %v231, %v232
    %v234 = vand.u32 %v233, 4294901760
    %235 = vmatmul.mubr.f32.gmra.mrb[0].mxu0 %v234
    %v236 = vpop.f32.mrb[0].mxu0
    %v237 = vadd.f32 0.0, %v236
    %v238 = vpop.f32.mrb[0].mxu0
    %v239 = vadd.f32 0.0, %v238
    %240 = vmatprep.mubr.f32.mxu0 0.0
    %v241 = vand.u32 %v97, 4294901760
    %v242 = vsub.f32 %v97, %v241
    %v243 = vand.u32 %v242, 4294901760
    %v244 = vsub.f32 %v242, %v243
    %v245 = vand.u32 %v244, 4294901760
    %246 = vmatmul.mubr.f32.gmra.mrb[0].mxu0 %v245
    %v247 = vpop.f32.mrb[0].mxu0
    %v248 = vadd.f32 0.0, %v247
    %v249 = vpop.f32.mrb[0].mxu0
    %v250 = vadd.f32 0.0, %v249
    %251 = vmatprep.mubr.f32.mxu0 0.0
    %v252 = vand.u32 %v100, 4294901760
    %v253 = vsub.f32 %v100, %v252
    %v254 = vand.u32 %v253, 4294901760
    %v255 = vsub.f32 %v253, %v254
    %v256 = vand.u32 %v255, 4294901760
    %257 = vmatmul.mubr.f32.gmra.mrb[0].mxu0 %v256
    %v258 = vpop.f32.mrb[0].mxu0
    %v259 = vadd.f32 0.0, %v258
    %v260 = vpop.f32.mrb[0].mxu0
    %v261 = vadd.f32 0.0, %v260
    %262 = vdwg.mxu0
    %v263 = vand.u32 %v70, 4294901760
    %v264 = vsub.f32 %v70, %v263
    %v265 = vand.u32 %v264, 4294901760
    %v266 = vsub.f32 %v264, %v265
    %v267 = vand.u32 %v266, 4294901760
    %268 = vmatprep.subr.mxu0 %v267
    %v269 = vand.u32 %v69, 4294901760
    %v270 = vsub.f32 %v69, %v269
    %v271 = vand.u32 %v270, 4294901760
    %v272 = vsub.f32 %v270, %v271
    %v273 = vand.u32 %v272, 4294901760
    %274 = vmatpush1.msra.mxu0 %v273
    %v275 = vand.u32 %v72, 4294901760
    %v276 = vsub.f32 %v72, %v275
    %v277 = vand.u32 %v276, 4294901760
    %v278 = vsub.f32 %v276, %v277
    %v279 = vand.u32 %v278, 4294901760
    %280 = vmatprep.subr.mxu0 %v279
    %v281 = vand.u32 %v71, 4294901760
    %v282 = vsub.f32 %v71, %v281
    %v283 = vand.u32 %v282, 4294901760
    %v284 = vsub.f32 %v282, %v283
    %v285 = vand.u32 %v284, 4294901760
    %286 = vmatpush1.msra.mxu0 %v285
    %v287 = vand.u32 %v74, 4294901760
    %v288 = vsub.f32 %v74, %v287
    %v289 = vand.u32 %v288, 4294901760
    %v290 = vsub.f32 %v288, %v289
    %v291 = vand.u32 %v290, 4294901760
    %292 = vmatprep.subr.mxu0 %v291
    %v293 = vand.u32 %v73, 4294901760
    %v294 = vsub.f32 %v73, %v293
    %v295 = vand.u32 %v294, 4294901760
    %v296 = vsub.f32 %v294, %v295
    %v297 = vand.u32 %v296, 4294901760
    %298 = vmatpush1.msra.mxu0 %v297
    %v299 = vand.u32 %v76, 4294901760
    %v300 = vsub.f32 %v76, %v299
    %v301 = vand.u32 %v300, 4294901760
    %v302 = vsub.f32 %v300, %v301
    %v303 = vand.u32 %v302, 4294901760
    %304 = vmatprep.subr.mxu0 %v303
    %v305 = vand.u32 %v75, 4294901760
    %v306 = vsub.f32 %v75, %v305
    %v307 = vand.u32 %v306, 4294901760
    %v308 = vsub.f32 %v306, %v307
    %v309 = vand.u32 %v308, 4294901760
    %310 = vmatpush1.msra.mxu0 %v309
    %311 = vmatprep.subr.mxu0 0.0
    %312 = vmatpush1.msra.mxu0 0.0
    %313 = vmatprep.subr.mxu0 0.0
    %314 = vmatpush1.msra.mxu0 0.0
    %315 = vmatprep.subr.mxu0 0.0
    %316 = vmatpush1.msra.mxu0 0.0
    %317 = vmatprep.subr.mxu0 0.0
    %318 = vmatpush1.msra.mxu0 0.0
    %319 = vmatprep.subr.mxu0 0.0
    %320 = vmatpush1.msra.mxu0 0.0
    %321 = vmatprep.subr.mxu0 0.0
    %322 = vmatpush1.msra.mxu0 0.0
    %323 = vmatprep.subr.mxu0 0.0
    %324 = vmatpush1.msra.mxu0 0.0
    %325 = vmatprep.subr.mxu0 0.0
    %326 = vmatpush1.msra.mxu0 0.0
    %327 = vmatprep.subr.mxu0 0.0
    %328 = vmatpush1.msra.mxu0 0.0
    %329 = vmatprep.subr.mxu0 0.0
    %330 = vmatpush1.msra.mxu0 0.0
    %331 = vmatprep.subr.mxu0 0.0
    %332 = vmatpush1.msra.mxu0 0.0
    %333 = vmatprep.subr.mxu0 0.0
    %334 = vmatpush1.msra.mxu0 0.0
    %335 = vmatprep.subr.mxu0 0.0
    %336 = vmatpush1.msra.mxu0 0.0
    %337 = vmatprep.subr.mxu0 0.0
    %338 = vmatpush1.msra.mxu0 0.0
    %339 = vmatprep.subr.mxu0 0.0
    %340 = vmatpush1.msra.mxu0 0.0
    %341 = vmatprep.subr.mxu0 0.0
    %342 = vmatpush1.msra.mxu0 0.0
    %343 = vmatprep.subr.mxu0 0.0
    %344 = vmatpush1.msra.mxu0 0.0
    %345 = vmatprep.subr.mxu0 0.0
    %346 = vmatpush1.msra.mxu0 0.0
    %347 = vmatprep.subr.mxu0 0.0
    %348 = vmatpush1.msra.mxu0 0.0
    %349 = vmatprep.subr.mxu0 0.0
    %350 = vmatpush1.msra.mxu0 0.0
    %351 = vmatprep.subr.mxu0 0.0
    %352 = vmatpush1.msra.mxu0 0.0
    %353 = vmatprep.subr.mxu0 0.0
    %354 = vmatpush1.msra.mxu0 0.0
    %355 = vmatprep.subr.mxu0 0.0
    %356 = vmatpush1.msra.mxu0 0.0
    %357 = vmatprep.subr.mxu0 0.0
    %358 = vmatpush1.msra.mxu0 0.0
    %359 = vmatprep.subr.mxu0 0.0
    %360 = vmatpush1.msra.mxu0 0.0
    %361 = vmatprep.subr.mxu0 0.0
    %362 = vmatpush1.msra.mxu0 0.0
    %363 = vmatprep.subr.mxu0 0.0
    %364 = vmatpush1.msra.mxu0 0.0
    %365 = vmatprep.subr.mxu0 0.0
    %366 = vmatpush1.msra.mxu0 0.0
    %367 = vmatprep.mubr.f32.mxu0 0.0
    %v368 = vand.u32 %v79, 4294901760
    %369 = vmatmul.mubr.f32.gmra.mrb[0].mxu0 %v368
    %v370 = vpop.f32.mrb[0].mxu0
    %v371 = vadd.f32 %v182, %v370
    %v372 = vpop.f32.mrb[0].mxu0
    %v373 = vadd.f32 %v184, %v372
    %374 = vmatprep.mubr.f32.mxu0 0.0
    %v375 = vand.u32 %v82, 4294901760
    %376 = vmatmul.mubr.f32.gmra.mrb[0].mxu0 %v375
    %v377 = vpop.f32.mrb[0].mxu0
    %v378 = vadd.f32 %v193, %v377
    %v379 = vpop.f32.mrb[0].mxu0
    %v380 = vadd.f32 %v195, %v379
    %381 = vmatprep.mubr.f32.mxu0 0.0
    %v382 = vand.u32 %v85, 4294901760
    %383 = vmatmul.mubr.f32.gmra.mrb[0].mxu0 %v382
    %v384 = vpop.f32.mrb[0].mxu0
    %v385 = vadd.f32 %v204, %v384
    %v386 = vpop.f32.mrb[0].mxu0
    %v387 = vadd.f32 %v206, %v386
    %388 = vmatprep.mubr.f32.mxu0 0.0
    %v389 = vand.u32 %v88, 4294901760
    %390 = vmatmul.mubr.f32.gmra.mrb[0].mxu0 %v389
    %v391 = vpop.f32.mrb[0].mxu0
    %v392 = vadd.f32 %v215, %v391
    %v393 = vpop.f32.mrb[0].mxu0
    %v394 = vadd.f32 %v217, %v393
    %395 = vmatprep.mubr.f32.mxu0 0.0
    %v396 = vand.u32 %v91, 4294901760
    %397 = vmatmul.mubr.f32.gmra.mrb[0].mxu0 %v396
    %v398 = vpop.f32.mrb[0].mxu0
    %v399 = vadd.f32 %v226, %v398
    %v400 = vpop.f32.mrb[0].mxu0
    %v401 = vadd.f32 %v228, %v400
    %402 = vmatprep.mubr.f32.mxu0 0.0
    %v403 = vand.u32 %v94, 4294901760
    %404 = vmatmul.mubr.f32.gmra.mrb[0].mxu0 %v403
    %v405 = vpop.f32.mrb[0].mxu0
    %v406 = vadd.f32 %v237, %v405
    %v407 = vpop.f32.mrb[0].mxu0
    %v408 = vadd.f32 %v239, %v407
    %409 = vmatprep.mubr.f32.mxu0 0.0
    %v410 = vand.u32 %v97, 4294901760
    %411 = vmatmul.mubr.f32.gmra.mrb[0].mxu0 %v410
    %v412 = vpop.f32.mrb[0].mxu0
    %v413 = vadd.f32 %v248, %v412
    %v414 = vpop.f32.mrb[0].mxu0
    %v415 = vadd.f32 %v250, %v414
    %416 = vmatprep.mubr.f32.mxu0 0.0
    %v417 = vand.u32 %v100, 4294901760
    %418 = vmatmul.mubr.f32.gmra.mrb[0].mxu0 %v417
    %v419 = vpop.f32.mrb[0].mxu0
    %v420 = vadd.f32 %v259, %v419
    %v421 = vpop.f32.mrb[0].mxu0
    %v422 = vadd.f32 %v261, %v421
    %423 = vdwg.mxu0
    %v424 = vand.u32 %v70, 4294901760
    %v425 = vsub.f32 %v70, %v424
    %426 = vmatprep.subr.mxu0 %v425
    %v427 = vand.u32 %v69, 4294901760
    %v428 = vsub.f32 %v69, %v427
    %429 = vmatpush1.msra.mxu0 %v428
    %v430 = vand.u32 %v72, 4294901760
    %v431 = vsub.f32 %v72, %v430
    %432 = vmatprep.subr.mxu0 %v431
    %v433 = vand.u32 %v71, 4294901760
    %v434 = vsub.f32 %v71, %v433
    %435 = vmatpush1.msra.mxu0 %v434
    %v436 = vand.u32 %v74, 4294901760
    %v437 = vsub.f32 %v74, %v436
    %438 = vmatprep.subr.mxu0 %v437
    %v439 = vand.u32 %v73, 4294901760
    %v440 = vsub.f32 %v73, %v439
    %441 = vmatpush1.msra.mxu0 %v440
    %v442 = vand.u32 %v76, 4294901760
    %v443 = vsub.f32 %v76, %v442
    %444 = vmatprep.subr.mxu0 %v443
    %v445 = vand.u32 %v75, 4294901760
    %v446 = vsub.f32 %v75, %v445
    %447 = vmatpush1.msra.mxu0 %v446
    %448 = vmatprep.subr.mxu0 0.0
    %449 = vmatpush1.msra.mxu0 0.0
    %450 = vmatprep.subr.mxu0 0.0
    %451 = vmatpush1.msra.mxu0 0.0
    %452 = vmatprep.subr.mxu0 0.0
    %453 = vmatpush1.msra.mxu0 0.0
    %454 = vmatprep.subr.mxu0 0.0
    %455 = vmatpush1.msra.mxu0 0.0
    %456 = vmatprep.subr.mxu0 0.0
    %457 = vmatpush1.msra.mxu0 0.0
    %458 = vmatprep.subr.mxu0 0.0
    %459 = vmatpush1.msra.mxu0 0.0
    %460 = vmatprep.subr.mxu0 0.0
    %461 = vmatpush1.msra.mxu0 0.0
    %462 = vmatprep.subr.mxu0 0.0
    %463 = vmatpush1.msra.mxu0 0.0
    %464 = vmatprep.subr.mxu0 0.0
    %465 = vmatpush1.msra.mxu0 0.0
    %466 = vmatprep.subr.mxu0 0.0
    %467 = vmatpush1.msra.mxu0 0.0
    %468 = vmatprep.subr.mxu0 0.0
    %469 = vmatpush1.msra.mxu0 0.0
    %470 = vmatprep.subr.mxu0 0.0
    %471 = vmatpush1.msra.mxu0 0.0
    %472 = vmatprep.subr.mxu0 0.0
    %473 = vmatpush1.msra.mxu0 0.0
    %474 = vmatprep.subr.mxu0 0.0
    %475 = vmatpush1.msra.mxu0 0.0
    %476 = vmatprep.subr.mxu0 0.0
    %477 = vmatpush1.msra.mxu0 0.0
    %478 = vmatprep.subr.mxu0 0.0
    %479 = vmatpush1.msra.mxu0 0.0
    %480 = vmatprep.subr.mxu0 0.0
    %481 = vmatpush1.msra.mxu0 0.0
    %482 = vmatprep.subr.mxu0 0.0
    %483 = vmatpush1.msra.mxu0 0.0
    %484 = vmatprep.subr.mxu0 0.0
    %485 = vmatpush1.msra.mxu0 0.0
    %486 = vmatprep.subr.mxu0 0.0
    %487 = vmatpush1.msra.mxu0 0.0
    %488 = vmatprep.subr.mxu0 0.0
    %489 = vmatpush1.msra.mxu0 0.0
    %490 = vmatprep.subr.mxu0 0.0
    %491 = vmatpush1.msra.mxu0 0.0
    %492 = vmatprep.subr.mxu0 0.0
    %493 = vmatpush1.msra.mxu0 0.0
    %494 = vmatprep.subr.mxu0 0.0
    %495 = vmatpush1.msra.mxu0 0.0
    %496 = vmatprep.subr.mxu0 0.0
    %497 = vmatpush1.msra.mxu0 0.0
    %498 = vmatprep.subr.mxu0 0.0
    %499 = vmatpush1.msra.mxu0 0.0
    %500 = vmatprep.subr.mxu0 0.0
    %501 = vmatpush1.msra.mxu0 0.0
    %502 = vmatprep.subr.mxu0 0.0
    %503 = vmatpush1.msra.mxu0 0.0
    %504 = vmatprep.mubr.f32.mxu0 0.0
    %v505 = vand.u32 %v79, 4294901760
    %v506 = vsub.f32 %v79, %v505
    %507 = vmatmul.mubr.f32.gmra.mrb[0].mxu0 %v506
    %v508 = vpop.f32.mrb[0].mxu0
    %v509 = vadd.f32 %v371, %v508
    %v510 = vpop.f32.mrb[0].mxu0
    %v511 = vadd.f32 %v373, %v510
    %512 = vmatprep.mubr.f32.mxu0 0.0
    %v513 = vand.u32 %v82, 4294901760
    %v514 = vsub.f32 %v82, %v513
    %515 = vmatmul.mubr.f32.gmra.mrb[0].mxu0 %v514
    %v516 = vpop.f32.mrb[0].mxu0
    %v517 = vadd.f32 %v378, %v516
    %v518 = vpop.f32.mrb[0].mxu0
    %v519 = vadd.f32 %v380, %v518
    %520 = vmatprep.mubr.f32.mxu0 0.0
    %v521 = vand.u32 %v85, 4294901760
    %v522 = vsub.f32 %v85, %v521
    %523 = vmatmul.mubr.f32.gmra.mrb[0].mxu0 %v522
    %v524 = vpop.f32.mrb[0].mxu0
    %v525 = vadd.f32 %v385, %v524
    %v526 = vpop.f32.mrb[0].mxu0
    %v527 = vadd.f32 %v387, %v526
    %528 = vmatprep.mubr.f32.mxu0 0.0
    %v529 = vand.u32 %v88, 4294901760
    %v530 = vsub.f32 %v88, %v529
    %531 = vmatmul.mubr.f32.gmra.mrb[0].mxu0 %v530
    %v532 = vpop.f32.mrb[0].mxu0
    %v533 = vadd.f32 %v392, %v532
    %v534 = vpop.f32.mrb[0].mxu0
    %v535 = vadd.f32 %v394, %v534
    %536 = vmatprep.mubr.f32.mxu0 0.0
    %v537 = vand.u32 %v91, 4294901760
    %v538 = vsub.f32 %v91, %v537
    %539 = vmatmul.mubr.f32.gmra.mrb[0].mxu0 %v538
    %v540 = vpop.f32.mrb[0].mxu0
    %v541 = vadd.f32 %v399, %v540
    %v542 = vpop.f32.mrb[0].mxu0
    %v543 = vadd.f32 %v401, %v542
    %544 = vmatprep.mubr.f32.mxu0 0.0
    %v545 = vand.u32 %v94, 4294901760
    %v546 = vsub.f32 %v94, %v545
    %547 = vmatmul.mubr.f32.gmra.mrb[0].mxu0 %v546
    %v548 = vpop.f32.mrb[0].mxu0
    %v549 = vadd.f32 %v406, %v548
    %v550 = vpop.f32.mrb[0].mxu0
    %v551 = vadd.f32 %v408, %v550
    %552 = vmatprep.mubr.f32.mxu0 0.0
    %v553 = vand.u32 %v97, 4294901760
    %v554 = vsub.f32 %v97, %v553
    %555 = vmatmul.mubr.f32.gmra.mrb[0].mxu0 %v554
    %v556 = vpop.f32.mrb[0].mxu0
    %v557 = vadd.f32 %v413, %v556
    %v558 = vpop.f32.mrb[0].mxu0
    %v559 = vadd.f32 %v415, %v558
    %560 = vmatprep.mubr.f32.mxu0 0.0
    %v561 = vand.u32 %v100, 4294901760
    %v562 = vsub.f32 %v100, %v561
    %563 = vmatmul.mubr.f32.gmra.mrb[0].mxu0 %v562
    %v564 = vpop.f32.mrb[0].mxu0
    %v565 = vadd.f32 %v420, %v564
    %v566 = vpop.f32.mrb[0].mxu0
    %v567 = vadd.f32 %v422, %v566
    %568 = vdwg.mxu0
    %v569 = vand.u32 %v70, 4294901760
    %570 = vmatprep.subr.mxu0 %v569
    %v571 = vand.u32 %v69, 4294901760
    %572 = vmatpush1.msra.mxu0 %v571
    %v573 = vand.u32 %v72, 4294901760
    %574 = vmatprep.subr.mxu0 %v573
    %v575 = vand.u32 %v71, 4294901760
    %576 = vmatpush1.msra.mxu0 %v575
    %v577 = vand.u32 %v74, 4294901760
    %578 = vmatprep.subr.mxu0 %v577
    %v579 = vand.u32 %v73, 4294901760
    %580 = vmatpush1.msra.mxu0 %v579
    %v581 = vand.u32 %v76, 4294901760
    %582 = vmatprep.subr.mxu0 %v581
    %v583 = vand.u32 %v75, 4294901760
    %584 = vmatpush1.msra.mxu0 %v583
    %585 = vmatprep.subr.mxu0 0.0
    %586 = vmatpush1.msra.mxu0 0.0
    %587 = vmatprep.subr.mxu0 0.0
    %588 = vmatpush1.msra.mxu0 0.0
    %589 = vmatprep.subr.mxu0 0.0
    %590 = vmatpush1.msra.mxu0 0.0
    %591 = vmatprep.subr.mxu0 0.0
    %592 = vmatpush1.msra.mxu0 0.0
    %593 = vmatprep.subr.mxu0 0.0
    %594 = vmatpush1.msra.mxu0 0.0
    %595 = vmatprep.subr.mxu0 0.0
    %596 = vmatpush1.msra.mxu0 0.0
    %597 = vmatprep.subr.mxu0 0.0
    %598 = vmatpush1.msra.mxu0 0.0
    %599 = vmatprep.subr.mxu0 0.0
    %600 = vmatpush1.msra.mxu0 0.0
    %601 = vmatprep.subr.mxu0 0.0
    %602 = vmatpush1.msra.mxu0 0.0
    %603 = vmatprep.subr.mxu0 0.0
    %604 = vmatpush1.msra.mxu0 0.0
    %605 = vmatprep.subr.mxu0 0.0
    %606 = vmatpush1.msra.mxu0 0.0
    %607 = vmatprep.subr.mxu0 0.0
    %608 = vmatpush1.msra.mxu0 0.0
    %609 = vmatprep.subr.mxu0 0.0
    %610 = vmatpush1.msra.mxu0 0.0
    %611 = vmatprep.subr.mxu0 0.0
    %612 = vmatpush1.msra.mxu0 0.0
    %613 = vmatprep.subr.mxu0 0.0
    %614 = vmatpush1.msra.mxu0 0.0
    %615 = vmatprep.subr.mxu0 0.0
    %616 = vmatpush1.msra.mxu0 0.0
    %617 = vmatprep.subr.mxu0 0.0
    %618 = vmatpush1.msra.mxu0 0.0
    %619 = vmatprep.subr.mxu0 0.0
    %620 = vmatpush1.msra.mxu0 0.0
    %621 = vmatprep.subr.mxu0 0.0
    %622 = vmatpush1.msra.mxu0 0.0
    %623 = vmatprep.subr.mxu0 0.0
    %624 = vmatpush1.msra.mxu0 0.0
    %625 = vmatprep.subr.mxu0 0.0
    %626 = vmatpush1.msra.mxu0 0.0
    %627 = vmatprep.subr.mxu0 0.0
    %628 = vmatpush1.msra.mxu0 0.0
    %629 = vmatprep.subr.mxu0 0.0
    %630 = vmatpush1.msra.mxu0 0.0
    %631 = vmatprep.subr.mxu0 0.0
    %632 = vmatpush1.msra.mxu0 0.0
    %633 = vmatprep.subr.mxu0 0.0
    %634 = vmatpush1.msra.mxu0 0.0
    %635 = vmatprep.subr.mxu0 0.0
    %636 = vmatpush1.msra.mxu0 0.0
    %637 = vmatprep.subr.mxu0 0.0
    %638 = vmatpush1.msra.mxu0 0.0
    %639 = vmatprep.subr.mxu0 0.0
    %640 = vmatpush1.msra.mxu0 0.0
    %641 = vmatprep.mubr.f32.mxu0 0.0
    %v642 = vand.u32 %v79, 4294901760
    %v643 = vsub.f32 %v79, %v642
    %v644 = vand.u32 %v643, 4294901760
    %645 = vmatmul.mubr.f32.gmra.mrb[0].mxu0 %v644
    %v646 = vpop.f32.mrb[0].mxu0
    %v647 = vadd.f32 %v509, %v646
    %v648 = vpop.f32.mrb[0].mxu0
    %v649 = vadd.f32 %v511, %v648
    %650 = vmatprep.mubr.f32.mxu0 0.0
    %v651 = vand.u32 %v82, 4294901760
    %v652 = vsub.f32 %v82, %v651
    %v653 = vand.u32 %v652, 4294901760
    %654 = vmatmul.mubr.f32.gmra.mrb[0].mxu0 %v653
    %v655 = vpop.f32.mrb[0].mxu0
    %v656 = vadd.f32 %v517, %v655
    %v657 = vpop.f32.mrb[0].mxu0
    %v658 = vadd.f32 %v519, %v657
    %659 = vmatprep.mubr.f32.mxu0 0.0
    %v660 = vand.u32 %v85, 4294901760
    %v661 = vsub.f32 %v85, %v660
    %v662 = vand.u32 %v661, 4294901760
    %663 = vmatmul.mubr.f32.gmra.mrb[0].mxu0 %v662
    %v664 = vpop.f32.mrb[0].mxu0
    %v665 = vadd.f32 %v525, %v664
    %v666 = vpop.f32.mrb[0].mxu0
    %v667 = vadd.f32 %v527, %v666
    %668 = vmatprep.mubr.f32.mxu0 0.0
    %v669 = vand.u32 %v88, 4294901760
    %v670 = vsub.f32 %v88, %v669
    %v671 = vand.u32 %v670, 4294901760
    %672 = vmatmul.mubr.f32.gmra.mrb[0].mxu0 %v671
    %v673 = vpop.f32.mrb[0].mxu0
    %v674 = vadd.f32 %v533, %v673
    %v675 = vpop.f32.mrb[0].mxu0
    %v676 = vadd.f32 %v535, %v675
    %677 = vmatprep.mubr.f32.mxu0 0.0
    %v678 = vand.u32 %v91, 4294901760
    %v679 = vsub.f32 %v91, %v678
    %v680 = vand.u32 %v679, 4294901760
    %681 = vmatmul.mubr.f32.gmra.mrb[0].mxu0 %v680
    %v682 = vpop.f32.mrb[0].mxu0
    %v683 = vadd.f32 %v541, %v682
    %v684 = vpop.f32.mrb[0].mxu0
    %v685 = vadd.f32 %v543, %v684
    %686 = vmatprep.mubr.f32.mxu0 0.0
    %v687 = vand.u32 %v94, 4294901760
    %v688 = vsub.f32 %v94, %v687
    %v689 = vand.u32 %v688, 4294901760
    %690 = vmatmul.mubr.f32.gmra.mrb[0].mxu0 %v689
    %v691 = vpop.f32.mrb[0].mxu0
    %v692 = vadd.f32 %v549, %v691
    %v693 = vpop.f32.mrb[0].mxu0
    %v694 = vadd.f32 %v551, %v693
    %695 = vmatprep.mubr.f32.mxu0 0.0
    %v696 = vand.u32 %v97, 4294901760
    %v697 = vsub.f32 %v97, %v696
    %v698 = vand.u32 %v697, 4294901760
    %699 = vmatmul.mubr.f32.gmra.mrb[0].mxu0 %v698
    %v700 = vpop.f32.mrb[0].mxu0
    %v701 = vadd.f32 %v557, %v700
    %v702 = vpop.f32.mrb[0].mxu0
    %v703 = vadd.f32 %v559, %v702
    %704 = vmatprep.mubr.f32.mxu0 0.0
    %v705 = vand.u32 %v100, 4294901760
    %v706 = vsub.f32 %v100, %v705
    %v707 = vand.u32 %v706, 4294901760
    %708 = vmatmul.mubr.f32.gmra.mrb[0].mxu0 %v707
    %v709 = vpop.f32.mrb[0].mxu0
    %v710 = vadd.f32 %v565, %v709
    %v711 = vpop.f32.mrb[0].mxu0
    %v712 = vadd.f32 %v567, %v711
    %713 = vdwg.mxu0
    %v714 = vand.u32 %v70, 4294901760
    %v715 = vsub.f32 %v70, %v714
    %v716 = vand.u32 %v715, 4294901760
    %717 = vmatprep.subr.mxu0 %v716
    %v718 = vand.u32 %v69, 4294901760
    %v719 = vsub.f32 %v69, %v718
    %v720 = vand.u32 %v719, 4294901760
    %721 = vmatpush1.msra.mxu0 %v720
    %v722 = vand.u32 %v72, 4294901760
    %v723 = vsub.f32 %v72, %v722
    %v724 = vand.u32 %v723, 4294901760
    %725 = vmatprep.subr.mxu0 %v724
    %v726 = vand.u32 %v71, 4294901760
    %v727 = vsub.f32 %v71, %v726
    %v728 = vand.u32 %v727, 4294901760
    %729 = vmatpush1.msra.mxu0 %v728
    %v730 = vand.u32 %v74, 4294901760
    %v731 = vsub.f32 %v74, %v730
    %v732 = vand.u32 %v731, 4294901760
    %733 = vmatprep.subr.mxu0 %v732
    %v734 = vand.u32 %v73, 4294901760
    %v735 = vsub.f32 %v73, %v734
    %v736 = vand.u32 %v735, 4294901760
    %737 = vmatpush1.msra.mxu0 %v736
    %v738 = vand.u32 %v76, 4294901760
    %v739 = vsub.f32 %v76, %v738
    %v740 = vand.u32 %v739, 4294901760
    %741 = vmatprep.subr.mxu0 %v740
    %v742 = vand.u32 %v75, 4294901760
    %v743 = vsub.f32 %v75, %v742
    %v744 = vand.u32 %v743, 4294901760
    %745 = vmatpush1.msra.mxu0 %v744
    %746 = vmatprep.subr.mxu0 0.0
    %747 = vmatpush1.msra.mxu0 0.0
    %748 = vmatprep.subr.mxu0 0.0
    %749 = vmatpush1.msra.mxu0 0.0
    %750 = vmatprep.subr.mxu0 0.0
    %751 = vmatpush1.msra.mxu0 0.0
    %752 = vmatprep.subr.mxu0 0.0
    %753 = vmatpush1.msra.mxu0 0.0
    %754 = vmatprep.subr.mxu0 0.0
    %755 = vmatpush1.msra.mxu0 0.0
    %756 = vmatprep.subr.mxu0 0.0
    %757 = vmatpush1.msra.mxu0 0.0
    %758 = vmatprep.subr.mxu0 0.0
    %759 = vmatpush1.msra.mxu0 0.0
    %760 = vmatprep.subr.mxu0 0.0
    %761 = vmatpush1.msra.mxu0 0.0
    %762 = vmatprep.subr.mxu0 0.0
    %763 = vmatpush1.msra.mxu0 0.0
    %764 = vmatprep.subr.mxu0 0.0
    %765 = vmatpush1.msra.mxu0 0.0
    %766 = vmatprep.subr.mxu0 0.0
    %767 = vmatpush1.msra.mxu0 0.0
    %768 = vmatprep.subr.mxu0 0.0
    %769 = vmatpush1.msra.mxu0 0.0
    %770 = vmatprep.subr.mxu0 0.0
    %771 = vmatpush1.msra.mxu0 0.0
    %772 = vmatprep.subr.mxu0 0.0
    %773 = vmatpush1.msra.mxu0 0.0
    %774 = vmatprep.subr.mxu0 0.0
    %775 = vmatpush1.msra.mxu0 0.0
    %776 = vmatprep.subr.mxu0 0.0
    %777 = vmatpush1.msra.mxu0 0.0
    %778 = vmatprep.subr.mxu0 0.0
    %779 = vmatpush1.msra.mxu0 0.0
    %780 = vmatprep.subr.mxu0 0.0
    %781 = vmatpush1.msra.mxu0 0.0
    %782 = vmatprep.subr.mxu0 0.0
    %783 = vmatpush1.msra.mxu0 0.0
    %784 = vmatprep.subr.mxu0 0.0
    %785 = vmatpush1.msra.mxu0 0.0
    %786 = vmatprep.subr.mxu0 0.0
    %787 = vmatpush1.msra.mxu0 0.0
    %788 = vmatprep.subr.mxu0 0.0
    %789 = vmatpush1.msra.mxu0 0.0
    %790 = vmatprep.subr.mxu0 0.0
    %791 = vmatpush1.msra.mxu0 0.0
    %792 = vmatprep.subr.mxu0 0.0
    %793 = vmatpush1.msra.mxu0 0.0
    %794 = vmatprep.subr.mxu0 0.0
    %795 = vmatpush1.msra.mxu0 0.0
    %796 = vmatprep.subr.mxu0 0.0
    %797 = vmatpush1.msra.mxu0 0.0
    %798 = vmatprep.subr.mxu0 0.0
    %799 = vmatpush1.msra.mxu0 0.0
    %800 = vmatprep.subr.mxu0 0.0
    %801 = vmatpush1.msra.mxu0 0.0
    %802 = vmatprep.mubr.f32.mxu0 0.0
    %v803 = vand.u32 %v79, 4294901760
    %804 = vmatmul.mubr.f32.gmra.mrb[0].mxu0 %v803
    %v805 = vpop.f32.mrb[0].mxu0
    %v806 = vadd.f32 %v647, %v805
    %v807 = vpop.f32.mrb[0].mxu0
    %v808 = vadd.f32 %v649, %v807
    %809 = vmatprep.mubr.f32.mxu0 0.0
    %v810 = vand.u32 %v82, 4294901760
    %811 = vmatmul.mubr.f32.gmra.mrb[0].mxu0 %v810
    %v812 = vpop.f32.mrb[0].mxu0
    %v813 = vadd.f32 %v656, %v812
    %v814 = vpop.f32.mrb[0].mxu0
    %v815 = vadd.f32 %v658, %v814
    %816 = vmatprep.mubr.f32.mxu0 0.0
    %v817 = vand.u32 %v85, 4294901760
    %818 = vmatmul.mubr.f32.gmra.mrb[0].mxu0 %v817
    %v819 = vpop.f32.mrb[0].mxu0
    %v820 = vadd.f32 %v665, %v819
    %v821 = vpop.f32.mrb[0].mxu0
    %v822 = vadd.f32 %v667, %v821
    %823 = vmatprep.mubr.f32.mxu0 0.0
    %v824 = vand.u32 %v88, 4294901760
    %825 = vmatmul.mubr.f32.gmra.mrb[0].mxu0 %v824
    %v826 = vpop.f32.mrb[0].mxu0
    %v827 = vadd.f32 %v674, %v826
    %v828 = vpop.f32.mrb[0].mxu0
    %v829 = vadd.f32 %v676, %v828
    %830 = vmatprep.mubr.f32.mxu0 0.0
    %v831 = vand.u32 %v91, 4294901760
    %832 = vmatmul.mubr.f32.gmra.mrb[0].mxu0 %v831
    %v833 = vpop.f32.mrb[0].mxu0
    %v834 = vadd.f32 %v683, %v833
    %v835 = vpop.f32.mrb[0].mxu0
    %v836 = vadd.f32 %v685, %v835
    %837 = vmatprep.mubr.f32.mxu0 0.0
    %v838 = vand.u32 %v94, 4294901760
    %839 = vmatmul.mubr.f32.gmra.mrb[0].mxu0 %v838
    %v840 = vpop.f32.mrb[0].mxu0
    %v841 = vadd.f32 %v692, %v840
    %v842 = vpop.f32.mrb[0].mxu0
    %v843 = vadd.f32 %v694, %v842
    %844 = vmatprep.mubr.f32.mxu0 0.0
    %v845 = vand.u32 %v97, 4294901760
    %846 = vmatmul.mubr.f32.gmra.mrb[0].mxu0 %v845
    %v847 = vpop.f32.mrb[0].mxu0
    %v848 = vadd.f32 %v701, %v847
    %v849 = vpop.f32.mrb[0].mxu0
    %v850 = vadd.f32 %v703, %v849
    %851 = vmatprep.mubr.f32.mxu0 0.0
    %v852 = vand.u32 %v100, 4294901760
    %853 = vmatmul.mubr.f32.gmra.mrb[0].mxu0 %v852
    %v854 = vpop.f32.mrb[0].mxu0
    %v855 = vadd.f32 %v710, %v854
    %v856 = vpop.f32.mrb[0].mxu0
    %v857 = vadd.f32 %v712, %v856
    %858 = vdwg.mxu0
    %v859 = vand.u32 %v70, 4294901760
    %860 = vmatprep.subr.mxu0 %v859
    %v861 = vand.u32 %v69, 4294901760
    %862 = vmatpush1.msra.mxu0 %v861
    %v863 = vand.u32 %v72, 4294901760
    %864 = vmatprep.subr.mxu0 %v863
    %v865 = vand.u32 %v71, 4294901760
    %866 = vmatpush1.msra.mxu0 %v865
    %v867 = vand.u32 %v74, 4294901760
    %868 = vmatprep.subr.mxu0 %v867
    %v869 = vand.u32 %v73, 4294901760
    %870 = vmatpush1.msra.mxu0 %v869
    %v871 = vand.u32 %v76, 4294901760
    %872 = vmatprep.subr.mxu0 %v871
    %v873 = vand.u32 %v75, 4294901760
    %874 = vmatpush1.msra.mxu0 %v873
    %875 = vmatprep.subr.mxu0 0.0
    %876 = vmatpush1.msra.mxu0 0.0
    %877 = vmatprep.subr.mxu0 0.0
    %878 = vmatpush1.msra.mxu0 0.0
    %879 = vmatprep.subr.mxu0 0.0
    %880 = vmatpush1.msra.mxu0 0.0
    %881 = vmatprep.subr.mxu0 0.0
    %882 = vmatpush1.msra.mxu0 0.0
    %883 = vmatprep.subr.mxu0 0.0
    %884 = vmatpush1.msra.mxu0 0.0
    %885 = vmatprep.subr.mxu0 0.0
    %886 = vmatpush1.msra.mxu0 0.0
    %887 = vmatprep.subr.mxu0 0.0
    %888 = vmatpush1.msra.mxu0 0.0
    %889 = vmatprep.subr.mxu0 0.0
    %890 = vmatpush1.msra.mxu0 0.0
    %891 = vmatprep.subr.mxu0 0.0
    %892 = vmatpush1.msra.mxu0 0.0
    %893 = vmatprep.subr.mxu0 0.0
    %894 = vmatpush1.msra.mxu0 0.0
    %895 = vmatprep.subr.mxu0 0.0
    %896 = vmatpush1.msra.mxu0 0.0
    %897 = vmatprep.subr.mxu0 0.0
    %898 = vmatpush1.msra.mxu0 0.0
    %899 = vmatprep.subr.mxu0 0.0
    %900 = vmatpush1.msra.mxu0 0.0
    %901 = vmatprep.subr.mxu0 0.0
    %902 = vmatpush1.msra.mxu0 0.0
    %903 = vmatprep.subr.mxu0 0.0
    %904 = vmatpush1.msra.mxu0 0.0
    %905 = vmatprep.subr.mxu0 0.0
    %906 = vmatpush1.msra.mxu0 0.0
    %907 = vmatprep.subr.mxu0 0.0
    %908 = vmatpush1.msra.mxu0 0.0
    %909 = vmatprep.subr.mxu0 0.0
    %910 = vmatpush1.msra.mxu0 0.0
    %911 = vmatprep.subr.mxu0 0.0
    %912 = vmatpush1.msra.mxu0 0.0
    %913 = vmatprep.subr.mxu0 0.0
    %914 = vmatpush1.msra.mxu0 0.0
    %915 = vmatprep.subr.mxu0 0.0
    %916 = vmatpush1.msra.mxu0 0.0
    %917 = vmatprep.subr.mxu0 0.0
    %918 = vmatpush1.msra.mxu0 0.0
    %919 = vmatprep.subr.mxu0 0.0
    %920 = vmatpush1.msra.mxu0 0.0
    %921 = vmatprep.subr.mxu0 0.0
    %922 = vmatpush1.msra.mxu0 0.0
    %923 = vmatprep.subr.mxu0 0.0
    %924 = vmatpush1.msra.mxu0 0.0
    %925 = vmatprep.subr.mxu0 0.0
    %926 = vmatpush1.msra.mxu0 0.0
    %927 = vmatprep.subr.mxu0 0.0
    %928 = vmatpush1.msra.mxu0 0.0
    %929 = vmatprep.subr.mxu0 0.0
    %930 = vmatpush1.msra.mxu0 0.0
    %931 = vmatprep.mubr.f32.mxu0 0.0
    %v932 = vand.u32 %v79, 4294901760
    %933 = vmatmul.mubr.f32.gmra.mrb[0].mxu0 %v932
    %v934 = vpop.f32.mrb[0].mxu0
    %v935 = vadd.f32 %v806, %v934
    %v936 = vpop.f32.mrb[0].mxu0
    %v937 = vadd.f32 %v808, %v936
    %938 = vmatprep.mubr.f32.mxu0 0.0
    %v939 = vand.u32 %v82, 4294901760
    %940 = vmatmul.mubr.f32.gmra.mrb[0].mxu0 %v939
    %v941 = vpop.f32.mrb[0].mxu0
    %v942 = vadd.f32 %v813, %v941
    %v943 = vpop.f32.mrb[0].mxu0
    %v944 = vadd.f32 %v815, %v943
    %945 = vmatprep.mubr.f32.mxu0 0.0
    %v946 = vand.u32 %v85, 4294901760
    %947 = vmatmul.mubr.f32.gmra.mrb[0].mxu0 %v946
    %v948 = vpop.f32.mrb[0].mxu0
    %v949 = vadd.f32 %v820, %v948
    %v950 = vpop.f32.mrb[0].mxu0
    %v951 = vadd.f32 %v822, %v950
    %952 = vmatprep.mubr.f32.mxu0 0.0
    %v953 = vand.u32 %v88, 4294901760
    %954 = vmatmul.mubr.f32.gmra.mrb[0].mxu0 %v953
    %v955 = vpop.f32.mrb[0].mxu0
    %v956 = vadd.f32 %v827, %v955
    %v957 = vpop.f32.mrb[0].mxu0
    %v958 = vadd.f32 %v829, %v957
    %959 = vmatprep.mubr.f32.mxu0 0.0
    %v960 = vand.u32 %v91, 4294901760
    %961 = vmatmul.mubr.f32.gmra.mrb[0].mxu0 %v960
    %v962 = vpop.f32.mrb[0].mxu0
    %v963 = vadd.f32 %v834, %v962
    %v964 = vpop.f32.mrb[0].mxu0
    %v965 = vadd.f32 %v836, %v964
    %966 = vmatprep.mubr.f32.mxu0 0.0
    %v967 = vand.u32 %v94, 4294901760
    %968 = vmatmul.mubr.f32.gmra.mrb[0].mxu0 %v967
    %v969 = vpop.f32.mrb[0].mxu0
    %v970 = vadd.f32 %v841, %v969
    %v971 = vpop.f32.mrb[0].mxu0
    %v972 = vadd.f32 %v843, %v971
    %973 = vmatprep.mubr.f32.mxu0 0.0
    %v974 = vand.u32 %v97, 4294901760
    %975 = vmatmul.mubr.f32.gmra.mrb[0].mxu0 %v974
    %v976 = vpop.f32.mrb[0].mxu0
    %v977 = vadd.f32 %v848, %v976
    %v978 = vpop.f32.mrb[0].mxu0
    %v979 = vadd.f32 %v850, %v978
    %980 = vmatprep.mubr.f32.mxu0 0.0
    %v981 = vand.u32 %v100, 4294901760
    %982 = vmatmul.mubr.f32.gmra.mrb[0].mxu0 %v981
    %v983 = vpop.f32.mrb[0].mxu0
    %v984 = vadd.f32 %v855, %v983
    %v985 = vpop.f32.mrb[0].mxu0
    %v986 = vadd.f32 %v857, %v985
    %987 = vdwg.mxu0
    %v988 = vld [vmem:[%s1] sm:$0xff]
    %v989 = vld [vmem:[%s1 + $0x8] sm:$0xff]
    %v990 = vld [vmem:[%s1 + $0x10] sm:$0xff]
    %v991 = vld [vmem:[%s1 + $0x18] sm:$0xff]
    %v992 = vld [vmem:[%s1 + $0x20] sm:$0xff]
    %v993 = vld [vmem:[%s1 + $0x28] sm:$0xff]
    %v994 = vld [vmem:[%s1 + $0x30] sm:$0xff]
    %v995 = vld [vmem:[%s1 + $0x38] sm:$0xff]
    %1004 = vrot.lane.b32.xlu0 %v935, 64
    %v1005 = vpop.permute.xlu0 %1004
    %1006 = vrot.lane.b32.xlu0 %v942, 64
    %v1007 = vpop.permute.xlu0 %1006
    %1008 = vrot.lane.b32.xlu0 %v949, 64
    %v1009 = vpop.permute.xlu0 %1008
    %1010 = vrot.lane.b32.xlu0 %v956, 64
    %v1011 = vpop.permute.xlu0 %1010
    %1012 = vrot.lane.b32.xlu0 %v963, 64
    %v1013 = vpop.permute.xlu0 %1012
    %1014 = vrot.lane.b32.xlu0 %v970, 64
    %v1015 = vpop.permute.xlu0 %1014
    %1016 = vrot.lane.b32.xlu0 %v977, 64
    %v1017 = vpop.permute.xlu0 %1016
    %1018 = vrot.lane.b32.xlu0 %v984, 64
    %v1019 = vpop.permute.xlu0 %1018
    %vm1020 = vcmask 130048
    %v1021 = vsel %vm1020, %v935, 0
    %v1023 = vsel %vm1020, %v942, 0
    %v1025 = vsel %vm1020, %v949, 0
    %v1027 = vsel %vm1020, %v956, 0
    %v1029 = vsel %vm1020, %v963, 0
    %v1031 = vsel %vm1020, %v970, 0
    %v1033 = vsel %vm1020, %v977, 0
    %v1035 = vsel %vm1020, %v984, 0
    %v1037 = vsel %vm1020, %v1005, 0
    %v1039 = vsel %vm1020, %v1007, 0
    %v1041 = vsel %vm1020, %v1009, 0
    %v1043 = vsel %vm1020, %v1011, 0
    %v1045 = vsel %vm1020, %v1013, 0
    %v1047 = vsel %vm1020, %v1015, 0
    %v1049 = vsel %vm1020, %v1017, 0
    %v1051 = vsel %vm1020, %v1019, 0
    %1053 = vmatprep.subr.mxu0 0.0
    %v1054 = vand.u32 %v1037, 4294901760
    %1055 = vmatpush1.xpose.msra.mxu0 %v1054
    %1056 = vmatprep.subr.mxu0 0.0
    %v1057 = vand.u32 %v1039, 4294901760
    %1058 = vmatpush1.xpose.msra.mxu0 %v1057
    %1059 = vmatprep.subr.mxu0 0.0
    %v1060 = vand.u32 %v1041, 4294901760
    %1061 = vmatpush1.xpose.msra.mxu0 %v1060
    %1062 = vmatprep.subr.mxu0 0.0
    %v1063 = vand.u32 %v1043, 4294901760
    %1064 = vmatpush1.xpose.msra.mxu0 %v1063
    %1065 = vmatprep.subr.mxu0 0.0
    %v1066 = vand.u32 %v1045, 4294901760
    %1067 = vmatpush1.xpose.msra.mxu0 %v1066
    %1068 = vmatprep.subr.mxu0 0.0
    %v1069 = vand.u32 %v1047, 4294901760
    %1070 = vmatpush1.xpose.msra.mxu0 %v1069
    %1071 = vmatprep.subr.mxu0 0.0
    %v1072 = vand.u32 %v1049, 4294901760
    %1073 = vmatpush1.xpose.msra.mxu0 %v1072
    %1074 = vmatprep.subr.mxu0 0.0
    %v1075 = vand.u32 %v1051, 4294901760
    %1076 = vmatpush1.xpose.msra.mxu0 %v1075
    %1077 = vmatprep.subr.mxu0 0.0
    %1078 = vmatpush1.xpose.msra.mxu0 0.0
    %1079 = vmatprep.subr.mxu0 0.0
    %1080 = vmatpush1.xpose.msra.mxu0 0.0
    %1081 = vmatprep.subr.mxu0 0.0
    %1082 = vmatpush1.xpose.msra.mxu0 0.0
    %1083 = vmatprep.subr.mxu0 0.0
    %1084 = vmatpush1.xpose.msra.mxu0 0.0
    %1085 = vmatprep.subr.mxu0 0.0
    %1086 = vmatpush1.xpose.msra.mxu0 0.0
    %1087 = vmatprep.subr.mxu0 0.0
    %1088 = vmatpush1.xpose.msra.mxu0 0.0
    %1089 = vmatprep.subr.mxu0 0.0
    %1090 = vmatpush1.xpose.msra.mxu0 0.0
    %1091 = vmatprep.subr.mxu0 0.0
    %1092 = vmatpush1.xpose.msra.mxu0 0.0
    %1093 = vmatprep.subr.mxu0 0.0
    %1094 = vmatpush1.xpose.msra.mxu0 0.0
    %1095 = vmatprep.subr.mxu0 0.0
    %1096 = vmatpush1.xpose.msra.mxu0 0.0
    %1097 = vmatprep.subr.mxu0 0.0
    %1098 = vmatpush1.xpose.msra.mxu0 0.0
    %1099 = vmatprep.subr.mxu0 0.0
    %1100 = vmatpush1.xpose.msra.mxu0 0.0
    %1101 = vmatprep.subr.mxu0 0.0
    %1102 = vmatpush1.xpose.msra.mxu0 0.0
    %1103 = vmatprep.subr.mxu0 0.0
    %1104 = vmatpush1.xpose.msra.mxu0 0.0
    %1105 = vmatprep.subr.mxu0 0.0
    %1106 = vmatpush1.xpose.msra.mxu0 0.0
    %1107 = vmatprep.subr.mxu0 0.0
    %1108 = vmatpush1.xpose.msra.mxu0 0.0
    %1109 = vmatprep.subr.mxu0 0.0
    %1110 = vmatpush1.xpose.msra.mxu0 0.0
    %1111 = vmatprep.subr.mxu0 0.0
    %1112 = vmatpush1.xpose.msra.mxu0 0.0
    %1113 = vmatprep.subr.mxu0 0.0
    %1114 = vmatpush1.xpose.msra.mxu0 0.0
    %1115 = vmatprep.subr.mxu0 0.0
    %1116 = vmatpush1.xpose.msra.mxu0 0.0
    %1117 = vmatprep.subr.mxu0 0.0
    %1118 = vmatpush1.xpose.msra.mxu0 0.0
    %1119 = vmatprep.subr.mxu0 0.0
    %1120 = vmatpush1.xpose.msra.mxu0 0.0
    %1121 = vmatprep.subr.mxu0 0.0
    %1122 = vmatpush1.xpose.msra.mxu0 0.0
    %1123 = vmatprep.subr.mxu0 0.0
    %1124 = vmatpush1.xpose.msra.mxu0 0.0
    %1125 = vmatprep.mubr.f32.mxu0 0.0
    %v1126 = vand.u32 %v1021, 4294901760
    %v1127 = vsub.f32 %v1021, %v1126
    %v1128 = vand.u32 %v1127, 4294901760
    %v1129 = vsub.f32 %v1127, %v1128
    %v1130 = vand.u32 %v1129, 4294901760
    %1131 = vmatmul.mubr.f32.gmra.mrb[0].mxu0 %v1130
    %v1132 = vpop.f32.mrb[0].mxu0
    %v1133 = vadd.f32 0.0, %v1132
    %v1134 = vpop.f32.mrb[0].mxu0
    %1135 = vmatprep.mubr.f32.mxu0 0.0
    %v1136 = vand.u32 %v1023, 4294901760
    %v1137 = vsub.f32 %v1023, %v1136
    %v1138 = vand.u32 %v1137, 4294901760
    %v1139 = vsub.f32 %v1137, %v1138
    %v1140 = vand.u32 %v1139, 4294901760
    %1141 = vmatmul.mubr.f32.gmra.mrb[0].mxu0 %v1140
    %v1142 = vpop.f32.mrb[0].mxu0
    %v1143 = vadd.f32 0.0, %v1142
    %v1144 = vpop.f32.mrb[0].mxu0
    %1145 = vmatprep.mubr.f32.mxu0 0.0
    %v1146 = vand.u32 %v1025, 4294901760
    %v1147 = vsub.f32 %v1025, %v1146
    %v1148 = vand.u32 %v1147, 4294901760
    %v1149 = vsub.f32 %v1147, %v1148
    %v1150 = vand.u32 %v1149, 4294901760
    %1151 = vmatmul.mubr.f32.gmra.mrb[0].mxu0 %v1150
    %v1152 = vpop.f32.mrb[0].mxu0
    %v1153 = vadd.f32 0.0, %v1152
    %v1154 = vpop.f32.mrb[0].mxu0
    %1155 = vmatprep.mubr.f32.mxu0 0.0
    %v1156 = vand.u32 %v1027, 4294901760
    %v1157 = vsub.f32 %v1027, %v1156
    %v1158 = vand.u32 %v1157, 4294901760
    %v1159 = vsub.f32 %v1157, %v1158
    %v1160 = vand.u32 %v1159, 4294901760
    %1161 = vmatmul.mubr.f32.gmra.mrb[0].mxu0 %v1160
    %v1162 = vpop.f32.mrb[0].mxu0
    %v1163 = vadd.f32 0.0, %v1162
    %v1164 = vpop.f32.mrb[0].mxu0
    %1165 = vmatprep.mubr.f32.mxu0 0.0
    %v1166 = vand.u32 %v1029, 4294901760
    %v1167 = vsub.f32 %v1029, %v1166
    %v1168 = vand.u32 %v1167, 4294901760
    %v1169 = vsub.f32 %v1167, %v1168
    %v1170 = vand.u32 %v1169, 4294901760
    %1171 = vmatmul.mubr.f32.gmra.mrb[0].mxu0 %v1170
    %v1172 = vpop.f32.mrb[0].mxu0
    %v1173 = vadd.f32 0.0, %v1172
    %v1174 = vpop.f32.mrb[0].mxu0
    %1175 = vmatprep.mubr.f32.mxu0 0.0
    %v1176 = vand.u32 %v1031, 4294901760
    %v1177 = vsub.f32 %v1031, %v1176
    %v1178 = vand.u32 %v1177, 4294901760
    %v1179 = vsub.f32 %v1177, %v1178
    %v1180 = vand.u32 %v1179, 4294901760
    %1181 = vmatmul.mubr.f32.gmra.mrb[0].mxu0 %v1180
    %v1182 = vpop.f32.mrb[0].mxu0
    %v1183 = vadd.f32 0.0, %v1182
    %v1184 = vpop.f32.mrb[0].mxu0
    %1185 = vmatprep.mubr.f32.mxu0 0.0
    %v1186 = vand.u32 %v1033, 4294901760
    %v1187 = vsub.f32 %v1033, %v1186
    %v1188 = vand.u32 %v1187, 4294901760
    %v1189 = vsub.f32 %v1187, %v1188
    %v1190 = vand.u32 %v1189, 4294901760
    %1191 = vmatmul.mubr.f32.gmra.mrb[0].mxu0 %v1190
    %v1192 = vpop.f32.mrb[0].mxu0
    %v1193 = vadd.f32 0.0, %v1192
    %v1194 = vpop.f32.mrb[0].mxu0
    %1195 = vmatprep.mubr.f32.mxu0 0.0
    %v1196 = vand.u32 %v1035, 4294901760
    %v1197 = vsub.f32 %v1035, %v1196
    %v1198 = vand.u32 %v1197, 4294901760
    %v1199 = vsub.f32 %v1197, %v1198
    %v1200 = vand.u32 %v1199, 4294901760
    %1201 = vmatmul.mubr.f32.gmra.mrb[0].mxu0 %v1200
    %v1202 = vpop.f32.mrb[0].mxu0
    %v1203 = vadd.f32 0.0, %v1202
    %v1204 = vpop.f32.mrb[0].mxu0
    %1205 = vdwg.mxu0
    %1206 = vmatprep.subr.mxu0 0.0
    %v1207 = vand.u32 %v1037, 4294901760
    %v1208 = vsub.f32 %v1037, %v1207
    %v1209 = vand.u32 %v1208, 4294901760
    %v1210 = vsub.f32 %v1208, %v1209
    %v1211 = vand.u32 %v1210, 4294901760
    %1212 = vmatpush1.xpose.msra.mxu0 %v1211
    %1213 = vmatprep.subr.mxu0 0.0
    %v1214 = vand.u32 %v1039, 4294901760
    %v1215 = vsub.f32 %v1039, %v1214
    %v1216 = vand.u32 %v1215, 4294901760
    %v1217 = vsub.f32 %v1215, %v1216
    %v1218 = vand.u32 %v1217, 4294901760
    %1219 = vmatpush1.xpose.msra.mxu0 %v1218
    %1220 = vmatprep.subr.mxu0 0.0
    %v1221 = vand.u32 %v1041, 4294901760
    %v1222 = vsub.f32 %v1041, %v1221
    %v1223 = vand.u32 %v1222, 4294901760
    %v1224 = vsub.f32 %v1222, %v1223
    %v1225 = vand.u32 %v1224, 4294901760
    %1226 = vmatpush1.xpose.msra.mxu0 %v1225
    %1227 = vmatprep.subr.mxu0 0.0
    %v1228 = vand.u32 %v1043, 4294901760
    %v1229 = vsub.f32 %v1043, %v1228
    %v1230 = vand.u32 %v1229, 4294901760
    %v1231 = vsub.f32 %v1229, %v1230
    %v1232 = vand.u32 %v1231, 4294901760
    %1233 = vmatpush1.xpose.msra.mxu0 %v1232
    %1234 = vmatprep.subr.mxu0 0.0
    %v1235 = vand.u32 %v1045, 4294901760
    %v1236 = vsub.f32 %v1045, %v1235
    %v1237 = vand.u32 %v1236, 4294901760
    %v1238 = vsub.f32 %v1236, %v1237
    %v1239 = vand.u32 %v1238, 4294901760
    %1240 = vmatpush1.xpose.msra.mxu0 %v1239
    %1241 = vmatprep.subr.mxu0 0.0
    %v1242 = vand.u32 %v1047, 4294901760
    %v1243 = vsub.f32 %v1047, %v1242
    %v1244 = vand.u32 %v1243, 4294901760
    %v1245 = vsub.f32 %v1243, %v1244
    %v1246 = vand.u32 %v1245, 4294901760
    %1247 = vmatpush1.xpose.msra.mxu0 %v1246
    %1248 = vmatprep.subr.mxu0 0.0
    %v1249 = vand.u32 %v1049, 4294901760
    %v1250 = vsub.f32 %v1049, %v1249
    %v1251 = vand.u32 %v1250, 4294901760
    %v1252 = vsub.f32 %v1250, %v1251
    %v1253 = vand.u32 %v1252, 4294901760
    %1254 = vmatpush1.xpose.msra.mxu0 %v1253
    %1255 = vmatprep.subr.mxu0 0.0
    %v1256 = vand.u32 %v1051, 4294901760
    %v1257 = vsub.f32 %v1051, %v1256
    %v1258 = vand.u32 %v1257, 4294901760
    %v1259 = vsub.f32 %v1257, %v1258
    %v1260 = vand.u32 %v1259, 4294901760
    %1261 = vmatpush1.xpose.msra.mxu0 %v1260
    %1262 = vmatprep.subr.mxu0 0.0
    %1263 = vmatpush1.xpose.msra.mxu0 0.0
    %1264 = vmatprep.subr.mxu0 0.0
    %1265 = vmatpush1.xpose.msra.mxu0 0.0
    %1266 = vmatprep.subr.mxu0 0.0
    %1267 = vmatpush1.xpose.msra.mxu0 0.0
    %1268 = vmatprep.subr.mxu0 0.0
    %1269 = vmatpush1.xpose.msra.mxu0 0.0
    %1270 = vmatprep.subr.mxu0 0.0
    %1271 = vmatpush1.xpose.msra.mxu0 0.0
    %1272 = vmatprep.subr.mxu0 0.0
    %1273 = vmatpush1.xpose.msra.mxu0 0.0
    %1274 = vmatprep.subr.mxu0 0.0
    %1275 = vmatpush1.xpose.msra.mxu0 0.0
    %1276 = vmatprep.subr.mxu0 0.0
    %1277 = vmatpush1.xpose.msra.mxu0 0.0
    %1278 = vmatprep.subr.mxu0 0.0
    %1279 = vmatpush1.xpose.msra.mxu0 0.0
    %1280 = vmatprep.subr.mxu0 0.0
    %1281 = vmatpush1.xpose.msra.mxu0 0.0
    %1282 = vmatprep.subr.mxu0 0.0
    %1283 = vmatpush1.xpose.msra.mxu0 0.0
    %1284 = vmatprep.subr.mxu0 0.0
    %1285 = vmatpush1.xpose.msra.mxu0 0.0
    %1286 = vmatprep.subr.mxu0 0.0
    %1287 = vmatpush1.xpose.msra.mxu0 0.0
    %1288 = vmatprep.subr.mxu0 0.0
    %1289 = vmatpush1.xpose.msra.mxu0 0.0
    %1290 = vmatprep.subr.mxu0 0.0
    %1291 = vmatpush1.xpose.msra.mxu0 0.0
    %1292 = vmatprep.subr.mxu0 0.0
    %1293 = vmatpush1.xpose.msra.mxu0 0.0
    %1294 = vmatprep.subr.mxu0 0.0
    %1295 = vmatpush1.xpose.msra.mxu0 0.0
    %1296 = vmatprep.subr.mxu0 0.0
    %1297 = vmatpush1.xpose.msra.mxu0 0.0
    %1298 = vmatprep.subr.mxu0 0.0
    %1299 = vmatpush1.xpose.msra.mxu0 0.0
    %1300 = vmatprep.subr.mxu0 0.0
    %1301 = vmatpush1.xpose.msra.mxu0 0.0
    %1302 = vmatprep.subr.mxu0 0.0
    %1303 = vmatpush1.xpose.msra.mxu0 0.0
    %1304 = vmatprep.subr.mxu0 0.0
    %1305 = vmatpush1.xpose.msra.mxu0 0.0
    %1306 = vmatprep.subr.mxu0 0.0
    %1307 = vmatpush1.xpose.msra.mxu0 0.0
    %1308 = vmatprep.subr.mxu0 0.0
    %1309 = vmatpush1.xpose.msra.mxu0 0.0
    %1310 = vmatprep.mubr.f32.mxu0 0.0
    %v1311 = vand.u32 %v1021, 4294901760
    %1312 = vmatmul.mubr.f32.gmra.mrb[0].mxu0 %v1311
    %v1313 = vpop.f32.mrb[0].mxu0
    %v1314 = vadd.f32 %v1133, %v1313
    %v1315 = vpop.f32.mrb[0].mxu0
    %1316 = vmatprep.mubr.f32.mxu0 0.0
    %v1317 = vand.u32 %v1023, 4294901760
    %1318 = vmatmul.mubr.f32.gmra.mrb[0].mxu0 %v1317
    %v1319 = vpop.f32.mrb[0].mxu0
    %v1320 = vadd.f32 %v1143, %v1319
    %v1321 = vpop.f32.mrb[0].mxu0
    %1322 = vmatprep.mubr.f32.mxu0 0.0
    %v1323 = vand.u32 %v1025, 4294901760
    %1324 = vmatmul.mubr.f32.gmra.mrb[0].mxu0 %v1323
    %v1325 = vpop.f32.mrb[0].mxu0
    %v1326 = vadd.f32 %v1153, %v1325
    %v1327 = vpop.f32.mrb[0].mxu0
    %1328 = vmatprep.mubr.f32.mxu0 0.0
    %v1329 = vand.u32 %v1027, 4294901760
    %1330 = vmatmul.mubr.f32.gmra.mrb[0].mxu0 %v1329
    %v1331 = vpop.f32.mrb[0].mxu0
    %v1332 = vadd.f32 %v1163, %v1331
    %v1333 = vpop.f32.mrb[0].mxu0
    %1334 = vmatprep.mubr.f32.mxu0 0.0
    %v1335 = vand.u32 %v1029, 4294901760
    %1336 = vmatmul.mubr.f32.gmra.mrb[0].mxu0 %v1335
    %v1337 = vpop.f32.mrb[0].mxu0
    %v1338 = vadd.f32 %v1173, %v1337
    %v1339 = vpop.f32.mrb[0].mxu0
    %1340 = vmatprep.mubr.f32.mxu0 0.0
    %v1341 = vand.u32 %v1031, 4294901760
    %1342 = vmatmul.mubr.f32.gmra.mrb[0].mxu0 %v1341
    %v1343 = vpop.f32.mrb[0].mxu0
    %v1344 = vadd.f32 %v1183, %v1343
    %v1345 = vpop.f32.mrb[0].mxu0
    %1346 = vmatprep.mubr.f32.mxu0 0.0
    %v1347 = vand.u32 %v1033, 4294901760
    %1348 = vmatmul.mubr.f32.gmra.mrb[0].mxu0 %v1347
    %v1349 = vpop.f32.mrb[0].mxu0
    %v1350 = vadd.f32 %v1193, %v1349
    %v1351 = vpop.f32.mrb[0].mxu0
    %1352 = vmatprep.mubr.f32.mxu0 0.0
    %v1353 = vand.u32 %v1035, 4294901760
    %1354 = vmatmul.mubr.f32.gmra.mrb[0].mxu0 %v1353
    %v1355 = vpop.f32.mrb[0].mxu0
    %v1356 = vadd.f32 %v1203, %v1355
    %v1357 = vpop.f32.mrb[0].mxu0
    %1358 = vdwg.mxu0
    %1359 = vmatprep.subr.mxu0 0.0
    %v1360 = vand.u32 %v1037, 4294901760
    %v1361 = vsub.f32 %v1037, %v1360
    %1362 = vmatpush1.xpose.msra.mxu0 %v1361
    %1363 = vmatprep.subr.mxu0 0.0
    %v1364 = vand.u32 %v1039, 4294901760
    %v1365 = vsub.f32 %v1039, %v1364
    %1366 = vmatpush1.xpose.msra.mxu0 %v1365
    %1367 = vmatprep.subr.mxu0 0.0
    %v1368 = vand.u32 %v1041, 4294901760
    %v1369 = vsub.f32 %v1041, %v1368
    %1370 = vmatpush1.xpose.msra.mxu0 %v1369
    %1371 = vmatprep.subr.mxu0 0.0
    %v1372 = vand.u32 %v1043, 4294901760
    %v1373 = vsub.f32 %v1043, %v1372
    %1374 = vmatpush1.xpose.msra.mxu0 %v1373
    %1375 = vmatprep.subr.mxu0 0.0
    %v1376 = vand.u32 %v1045, 4294901760
    %v1377 = vsub.f32 %v1045, %v1376
    %1378 = vmatpush1.xpose.msra.mxu0 %v1377
    %1379 = vmatprep.subr.mxu0 0.0
    %v1380 = vand.u32 %v1047, 4294901760
    %v1381 = vsub.f32 %v1047, %v1380
    %1382 = vmatpush1.xpose.msra.mxu0 %v1381
    %1383 = vmatprep.subr.mxu0 0.0
    %v1384 = vand.u32 %v1049, 4294901760
    %v1385 = vsub.f32 %v1049, %v1384
    %1386 = vmatpush1.xpose.msra.mxu0 %v1385
    %1387 = vmatprep.subr.mxu0 0.0
    %v1388 = vand.u32 %v1051, 4294901760
    %v1389 = vsub.f32 %v1051, %v1388
    %1390 = vmatpush1.xpose.msra.mxu0 %v1389
    %1391 = vmatprep.subr.mxu0 0.0
    %1392 = vmatpush1.xpose.msra.mxu0 0.0
    %1393 = vmatprep.subr.mxu0 0.0
    %1394 = vmatpush1.xpose.msra.mxu0 0.0
    %1395 = vmatprep.subr.mxu0 0.0
    %1396 = vmatpush1.xpose.msra.mxu0 0.0
    %1397 = vmatprep.subr.mxu0 0.0
    %1398 = vmatpush1.xpose.msra.mxu0 0.0
    %1399 = vmatprep.subr.mxu0 0.0
    %1400 = vmatpush1.xpose.msra.mxu0 0.0
    %1401 = vmatprep.subr.mxu0 0.0
    %1402 = vmatpush1.xpose.msra.mxu0 0.0
    %1403 = vmatprep.subr.mxu0 0.0
    %1404 = vmatpush1.xpose.msra.mxu0 0.0
    %1405 = vmatprep.subr.mxu0 0.0
    %1406 = vmatpush1.xpose.msra.mxu0 0.0
    %1407 = vmatprep.subr.mxu0 0.0
    %1408 = vmatpush1.xpose.msra.mxu0 0.0
    %1409 = vmatprep.subr.mxu0 0.0
    %1410 = vmatpush1.xpose.msra.mxu0 0.0
    %1411 = vmatprep.subr.mxu0 0.0
    %1412 = vmatpush1.xpose.msra.mxu0 0.0
    %1413 = vmatprep.subr.mxu0 0.0
    %1414 = vmatpush1.xpose.msra.mxu0 0.0
    %1415 = vmatprep.subr.mxu0 0.0
    %1416 = vmatpush1.xpose.msra.mxu0 0.0
    %1417 = vmatprep.subr.mxu0 0.0
    %1418 = vmatpush1.xpose.msra.mxu0 0.0
    %1419 = vmatprep.subr.mxu0 0.0
    %1420 = vmatpush1.xpose.msra.mxu0 0.0
    %1421 = vmatprep.subr.mxu0 0.0
    %1422 = vmatpush1.xpose.msra.mxu0 0.0
    %1423 = vmatprep.subr.mxu0 0.0
    %1424 = vmatpush1.xpose.msra.mxu0 0.0
    %1425 = vmatprep.subr.mxu0 0.0
    %1426 = vmatpush1.xpose.msra.mxu0 0.0
    %1427 = vmatprep.subr.mxu0 0.0
    %1428 = vmatpush1.xpose.msra.mxu0 0.0
    %1429 = vmatprep.subr.mxu0 0.0
    %1430 = vmatpush1.xpose.msra.mxu0 0.0
    %1431 = vmatprep.subr.mxu0 0.0
    %1432 = vmatpush1.xpose.msra.mxu0 0.0
    %1433 = vmatprep.subr.mxu0 0.0
    %1434 = vmatpush1.xpose.msra.mxu0 0.0
    %1435 = vmatprep.subr.mxu0 0.0
    %1436 = vmatpush1.xpose.msra.mxu0 0.0
    %1437 = vmatprep.subr.mxu0 0.0
    %1438 = vmatpush1.xpose.msra.mxu0 0.0
    %1439 = vmatprep.mubr.f32.mxu0 0.0
    %v1440 = vand.u32 %v1021, 4294901760
    %v1441 = vsub.f32 %v1021, %v1440
    %1442 = vmatmul.mubr.f32.gmra.mrb[0].mxu0 %v1441
    %v1443 = vpop.f32.mrb[0].mxu0
    %v1444 = vadd.f32 %v1314, %v1443
    %v1445 = vpop.f32.mrb[0].mxu0
    %1446 = vmatprep.mubr.f32.mxu0 0.0
    %v1447 = vand.u32 %v1023, 4294901760
    %v1448 = vsub.f32 %v1023, %v1447
    %1449 = vmatmul.mubr.f32.gmra.mrb[0].mxu0 %v1448
    %v1450 = vpop.f32.mrb[0].mxu0
    %v1451 = vadd.f32 %v1320, %v1450
    %v1452 = vpop.f32.mrb[0].mxu0
    %1453 = vmatprep.mubr.f32.mxu0 0.0
    %v1454 = vand.u32 %v1025, 4294901760
    %v1455 = vsub.f32 %v1025, %v1454
    %1456 = vmatmul.mubr.f32.gmra.mrb[0].mxu0 %v1455
    %v1457 = vpop.f32.mrb[0].mxu0
    %v1458 = vadd.f32 %v1326, %v1457
    %v1459 = vpop.f32.mrb[0].mxu0
    %1460 = vmatprep.mubr.f32.mxu0 0.0
    %v1461 = vand.u32 %v1027, 4294901760
    %v1462 = vsub.f32 %v1027, %v1461
    %1463 = vmatmul.mubr.f32.gmra.mrb[0].mxu0 %v1462
    %v1464 = vpop.f32.mrb[0].mxu0
    %v1465 = vadd.f32 %v1332, %v1464
    %v1466 = vpop.f32.mrb[0].mxu0
    %1467 = vmatprep.mubr.f32.mxu0 0.0
    %v1468 = vand.u32 %v1029, 4294901760
    %v1469 = vsub.f32 %v1029, %v1468
    %1470 = vmatmul.mubr.f32.gmra.mrb[0].mxu0 %v1469
    %v1471 = vpop.f32.mrb[0].mxu0
    %v1472 = vadd.f32 %v1338, %v1471
    %v1473 = vpop.f32.mrb[0].mxu0
    %1474 = vmatprep.mubr.f32.mxu0 0.0
    %v1475 = vand.u32 %v1031, 4294901760
    %v1476 = vsub.f32 %v1031, %v1475
    %1477 = vmatmul.mubr.f32.gmra.mrb[0].mxu0 %v1476
    %v1478 = vpop.f32.mrb[0].mxu0
    %v1479 = vadd.f32 %v1344, %v1478
    %v1480 = vpop.f32.mrb[0].mxu0
    %1481 = vmatprep.mubr.f32.mxu0 0.0
    %v1482 = vand.u32 %v1033, 4294901760
    %v1483 = vsub.f32 %v1033, %v1482
    %1484 = vmatmul.mubr.f32.gmra.mrb[0].mxu0 %v1483
    %v1485 = vpop.f32.mrb[0].mxu0
    %v1486 = vadd.f32 %v1350, %v1485
    %v1487 = vpop.f32.mrb[0].mxu0
    %1488 = vmatprep.mubr.f32.mxu0 0.0
    %v1489 = vand.u32 %v1035, 4294901760
    %v1490 = vsub.f32 %v1035, %v1489
    %1491 = vmatmul.mubr.f32.gmra.mrb[0].mxu0 %v1490
    %v1492 = vpop.f32.mrb[0].mxu0
    %v1493 = vadd.f32 %v1356, %v1492
    %v1494 = vpop.f32.mrb[0].mxu0
    %1495 = vdwg.mxu0
    %1496 = vmatprep.subr.mxu0 0.0
    %v1497 = vand.u32 %v1037, 4294901760
    %1498 = vmatpush1.xpose.msra.mxu0 %v1497
    %1499 = vmatprep.subr.mxu0 0.0
    %v1500 = vand.u32 %v1039, 4294901760
    %1501 = vmatpush1.xpose.msra.mxu0 %v1500
    %1502 = vmatprep.subr.mxu0 0.0
    %v1503 = vand.u32 %v1041, 4294901760
    %1504 = vmatpush1.xpose.msra.mxu0 %v1503
    %1505 = vmatprep.subr.mxu0 0.0
    %v1506 = vand.u32 %v1043, 4294901760
    %1507 = vmatpush1.xpose.msra.mxu0 %v1506
    %1508 = vmatprep.subr.mxu0 0.0
    %v1509 = vand.u32 %v1045, 4294901760
    %1510 = vmatpush1.xpose.msra.mxu0 %v1509
    %1511 = vmatprep.subr.mxu0 0.0
    %v1512 = vand.u32 %v1047, 4294901760
    %1513 = vmatpush1.xpose.msra.mxu0 %v1512
    %1514 = vmatprep.subr.mxu0 0.0
    %v1515 = vand.u32 %v1049, 4294901760
    %1516 = vmatpush1.xpose.msra.mxu0 %v1515
    %1517 = vmatprep.subr.mxu0 0.0
    %v1518 = vand.u32 %v1051, 4294901760
    %1519 = vmatpush1.xpose.msra.mxu0 %v1518
    %1520 = vmatprep.subr.mxu0 0.0
    %1521 = vmatpush1.xpose.msra.mxu0 0.0
    %1522 = vmatprep.subr.mxu0 0.0
    %1523 = vmatpush1.xpose.msra.mxu0 0.0
    %1524 = vmatprep.subr.mxu0 0.0
    %1525 = vmatpush1.xpose.msra.mxu0 0.0
    %1526 = vmatprep.subr.mxu0 0.0
    %1527 = vmatpush1.xpose.msra.mxu0 0.0
    %1528 = vmatprep.subr.mxu0 0.0
    %1529 = vmatpush1.xpose.msra.mxu0 0.0
    %1530 = vmatprep.subr.mxu0 0.0
    %1531 = vmatpush1.xpose.msra.mxu0 0.0
    %1532 = vmatprep.subr.mxu0 0.0
    %1533 = vmatpush1.xpose.msra.mxu0 0.0
    %1534 = vmatprep.subr.mxu0 0.0
    %1535 = vmatpush1.xpose.msra.mxu0 0.0
    %1536 = vmatprep.subr.mxu0 0.0
    %1537 = vmatpush1.xpose.msra.mxu0 0.0
    %1538 = vmatprep.subr.mxu0 0.0
    %1539 = vmatpush1.xpose.msra.mxu0 0.0
    %1540 = vmatprep.subr.mxu0 0.0
    %1541 = vmatpush1.xpose.msra.mxu0 0.0
    %1542 = vmatprep.subr.mxu0 0.0
    %1543 = vmatpush1.xpose.msra.mxu0 0.0
    %1544 = vmatprep.subr.mxu0 0.0
    %1545 = vmatpush1.xpose.msra.mxu0 0.0
    %1546 = vmatprep.subr.mxu0 0.0
    %1547 = vmatpush1.xpose.msra.mxu0 0.0
    %1548 = vmatprep.subr.mxu0 0.0
    %1549 = vmatpush1.xpose.msra.mxu0 0.0
    %1550 = vmatprep.subr.mxu0 0.0
    %1551 = vmatpush1.xpose.msra.mxu0 0.0
    %1552 = vmatprep.subr.mxu0 0.0
    %1553 = vmatpush1.xpose.msra.mxu0 0.0
    %1554 = vmatprep.subr.mxu0 0.0
    %1555 = vmatpush1.xpose.msra.mxu0 0.0
    %1556 = vmatprep.subr.mxu0 0.0
    %1557 = vmatpush1.xpose.msra.mxu0 0.0
    %1558 = vmatprep.subr.mxu0 0.0
    %1559 = vmatpush1.xpose.msra.mxu0 0.0
    %1560 = vmatprep.subr.mxu0 0.0
    %1561 = vmatpush1.xpose.msra.mxu0 0.0
    %1562 = vmatprep.subr.mxu0 0.0
    %1563 = vmatpush1.xpose.msra.mxu0 0.0
    %1564 = vmatprep.subr.mxu0 0.0
    %1565 = vmatpush1.xpose.msra.mxu0 0.0
    %1566 = vmatprep.subr.mxu0 0.0
    %1567 = vmatpush1.xpose.msra.mxu0 0.0
    %1568 = vmatprep.mubr.f32.mxu0 0.0
    %v1569 = vand.u32 %v1021, 4294901760
    %v1570 = vsub.f32 %v1021, %v1569
    %v1571 = vand.u32 %v1570, 4294901760
    %1572 = vmatmul.mubr.f32.gmra.mrb[0].mxu0 %v1571
    %v1573 = vpop.f32.mrb[0].mxu0
    %v1574 = vadd.f32 %v1444, %v1573
    %v1575 = vpop.f32.mrb[0].mxu0
    %1576 = vmatprep.mubr.f32.mxu0 0.0
    %v1577 = vand.u32 %v1023, 4294901760
    %v1578 = vsub.f32 %v1023, %v1577
    %v1579 = vand.u32 %v1578, 4294901760
    %1580 = vmatmul.mubr.f32.gmra.mrb[0].mxu0 %v1579
    %v1581 = vpop.f32.mrb[0].mxu0
    %v1582 = vadd.f32 %v1451, %v1581
    %v1583 = vpop.f32.mrb[0].mxu0
    %1584 = vmatprep.mubr.f32.mxu0 0.0
    %v1585 = vand.u32 %v1025, 4294901760
    %v1586 = vsub.f32 %v1025, %v1585
    %v1587 = vand.u32 %v1586, 4294901760
    %1588 = vmatmul.mubr.f32.gmra.mrb[0].mxu0 %v1587
    %v1589 = vpop.f32.mrb[0].mxu0
    %v1590 = vadd.f32 %v1458, %v1589
    %v1591 = vpop.f32.mrb[0].mxu0
    %1592 = vmatprep.mubr.f32.mxu0 0.0
    %v1593 = vand.u32 %v1027, 4294901760
    %v1594 = vsub.f32 %v1027, %v1593
    %v1595 = vand.u32 %v1594, 4294901760
    %1596 = vmatmul.mubr.f32.gmra.mrb[0].mxu0 %v1595
    %v1597 = vpop.f32.mrb[0].mxu0
    %v1598 = vadd.f32 %v1465, %v1597
    %v1599 = vpop.f32.mrb[0].mxu0
    %1600 = vmatprep.mubr.f32.mxu0 0.0
    %v1601 = vand.u32 %v1029, 4294901760
    %v1602 = vsub.f32 %v1029, %v1601
    %v1603 = vand.u32 %v1602, 4294901760
    %1604 = vmatmul.mubr.f32.gmra.mrb[0].mxu0 %v1603
    %v1605 = vpop.f32.mrb[0].mxu0
    %v1606 = vadd.f32 %v1472, %v1605
    %v1607 = vpop.f32.mrb[0].mxu0
    %1608 = vmatprep.mubr.f32.mxu0 0.0
    %v1609 = vand.u32 %v1031, 4294901760
    %v1610 = vsub.f32 %v1031, %v1609
    %v1611 = vand.u32 %v1610, 4294901760
    %1612 = vmatmul.mubr.f32.gmra.mrb[0].mxu0 %v1611
    %v1613 = vpop.f32.mrb[0].mxu0
    %v1614 = vadd.f32 %v1479, %v1613
    %v1615 = vpop.f32.mrb[0].mxu0
    %1616 = vmatprep.mubr.f32.mxu0 0.0
    %v1617 = vand.u32 %v1033, 4294901760
    %v1618 = vsub.f32 %v1033, %v1617
    %v1619 = vand.u32 %v1618, 4294901760
    %1620 = vmatmul.mubr.f32.gmra.mrb[0].mxu0 %v1619
    %v1621 = vpop.f32.mrb[0].mxu0
    %v1622 = vadd.f32 %v1486, %v1621
    %v1623 = vpop.f32.mrb[0].mxu0
    %1624 = vmatprep.mubr.f32.mxu0 0.0
    %v1625 = vand.u32 %v1035, 4294901760
    %v1626 = vsub.f32 %v1035, %v1625
    %v1627 = vand.u32 %v1626, 4294901760
    %1628 = vmatmul.mubr.f32.gmra.mrb[0].mxu0 %v1627
    %v1629 = vpop.f32.mrb[0].mxu0
    %v1630 = vadd.f32 %v1493, %v1629
    %v1631 = vpop.f32.mrb[0].mxu0
    %1632 = vdwg.mxu0
    %1633 = vmatprep.subr.mxu0 0.0
    %v1634 = vand.u32 %v1037, 4294901760
    %v1635 = vsub.f32 %v1037, %v1634
    %v1636 = vand.u32 %v1635, 4294901760
    %1637 = vmatpush1.xpose.msra.mxu0 %v1636
    %1638 = vmatprep.subr.mxu0 0.0
    %v1639 = vand.u32 %v1039, 4294901760
    %v1640 = vsub.f32 %v1039, %v1639
    %v1641 = vand.u32 %v1640, 4294901760
    %1642 = vmatpush1.xpose.msra.mxu0 %v1641
    %1643 = vmatprep.subr.mxu0 0.0
    %v1644 = vand.u32 %v1041, 4294901760
    %v1645 = vsub.f32 %v1041, %v1644
    %v1646 = vand.u32 %v1645, 4294901760
    %1647 = vmatpush1.xpose.msra.mxu0 %v1646
    %1648 = vmatprep.subr.mxu0 0.0
    %v1649 = vand.u32 %v1043, 4294901760
    %v1650 = vsub.f32 %v1043, %v1649
    %v1651 = vand.u32 %v1650, 4294901760
    %1652 = vmatpush1.xpose.msra.mxu0 %v1651
    %1653 = vmatprep.subr.mxu0 0.0
    %v1654 = vand.u32 %v1045, 4294901760
    %v1655 = vsub.f32 %v1045, %v1654
    %v1656 = vand.u32 %v1655, 4294901760
    %1657 = vmatpush1.xpose.msra.mxu0 %v1656
    %1658 = vmatprep.subr.mxu0 0.0
    %v1659 = vand.u32 %v1047, 4294901760
    %v1660 = vsub.f32 %v1047, %v1659
    %v1661 = vand.u32 %v1660, 4294901760
    %1662 = vmatpush1.xpose.msra.mxu0 %v1661
    %1663 = vmatprep.subr.mxu0 0.0
    %v1664 = vand.u32 %v1049, 4294901760
    %v1665 = vsub.f32 %v1049, %v1664
    %v1666 = vand.u32 %v1665, 4294901760
    %1667 = vmatpush1.xpose.msra.mxu0 %v1666
    %1668 = vmatprep.subr.mxu0 0.0
    %v1669 = vand.u32 %v1051, 4294901760
    %v1670 = vsub.f32 %v1051, %v1669
    %v1671 = vand.u32 %v1670, 4294901760
    %1672 = vmatpush1.xpose.msra.mxu0 %v1671
    %1673 = vmatprep.subr.mxu0 0.0
    %1674 = vmatpush1.xpose.msra.mxu0 0.0
    %1675 = vmatprep.subr.mxu0 0.0
    %1676 = vmatpush1.xpose.msra.mxu0 0.0
    %1677 = vmatprep.subr.mxu0 0.0
    %1678 = vmatpush1.xpose.msra.mxu0 0.0
    %1679 = vmatprep.subr.mxu0 0.0
    %1680 = vmatpush1.xpose.msra.mxu0 0.0
    %1681 = vmatprep.subr.mxu0 0.0
    %1682 = vmatpush1.xpose.msra.mxu0 0.0
    %1683 = vmatprep.subr.mxu0 0.0
    %1684 = vmatpush1.xpose.msra.mxu0 0.0
    %1685 = vmatprep.subr.mxu0 0.0
    %1686 = vmatpush1.xpose.msra.mxu0 0.0
    %1687 = vmatprep.subr.mxu0 0.0
    %1688 = vmatpush1.xpose.msra.mxu0 0.0
    %1689 = vmatprep.subr.mxu0 0.0
    %1690 = vmatpush1.xpose.msra.mxu0 0.0
    %1691 = vmatprep.subr.mxu0 0.0
    %1692 = vmatpush1.xpose.msra.mxu0 0.0
    %1693 = vmatprep.subr.mxu0 0.0
    %1694 = vmatpush1.xpose.msra.mxu0 0.0
    %1695 = vmatprep.subr.mxu0 0.0
    %1696 = vmatpush1.xpose.msra.mxu0 0.0
    %1697 = vmatprep.subr.mxu0 0.0
    %1698 = vmatpush1.xpose.msra.mxu0 0.0
    %1699 = vmatprep.subr.mxu0 0.0
    %1700 = vmatpush1.xpose.msra.mxu0 0.0
    %1701 = vmatprep.subr.mxu0 0.0
    %1702 = vmatpush1.xpose.msra.mxu0 0.0
    %1703 = vmatprep.subr.mxu0 0.0
    %1704 = vmatpush1.xpose.msra.mxu0 0.0
    %1705 = vmatprep.subr.mxu0 0.0
    %1706 = vmatpush1.xpose.msra.mxu0 0.0
    %1707 = vmatprep.subr.mxu0 0.0
    %1708 = vmatpush1.xpose.msra.mxu0 0.0
    %1709 = vmatprep.subr.mxu0 0.0
    %1710 = vmatpush1.xpose.msra.mxu0 0.0
    %1711 = vmatprep.subr.mxu0 0.0
    %1712 = vmatpush1.xpose.msra.mxu0 0.0
    %1713 = vmatprep.subr.mxu0 0.0
    %1714 = vmatpush1.xpose.msra.mxu0 0.0
    %1715 = vmatprep.subr.mxu0 0.0
    %1716 = vmatpush1.xpose.msra.mxu0 0.0
    %1717 = vmatprep.subr.mxu0 0.0
    %1718 = vmatpush1.xpose.msra.mxu0 0.0
    %1719 = vmatprep.subr.mxu0 0.0
    %1720 = vmatpush1.xpose.msra.mxu0 0.0
    %1721 = vmatprep.mubr.f32.mxu0 0.0
    %v1722 = vand.u32 %v1021, 4294901760
    %1723 = vmatmul.mubr.f32.gmra.mrb[0].mxu0 %v1722
    %v1724 = vpop.f32.mrb[0].mxu0
    %v1725 = vadd.f32 %v1574, %v1724
    %v1726 = vpop.f32.mrb[0].mxu0
    %1727 = vmatprep.mubr.f32.mxu0 0.0
    %v1728 = vand.u32 %v1023, 4294901760
    %1729 = vmatmul.mubr.f32.gmra.mrb[0].mxu0 %v1728
    %v1730 = vpop.f32.mrb[0].mxu0
    %v1731 = vadd.f32 %v1582, %v1730
    %v1732 = vpop.f32.mrb[0].mxu0
    %1733 = vmatprep.mubr.f32.mxu0 0.0
    %v1734 = vand.u32 %v1025, 4294901760
    %1735 = vmatmul.mubr.f32.gmra.mrb[0].mxu0 %v1734
    %v1736 = vpop.f32.mrb[0].mxu0
    %v1737 = vadd.f32 %v1590, %v1736
    %v1738 = vpop.f32.mrb[0].mxu0
    %1739 = vmatprep.mubr.f32.mxu0 0.0
    %v1740 = vand.u32 %v1027, 4294901760
    %1741 = vmatmul.mubr.f32.gmra.mrb[0].mxu0 %v1740
    %v1742 = vpop.f32.mrb[0].mxu0
    %v1743 = vadd.f32 %v1598, %v1742
    %v1744 = vpop.f32.mrb[0].mxu0
    %1745 = vmatprep.mubr.f32.mxu0 0.0
    %v1746 = vand.u32 %v1029, 4294901760
    %1747 = vmatmul.mubr.f32.gmra.mrb[0].mxu0 %v1746
    %v1748 = vpop.f32.mrb[0].mxu0
    %v1749 = vadd.f32 %v1606, %v1748
    %v1750 = vpop.f32.mrb[0].mxu0
    %1751 = vmatprep.mubr.f32.mxu0 0.0
    %v1752 = vand.u32 %v1031, 4294901760
    %1753 = vmatmul.mubr.f32.gmra.mrb[0].mxu0 %v1752
    %v1754 = vpop.f32.mrb[0].mxu0
    %v1755 = vadd.f32 %v1614, %v1754
    %v1756 = vpop.f32.mrb[0].mxu0
    %1757 = vmatprep.mubr.f32.mxu0 0.0
    %v1758 = vand.u32 %v1033, 4294901760
    %1759 = vmatmul.mubr.f32.gmra.mrb[0].mxu0 %v1758
    %v1760 = vpop.f32.mrb[0].mxu0
    %v1761 = vadd.f32 %v1622, %v1760
    %v1762 = vpop.f32.mrb[0].mxu0
    %1763 = vmatprep.mubr.f32.mxu0 0.0
    %v1764 = vand.u32 %v1035, 4294901760
    %1765 = vmatmul.mubr.f32.gmra.mrb[0].mxu0 %v1764
    %v1766 = vpop.f32.mrb[0].mxu0
    %v1767 = vadd.f32 %v1630, %v1766
    %v1768 = vpop.f32.mrb[0].mxu0
    %1769 = vdwg.mxu0
    %1770 = vmatprep.subr.mxu0 0.0
    %v1771 = vand.u32 %v1037, 4294901760
    %1772 = vmatpush1.xpose.msra.mxu0 %v1771
    %1773 = vmatprep.subr.mxu0 0.0
    %v1774 = vand.u32 %v1039, 4294901760
    %1775 = vmatpush1.xpose.msra.mxu0 %v1774
    %1776 = vmatprep.subr.mxu0 0.0
    %v1777 = vand.u32 %v1041, 4294901760
    %1778 = vmatpush1.xpose.msra.mxu0 %v1777
    %1779 = vmatprep.subr.mxu0 0.0
    %v1780 = vand.u32 %v1043, 4294901760
    %1781 = vmatpush1.xpose.msra.mxu0 %v1780
    %1782 = vmatprep.subr.mxu0 0.0
    %v1783 = vand.u32 %v1045, 4294901760
    %1784 = vmatpush1.xpose.msra.mxu0 %v1783
    %1785 = vmatprep.subr.mxu0 0.0
    %v1786 = vand.u32 %v1047, 4294901760
    %1787 = vmatpush1.xpose.msra.mxu0 %v1786
    %1788 = vmatprep.subr.mxu0 0.0
    %v1789 = vand.u32 %v1049, 4294901760
    %1790 = vmatpush1.xpose.msra.mxu0 %v1789
    %1791 = vmatprep.subr.mxu0 0.0
    %v1792 = vand.u32 %v1051, 4294901760
    %1793 = vmatpush1.xpose.msra.mxu0 %v1792
    %1794 = vmatprep.subr.mxu0 0.0
    %1795 = vmatpush1.xpose.msra.mxu0 0.0
    %1796 = vmatprep.subr.mxu0 0.0
    %1797 = vmatpush1.xpose.msra.mxu0 0.0
    %1798 = vmatprep.subr.mxu0 0.0
    %1799 = vmatpush1.xpose.msra.mxu0 0.0
    %1800 = vmatprep.subr.mxu0 0.0
    %1801 = vmatpush1.xpose.msra.mxu0 0.0
    %1802 = vmatprep.subr.mxu0 0.0
    %1803 = vmatpush1.xpose.msra.mxu0 0.0
    %1804 = vmatprep.subr.mxu0 0.0
    %1805 = vmatpush1.xpose.msra.mxu0 0.0
    %1806 = vmatprep.subr.mxu0 0.0
    %1807 = vmatpush1.xpose.msra.mxu0 0.0
    %1808 = vmatprep.subr.mxu0 0.0
    %1809 = vmatpush1.xpose.msra.mxu0 0.0
    %1810 = vmatprep.subr.mxu0 0.0
    %1811 = vmatpush1.xpose.msra.mxu0 0.0
    %1812 = vmatprep.subr.mxu0 0.0
    %1813 = vmatpush1.xpose.msra.mxu0 0.0
    %1814 = vmatprep.subr.mxu0 0.0
    %1815 = vmatpush1.xpose.msra.mxu0 0.0
    %1816 = vmatprep.subr.mxu0 0.0
    %1817 = vmatpush1.xpose.msra.mxu0 0.0
    %1818 = vmatprep.subr.mxu0 0.0
    %1819 = vmatpush1.xpose.msra.mxu0 0.0
    %1820 = vmatprep.subr.mxu0 0.0
    %1821 = vmatpush1.xpose.msra.mxu0 0.0
    %1822 = vmatprep.subr.mxu0 0.0
    %1823 = vmatpush1.xpose.msra.mxu0 0.0
    %1824 = vmatprep.subr.mxu0 0.0
    %1825 = vmatpush1.xpose.msra.mxu0 0.0
    %1826 = vmatprep.subr.mxu0 0.0
    %1827 = vmatpush1.xpose.msra.mxu0 0.0
    %1828 = vmatprep.subr.mxu0 0.0
    %1829 = vmatpush1.xpose.msra.mxu0 0.0
    %1830 = vmatprep.subr.mxu0 0.0
    %1831 = vmatpush1.xpose.msra.mxu0 0.0
    %1832 = vmatprep.subr.mxu0 0.0
    %1833 = vmatpush1.xpose.msra.mxu0 0.0
    %1834 = vmatprep.subr.mxu0 0.0
    %1835 = vmatpush1.xpose.msra.mxu0 0.0
    %1836 = vmatprep.subr.mxu0 0.0
    %1837 = vmatpush1.xpose.msra.mxu0 0.0
    %1838 = vmatprep.subr.mxu0 0.0
    %1839 = vmatpush1.xpose.msra.mxu0 0.0
    %1840 = vmatprep.subr.mxu0 0.0
    %1841 = vmatpush1.xpose.msra.mxu0 0.0
    %1842 = vmatprep.mubr.f32.mxu0 0.0
    %v1843 = vand.u32 %v1021, 4294901760
    %1844 = vmatmul.mubr.f32.gmra.mrb[0].mxu0 %v1843
    %v1845 = vpop.f32.mrb[0].mxu0
    %v1846 = vadd.f32 %v1725, %v1845
    %v1847 = vpop.f32.mrb[0].mxu0
    %1848 = vmatprep.mubr.f32.mxu0 0.0
    %v1849 = vand.u32 %v1023, 4294901760
    %1850 = vmatmul.mubr.f32.gmra.mrb[0].mxu0 %v1849
    %v1851 = vpop.f32.mrb[0].mxu0
    %v1852 = vadd.f32 %v1731, %v1851
    %v1853 = vpop.f32.mrb[0].mxu0
    %1854 = vmatprep.mubr.f32.mxu0 0.0
    %v1855 = vand.u32 %v1025, 4294901760
    %1856 = vmatmul.mubr.f32.gmra.mrb[0].mxu0 %v1855
    %v1857 = vpop.f32.mrb[0].mxu0
    %v1858 = vadd.f32 %v1737, %v1857
    %v1859 = vpop.f32.mrb[0].mxu0
    %1860 = vmatprep.mubr.f32.mxu0 0.0
    %v1861 = vand.u32 %v1027, 4294901760
    %1862 = vmatmul.mubr.f32.gmra.mrb[0].mxu0 %v1861
    %v1863 = vpop.f32.mrb[0].mxu0
    %v1864 = vadd.f32 %v1743, %v1863
    %v1865 = vpop.f32.mrb[0].mxu0
    %1866 = vmatprep.mubr.f32.mxu0 0.0
    %v1867 = vand.u32 %v1029, 4294901760
    %1868 = vmatmul.mubr.f32.gmra.mrb[0].mxu0 %v1867
    %v1869 = vpop.f32.mrb[0].mxu0
    %v1870 = vadd.f32 %v1749, %v1869
    %v1871 = vpop.f32.mrb[0].mxu0
    %1872 = vmatprep.mubr.f32.mxu0 0.0
    %v1873 = vand.u32 %v1031, 4294901760
    %1874 = vmatmul.mubr.f32.gmra.mrb[0].mxu0 %v1873
    %v1875 = vpop.f32.mrb[0].mxu0
    %v1876 = vadd.f32 %v1755, %v1875
    %v1877 = vpop.f32.mrb[0].mxu0
    %1878 = vmatprep.mubr.f32.mxu0 0.0
    %v1879 = vand.u32 %v1033, 4294901760
    %1880 = vmatmul.mubr.f32.gmra.mrb[0].mxu0 %v1879
    %v1881 = vpop.f32.mrb[0].mxu0
    %v1882 = vadd.f32 %v1761, %v1881
    %v1883 = vpop.f32.mrb[0].mxu0
    %1884 = vmatprep.mubr.f32.mxu0 0.0
    %v1885 = vand.u32 %v1035, 4294901760
    %1886 = vmatmul.mubr.f32.gmra.mrb[0].mxu0 %v1885
    %v1887 = vpop.f32.mrb[0].mxu0
    %v1888 = vadd.f32 %v1767, %v1887
    %v1889 = vpop.f32.mrb[0].mxu0
    %1890 = vdwg.mxu0
    %v1891 = vmul.f32 %v1846, 0.35355338
    %v1892 = vmul.f32 %v1852, 0.35355338
    %v1893 = vmul.f32 %v1858, 0.35355338
    %v1894 = vmul.f32 %v1864, 0.35355338
    %v1895 = vmul.f32 %v1870, 0.35355338
    %v1896 = vmul.f32 %v1876, 0.35355338
    %v1897 = vmul.f32 %v1882, 0.35355338
    %v1898 = vmul.f32 %v1888, 0.35355338
    %v1899 = vadd.f32 %v1891, %v988
    %v1900 = vadd.f32 %v1892, %v989
    %v1901 = vadd.f32 %v1893, %v990
    %v1902 = vadd.f32 %v1894, %v991
    %v1903 = vadd.f32 %v1895, %v992
    %v1904 = vadd.f32 %v1896, %v993
    %v1905 = vadd.f32 %v1897, %v994
    %v1906 = vadd.f32 %v1898, %v995
    %vm1907 = vcmask 523264
    %v1908 = vsel %vm1907, %v1899, -inf
    %1909 = vmax.xlane.f32.xlu0 %v1908
    %v1910 = vpop.xlane.xlu0 %1909
    %v1911 = vsel %vm1907, %v1900, -inf
    %1912 = vmax.xlane.f32.xlu0 %v1911
    %v1913 = vpop.xlane.xlu0 %1912
    %v1914 = vsel %vm1907, %v1901, -inf
    %1915 = vmax.xlane.f32.xlu0 %v1914
    %v1916 = vpop.xlane.xlu0 %1915
    %v1917 = vsel %vm1907, %v1902, -inf
    %1918 = vmax.xlane.f32.xlu0 %v1917
    %v1919 = vpop.xlane.xlu0 %1918
    %v1920 = vsel %vm1907, %v1903, -inf
    %1921 = vmax.xlane.f32.xlu0 %v1920
    %v1922 = vpop.xlane.xlu0 %1921
    %v1923 = vsel %vm1907, %v1904, -inf
    %1924 = vmax.xlane.f32.xlu0 %v1923
    %v1925 = vpop.xlane.xlu0 %1924
    %v1926 = vsel %vm1907, %v1905, -inf
    %1927 = vmax.xlane.f32.xlu0 %v1926
    %v1928 = vpop.xlane.xlu0 %1927
    %v1929 = vsel %vm1907, %v1906, -inf
    %1930 = vmax.xlane.f32.xlu0 %v1929
    %v1931 = vpop.xlane.xlu0 %1930
    %v1932 = vsub.f32 %v1899, %v1910
    %v1933 = vsub.f32 %v1900, %v1913
    %v1934 = vsub.f32 %v1901, %v1916
    %v1935 = vsub.f32 %v1902, %v1919
    %v1936 = vsub.f32 %v1903, %v1922
    %v1937 = vsub.f32 %v1904, %v1925
    %v1938 = vsub.f32 %v1905, %v1928
    %v1939 = vsub.f32 %v1906, %v1931
    %v1940 = vmul.f32 %v1932, 1.442695
    %v1941 = vpow.pop %v1940
    %v1942 = vmul.f32 %v1933, 1.442695
    %v1943 = vpow.pop %v1942
    %v1944 = vmul.f32 %v1934, 1.442695
    %v1945 = vpow.pop %v1944
    %v1946 = vmul.f32 %v1935, 1.442695
    %v1947 = vpow.pop %v1946
    %v1948 = vmul.f32 %v1936, 1.442695
    %v1949 = vpow.pop %v1948
    %v1950 = vmul.f32 %v1937, 1.442695
    %v1951 = vpow.pop %v1950
    %v1952 = vmul.f32 %v1938, 1.442695
    %v1953 = vpow.pop %v1952
    %v1954 = vmul.f32 %v1939, 1.442695
    %v1955 = vpow.pop %v1954
    %v1956 = vsel %vm1907, %v1941, 0.0
    %1957 = vadd.xlane.f32.xlu0 %v1956
    %v1958 = vpop.xlane.xlu0 %1957
    %v1959 = vsel %vm1907, %v1943, 0.0
    %1960 = vadd.xlane.f32.xlu0 %v1959
    %v1961 = vpop.xlane.xlu0 %1960
    %v1962 = vsel %vm1907, %v1945, 0.0
    %1963 = vadd.xlane.f32.xlu0 %v1962
    %v1964 = vpop.xlane.xlu0 %1963
    %v1965 = vsel %vm1907, %v1947, 0.0
    %1966 = vadd.xlane.f32.xlu0 %v1965
    %v1967 = vpop.xlane.xlu0 %1966
    %v1968 = vsel %vm1907, %v1949, 0.0
    %1969 = vadd.xlane.f32.xlu0 %v1968
    %v1970 = vpop.xlane.xlu0 %1969
    %v1971 = vsel %vm1907, %v1951, 0.0
    %1972 = vadd.xlane.f32.xlu0 %v1971
    %v1973 = vpop.xlane.xlu0 %1972
    %v1974 = vsel %vm1907, %v1953, 0.0
    %1975 = vadd.xlane.f32.xlu0 %v1974
    %v1976 = vpop.xlane.xlu0 %1975
    %v1977 = vsel %vm1907, %v1955, 0.0
    %1978 = vadd.xlane.f32.xlu0 %v1977
    %v1979 = vpop.xlane.xlu0 %1978
    %v1980 = vrcp.pop %v1958
    %v1981 = vrcp.pop %v1961
    %v1982 = vrcp.pop %v1964
    %v1983 = vrcp.pop %v1967
    %v1984 = vrcp.pop %v1970
    %v1985 = vrcp.pop %v1973
    %v1986 = vrcp.pop %v1976
    %v1987 = vrcp.pop %v1979
    %v1988 = vmul.f32 %v1941, %v1980
    %v1989 = vmul.f32 %v1943, %v1981
    %v1990 = vmul.f32 %v1945, %v1982
    %v1991 = vmul.f32 %v1947, %v1983
    %v1992 = vmul.f32 %v1949, %v1984
    %v1993 = vmul.f32 %v1951, %v1985
    %v1994 = vmul.f32 %v1953, %v1986
    %v1995 = vmul.f32 %v1955, %v1987
    %v1997 = vsel %vm1907, %v1988, 0
    %v2000 = vsel %vm1907, %v1989, 0
    %v2003 = vsel %vm1907, %v1990, 0
    %v2006 = vsel %vm1907, %v1991, 0
    %v2009 = vsel %vm1907, %v1992, 0
    %v2012 = vsel %vm1907, %v1993, 0
    %v2015 = vsel %vm1907, %v1994, 0
    %v2018 = vsel %vm1907, %v1995, 0
    %2020 = vmatprep.subr.mxu0 0.0
    %v2021 = vand.u32 %v937, 4294901760
    %2022 = vmatpush1.msra.mxu0 %v2021
    %2023 = vmatprep.subr.mxu0 0.0
    %v2024 = vand.u32 %v944, 4294901760
    %2025 = vmatpush1.msra.mxu0 %v2024
    %2026 = vmatprep.subr.mxu0 0.0
    %v2027 = vand.u32 %v951, 4294901760
    %2028 = vmatpush1.msra.mxu0 %v2027
    %2029 = vmatprep.subr.mxu0 0.0
    %v2030 = vand.u32 %v958, 4294901760
    %2031 = vmatpush1.msra.mxu0 %v2030
    %2032 = vmatprep.subr.mxu0 0.0
    %v2033 = vand.u32 %v965, 4294901760
    %2034 = vmatpush1.msra.mxu0 %v2033
    %2035 = vmatprep.subr.mxu0 0.0
    %v2036 = vand.u32 %v972, 4294901760
    %2037 = vmatpush1.msra.mxu0 %v2036
    %2038 = vmatprep.subr.mxu0 0.0
    %v2039 = vand.u32 %v979, 4294901760
    %2040 = vmatpush1.msra.mxu0 %v2039
    %2041 = vmatprep.subr.mxu0 0.0
    %v2042 = vand.u32 %v986, 4294901760
    %2043 = vmatpush1.msra.mxu0 %v2042
    %2044 = vmatprep.subr.mxu0 0.0
    %2045 = vmatpush1.msra.mxu0 0.0
    %2046 = vmatprep.subr.mxu0 0.0
    %2047 = vmatpush1.msra.mxu0 0.0
    %2048 = vmatprep.subr.mxu0 0.0
    %2049 = vmatpush1.msra.mxu0 0.0
    %2050 = vmatprep.subr.mxu0 0.0
    %2051 = vmatpush1.msra.mxu0 0.0
    %2052 = vmatprep.subr.mxu0 0.0
    %2053 = vmatpush1.msra.mxu0 0.0
    %2054 = vmatprep.subr.mxu0 0.0
    %2055 = vmatpush1.msra.mxu0 0.0
    %2056 = vmatprep.subr.mxu0 0.0
    %2057 = vmatpush1.msra.mxu0 0.0
    %2058 = vmatprep.subr.mxu0 0.0
    %2059 = vmatpush1.msra.mxu0 0.0
    %2060 = vmatprep.subr.mxu0 0.0
    %2061 = vmatpush1.msra.mxu0 0.0
    %2062 = vmatprep.subr.mxu0 0.0
    %2063 = vmatpush1.msra.mxu0 0.0
    %2064 = vmatprep.subr.mxu0 0.0
    %2065 = vmatpush1.msra.mxu0 0.0
    %2066 = vmatprep.subr.mxu0 0.0
    %2067 = vmatpush1.msra.mxu0 0.0
    %2068 = vmatprep.subr.mxu0 0.0
    %2069 = vmatpush1.msra.mxu0 0.0
    %2070 = vmatprep.subr.mxu0 0.0
    %2071 = vmatpush1.msra.mxu0 0.0
    %2072 = vmatprep.subr.mxu0 0.0
    %2073 = vmatpush1.msra.mxu0 0.0
    %2074 = vmatprep.subr.mxu0 0.0
    %2075 = vmatpush1.msra.mxu0 0.0
    %2076 = vmatprep.subr.mxu0 0.0
    %2077 = vmatpush1.msra.mxu0 0.0
    %2078 = vmatprep.subr.mxu0 0.0
    %2079 = vmatpush1.msra.mxu0 0.0
    %2080 = vmatprep.subr.mxu0 0.0
    %2081 = vmatpush1.msra.mxu0 0.0
    %2082 = vmatprep.subr.mxu0 0.0
    %2083 = vmatpush1.msra.mxu0 0.0
    %2084 = vmatprep.subr.mxu0 0.0
    %2085 = vmatpush1.msra.mxu0 0.0
    %2086 = vmatprep.subr.mxu0 0.0
    %2087 = vmatpush1.msra.mxu0 0.0
    %2088 = vmatprep.subr.mxu0 0.0
    %2089 = vmatpush1.msra.mxu0 0.0
    %2090 = vmatprep.subr.mxu0 0.0
    %2091 = vmatpush1.msra.mxu0 0.0
    %2092 = vmatprep.mubr.f32.mxu0 0.0
    %v2093 = vand.u32 %v1997, 4294901760
    %v2094 = vsub.f32 %v1997, %v2093
    %v2095 = vand.u32 %v2094, 4294901760
    %v2096 = vsub.f32 %v2094, %v2095
    %v2097 = vand.u32 %v2096, 4294901760
    %2098 = vmatmul.mubr.f32.gmra.mrb[0].mxu0 %v2097
    %v2099 = vpop.f32.mrb[0].mxu0
    %v2100 = vadd.f32 0.0, %v2099
    %v2101 = vpop.f32.mrb[0].mxu0
    %2102 = vmatprep.mubr.f32.mxu0 0.0
    %v2103 = vand.u32 %v2000, 4294901760
    %v2104 = vsub.f32 %v2000, %v2103
    %v2105 = vand.u32 %v2104, 4294901760
    %v2106 = vsub.f32 %v2104, %v2105
    %v2107 = vand.u32 %v2106, 4294901760
    %2108 = vmatmul.mubr.f32.gmra.mrb[0].mxu0 %v2107
    %v2109 = vpop.f32.mrb[0].mxu0
    %v2110 = vadd.f32 0.0, %v2109
    %v2111 = vpop.f32.mrb[0].mxu0
    %2112 = vmatprep.mubr.f32.mxu0 0.0
    %v2113 = vand.u32 %v2003, 4294901760
    %v2114 = vsub.f32 %v2003, %v2113
    %v2115 = vand.u32 %v2114, 4294901760
    %v2116 = vsub.f32 %v2114, %v2115
    %v2117 = vand.u32 %v2116, 4294901760
    %2118 = vmatmul.mubr.f32.gmra.mrb[0].mxu0 %v2117
    %v2119 = vpop.f32.mrb[0].mxu0
    %v2120 = vadd.f32 0.0, %v2119
    %v2121 = vpop.f32.mrb[0].mxu0
    %2122 = vmatprep.mubr.f32.mxu0 0.0
    %v2123 = vand.u32 %v2006, 4294901760
    %v2124 = vsub.f32 %v2006, %v2123
    %v2125 = vand.u32 %v2124, 4294901760
    %v2126 = vsub.f32 %v2124, %v2125
    %v2127 = vand.u32 %v2126, 4294901760
    %2128 = vmatmul.mubr.f32.gmra.mrb[0].mxu0 %v2127
    %v2129 = vpop.f32.mrb[0].mxu0
    %v2130 = vadd.f32 0.0, %v2129
    %v2131 = vpop.f32.mrb[0].mxu0
    %2132 = vmatprep.mubr.f32.mxu0 0.0
    %v2133 = vand.u32 %v2009, 4294901760
    %v2134 = vsub.f32 %v2009, %v2133
    %v2135 = vand.u32 %v2134, 4294901760
    %v2136 = vsub.f32 %v2134, %v2135
    %v2137 = vand.u32 %v2136, 4294901760
    %2138 = vmatmul.mubr.f32.gmra.mrb[0].mxu0 %v2137
    %v2139 = vpop.f32.mrb[0].mxu0
    %v2140 = vadd.f32 0.0, %v2139
    %v2141 = vpop.f32.mrb[0].mxu0
    %2142 = vmatprep.mubr.f32.mxu0 0.0
    %v2143 = vand.u32 %v2012, 4294901760
    %v2144 = vsub.f32 %v2012, %v2143
    %v2145 = vand.u32 %v2144, 4294901760
    %v2146 = vsub.f32 %v2144, %v2145
    %v2147 = vand.u32 %v2146, 4294901760
    %2148 = vmatmul.mubr.f32.gmra.mrb[0].mxu0 %v2147
    %v2149 = vpop.f32.mrb[0].mxu0
    %v2150 = vadd.f32 0.0, %v2149
    %v2151 = vpop.f32.mrb[0].mxu0
    %2152 = vmatprep.mubr.f32.mxu0 0.0
    %v2153 = vand.u32 %v2015, 4294901760
    %v2154 = vsub.f32 %v2015, %v2153
    %v2155 = vand.u32 %v2154, 4294901760
    %v2156 = vsub.f32 %v2154, %v2155
    %v2157 = vand.u32 %v2156, 4294901760
    %2158 = vmatmul.mubr.f32.gmra.mrb[0].mxu0 %v2157
    %v2159 = vpop.f32.mrb[0].mxu0
    %v2160 = vadd.f32 0.0, %v2159
    %v2161 = vpop.f32.mrb[0].mxu0
    %2162 = vmatprep.mubr.f32.mxu0 0.0
    %v2163 = vand.u32 %v2018, 4294901760
    %v2164 = vsub.f32 %v2018, %v2163
    %v2165 = vand.u32 %v2164, 4294901760
    %v2166 = vsub.f32 %v2164, %v2165
    %v2167 = vand.u32 %v2166, 4294901760
    %2168 = vmatmul.mubr.f32.gmra.mrb[0].mxu0 %v2167
    %v2169 = vpop.f32.mrb[0].mxu0
    %v2170 = vadd.f32 0.0, %v2169
    %v2171 = vpop.f32.mrb[0].mxu0
    %2172 = vdwg.mxu0
    %2173 = vmatprep.subr.mxu0 0.0
    %v2174 = vand.u32 %v937, 4294901760
    %v2175 = vsub.f32 %v937, %v2174
    %v2176 = vand.u32 %v2175, 4294901760
    %v2177 = vsub.f32 %v2175, %v2176
    %v2178 = vand.u32 %v2177, 4294901760
    %2179 = vmatpush1.msra.mxu0 %v2178
    %2180 = vmatprep.subr.mxu0 0.0
    %v2181 = vand.u32 %v944, 4294901760
    %v2182 = vsub.f32 %v944, %v2181
    %v2183 = vand.u32 %v2182, 4294901760
    %v2184 = vsub.f32 %v2182, %v2183
    %v2185 = vand.u32 %v2184, 4294901760
    %2186 = vmatpush1.msra.mxu0 %v2185
    %2187 = vmatprep.subr.mxu0 0.0
    %v2188 = vand.u32 %v951, 4294901760
    %v2189 = vsub.f32 %v951, %v2188
    %v2190 = vand.u32 %v2189, 4294901760
    %v2191 = vsub.f32 %v2189, %v2190
    %v2192 = vand.u32 %v2191, 4294901760
    %2193 = vmatpush1.msra.mxu0 %v2192
    %2194 = vmatprep.subr.mxu0 0.0
    %v2195 = vand.u32 %v958, 4294901760
    %v2196 = vsub.f32 %v958, %v2195
    %v2197 = vand.u32 %v2196, 4294901760
    %v2198 = vsub.f32 %v2196, %v2197
    %v2199 = vand.u32 %v2198, 4294901760
    %2200 = vmatpush1.msra.mxu0 %v2199
    %2201 = vmatprep.subr.mxu0 0.0
    %v2202 = vand.u32 %v965, 4294901760
    %v2203 = vsub.f32 %v965, %v2202
    %v2204 = vand.u32 %v2203, 4294901760
    %v2205 = vsub.f32 %v2203, %v2204
    %v2206 = vand.u32 %v2205, 4294901760
    %2207 = vmatpush1.msra.mxu0 %v2206
    %2208 = vmatprep.subr.mxu0 0.0
    %v2209 = vand.u32 %v972, 4294901760
    %v2210 = vsub.f32 %v972, %v2209
    %v2211 = vand.u32 %v2210, 4294901760
    %v2212 = vsub.f32 %v2210, %v2211
    %v2213 = vand.u32 %v2212, 4294901760
    %2214 = vmatpush1.msra.mxu0 %v2213
    %2215 = vmatprep.subr.mxu0 0.0
    %v2216 = vand.u32 %v979, 4294901760
    %v2217 = vsub.f32 %v979, %v2216
    %v2218 = vand.u32 %v2217, 4294901760
    %v2219 = vsub.f32 %v2217, %v2218
    %v2220 = vand.u32 %v2219, 4294901760
    %2221 = vmatpush1.msra.mxu0 %v2220
    %2222 = vmatprep.subr.mxu0 0.0
    %v2223 = vand.u32 %v986, 4294901760
    %v2224 = vsub.f32 %v986, %v2223
    %v2225 = vand.u32 %v2224, 4294901760
    %v2226 = vsub.f32 %v2224, %v2225
    %v2227 = vand.u32 %v2226, 4294901760
    %2228 = vmatpush1.msra.mxu0 %v2227
    %2229 = vmatprep.subr.mxu0 0.0
    %2230 = vmatpush1.msra.mxu0 0.0
    %2231 = vmatprep.subr.mxu0 0.0
    %2232 = vmatpush1.msra.mxu0 0.0
    %2233 = vmatprep.subr.mxu0 0.0
    %2234 = vmatpush1.msra.mxu0 0.0
    %2235 = vmatprep.subr.mxu0 0.0
    %2236 = vmatpush1.msra.mxu0 0.0
    %2237 = vmatprep.subr.mxu0 0.0
    %2238 = vmatpush1.msra.mxu0 0.0
    %2239 = vmatprep.subr.mxu0 0.0
    %2240 = vmatpush1.msra.mxu0 0.0
    %2241 = vmatprep.subr.mxu0 0.0
    %2242 = vmatpush1.msra.mxu0 0.0
    %2243 = vmatprep.subr.mxu0 0.0
    %2244 = vmatpush1.msra.mxu0 0.0
    %2245 = vmatprep.subr.mxu0 0.0
    %2246 = vmatpush1.msra.mxu0 0.0
    %2247 = vmatprep.subr.mxu0 0.0
    %2248 = vmatpush1.msra.mxu0 0.0
    %2249 = vmatprep.subr.mxu0 0.0
    %2250 = vmatpush1.msra.mxu0 0.0
    %2251 = vmatprep.subr.mxu0 0.0
    %2252 = vmatpush1.msra.mxu0 0.0
    %2253 = vmatprep.subr.mxu0 0.0
    %2254 = vmatpush1.msra.mxu0 0.0
    %2255 = vmatprep.subr.mxu0 0.0
    %2256 = vmatpush1.msra.mxu0 0.0
    %2257 = vmatprep.subr.mxu0 0.0
    %2258 = vmatpush1.msra.mxu0 0.0
    %2259 = vmatprep.subr.mxu0 0.0
    %2260 = vmatpush1.msra.mxu0 0.0
    %2261 = vmatprep.subr.mxu0 0.0
    %2262 = vmatpush1.msra.mxu0 0.0
    %2263 = vmatprep.subr.mxu0 0.0
    %2264 = vmatpush1.msra.mxu0 0.0
    %2265 = vmatprep.subr.mxu0 0.0
    %2266 = vmatpush1.msra.mxu0 0.0
    %2267 = vmatprep.subr.mxu0 0.0
    %2268 = vmatpush1.msra.mxu0 0.0
    %2269 = vmatprep.subr.mxu0 0.0
    %2270 = vmatpush1.msra.mxu0 0.0
    %2271 = vmatprep.subr.mxu0 0.0
    %2272 = vmatpush1.msra.mxu0 0.0
    %2273 = vmatprep.subr.mxu0 0.0
    %2274 = vmatpush1.msra.mxu0 0.0
    %2275 = vmatprep.subr.mxu0 0.0
    %2276 = vmatpush1.msra.mxu0 0.0
    %2277 = vmatprep.mubr.f32.mxu0 0.0
    %v2278 = vand.u32 %v1997, 4294901760
    %2279 = vmatmul.mubr.f32.gmra.mrb[0].mxu0 %v2278
    %v2280 = vpop.f32.mrb[0].mxu0
    %v2281 = vadd.f32 %v2100, %v2280
    %v2282 = vpop.f32.mrb[0].mxu0
    %2283 = vmatprep.mubr.f32.mxu0 0.0
    %v2284 = vand.u32 %v2000, 4294901760
    %2285 = vmatmul.mubr.f32.gmra.mrb[0].mxu0 %v2284
    %v2286 = vpop.f32.mrb[0].mxu0
    %v2287 = vadd.f32 %v2110, %v2286
    %v2288 = vpop.f32.mrb[0].mxu0
    %2289 = vmatprep.mubr.f32.mxu0 0.0
    %v2290 = vand.u32 %v2003, 4294901760
    %2291 = vmatmul.mubr.f32.gmra.mrb[0].mxu0 %v2290
    %v2292 = vpop.f32.mrb[0].mxu0
    %v2293 = vadd.f32 %v2120, %v2292
    %v2294 = vpop.f32.mrb[0].mxu0
    %2295 = vmatprep.mubr.f32.mxu0 0.0
    %v2296 = vand.u32 %v2006, 4294901760
    %2297 = vmatmul.mubr.f32.gmra.mrb[0].mxu0 %v2296
    %v2298 = vpop.f32.mrb[0].mxu0
    %v2299 = vadd.f32 %v2130, %v2298
    %v2300 = vpop.f32.mrb[0].mxu0
    %2301 = vmatprep.mubr.f32.mxu0 0.0
    %v2302 = vand.u32 %v2009, 4294901760
    %2303 = vmatmul.mubr.f32.gmra.mrb[0].mxu0 %v2302
    %v2304 = vpop.f32.mrb[0].mxu0
    %v2305 = vadd.f32 %v2140, %v2304
    %v2306 = vpop.f32.mrb[0].mxu0
    %2307 = vmatprep.mubr.f32.mxu0 0.0
    %v2308 = vand.u32 %v2012, 4294901760
    %2309 = vmatmul.mubr.f32.gmra.mrb[0].mxu0 %v2308
    %v2310 = vpop.f32.mrb[0].mxu0
    %v2311 = vadd.f32 %v2150, %v2310
    %v2312 = vpop.f32.mrb[0].mxu0
    %2313 = vmatprep.mubr.f32.mxu0 0.0
    %v2314 = vand.u32 %v2015, 4294901760
    %2315 = vmatmul.mubr.f32.gmra.mrb[0].mxu0 %v2314
    %v2316 = vpop.f32.mrb[0].mxu0
    %v2317 = vadd.f32 %v2160, %v2316
    %v2318 = vpop.f32.mrb[0].mxu0
    %2319 = vmatprep.mubr.f32.mxu0 0.0
    %v2320 = vand.u32 %v2018, 4294901760
    %2321 = vmatmul.mubr.f32.gmra.mrb[0].mxu0 %v2320
    %v2322 = vpop.f32.mrb[0].mxu0
    %v2323 = vadd.f32 %v2170, %v2322
    %v2324 = vpop.f32.mrb[0].mxu0
    %2325 = vdwg.mxu0
    %2326 = vmatprep.subr.mxu0 0.0
    %v2327 = vand.u32 %v937, 4294901760
    %v2328 = vsub.f32 %v937, %v2327
    %2329 = vmatpush1.msra.mxu0 %v2328
    %2330 = vmatprep.subr.mxu0 0.0
    %v2331 = vand.u32 %v944, 4294901760
    %v2332 = vsub.f32 %v944, %v2331
    %2333 = vmatpush1.msra.mxu0 %v2332
    %2334 = vmatprep.subr.mxu0 0.0
    %v2335 = vand.u32 %v951, 4294901760
    %v2336 = vsub.f32 %v951, %v2335
    %2337 = vmatpush1.msra.mxu0 %v2336
    %2338 = vmatprep.subr.mxu0 0.0
    %v2339 = vand.u32 %v958, 4294901760
    %v2340 = vsub.f32 %v958, %v2339
    %2341 = vmatpush1.msra.mxu0 %v2340
    %2342 = vmatprep.subr.mxu0 0.0
    %v2343 = vand.u32 %v965, 4294901760
    %v2344 = vsub.f32 %v965, %v2343
    %2345 = vmatpush1.msra.mxu0 %v2344
    %2346 = vmatprep.subr.mxu0 0.0
    %v2347 = vand.u32 %v972, 4294901760
    %v2348 = vsub.f32 %v972, %v2347
    %2349 = vmatpush1.msra.mxu0 %v2348
    %2350 = vmatprep.subr.mxu0 0.0
    %v2351 = vand.u32 %v979, 4294901760
    %v2352 = vsub.f32 %v979, %v2351
    %2353 = vmatpush1.msra.mxu0 %v2352
    %2354 = vmatprep.subr.mxu0 0.0
    %v2355 = vand.u32 %v986, 4294901760
    %v2356 = vsub.f32 %v986, %v2355
    %2357 = vmatpush1.msra.mxu0 %v2356
    %2358 = vmatprep.subr.mxu0 0.0
    %2359 = vmatpush1.msra.mxu0 0.0
    %2360 = vmatprep.subr.mxu0 0.0
    %2361 = vmatpush1.msra.mxu0 0.0
    %2362 = vmatprep.subr.mxu0 0.0
    %2363 = vmatpush1.msra.mxu0 0.0
    %2364 = vmatprep.subr.mxu0 0.0
    %2365 = vmatpush1.msra.mxu0 0.0
    %2366 = vmatprep.subr.mxu0 0.0
    %2367 = vmatpush1.msra.mxu0 0.0
    %2368 = vmatprep.subr.mxu0 0.0
    %2369 = vmatpush1.msra.mxu0 0.0
    %2370 = vmatprep.subr.mxu0 0.0
    %2371 = vmatpush1.msra.mxu0 0.0
    %2372 = vmatprep.subr.mxu0 0.0
    %2373 = vmatpush1.msra.mxu0 0.0
    %2374 = vmatprep.subr.mxu0 0.0
    %2375 = vmatpush1.msra.mxu0 0.0
    %2376 = vmatprep.subr.mxu0 0.0
    %2377 = vmatpush1.msra.mxu0 0.0
    %2378 = vmatprep.subr.mxu0 0.0
    %2379 = vmatpush1.msra.mxu0 0.0
    %2380 = vmatprep.subr.mxu0 0.0
    %2381 = vmatpush1.msra.mxu0 0.0
    %2382 = vmatprep.subr.mxu0 0.0
    %2383 = vmatpush1.msra.mxu0 0.0
    %2384 = vmatprep.subr.mxu0 0.0
    %2385 = vmatpush1.msra.mxu0 0.0
    %2386 = vmatprep.subr.mxu0 0.0
    %2387 = vmatpush1.msra.mxu0 0.0
    %2388 = vmatprep.subr.mxu0 0.0
    %2389 = vmatpush1.msra.mxu0 0.0
    %2390 = vmatprep.subr.mxu0 0.0
    %2391 = vmatpush1.msra.mxu0 0.0
    %2392 = vmatprep.subr.mxu0 0.0
    %2393 = vmatpush1.msra.mxu0 0.0
    %2394 = vmatprep.subr.mxu0 0.0
    %2395 = vmatpush1.msra.mxu0 0.0
    %2396 = vmatprep.subr.mxu0 0.0
    %2397 = vmatpush1.msra.mxu0 0.0
    %2398 = vmatprep.subr.mxu0 0.0
    %2399 = vmatpush1.msra.mxu0 0.0
    %2400 = vmatprep.subr.mxu0 0.0
    %2401 = vmatpush1.msra.mxu0 0.0
    %2402 = vmatprep.subr.mxu0 0.0
    %2403 = vmatpush1.msra.mxu0 0.0
    %2404 = vmatprep.subr.mxu0 0.0
    %2405 = vmatpush1.msra.mxu0 0.0
    %2406 = vmatprep.mubr.f32.mxu0 0.0
    %v2407 = vand.u32 %v1997, 4294901760
    %v2408 = vsub.f32 %v1997, %v2407
    %2409 = vmatmul.mubr.f32.gmra.mrb[0].mxu0 %v2408
    %v2410 = vpop.f32.mrb[0].mxu0
    %v2411 = vadd.f32 %v2281, %v2410
    %v2412 = vpop.f32.mrb[0].mxu0
    %2413 = vmatprep.mubr.f32.mxu0 0.0
    %v2414 = vand.u32 %v2000, 4294901760
    %v2415 = vsub.f32 %v2000, %v2414
    %2416 = vmatmul.mubr.f32.gmra.mrb[0].mxu0 %v2415
    %v2417 = vpop.f32.mrb[0].mxu0
    %v2418 = vadd.f32 %v2287, %v2417
    %v2419 = vpop.f32.mrb[0].mxu0
    %2420 = vmatprep.mubr.f32.mxu0 0.0
    %v2421 = vand.u32 %v2003, 4294901760
    %v2422 = vsub.f32 %v2003, %v2421
    %2423 = vmatmul.mubr.f32.gmra.mrb[0].mxu0 %v2422
    %v2424 = vpop.f32.mrb[0].mxu0
    %v2425 = vadd.f32 %v2293, %v2424
    %v2426 = vpop.f32.mrb[0].mxu0
    %2427 = vmatprep.mubr.f32.mxu0 0.0
    %v2428 = vand.u32 %v2006, 4294901760
    %v2429 = vsub.f32 %v2006, %v2428
    %2430 = vmatmul.mubr.f32.gmra.mrb[0].mxu0 %v2429
    %v2431 = vpop.f32.mrb[0].mxu0
    %v2432 = vadd.f32 %v2299, %v2431
    %v2433 = vpop.f32.mrb[0].mxu0
    %2434 = vmatprep.mubr.f32.mxu0 0.0
    %v2435 = vand.u32 %v2009, 4294901760
    %v2436 = vsub.f32 %v2009, %v2435
    %2437 = vmatmul.mubr.f32.gmra.mrb[0].mxu0 %v2436
    %v2438 = vpop.f32.mrb[0].mxu0
    %v2439 = vadd.f32 %v2305, %v2438
    %v2440 = vpop.f32.mrb[0].mxu0
    %2441 = vmatprep.mubr.f32.mxu0 0.0
    %v2442 = vand.u32 %v2012, 4294901760
    %v2443 = vsub.f32 %v2012, %v2442
    %2444 = vmatmul.mubr.f32.gmra.mrb[0].mxu0 %v2443
    %v2445 = vpop.f32.mrb[0].mxu0
    %v2446 = vadd.f32 %v2311, %v2445
    %v2447 = vpop.f32.mrb[0].mxu0
    %2448 = vmatprep.mubr.f32.mxu0 0.0
    %v2449 = vand.u32 %v2015, 4294901760
    %v2450 = vsub.f32 %v2015, %v2449
    %2451 = vmatmul.mubr.f32.gmra.mrb[0].mxu0 %v2450
    %v2452 = vpop.f32.mrb[0].mxu0
    %v2453 = vadd.f32 %v2317, %v2452
    %v2454 = vpop.f32.mrb[0].mxu0
    %2455 = vmatprep.mubr.f32.mxu0 0.0
    %v2456 = vand.u32 %v2018, 4294901760
    %v2457 = vsub.f32 %v2018, %v2456
    %2458 = vmatmul.mubr.f32.gmra.mrb[0].mxu0 %v2457
    %v2459 = vpop.f32.mrb[0].mxu0
    %v2460 = vadd.f32 %v2323, %v2459
    %v2461 = vpop.f32.mrb[0].mxu0
    %2462 = vdwg.mxu0
    %2463 = vmatprep.subr.mxu0 0.0
    %v2464 = vand.u32 %v937, 4294901760
    %2465 = vmatpush1.msra.mxu0 %v2464
    %2466 = vmatprep.subr.mxu0 0.0
    %v2467 = vand.u32 %v944, 4294901760
    %2468 = vmatpush1.msra.mxu0 %v2467
    %2469 = vmatprep.subr.mxu0 0.0
    %v2470 = vand.u32 %v951, 4294901760
    %2471 = vmatpush1.msra.mxu0 %v2470
    %2472 = vmatprep.subr.mxu0 0.0
    %v2473 = vand.u32 %v958, 4294901760
    %2474 = vmatpush1.msra.mxu0 %v2473
    %2475 = vmatprep.subr.mxu0 0.0
    %v2476 = vand.u32 %v965, 4294901760
    %2477 = vmatpush1.msra.mxu0 %v2476
    %2478 = vmatprep.subr.mxu0 0.0
    %v2479 = vand.u32 %v972, 4294901760
    %2480 = vmatpush1.msra.mxu0 %v2479
    %2481 = vmatprep.subr.mxu0 0.0
    %v2482 = vand.u32 %v979, 4294901760
    %2483 = vmatpush1.msra.mxu0 %v2482
    %2484 = vmatprep.subr.mxu0 0.0
    %v2485 = vand.u32 %v986, 4294901760
    %2486 = vmatpush1.msra.mxu0 %v2485
    %2487 = vmatprep.subr.mxu0 0.0
    %2488 = vmatpush1.msra.mxu0 0.0
    %2489 = vmatprep.subr.mxu0 0.0
    %2490 = vmatpush1.msra.mxu0 0.0
    %2491 = vmatprep.subr.mxu0 0.0
    %2492 = vmatpush1.msra.mxu0 0.0
    %2493 = vmatprep.subr.mxu0 0.0
    %2494 = vmatpush1.msra.mxu0 0.0
    %2495 = vmatprep.subr.mxu0 0.0
    %2496 = vmatpush1.msra.mxu0 0.0
    %2497 = vmatprep.subr.mxu0 0.0
    %2498 = vmatpush1.msra.mxu0 0.0
    %2499 = vmatprep.subr.mxu0 0.0
    %2500 = vmatpush1.msra.mxu0 0.0
    %2501 = vmatprep.subr.mxu0 0.0
    %2502 = vmatpush1.msra.mxu0 0.0
    %2503 = vmatprep.subr.mxu0 0.0
    %2504 = vmatpush1.msra.mxu0 0.0
    %2505 = vmatprep.subr.mxu0 0.0
    %2506 = vmatpush1.msra.mxu0 0.0
    %2507 = vmatprep.subr.mxu0 0.0
    %2508 = vmatpush1.msra.mxu0 0.0
    %2509 = vmatprep.subr.mxu0 0.0
    %2510 = vmatpush1.msra.mxu0 0.0
    %2511 = vmatprep.subr.mxu0 0.0
    %2512 = vmatpush1.msra.mxu0 0.0
    %2513 = vmatprep.subr.mxu0 0.0
    %2514 = vmatpush1.msra.mxu0 0.0
    %2515 = vmatprep.subr.mxu0 0.0
    %2516 = vmatpush1.msra.mxu0 0.0
    %2517 = vmatprep.subr.mxu0 0.0
    %2518 = vmatpush1.msra.mxu0 0.0
    %2519 = vmatprep.subr.mxu0 0.0
    %2520 = vmatpush1.msra.mxu0 0.0
    %2521 = vmatprep.subr.mxu0 0.0
    %2522 = vmatpush1.msra.mxu0 0.0
    %2523 = vmatprep.subr.mxu0 0.0
    %2524 = vmatpush1.msra.mxu0 0.0
    %2525 = vmatprep.subr.mxu0 0.0
    %2526 = vmatpush1.msra.mxu0 0.0
    %2527 = vmatprep.subr.mxu0 0.0
    %2528 = vmatpush1.msra.mxu0 0.0
    %2529 = vmatprep.subr.mxu0 0.0
    %2530 = vmatpush1.msra.mxu0 0.0
    %2531 = vmatprep.subr.mxu0 0.0
    %2532 = vmatpush1.msra.mxu0 0.0
    %2533 = vmatprep.subr.mxu0 0.0
    %2534 = vmatpush1.msra.mxu0 0.0
    %2535 = vmatprep.mubr.f32.mxu0 0.0
    %v2536 = vand.u32 %v1997, 4294901760
    %v2537 = vsub.f32 %v1997, %v2536
    %v2538 = vand.u32 %v2537, 4294901760
    %2539 = vmatmul.mubr.f32.gmra.mrb[0].mxu0 %v2538
    %v2540 = vpop.f32.mrb[0].mxu0
    %v2541 = vadd.f32 %v2411, %v2540
    %v2542 = vpop.f32.mrb[0].mxu0
    %2543 = vmatprep.mubr.f32.mxu0 0.0
    %v2544 = vand.u32 %v2000, 4294901760
    %v2545 = vsub.f32 %v2000, %v2544
    %v2546 = vand.u32 %v2545, 4294901760
    %2547 = vmatmul.mubr.f32.gmra.mrb[0].mxu0 %v2546
    %v2548 = vpop.f32.mrb[0].mxu0
    %v2549 = vadd.f32 %v2418, %v2548
    %v2550 = vpop.f32.mrb[0].mxu0
    %2551 = vmatprep.mubr.f32.mxu0 0.0
    %v2552 = vand.u32 %v2003, 4294901760
    %v2553 = vsub.f32 %v2003, %v2552
    %v2554 = vand.u32 %v2553, 4294901760
    %2555 = vmatmul.mubr.f32.gmra.mrb[0].mxu0 %v2554
    %v2556 = vpop.f32.mrb[0].mxu0
    %v2557 = vadd.f32 %v2425, %v2556
    %v2558 = vpop.f32.mrb[0].mxu0
    %2559 = vmatprep.mubr.f32.mxu0 0.0
    %v2560 = vand.u32 %v2006, 4294901760
    %v2561 = vsub.f32 %v2006, %v2560
    %v2562 = vand.u32 %v2561, 4294901760
    %2563 = vmatmul.mubr.f32.gmra.mrb[0].mxu0 %v2562
    %v2564 = vpop.f32.mrb[0].mxu0
    %v2565 = vadd.f32 %v2432, %v2564
    %v2566 = vpop.f32.mrb[0].mxu0
    %2567 = vmatprep.mubr.f32.mxu0 0.0
    %v2568 = vand.u32 %v2009, 4294901760
    %v2569 = vsub.f32 %v2009, %v2568
    %v2570 = vand.u32 %v2569, 4294901760
    %2571 = vmatmul.mubr.f32.gmra.mrb[0].mxu0 %v2570
    %v2572 = vpop.f32.mrb[0].mxu0
    %v2573 = vadd.f32 %v2439, %v2572
    %v2574 = vpop.f32.mrb[0].mxu0
    %2575 = vmatprep.mubr.f32.mxu0 0.0
    %v2576 = vand.u32 %v2012, 4294901760
    %v2577 = vsub.f32 %v2012, %v2576
    %v2578 = vand.u32 %v2577, 4294901760
    %2579 = vmatmul.mubr.f32.gmra.mrb[0].mxu0 %v2578
    %v2580 = vpop.f32.mrb[0].mxu0
    %v2581 = vadd.f32 %v2446, %v2580
    %v2582 = vpop.f32.mrb[0].mxu0
    %2583 = vmatprep.mubr.f32.mxu0 0.0
    %v2584 = vand.u32 %v2015, 4294901760
    %v2585 = vsub.f32 %v2015, %v2584
    %v2586 = vand.u32 %v2585, 4294901760
    %2587 = vmatmul.mubr.f32.gmra.mrb[0].mxu0 %v2586
    %v2588 = vpop.f32.mrb[0].mxu0
    %v2589 = vadd.f32 %v2453, %v2588
    %v2590 = vpop.f32.mrb[0].mxu0
    %2591 = vmatprep.mubr.f32.mxu0 0.0
    %v2592 = vand.u32 %v2018, 4294901760
    %v2593 = vsub.f32 %v2018, %v2592
    %v2594 = vand.u32 %v2593, 4294901760
    %2595 = vmatmul.mubr.f32.gmra.mrb[0].mxu0 %v2594
    %v2596 = vpop.f32.mrb[0].mxu0
    %v2597 = vadd.f32 %v2460, %v2596
    %v2598 = vpop.f32.mrb[0].mxu0
    %2599 = vdwg.mxu0
    %2600 = vmatprep.subr.mxu0 0.0
    %v2601 = vand.u32 %v937, 4294901760
    %v2602 = vsub.f32 %v937, %v2601
    %v2603 = vand.u32 %v2602, 4294901760
    %2604 = vmatpush1.msra.mxu0 %v2603
    %2605 = vmatprep.subr.mxu0 0.0
    %v2606 = vand.u32 %v944, 4294901760
    %v2607 = vsub.f32 %v944, %v2606
    %v2608 = vand.u32 %v2607, 4294901760
    %2609 = vmatpush1.msra.mxu0 %v2608
    %2610 = vmatprep.subr.mxu0 0.0
    %v2611 = vand.u32 %v951, 4294901760
    %v2612 = vsub.f32 %v951, %v2611
    %v2613 = vand.u32 %v2612, 4294901760
    %2614 = vmatpush1.msra.mxu0 %v2613
    %2615 = vmatprep.subr.mxu0 0.0
    %v2616 = vand.u32 %v958, 4294901760
    %v2617 = vsub.f32 %v958, %v2616
    %v2618 = vand.u32 %v2617, 4294901760
    %2619 = vmatpush1.msra.mxu0 %v2618
    %2620 = vmatprep.subr.mxu0 0.0
    %v2621 = vand.u32 %v965, 4294901760
    %v2622 = vsub.f32 %v965, %v2621
    %v2623 = vand.u32 %v2622, 4294901760
    %2624 = vmatpush1.msra.mxu0 %v2623
    %2625 = vmatprep.subr.mxu0 0.0
    %v2626 = vand.u32 %v972, 4294901760
    %v2627 = vsub.f32 %v972, %v2626
    %v2628 = vand.u32 %v2627, 4294901760
    %2629 = vmatpush1.msra.mxu0 %v2628
    %2630 = vmatprep.subr.mxu0 0.0
    %v2631 = vand.u32 %v979, 4294901760
    %v2632 = vsub.f32 %v979, %v2631
    %v2633 = vand.u32 %v2632, 4294901760
    %2634 = vmatpush1.msra.mxu0 %v2633
    %2635 = vmatprep.subr.mxu0 0.0
    %v2636 = vand.u32 %v986, 4294901760
    %v2637 = vsub.f32 %v986, %v2636
    %v2638 = vand.u32 %v2637, 4294901760
    %2639 = vmatpush1.msra.mxu0 %v2638
    %2640 = vmatprep.subr.mxu0 0.0
    %2641 = vmatpush1.msra.mxu0 0.0
    %2642 = vmatprep.subr.mxu0 0.0
    %2643 = vmatpush1.msra.mxu0 0.0
    %2644 = vmatprep.subr.mxu0 0.0
    %2645 = vmatpush1.msra.mxu0 0.0
    %2646 = vmatprep.subr.mxu0 0.0
    %2647 = vmatpush1.msra.mxu0 0.0
    %2648 = vmatprep.subr.mxu0 0.0
    %2649 = vmatpush1.msra.mxu0 0.0
    %2650 = vmatprep.subr.mxu0 0.0
    %2651 = vmatpush1.msra.mxu0 0.0
    %2652 = vmatprep.subr.mxu0 0.0
    %2653 = vmatpush1.msra.mxu0 0.0
    %2654 = vmatprep.subr.mxu0 0.0
    %2655 = vmatpush1.msra.mxu0 0.0
    %2656 = vmatprep.subr.mxu0 0.0
    %2657 = vmatpush1.msra.mxu0 0.0
    %2658 = vmatprep.subr.mxu0 0.0
    %2659 = vmatpush1.msra.mxu0 0.0
    %2660 = vmatprep.subr.mxu0 0.0
    %2661 = vmatpush1.msra.mxu0 0.0
    %2662 = vmatprep.subr.mxu0 0.0
    %2663 = vmatpush1.msra.mxu0 0.0
    %2664 = vmatprep.subr.mxu0 0.0
    %2665 = vmatpush1.msra.mxu0 0.0
    %2666 = vmatprep.subr.mxu0 0.0
    %2667 = vmatpush1.msra.mxu0 0.0
    %2668 = vmatprep.subr.mxu0 0.0
    %2669 = vmatpush1.msra.mxu0 0.0
    %2670 = vmatprep.subr.mxu0 0.0
    %2671 = vmatpush1.msra.mxu0 0.0
    %2672 = vmatprep.subr.mxu0 0.0
    %2673 = vmatpush1.msra.mxu0 0.0
    %2674 = vmatprep.subr.mxu0 0.0
    %2675 = vmatpush1.msra.mxu0 0.0
    %2676 = vmatprep.subr.mxu0 0.0
    %2677 = vmatpush1.msra.mxu0 0.0
    %2678 = vmatprep.subr.mxu0 0.0
    %2679 = vmatpush1.msra.mxu0 0.0
    %2680 = vmatprep.subr.mxu0 0.0
    %2681 = vmatpush1.msra.mxu0 0.0
    %2682 = vmatprep.subr.mxu0 0.0
    %2683 = vmatpush1.msra.mxu0 0.0
    %2684 = vmatprep.subr.mxu0 0.0
    %2685 = vmatpush1.msra.mxu0 0.0
    %2686 = vmatprep.subr.mxu0 0.0
    %2687 = vmatpush1.msra.mxu0 0.0
    %2688 = vmatprep.mubr.f32.mxu0 0.0
    %v2689 = vand.u32 %v1997, 4294901760
    %2690 = vmatmul.mubr.f32.gmra.mrb[0].mxu0 %v2689
    %v2691 = vpop.f32.mrb[0].mxu0
    %v2692 = vadd.f32 %v2541, %v2691
    %v2693 = vpop.f32.mrb[0].mxu0
    %2694 = vmatprep.mubr.f32.mxu0 0.0
    %v2695 = vand.u32 %v2000, 4294901760
    %2696 = vmatmul.mubr.f32.gmra.mrb[0].mxu0 %v2695
    %v2697 = vpop.f32.mrb[0].mxu0
    %v2698 = vadd.f32 %v2549, %v2697
    %v2699 = vpop.f32.mrb[0].mxu0
    %2700 = vmatprep.mubr.f32.mxu0 0.0
    %v2701 = vand.u32 %v2003, 4294901760
    %2702 = vmatmul.mubr.f32.gmra.mrb[0].mxu0 %v2701
    %v2703 = vpop.f32.mrb[0].mxu0
    %v2704 = vadd.f32 %v2557, %v2703
    %v2705 = vpop.f32.mrb[0].mxu0
    %2706 = vmatprep.mubr.f32.mxu0 0.0
    %v2707 = vand.u32 %v2006, 4294901760
    %2708 = vmatmul.mubr.f32.gmra.mrb[0].mxu0 %v2707
    %v2709 = vpop.f32.mrb[0].mxu0
    %v2710 = vadd.f32 %v2565, %v2709
    %v2711 = vpop.f32.mrb[0].mxu0
    %2712 = vmatprep.mubr.f32.mxu0 0.0
    %v2713 = vand.u32 %v2009, 4294901760
    %2714 = vmatmul.mubr.f32.gmra.mrb[0].mxu0 %v2713
    %v2715 = vpop.f32.mrb[0].mxu0
    %v2716 = vadd.f32 %v2573, %v2715
    %v2717 = vpop.f32.mrb[0].mxu0
    %2718 = vmatprep.mubr.f32.mxu0 0.0
    %v2719 = vand.u32 %v2012, 4294901760
    %2720 = vmatmul.mubr.f32.gmra.mrb[0].mxu0 %v2719
    %v2721 = vpop.f32.mrb[0].mxu0
    %v2722 = vadd.f32 %v2581, %v2721
    %v2723 = vpop.f32.mrb[0].mxu0
    %2724 = vmatprep.mubr.f32.mxu0 0.0
    %v2725 = vand.u32 %v2015, 4294901760
    %2726 = vmatmul.mubr.f32.gmra.mrb[0].mxu0 %v2725
    %v2727 = vpop.f32.mrb[0].mxu0
    %v2728 = vadd.f32 %v2589, %v2727
    %v2729 = vpop.f32.mrb[0].mxu0
    %2730 = vmatprep.mubr.f32.mxu0 0.0
    %v2731 = vand.u32 %v2018, 4294901760
    %2732 = vmatmul.mubr.f32.gmra.mrb[0].mxu0 %v2731
    %v2733 = vpop.f32.mrb[0].mxu0
    %v2734 = vadd.f32 %v2597, %v2733
    %v2735 = vpop.f32.mrb[0].mxu0
    %2736 = vdwg.mxu0
    %2737 = vmatprep.subr.mxu0 0.0
    %v2738 = vand.u32 %v937, 4294901760
    %2739 = vmatpush1.msra.mxu0 %v2738
    %2740 = vmatprep.subr.mxu0 0.0
    %v2741 = vand.u32 %v944, 4294901760
    %2742 = vmatpush1.msra.mxu0 %v2741
    %2743 = vmatprep.subr.mxu0 0.0
    %v2744 = vand.u32 %v951, 4294901760
    %2745 = vmatpush1.msra.mxu0 %v2744
    %2746 = vmatprep.subr.mxu0 0.0
    %v2747 = vand.u32 %v958, 4294901760
    %2748 = vmatpush1.msra.mxu0 %v2747
    %2749 = vmatprep.subr.mxu0 0.0
    %v2750 = vand.u32 %v965, 4294901760
    %2751 = vmatpush1.msra.mxu0 %v2750
    %2752 = vmatprep.subr.mxu0 0.0
    %v2753 = vand.u32 %v972, 4294901760
    %2754 = vmatpush1.msra.mxu0 %v2753
    %2755 = vmatprep.subr.mxu0 0.0
    %v2756 = vand.u32 %v979, 4294901760
    %2757 = vmatpush1.msra.mxu0 %v2756
    %2758 = vmatprep.subr.mxu0 0.0
    %v2759 = vand.u32 %v986, 4294901760
    %2760 = vmatpush1.msra.mxu0 %v2759
    %2761 = vmatprep.subr.mxu0 0.0
    %2762 = vmatpush1.msra.mxu0 0.0
    %2763 = vmatprep.subr.mxu0 0.0
    %2764 = vmatpush1.msra.mxu0 0.0
    %2765 = vmatprep.subr.mxu0 0.0
    %2766 = vmatpush1.msra.mxu0 0.0
    %2767 = vmatprep.subr.mxu0 0.0
    %2768 = vmatpush1.msra.mxu0 0.0
    %2769 = vmatprep.subr.mxu0 0.0
    %2770 = vmatpush1.msra.mxu0 0.0
    %2771 = vmatprep.subr.mxu0 0.0
    %2772 = vmatpush1.msra.mxu0 0.0
    %2773 = vmatprep.subr.mxu0 0.0
    %2774 = vmatpush1.msra.mxu0 0.0
    %2775 = vmatprep.subr.mxu0 0.0
    %2776 = vmatpush1.msra.mxu0 0.0
    %2777 = vmatprep.subr.mxu0 0.0
    %2778 = vmatpush1.msra.mxu0 0.0
    %2779 = vmatprep.subr.mxu0 0.0
    %2780 = vmatpush1.msra.mxu0 0.0
    %2781 = vmatprep.subr.mxu0 0.0
    %2782 = vmatpush1.msra.mxu0 0.0
    %2783 = vmatprep.subr.mxu0 0.0
    %2784 = vmatpush1.msra.mxu0 0.0
    %2785 = vmatprep.subr.mxu0 0.0
    %2786 = vmatpush1.msra.mxu0 0.0
    %2787 = vmatprep.subr.mxu0 0.0
    %2788 = vmatpush1.msra.mxu0 0.0
    %2789 = vmatprep.subr.mxu0 0.0
    %2790 = vmatpush1.msra.mxu0 0.0
    %2791 = vmatprep.subr.mxu0 0.0
    %2792 = vmatpush1.msra.mxu0 0.0
    %2793 = vmatprep.subr.mxu0 0.0
    %2794 = vmatpush1.msra.mxu0 0.0
    %2795 = vmatprep.subr.mxu0 0.0
    %2796 = vmatpush1.msra.mxu0 0.0
    %2797 = vmatprep.subr.mxu0 0.0
    %2798 = vmatpush1.msra.mxu0 0.0
    %2799 = vmatprep.subr.mxu0 0.0
    %2800 = vmatpush1.msra.mxu0 0.0
    %2801 = vmatprep.subr.mxu0 0.0
    %2802 = vmatpush1.msra.mxu0 0.0
    %2803 = vmatprep.subr.mxu0 0.0
    %2804 = vmatpush1.msra.mxu0 0.0
    %2805 = vmatprep.subr.mxu0 0.0
    %2806 = vmatpush1.msra.mxu0 0.0
    %2807 = vmatprep.subr.mxu0 0.0
    %2808 = vmatpush1.msra.mxu0 0.0
    %2809 = vmatprep.mubr.f32.mxu0 0.0
    %v2810 = vand.u32 %v1997, 4294901760
    %2811 = vmatmul.mubr.f32.gmra.mrb[0].mxu0 %v2810
    %v2812 = vpop.f32.mrb[0].mxu0
    %v2813 = vadd.f32 %v2692, %v2812
    %v2814 = vpop.f32.mrb[0].mxu0
    %2815 = vmatprep.mubr.f32.mxu0 0.0
    %v2816 = vand.u32 %v2000, 4294901760
    %2817 = vmatmul.mubr.f32.gmra.mrb[0].mxu0 %v2816
    %v2818 = vpop.f32.mrb[0].mxu0
    %v2819 = vadd.f32 %v2698, %v2818
    %v2820 = vpop.f32.mrb[0].mxu0
    %2821 = vmatprep.mubr.f32.mxu0 0.0
    %v2822 = vand.u32 %v2003, 4294901760
    %2823 = vmatmul.mubr.f32.gmra.mrb[0].mxu0 %v2822
    %v2824 = vpop.f32.mrb[0].mxu0
    %v2825 = vadd.f32 %v2704, %v2824
    %v2826 = vpop.f32.mrb[0].mxu0
    %2827 = vmatprep.mubr.f32.mxu0 0.0
    %v2828 = vand.u32 %v2006, 4294901760
    %2829 = vmatmul.mubr.f32.gmra.mrb[0].mxu0 %v2828
    %v2830 = vpop.f32.mrb[0].mxu0
    %v2831 = vadd.f32 %v2710, %v2830
    %v2832 = vpop.f32.mrb[0].mxu0
    %2833 = vmatprep.mubr.f32.mxu0 0.0
    %v2834 = vand.u32 %v2009, 4294901760
    %2835 = vmatmul.mubr.f32.gmra.mrb[0].mxu0 %v2834
    %v2836 = vpop.f32.mrb[0].mxu0
    %v2837 = vadd.f32 %v2716, %v2836
    %v2838 = vpop.f32.mrb[0].mxu0
    %2839 = vmatprep.mubr.f32.mxu0 0.0
    %v2840 = vand.u32 %v2012, 4294901760
    %2841 = vmatmul.mubr.f32.gmra.mrb[0].mxu0 %v2840
    %v2842 = vpop.f32.mrb[0].mxu0
    %v2843 = vadd.f32 %v2722, %v2842
    %v2844 = vpop.f32.mrb[0].mxu0
    %2845 = vmatprep.mubr.f32.mxu0 0.0
    %v2846 = vand.u32 %v2015, 4294901760
    %2847 = vmatmul.mubr.f32.gmra.mrb[0].mxu0 %v2846
    %v2848 = vpop.f32.mrb[0].mxu0
    %v2849 = vadd.f32 %v2728, %v2848
    %v2850 = vpop.f32.mrb[0].mxu0
    %2851 = vmatprep.mubr.f32.mxu0 0.0
    %v2852 = vand.u32 %v2018, 4294901760
    %2853 = vmatmul.mubr.f32.gmra.mrb[0].mxu0 %v2852
    %v2854 = vpop.f32.mrb[0].mxu0
    %v2855 = vadd.f32 %v2734, %v2854
    %v2856 = vpop.f32.mrb[0].mxu0
    %2857 = vdwg.mxu0
    %2858 = vrot.lane.b32.xlu0 %v935, 112
    %v2859 = vpop.permute.xlu0 %2858
    %2860 = vrot.lane.b32.xlu0 %v942, 112
    %v2861 = vpop.permute.xlu0 %2860
    %2862 = vrot.lane.b32.xlu0 %v949, 112
    %v2863 = vpop.permute.xlu0 %2862
    %2864 = vrot.lane.b32.xlu0 %v956, 112
    %v2865 = vpop.permute.xlu0 %2864
    %2866 = vrot.lane.b32.xlu0 %v963, 112
    %v2867 = vpop.permute.xlu0 %2866
    %2868 = vrot.lane.b32.xlu0 %v970, 112
    %v2869 = vpop.permute.xlu0 %2868
    %2870 = vrot.lane.b32.xlu0 %v977, 112
    %v2871 = vpop.permute.xlu0 %2870
    %2872 = vrot.lane.b32.xlu0 %v984, 112
    %v2873 = vpop.permute.xlu0 %2872
    %2874 = vrot.lane.b32.xlu0 %v935, 48
    %v2875 = vpop.permute.xlu0 %2874
    %2876 = vrot.lane.b32.xlu0 %v942, 48
    %v2877 = vpop.permute.xlu0 %2876
    %2878 = vrot.lane.b32.xlu0 %v949, 48
    %v2879 = vpop.permute.xlu0 %2878
    %2880 = vrot.lane.b32.xlu0 %v956, 48
    %v2881 = vpop.permute.xlu0 %2880
    %2882 = vrot.lane.b32.xlu0 %v963, 48
    %v2883 = vpop.permute.xlu0 %2882
    %2884 = vrot.lane.b32.xlu0 %v970, 48
    %v2885 = vpop.permute.xlu0 %2884
    %2886 = vrot.lane.b32.xlu0 %v977, 48
    %v2887 = vpop.permute.xlu0 %2886
    %2888 = vrot.lane.b32.xlu0 %v984, 48
    %v2889 = vpop.permute.xlu0 %2888
    %v2890 = vsel %vm1020, %v2859, 0
    %v2892 = vsel %vm1020, %v2861, 0
    %v2894 = vsel %vm1020, %v2863, 0
    %v2896 = vsel %vm1020, %v2865, 0
    %v2898 = vsel %vm1020, %v2867, 0
    %v2900 = vsel %vm1020, %v2869, 0
    %v2902 = vsel %vm1020, %v2871, 0
    %v2904 = vsel %vm1020, %v2873, 0
    %v2906 = vsel %vm1020, %v2875, 0
    %v2908 = vsel %vm1020, %v2877, 0
    %v2910 = vsel %vm1020, %v2879, 0
    %v2912 = vsel %vm1020, %v2881, 0
    %v2914 = vsel %vm1020, %v2883, 0
    %v2916 = vsel %vm1020, %v2885, 0
    %v2918 = vsel %vm1020, %v2887, 0
    %v2920 = vsel %vm1020, %v2889, 0
    %2922 = vmatprep.subr.mxu0 0.0
    %v2923 = vand.u32 %v2906, 4294901760
    %2924 = vmatpush1.xpose.msra.mxu0 %v2923
    %2925 = vmatprep.subr.mxu0 0.0
    %v2926 = vand.u32 %v2908, 4294901760
    %2927 = vmatpush1.xpose.msra.mxu0 %v2926
    %2928 = vmatprep.subr.mxu0 0.0
    %v2929 = vand.u32 %v2910, 4294901760
    %2930 = vmatpush1.xpose.msra.mxu0 %v2929
    %2931 = vmatprep.subr.mxu0 0.0
    %v2932 = vand.u32 %v2912, 4294901760
    %2933 = vmatpush1.xpose.msra.mxu0 %v2932
    %2934 = vmatprep.subr.mxu0 0.0
    %v2935 = vand.u32 %v2914, 4294901760
    %2936 = vmatpush1.xpose.msra.mxu0 %v2935
    %2937 = vmatprep.subr.mxu0 0.0
    %v2938 = vand.u32 %v2916, 4294901760
    %2939 = vmatpush1.xpose.msra.mxu0 %v2938
    %2940 = vmatprep.subr.mxu0 0.0
    %v2941 = vand.u32 %v2918, 4294901760
    %2942 = vmatpush1.xpose.msra.mxu0 %v2941
    %2943 = vmatprep.subr.mxu0 0.0
    %v2944 = vand.u32 %v2920, 4294901760
    %2945 = vmatpush1.xpose.msra.mxu0 %v2944
    %2946 = vmatprep.subr.mxu0 0.0
    %2947 = vmatpush1.xpose.msra.mxu0 0.0
    %2948 = vmatprep.subr.mxu0 0.0
    %2949 = vmatpush1.xpose.msra.mxu0 0.0
    %2950 = vmatprep.subr.mxu0 0.0
    %2951 = vmatpush1.xpose.msra.mxu0 0.0
    %2952 = vmatprep.subr.mxu0 0.0
    %2953 = vmatpush1.xpose.msra.mxu0 0.0
    %2954 = vmatprep.subr.mxu0 0.0
    %2955 = vmatpush1.xpose.msra.mxu0 0.0
    %2956 = vmatprep.subr.mxu0 0.0
    %2957 = vmatpush1.xpose.msra.mxu0 0.0
    %2958 = vmatprep.subr.mxu0 0.0
    %2959 = vmatpush1.xpose.msra.mxu0 0.0
    %2960 = vmatprep.subr.mxu0 0.0
    %2961 = vmatpush1.xpose.msra.mxu0 0.0
    %2962 = vmatprep.subr.mxu0 0.0
    %2963 = vmatpush1.xpose.msra.mxu0 0.0
    %2964 = vmatprep.subr.mxu0 0.0
    %2965 = vmatpush1.xpose.msra.mxu0 0.0
    %2966 = vmatprep.subr.mxu0 0.0
    %2967 = vmatpush1.xpose.msra.mxu0 0.0
    %2968 = vmatprep.subr.mxu0 0.0
    %2969 = vmatpush1.xpose.msra.mxu0 0.0
    %2970 = vmatprep.subr.mxu0 0.0
    %2971 = vmatpush1.xpose.msra.mxu0 0.0
    %2972 = vmatprep.subr.mxu0 0.0
    %2973 = vmatpush1.xpose.msra.mxu0 0.0
    %2974 = vmatprep.subr.mxu0 0.0
    %2975 = vmatpush1.xpose.msra.mxu0 0.0
    %2976 = vmatprep.subr.mxu0 0.0
    %2977 = vmatpush1.xpose.msra.mxu0 0.0
    %2978 = vmatprep.subr.mxu0 0.0
    %2979 = vmatpush1.xpose.msra.mxu0 0.0
    %2980 = vmatprep.subr.mxu0 0.0
    %2981 = vmatpush1.xpose.msra.mxu0 0.0
    %2982 = vmatprep.subr.mxu0 0.0
    %2983 = vmatpush1.xpose.msra.mxu0 0.0
    %2984 = vmatprep.subr.mxu0 0.0
    %2985 = vmatpush1.xpose.msra.mxu0 0.0
    %2986 = vmatprep.subr.mxu0 0.0
    %2987 = vmatpush1.xpose.msra.mxu0 0.0
    %2988 = vmatprep.subr.mxu0 0.0
    %2989 = vmatpush1.xpose.msra.mxu0 0.0
    %2990 = vmatprep.subr.mxu0 0.0
    %2991 = vmatpush1.xpose.msra.mxu0 0.0
    %2992 = vmatprep.subr.mxu0 0.0
    %2993 = vmatpush1.xpose.msra.mxu0 0.0
    %2994 = vmatprep.mubr.f32.mxu0 0.0
    %v2995 = vand.u32 %v2890, 4294901760
    %v2996 = vsub.f32 %v2890, %v2995
    %v2997 = vand.u32 %v2996, 4294901760
    %v2998 = vsub.f32 %v2996, %v2997
    %v2999 = vand.u32 %v2998, 4294901760
    %3000 = vmatmul.mubr.f32.gmra.mrb[0].mxu0 %v2999
    %v3001 = vpop.f32.mrb[0].mxu0
    %v3002 = vadd.f32 0.0, %v3001
    %v3003 = vpop.f32.mrb[0].mxu0
    %3004 = vmatprep.mubr.f32.mxu0 0.0
    %v3005 = vand.u32 %v2892, 4294901760
    %v3006 = vsub.f32 %v2892, %v3005
    %v3007 = vand.u32 %v3006, 4294901760
    %v3008 = vsub.f32 %v3006, %v3007
    %v3009 = vand.u32 %v3008, 4294901760
    %3010 = vmatmul.mubr.f32.gmra.mrb[0].mxu0 %v3009
    %v3011 = vpop.f32.mrb[0].mxu0
    %v3012 = vadd.f32 0.0, %v3011
    %v3013 = vpop.f32.mrb[0].mxu0
    %3014 = vmatprep.mubr.f32.mxu0 0.0
    %v3015 = vand.u32 %v2894, 4294901760
    %v3016 = vsub.f32 %v2894, %v3015
    %v3017 = vand.u32 %v3016, 4294901760
    %v3018 = vsub.f32 %v3016, %v3017
    %v3019 = vand.u32 %v3018, 4294901760
    %3020 = vmatmul.mubr.f32.gmra.mrb[0].mxu0 %v3019
    %v3021 = vpop.f32.mrb[0].mxu0
    %v3022 = vadd.f32 0.0, %v3021
    %v3023 = vpop.f32.mrb[0].mxu0
    %3024 = vmatprep.mubr.f32.mxu0 0.0
    %v3025 = vand.u32 %v2896, 4294901760
    %v3026 = vsub.f32 %v2896, %v3025
    %v3027 = vand.u32 %v3026, 4294901760
    %v3028 = vsub.f32 %v3026, %v3027
    %v3029 = vand.u32 %v3028, 4294901760
    %3030 = vmatmul.mubr.f32.gmra.mrb[0].mxu0 %v3029
    %v3031 = vpop.f32.mrb[0].mxu0
    %v3032 = vadd.f32 0.0, %v3031
    %v3033 = vpop.f32.mrb[0].mxu0
    %3034 = vmatprep.mubr.f32.mxu0 0.0
    %v3035 = vand.u32 %v2898, 4294901760
    %v3036 = vsub.f32 %v2898, %v3035
    %v3037 = vand.u32 %v3036, 4294901760
    %v3038 = vsub.f32 %v3036, %v3037
    %v3039 = vand.u32 %v3038, 4294901760
    %3040 = vmatmul.mubr.f32.gmra.mrb[0].mxu0 %v3039
    %v3041 = vpop.f32.mrb[0].mxu0
    %v3042 = vadd.f32 0.0, %v3041
    %v3043 = vpop.f32.mrb[0].mxu0
    %3044 = vmatprep.mubr.f32.mxu0 0.0
    %v3045 = vand.u32 %v2900, 4294901760
    %v3046 = vsub.f32 %v2900, %v3045
    %v3047 = vand.u32 %v3046, 4294901760
    %v3048 = vsub.f32 %v3046, %v3047
    %v3049 = vand.u32 %v3048, 4294901760
    %3050 = vmatmul.mubr.f32.gmra.mrb[0].mxu0 %v3049
    %v3051 = vpop.f32.mrb[0].mxu0
    %v3052 = vadd.f32 0.0, %v3051
    %v3053 = vpop.f32.mrb[0].mxu0
    %3054 = vmatprep.mubr.f32.mxu0 0.0
    %v3055 = vand.u32 %v2902, 4294901760
    %v3056 = vsub.f32 %v2902, %v3055
    %v3057 = vand.u32 %v3056, 4294901760
    %v3058 = vsub.f32 %v3056, %v3057
    %v3059 = vand.u32 %v3058, 4294901760
    %3060 = vmatmul.mubr.f32.gmra.mrb[0].mxu0 %v3059
    %v3061 = vpop.f32.mrb[0].mxu0
    %v3062 = vadd.f32 0.0, %v3061
    %v3063 = vpop.f32.mrb[0].mxu0
    %3064 = vmatprep.mubr.f32.mxu0 0.0
    %v3065 = vand.u32 %v2904, 4294901760
    %v3066 = vsub.f32 %v2904, %v3065
    %v3067 = vand.u32 %v3066, 4294901760
    %v3068 = vsub.f32 %v3066, %v3067
    %v3069 = vand.u32 %v3068, 4294901760
    %3070 = vmatmul.mubr.f32.gmra.mrb[0].mxu0 %v3069
    %v3071 = vpop.f32.mrb[0].mxu0
    %v3072 = vadd.f32 0.0, %v3071
    %v3073 = vpop.f32.mrb[0].mxu0
    %3074 = vdwg.mxu0
    %3075 = vmatprep.subr.mxu0 0.0
    %v3076 = vand.u32 %v2906, 4294901760
    %v3077 = vsub.f32 %v2906, %v3076
    %v3078 = vand.u32 %v3077, 4294901760
    %v3079 = vsub.f32 %v3077, %v3078
    %v3080 = vand.u32 %v3079, 4294901760
    %3081 = vmatpush1.xpose.msra.mxu0 %v3080
    %3082 = vmatprep.subr.mxu0 0.0
    %v3083 = vand.u32 %v2908, 4294901760
    %v3084 = vsub.f32 %v2908, %v3083
    %v3085 = vand.u32 %v3084, 4294901760
    %v3086 = vsub.f32 %v3084, %v3085
    %v3087 = vand.u32 %v3086, 4294901760
    %3088 = vmatpush1.xpose.msra.mxu0 %v3087
    %3089 = vmatprep.subr.mxu0 0.0
    %v3090 = vand.u32 %v2910, 4294901760
    %v3091 = vsub.f32 %v2910, %v3090
    %v3092 = vand.u32 %v3091, 4294901760
    %v3093 = vsub.f32 %v3091, %v3092
    %v3094 = vand.u32 %v3093, 4294901760
    %3095 = vmatpush1.xpose.msra.mxu0 %v3094
    %3096 = vmatprep.subr.mxu0 0.0
    %v3097 = vand.u32 %v2912, 4294901760
    %v3098 = vsub.f32 %v2912, %v3097
    %v3099 = vand.u32 %v3098, 4294901760
    %v3100 = vsub.f32 %v3098, %v3099
    %v3101 = vand.u32 %v3100, 4294901760
    %3102 = vmatpush1.xpose.msra.mxu0 %v3101
    %3103 = vmatprep.subr.mxu0 0.0
    %v3104 = vand.u32 %v2914, 4294901760
    %v3105 = vsub.f32 %v2914, %v3104
    %v3106 = vand.u32 %v3105, 4294901760
    %v3107 = vsub.f32 %v3105, %v3106
    %v3108 = vand.u32 %v3107, 4294901760
    %3109 = vmatpush1.xpose.msra.mxu0 %v3108
    %3110 = vmatprep.subr.mxu0 0.0
    %v3111 = vand.u32 %v2916, 4294901760
    %v3112 = vsub.f32 %v2916, %v3111
    %v3113 = vand.u32 %v3112, 4294901760
    %v3114 = vsub.f32 %v3112, %v3113
    %v3115 = vand.u32 %v3114, 4294901760
    %3116 = vmatpush1.xpose.msra.mxu0 %v3115
    %3117 = vmatprep.subr.mxu0 0.0
    %v3118 = vand.u32 %v2918, 4294901760
    %v3119 = vsub.f32 %v2918, %v3118
    %v3120 = vand.u32 %v3119, 4294901760
    %v3121 = vsub.f32 %v3119, %v3120
    %v3122 = vand.u32 %v3121, 4294901760
    %3123 = vmatpush1.xpose.msra.mxu0 %v3122
    %3124 = vmatprep.subr.mxu0 0.0
    %v3125 = vand.u32 %v2920, 4294901760
    %v3126 = vsub.f32 %v2920, %v3125
    %v3127 = vand.u32 %v3126, 4294901760
    %v3128 = vsub.f32 %v3126, %v3127
    %v3129 = vand.u32 %v3128, 4294901760
    %3130 = vmatpush1.xpose.msra.mxu0 %v3129
    %3131 = vmatprep.subr.mxu0 0.0
    %3132 = vmatpush1.xpose.msra.mxu0 0.0
    %3133 = vmatprep.subr.mxu0 0.0
    %3134 = vmatpush1.xpose.msra.mxu0 0.0
    %3135 = vmatprep.subr.mxu0 0.0
    %3136 = vmatpush1.xpose.msra.mxu0 0.0
    %3137 = vmatprep.subr.mxu0 0.0
    %3138 = vmatpush1.xpose.msra.mxu0 0.0
    %3139 = vmatprep.subr.mxu0 0.0
    %3140 = vmatpush1.xpose.msra.mxu0 0.0
    %3141 = vmatprep.subr.mxu0 0.0
    %3142 = vmatpush1.xpose.msra.mxu0 0.0
    %3143 = vmatprep.subr.mxu0 0.0
    %3144 = vmatpush1.xpose.msra.mxu0 0.0
    %3145 = vmatprep.subr.mxu0 0.0
    %3146 = vmatpush1.xpose.msra.mxu0 0.0
    %3147 = vmatprep.subr.mxu0 0.0
    %3148 = vmatpush1.xpose.msra.mxu0 0.0
    %3149 = vmatprep.subr.mxu0 0.0
    %3150 = vmatpush1.xpose.msra.mxu0 0.0
    %3151 = vmatprep.subr.mxu0 0.0
    %3152 = vmatpush1.xpose.msra.mxu0 0.0
    %3153 = vmatprep.subr.mxu0 0.0
    %3154 = vmatpush1.xpose.msra.mxu0 0.0
    %3155 = vmatprep.subr.mxu0 0.0
    %3156 = vmatpush1.xpose.msra.mxu0 0.0
    %3157 = vmatprep.subr.mxu0 0.0
    %3158 = vmatpush1.xpose.msra.mxu0 0.0
    %3159 = vmatprep.subr.mxu0 0.0
    %3160 = vmatpush1.xpose.msra.mxu0 0.0
    %3161 = vmatprep.subr.mxu0 0.0
    %3162 = vmatpush1.xpose.msra.mxu0 0.0
    %3163 = vmatprep.subr.mxu0 0.0
    %3164 = vmatpush1.xpose.msra.mxu0 0.0
    %3165 = vmatprep.subr.mxu0 0.0
    %3166 = vmatpush1.xpose.msra.mxu0 0.0
    %3167 = vmatprep.subr.mxu0 0.0
    %3168 = vmatpush1.xpose.msra.mxu0 0.0
    %3169 = vmatprep.subr.mxu0 0.0
    %3170 = vmatpush1.xpose.msra.mxu0 0.0
    %3171 = vmatprep.subr.mxu0 0.0
    %3172 = vmatpush1.xpose.msra.mxu0 0.0
    %3173 = vmatprep.subr.mxu0 0.0
    %3174 = vmatpush1.xpose.msra.mxu0 0.0
    %3175 = vmatprep.subr.mxu0 0.0
    %3176 = vmatpush1.xpose.msra.mxu0 0.0
    %3177 = vmatprep.subr.mxu0 0.0
    %3178 = vmatpush1.xpose.msra.mxu0 0.0
    %3179 = vmatprep.mubr.f32.mxu0 0.0
    %v3180 = vand.u32 %v2890, 4294901760
    %3181 = vmatmul.mubr.f32.gmra.mrb[0].mxu0 %v3180
    %v3182 = vpop.f32.mrb[0].mxu0
    %v3183 = vadd.f32 %v3002, %v3182
    %v3184 = vpop.f32.mrb[0].mxu0
    %3185 = vmatprep.mubr.f32.mxu0 0.0
    %v3186 = vand.u32 %v2892, 4294901760
    %3187 = vmatmul.mubr.f32.gmra.mrb[0].mxu0 %v3186
    %v3188 = vpop.f32.mrb[0].mxu0
    %v3189 = vadd.f32 %v3012, %v3188
    %v3190 = vpop.f32.mrb[0].mxu0
    %3191 = vmatprep.mubr.f32.mxu0 0.0
    %v3192 = vand.u32 %v2894, 4294901760
    %3193 = vmatmul.mubr.f32.gmra.mrb[0].mxu0 %v3192
    %v3194 = vpop.f32.mrb[0].mxu0
    %v3195 = vadd.f32 %v3022, %v3194
    %v3196 = vpop.f32.mrb[0].mxu0
    %3197 = vmatprep.mubr.f32.mxu0 0.0
    %v3198 = vand.u32 %v2896, 4294901760
    %3199 = vmatmul.mubr.f32.gmra.mrb[0].mxu0 %v3198
    %v3200 = vpop.f32.mrb[0].mxu0
    %v3201 = vadd.f32 %v3032, %v3200
    %v3202 = vpop.f32.mrb[0].mxu0
    %3203 = vmatprep.mubr.f32.mxu0 0.0
    %v3204 = vand.u32 %v2898, 4294901760
    %3205 = vmatmul.mubr.f32.gmra.mrb[0].mxu0 %v3204
    %v3206 = vpop.f32.mrb[0].mxu0
    %v3207 = vadd.f32 %v3042, %v3206
    %v3208 = vpop.f32.mrb[0].mxu0
    %3209 = vmatprep.mubr.f32.mxu0 0.0
    %v3210 = vand.u32 %v2900, 4294901760
    %3211 = vmatmul.mubr.f32.gmra.mrb[0].mxu0 %v3210
    %v3212 = vpop.f32.mrb[0].mxu0
    %v3213 = vadd.f32 %v3052, %v3212
    %v3214 = vpop.f32.mrb[0].mxu0
    %3215 = vmatprep.mubr.f32.mxu0 0.0
    %v3216 = vand.u32 %v2902, 4294901760
    %3217 = vmatmul.mubr.f32.gmra.mrb[0].mxu0 %v3216
    %v3218 = vpop.f32.mrb[0].mxu0
    %v3219 = vadd.f32 %v3062, %v3218
    %v3220 = vpop.f32.mrb[0].mxu0
    %3221 = vmatprep.mubr.f32.mxu0 0.0
    %v3222 = vand.u32 %v2904, 4294901760
    %3223 = vmatmul.mubr.f32.gmra.mrb[0].mxu0 %v3222
    %v3224 = vpop.f32.mrb[0].mxu0
    %v3225 = vadd.f32 %v3072, %v3224
    %v3226 = vpop.f32.mrb[0].mxu0
    %3227 = vdwg.mxu0
    %3228 = vmatprep.subr.mxu0 0.0
    %v3229 = vand.u32 %v2906, 4294901760
    %v3230 = vsub.f32 %v2906, %v3229
    %3231 = vmatpush1.xpose.msra.mxu0 %v3230
    %3232 = vmatprep.subr.mxu0 0.0
    %v3233 = vand.u32 %v2908, 4294901760
    %v3234 = vsub.f32 %v2908, %v3233
    %3235 = vmatpush1.xpose.msra.mxu0 %v3234
    %3236 = vmatprep.subr.mxu0 0.0
    %v3237 = vand.u32 %v2910, 4294901760
    %v3238 = vsub.f32 %v2910, %v3237
    %3239 = vmatpush1.xpose.msra.mxu0 %v3238
    %3240 = vmatprep.subr.mxu0 0.0
    %v3241 = vand.u32 %v2912, 4294901760
    %v3242 = vsub.f32 %v2912, %v3241
    %3243 = vmatpush1.xpose.msra.mxu0 %v3242
    %3244 = vmatprep.subr.mxu0 0.0
    %v3245 = vand.u32 %v2914, 4294901760
    %v3246 = vsub.f32 %v2914, %v3245
    %3247 = vmatpush1.xpose.msra.mxu0 %v3246
    %3248 = vmatprep.subr.mxu0 0.0
    %v3249 = vand.u32 %v2916, 4294901760
    %v3250 = vsub.f32 %v2916, %v3249
    %3251 = vmatpush1.xpose.msra.mxu0 %v3250
    %3252 = vmatprep.subr.mxu0 0.0
    %v3253 = vand.u32 %v2918, 4294901760
    %v3254 = vsub.f32 %v2918, %v3253
    %3255 = vmatpush1.xpose.msra.mxu0 %v3254
    %3256 = vmatprep.subr.mxu0 0.0
    %v3257 = vand.u32 %v2920, 4294901760
    %v3258 = vsub.f32 %v2920, %v3257
    %3259 = vmatpush1.xpose.msra.mxu0 %v3258
    %3260 = vmatprep.subr.mxu0 0.0
    %3261 = vmatpush1.xpose.msra.mxu0 0.0
    %3262 = vmatprep.subr.mxu0 0.0
    %3263 = vmatpush1.xpose.msra.mxu0 0.0
    %3264 = vmatprep.subr.mxu0 0.0
    %3265 = vmatpush1.xpose.msra.mxu0 0.0
    %3266 = vmatprep.subr.mxu0 0.0
    %3267 = vmatpush1.xpose.msra.mxu0 0.0
    %3268 = vmatprep.subr.mxu0 0.0
    %3269 = vmatpush1.xpose.msra.mxu0 0.0
    %3270 = vmatprep.subr.mxu0 0.0
    %3271 = vmatpush1.xpose.msra.mxu0 0.0
    %3272 = vmatprep.subr.mxu0 0.0
    %3273 = vmatpush1.xpose.msra.mxu0 0.0
    %3274 = vmatprep.subr.mxu0 0.0
    %3275 = vmatpush1.xpose.msra.mxu0 0.0
    %3276 = vmatprep.subr.mxu0 0.0
    %3277 = vmatpush1.xpose.msra.mxu0 0.0
    %3278 = vmatprep.subr.mxu0 0.0
    %3279 = vmatpush1.xpose.msra.mxu0 0.0
    %3280 = vmatprep.subr.mxu0 0.0
    %3281 = vmatpush1.xpose.msra.mxu0 0.0
    %3282 = vmatprep.subr.mxu0 0.0
    %3283 = vmatpush1.xpose.msra.mxu0 0.0
    %3284 = vmatprep.subr.mxu0 0.0
    %3285 = vmatpush1.xpose.msra.mxu0 0.0
    %3286 = vmatprep.subr.mxu0 0.0
    %3287 = vmatpush1.xpose.msra.mxu0 0.0
    %3288 = vmatprep.subr.mxu0 0.0
    %3289 = vmatpush1.xpose.msra.mxu0 0.0
    %3290 = vmatprep.subr.mxu0 0.0
    %3291 = vmatpush1.xpose.msra.mxu0 0.0
    %3292 = vmatprep.subr.mxu0 0.0
    %3293 = vmatpush1.xpose.msra.mxu0 0.0
    %3294 = vmatprep.subr.mxu0 0.0
    %3295 = vmatpush1.xpose.msra.mxu0 0.0
    %3296 = vmatprep.subr.mxu0 0.0
    %3297 = vmatpush1.xpose.msra.mxu0 0.0
    %3298 = vmatprep.subr.mxu0 0.0
    %3299 = vmatpush1.xpose.msra.mxu0 0.0
    %3300 = vmatprep.subr.mxu0 0.0
    %3301 = vmatpush1.xpose.msra.mxu0 0.0
    %3302 = vmatprep.subr.mxu0 0.0
    %3303 = vmatpush1.xpose.msra.mxu0 0.0
    %3304 = vmatprep.subr.mxu0 0.0
    %3305 = vmatpush1.xpose.msra.mxu0 0.0
    %3306 = vmatprep.subr.mxu0 0.0
    %3307 = vmatpush1.xpose.msra.mxu0 0.0
    %3308 = vmatprep.mubr.f32.mxu0 0.0
    %v3309 = vand.u32 %v2890, 4294901760
    %v3310 = vsub.f32 %v2890, %v3309
    %3311 = vmatmul.mubr.f32.gmra.mrb[0].mxu0 %v3310
    %v3312 = vpop.f32.mrb[0].mxu0
    %v3313 = vadd.f32 %v3183, %v3312
    %v3314 = vpop.f32.mrb[0].mxu0
    %3315 = vmatprep.mubr.f32.mxu0 0.0
    %v3316 = vand.u32 %v2892, 4294901760
    %v3317 = vsub.f32 %v2892, %v3316
    %3318 = vmatmul.mubr.f32.gmra.mrb[0].mxu0 %v3317
    %v3319 = vpop.f32.mrb[0].mxu0
    %v3320 = vadd.f32 %v3189, %v3319
    %v3321 = vpop.f32.mrb[0].mxu0
    %3322 = vmatprep.mubr.f32.mxu0 0.0
    %v3323 = vand.u32 %v2894, 4294901760
    %v3324 = vsub.f32 %v2894, %v3323
    %3325 = vmatmul.mubr.f32.gmra.mrb[0].mxu0 %v3324
    %v3326 = vpop.f32.mrb[0].mxu0
    %v3327 = vadd.f32 %v3195, %v3326
    %v3328 = vpop.f32.mrb[0].mxu0
    %3329 = vmatprep.mubr.f32.mxu0 0.0
    %v3330 = vand.u32 %v2896, 4294901760
    %v3331 = vsub.f32 %v2896, %v3330
    %3332 = vmatmul.mubr.f32.gmra.mrb[0].mxu0 %v3331
    %v3333 = vpop.f32.mrb[0].mxu0
    %v3334 = vadd.f32 %v3201, %v3333
    %v3335 = vpop.f32.mrb[0].mxu0
    %3336 = vmatprep.mubr.f32.mxu0 0.0
    %v3337 = vand.u32 %v2898, 4294901760
    %v3338 = vsub.f32 %v2898, %v3337
    %3339 = vmatmul.mubr.f32.gmra.mrb[0].mxu0 %v3338
    %v3340 = vpop.f32.mrb[0].mxu0
    %v3341 = vadd.f32 %v3207, %v3340
    %v3342 = vpop.f32.mrb[0].mxu0
    %3343 = vmatprep.mubr.f32.mxu0 0.0
    %v3344 = vand.u32 %v2900, 4294901760
    %v3345 = vsub.f32 %v2900, %v3344
    %3346 = vmatmul.mubr.f32.gmra.mrb[0].mxu0 %v3345
    %v3347 = vpop.f32.mrb[0].mxu0
    %v3348 = vadd.f32 %v3213, %v3347
    %v3349 = vpop.f32.mrb[0].mxu0
    %3350 = vmatprep.mubr.f32.mxu0 0.0
    %v3351 = vand.u32 %v2902, 4294901760
    %v3352 = vsub.f32 %v2902, %v3351
    %3353 = vmatmul.mubr.f32.gmra.mrb[0].mxu0 %v3352
    %v3354 = vpop.f32.mrb[0].mxu0
    %v3355 = vadd.f32 %v3219, %v3354
    %v3356 = vpop.f32.mrb[0].mxu0
    %3357 = vmatprep.mubr.f32.mxu0 0.0
    %v3358 = vand.u32 %v2904, 4294901760
    %v3359 = vsub.f32 %v2904, %v3358
    %3360 = vmatmul.mubr.f32.gmra.mrb[0].mxu0 %v3359
    %v3361 = vpop.f32.mrb[0].mxu0
    %v3362 = vadd.f32 %v3225, %v3361
    %v3363 = vpop.f32.mrb[0].mxu0
    %3364 = vdwg.mxu0
    %3365 = vmatprep.subr.mxu0 0.0
    %v3366 = vand.u32 %v2906, 4294901760
    %3367 = vmatpush1.xpose.msra.mxu0 %v3366
    %3368 = vmatprep.subr.mxu0 0.0
    %v3369 = vand.u32 %v2908, 4294901760
    %3370 = vmatpush1.xpose.msra.mxu0 %v3369
    %3371 = vmatprep.subr.mxu0 0.0
    %v3372 = vand.u32 %v2910, 4294901760
    %3373 = vmatpush1.xpose.msra.mxu0 %v3372
    %3374 = vmatprep.subr.mxu0 0.0
    %v3375 = vand.u32 %v2912, 4294901760
    %3376 = vmatpush1.xpose.msra.mxu0 %v3375
    %3377 = vmatprep.subr.mxu0 0.0
    %v3378 = vand.u32 %v2914, 4294901760
    %3379 = vmatpush1.xpose.msra.mxu0 %v3378
    %3380 = vmatprep.subr.mxu0 0.0
    %v3381 = vand.u32 %v2916, 4294901760
    %3382 = vmatpush1.xpose.msra.mxu0 %v3381
    %3383 = vmatprep.subr.mxu0 0.0
    %v3384 = vand.u32 %v2918, 4294901760
    %3385 = vmatpush1.xpose.msra.mxu0 %v3384
    %3386 = vmatprep.subr.mxu0 0.0
    %v3387 = vand.u32 %v2920, 4294901760
    %3388 = vmatpush1.xpose.msra.mxu0 %v3387
    %3389 = vmatprep.subr.mxu0 0.0
    %3390 = vmatpush1.xpose.msra.mxu0 0.0
    %3391 = vmatprep.subr.mxu0 0.0
    %3392 = vmatpush1.xpose.msra.mxu0 0.0
    %3393 = vmatprep.subr.mxu0 0.0
    %3394 = vmatpush1.xpose.msra.mxu0 0.0
    %3395 = vmatprep.subr.mxu0 0.0
    %3396 = vmatpush1.xpose.msra.mxu0 0.0
    %3397 = vmatprep.subr.mxu0 0.0
    %3398 = vmatpush1.xpose.msra.mxu0 0.0
    %3399 = vmatprep.subr.mxu0 0.0
    %3400 = vmatpush1.xpose.msra.mxu0 0.0
    %3401 = vmatprep.subr.mxu0 0.0
    %3402 = vmatpush1.xpose.msra.mxu0 0.0
    %3403 = vmatprep.subr.mxu0 0.0
    %3404 = vmatpush1.xpose.msra.mxu0 0.0
    %3405 = vmatprep.subr.mxu0 0.0
    %3406 = vmatpush1.xpose.msra.mxu0 0.0
    %3407 = vmatprep.subr.mxu0 0.0
    %3408 = vmatpush1.xpose.msra.mxu0 0.0
    %3409 = vmatprep.subr.mxu0 0.0
    %3410 = vmatpush1.xpose.msra.mxu0 0.0
    %3411 = vmatprep.subr.mxu0 0.0
    %3412 = vmatpush1.xpose.msra.mxu0 0.0
    %3413 = vmatprep.subr.mxu0 0.0
    %3414 = vmatpush1.xpose.msra.mxu0 0.0
    %3415 = vmatprep.subr.mxu0 0.0
    %3416 = vmatpush1.xpose.msra.mxu0 0.0
    %3417 = vmatprep.subr.mxu0 0.0
    %3418 = vmatpush1.xpose.msra.mxu0 0.0
    %3419 = vmatprep.subr.mxu0 0.0
    %3420 = vmatpush1.xpose.msra.mxu0 0.0
    %3421 = vmatprep.subr.mxu0 0.0
    %3422 = vmatpush1.xpose.msra.mxu0 0.0
    %3423 = vmatprep.subr.mxu0 0.0
    %3424 = vmatpush1.xpose.msra.mxu0 0.0
    %3425 = vmatprep.subr.mxu0 0.0
    %3426 = vmatpush1.xpose.msra.mxu0 0.0
    %3427 = vmatprep.subr.mxu0 0.0
    %3428 = vmatpush1.xpose.msra.mxu0 0.0
    %3429 = vmatprep.subr.mxu0 0.0
    %3430 = vmatpush1.xpose.msra.mxu0 0.0
    %3431 = vmatprep.subr.mxu0 0.0
    %3432 = vmatpush1.xpose.msra.mxu0 0.0
    %3433 = vmatprep.subr.mxu0 0.0
    %3434 = vmatpush1.xpose.msra.mxu0 0.0
    %3435 = vmatprep.subr.mxu0 0.0
    %3436 = vmatpush1.xpose.msra.mxu0 0.0
    %3437 = vmatprep.mubr.f32.mxu0 0.0
    %v3438 = vand.u32 %v2890, 4294901760
    %v3439 = vsub.f32 %v2890, %v3438
    %v3440 = vand.u32 %v3439, 4294901760
    %3441 = vmatmul.mubr.f32.gmra.mrb[0].mxu0 %v3440
    %v3442 = vpop.f32.mrb[0].mxu0
    %v3443 = vadd.f32 %v3313, %v3442
    %v3444 = vpop.f32.mrb[0].mxu0
    %3445 = vmatprep.mubr.f32.mxu0 0.0
    %v3446 = vand.u32 %v2892, 4294901760
    %v3447 = vsub.f32 %v2892, %v3446
    %v3448 = vand.u32 %v3447, 4294901760
    %3449 = vmatmul.mubr.f32.gmra.mrb[0].mxu0 %v3448
    %v3450 = vpop.f32.mrb[0].mxu0
    %v3451 = vadd.f32 %v3320, %v3450
    %v3452 = vpop.f32.mrb[0].mxu0
    %3453 = vmatprep.mubr.f32.mxu0 0.0
    %v3454 = vand.u32 %v2894, 4294901760
    %v3455 = vsub.f32 %v2894, %v3454
    %v3456 = vand.u32 %v3455, 4294901760
    %3457 = vmatmul.mubr.f32.gmra.mrb[0].mxu0 %v3456
    %v3458 = vpop.f32.mrb[0].mxu0
    %v3459 = vadd.f32 %v3327, %v3458
    %v3460 = vpop.f32.mrb[0].mxu0
    %3461 = vmatprep.mubr.f32.mxu0 0.0
    %v3462 = vand.u32 %v2896, 4294901760
    %v3463 = vsub.f32 %v2896, %v3462
    %v3464 = vand.u32 %v3463, 4294901760
    %3465 = vmatmul.mubr.f32.gmra.mrb[0].mxu0 %v3464
    %v3466 = vpop.f32.mrb[0].mxu0
    %v3467 = vadd.f32 %v3334, %v3466
    %v3468 = vpop.f32.mrb[0].mxu0
    %3469 = vmatprep.mubr.f32.mxu0 0.0
    %v3470 = vand.u32 %v2898, 4294901760
    %v3471 = vsub.f32 %v2898, %v3470
    %v3472 = vand.u32 %v3471, 4294901760
    %3473 = vmatmul.mubr.f32.gmra.mrb[0].mxu0 %v3472
    %v3474 = vpop.f32.mrb[0].mxu0
    %v3475 = vadd.f32 %v3341, %v3474
    %v3476 = vpop.f32.mrb[0].mxu0
    %3477 = vmatprep.mubr.f32.mxu0 0.0
    %v3478 = vand.u32 %v2900, 4294901760
    %v3479 = vsub.f32 %v2900, %v3478
    %v3480 = vand.u32 %v3479, 4294901760
    %3481 = vmatmul.mubr.f32.gmra.mrb[0].mxu0 %v3480
    %v3482 = vpop.f32.mrb[0].mxu0
    %v3483 = vadd.f32 %v3348, %v3482
    %v3484 = vpop.f32.mrb[0].mxu0
    %3485 = vmatprep.mubr.f32.mxu0 0.0
    %v3486 = vand.u32 %v2902, 4294901760
    %v3487 = vsub.f32 %v2902, %v3486
    %v3488 = vand.u32 %v3487, 4294901760
    %3489 = vmatmul.mubr.f32.gmra.mrb[0].mxu0 %v3488
    %v3490 = vpop.f32.mrb[0].mxu0
    %v3491 = vadd.f32 %v3355, %v3490
    %v3492 = vpop.f32.mrb[0].mxu0
    %3493 = vmatprep.mubr.f32.mxu0 0.0
    %v3494 = vand.u32 %v2904, 4294901760
    %v3495 = vsub.f32 %v2904, %v3494
    %v3496 = vand.u32 %v3495, 4294901760
    %3497 = vmatmul.mubr.f32.gmra.mrb[0].mxu0 %v3496
    %v3498 = vpop.f32.mrb[0].mxu0
    %v3499 = vadd.f32 %v3362, %v3498
    %v3500 = vpop.f32.mrb[0].mxu0
    %3501 = vdwg.mxu0
    %3502 = vmatprep.subr.mxu0 0.0
    %v3503 = vand.u32 %v2906, 4294901760
    %v3504 = vsub.f32 %v2906, %v3503
    %v3505 = vand.u32 %v3504, 4294901760
    %3506 = vmatpush1.xpose.msra.mxu0 %v3505
    %3507 = vmatprep.subr.mxu0 0.0
    %v3508 = vand.u32 %v2908, 4294901760
    %v3509 = vsub.f32 %v2908, %v3508
    %v3510 = vand.u32 %v3509, 4294901760
    %3511 = vmatpush1.xpose.msra.mxu0 %v3510
    %3512 = vmatprep.subr.mxu0 0.0
    %v3513 = vand.u32 %v2910, 4294901760
    %v3514 = vsub.f32 %v2910, %v3513
    %v3515 = vand.u32 %v3514, 4294901760
    %3516 = vmatpush1.xpose.msra.mxu0 %v3515
    %3517 = vmatprep.subr.mxu0 0.0
    %v3518 = vand.u32 %v2912, 4294901760
    %v3519 = vsub.f32 %v2912, %v3518
    %v3520 = vand.u32 %v3519, 4294901760
    %3521 = vmatpush1.xpose.msra.mxu0 %v3520
    %3522 = vmatprep.subr.mxu0 0.0
    %v3523 = vand.u32 %v2914, 4294901760
    %v3524 = vsub.f32 %v2914, %v3523
    %v3525 = vand.u32 %v3524, 4294901760
    %3526 = vmatpush1.xpose.msra.mxu0 %v3525
    %3527 = vmatprep.subr.mxu0 0.0
    %v3528 = vand.u32 %v2916, 4294901760
    %v3529 = vsub.f32 %v2916, %v3528
    %v3530 = vand.u32 %v3529, 4294901760
    %3531 = vmatpush1.xpose.msra.mxu0 %v3530
    %3532 = vmatprep.subr.mxu0 0.0
    %v3533 = vand.u32 %v2918, 4294901760
    %v3534 = vsub.f32 %v2918, %v3533
    %v3535 = vand.u32 %v3534, 4294901760
    %3536 = vmatpush1.xpose.msra.mxu0 %v3535
    %3537 = vmatprep.subr.mxu0 0.0
    %v3538 = vand.u32 %v2920, 4294901760
    %v3539 = vsub.f32 %v2920, %v3538
    %v3540 = vand.u32 %v3539, 4294901760
    %3541 = vmatpush1.xpose.msra.mxu0 %v3540
    %3542 = vmatprep.subr.mxu0 0.0
    %3543 = vmatpush1.xpose.msra.mxu0 0.0
    %3544 = vmatprep.subr.mxu0 0.0
    %3545 = vmatpush1.xpose.msra.mxu0 0.0
    %3546 = vmatprep.subr.mxu0 0.0
    %3547 = vmatpush1.xpose.msra.mxu0 0.0
    %3548 = vmatprep.subr.mxu0 0.0
    %3549 = vmatpush1.xpose.msra.mxu0 0.0
    %3550 = vmatprep.subr.mxu0 0.0
    %3551 = vmatpush1.xpose.msra.mxu0 0.0
    %3552 = vmatprep.subr.mxu0 0.0
    %3553 = vmatpush1.xpose.msra.mxu0 0.0
    %3554 = vmatprep.subr.mxu0 0.0
    %3555 = vmatpush1.xpose.msra.mxu0 0.0
    %3556 = vmatprep.subr.mxu0 0.0
    %3557 = vmatpush1.xpose.msra.mxu0 0.0
    %3558 = vmatprep.subr.mxu0 0.0
    %3559 = vmatpush1.xpose.msra.mxu0 0.0
    %3560 = vmatprep.subr.mxu0 0.0
    %3561 = vmatpush1.xpose.msra.mxu0 0.0
    %3562 = vmatprep.subr.mxu0 0.0
    %3563 = vmatpush1.xpose.msra.mxu0 0.0
    %3564 = vmatprep.subr.mxu0 0.0
    %3565 = vmatpush1.xpose.msra.mxu0 0.0
    %3566 = vmatprep.subr.mxu0 0.0
    %3567 = vmatpush1.xpose.msra.mxu0 0.0
    %3568 = vmatprep.subr.mxu0 0.0
    %3569 = vmatpush1.xpose.msra.mxu0 0.0
    %3570 = vmatprep.subr.mxu0 0.0
    %3571 = vmatpush1.xpose.msra.mxu0 0.0
    %3572 = vmatprep.subr.mxu0 0.0
    %3573 = vmatpush1.xpose.msra.mxu0 0.0
    %3574 = vmatprep.subr.mxu0 0.0
    %3575 = vmatpush1.xpose.msra.mxu0 0.0
    %3576 = vmatprep.subr.mxu0 0.0
    %3577 = vmatpush1.xpose.msra.mxu0 0.0
    %3578 = vmatprep.subr.mxu0 0.0
    %3579 = vmatpush1.xpose.msra.mxu0 0.0
    %3580 = vmatprep.subr.mxu0 0.0
    %3581 = vmatpush1.xpose.msra.mxu0 0.0
    %3582 = vmatprep.subr.mxu0 0.0
    %3583 = vmatpush1.xpose.msra.mxu0 0.0
    %3584 = vmatprep.subr.mxu0 0.0
    %3585 = vmatpush1.xpose.msra.mxu0 0.0
    %3586 = vmatprep.subr.mxu0 0.0
    %3587 = vmatpush1.xpose.msra.mxu0 0.0
    %3588 = vmatprep.subr.mxu0 0.0
    %3589 = vmatpush1.xpose.msra.mxu0 0.0
    %3590 = vmatprep.mubr.f32.mxu0 0.0
    %v3591 = vand.u32 %v2890, 4294901760
    %3592 = vmatmul.mubr.f32.gmra.mrb[0].mxu0 %v3591
    %v3593 = vpop.f32.mrb[0].mxu0
    %v3594 = vadd.f32 %v3443, %v3593
    %v3595 = vpop.f32.mrb[0].mxu0
    %3596 = vmatprep.mubr.f32.mxu0 0.0
    %v3597 = vand.u32 %v2892, 4294901760
    %3598 = vmatmul.mubr.f32.gmra.mrb[0].mxu0 %v3597
    %v3599 = vpop.f32.mrb[0].mxu0
    %v3600 = vadd.f32 %v3451, %v3599
    %v3601 = vpop.f32.mrb[0].mxu0
    %3602 = vmatprep.mubr.f32.mxu0 0.0
    %v3603 = vand.u32 %v2894, 4294901760
    %3604 = vmatmul.mubr.f32.gmra.mrb[0].mxu0 %v3603
    %v3605 = vpop.f32.mrb[0].mxu0
    %v3606 = vadd.f32 %v3459, %v3605
    %v3607 = vpop.f32.mrb[0].mxu0
    %3608 = vmatprep.mubr.f32.mxu0 0.0
    %v3609 = vand.u32 %v2896, 4294901760
    %3610 = vmatmul.mubr.f32.gmra.mrb[0].mxu0 %v3609
    %v3611 = vpop.f32.mrb[0].mxu0
    %v3612 = vadd.f32 %v3467, %v3611
    %v3613 = vpop.f32.mrb[0].mxu0
    %3614 = vmatprep.mubr.f32.mxu0 0.0
    %v3615 = vand.u32 %v2898, 4294901760
    %3616 = vmatmul.mubr.f32.gmra.mrb[0].mxu0 %v3615
    %v3617 = vpop.f32.mrb[0].mxu0
    %v3618 = vadd.f32 %v3475, %v3617
    %v3619 = vpop.f32.mrb[0].mxu0
    %3620 = vmatprep.mubr.f32.mxu0 0.0
    %v3621 = vand.u32 %v2900, 4294901760
    %3622 = vmatmul.mubr.f32.gmra.mrb[0].mxu0 %v3621
    %v3623 = vpop.f32.mrb[0].mxu0
    %v3624 = vadd.f32 %v3483, %v3623
    %v3625 = vpop.f32.mrb[0].mxu0
    %3626 = vmatprep.mubr.f32.mxu0 0.0
    %v3627 = vand.u32 %v2902, 4294901760
    %3628 = vmatmul.mubr.f32.gmra.mrb[0].mxu0 %v3627
    %v3629 = vpop.f32.mrb[0].mxu0
    %v3630 = vadd.f32 %v3491, %v3629
    %v3631 = vpop.f32.mrb[0].mxu0
    %3632 = vmatprep.mubr.f32.mxu0 0.0
    %v3633 = vand.u32 %v2904, 4294901760
    %3634 = vmatmul.mubr.f32.gmra.mrb[0].mxu0 %v3633
    %v3635 = vpop.f32.mrb[0].mxu0
    %v3636 = vadd.f32 %v3499, %v3635
    %v3637 = vpop.f32.mrb[0].mxu0
    %3638 = vdwg.mxu0
    %3639 = vmatprep.subr.mxu0 0.0
    %v3640 = vand.u32 %v2906, 4294901760
    %3641 = vmatpush1.xpose.msra.mxu0 %v3640
    %3642 = vmatprep.subr.mxu0 0.0
    %v3643 = vand.u32 %v2908, 4294901760
    %3644 = vmatpush1.xpose.msra.mxu0 %v3643
    %3645 = vmatprep.subr.mxu0 0.0
    %v3646 = vand.u32 %v2910, 4294901760
    %3647 = vmatpush1.xpose.msra.mxu0 %v3646
    %3648 = vmatprep.subr.mxu0 0.0
    %v3649 = vand.u32 %v2912, 4294901760
    %3650 = vmatpush1.xpose.msra.mxu0 %v3649
    %3651 = vmatprep.subr.mxu0 0.0
    %v3652 = vand.u32 %v2914, 4294901760
    %3653 = vmatpush1.xpose.msra.mxu0 %v3652
    %3654 = vmatprep.subr.mxu0 0.0
    %v3655 = vand.u32 %v2916, 4294901760
    %3656 = vmatpush1.xpose.msra.mxu0 %v3655
    %3657 = vmatprep.subr.mxu0 0.0
    %v3658 = vand.u32 %v2918, 4294901760
    %3659 = vmatpush1.xpose.msra.mxu0 %v3658
    %3660 = vmatprep.subr.mxu0 0.0
    %v3661 = vand.u32 %v2920, 4294901760
    %3662 = vmatpush1.xpose.msra.mxu0 %v3661
    %3663 = vmatprep.subr.mxu0 0.0
    %3664 = vmatpush1.xpose.msra.mxu0 0.0
    %3665 = vmatprep.subr.mxu0 0.0
    %3666 = vmatpush1.xpose.msra.mxu0 0.0
    %3667 = vmatprep.subr.mxu0 0.0
    %3668 = vmatpush1.xpose.msra.mxu0 0.0
    %3669 = vmatprep.subr.mxu0 0.0
    %3670 = vmatpush1.xpose.msra.mxu0 0.0
    %3671 = vmatprep.subr.mxu0 0.0
    %3672 = vmatpush1.xpose.msra.mxu0 0.0
    %3673 = vmatprep.subr.mxu0 0.0
    %3674 = vmatpush1.xpose.msra.mxu0 0.0
    %3675 = vmatprep.subr.mxu0 0.0
    %3676 = vmatpush1.xpose.msra.mxu0 0.0
    %3677 = vmatprep.subr.mxu0 0.0
    %3678 = vmatpush1.xpose.msra.mxu0 0.0
    %3679 = vmatprep.subr.mxu0 0.0
    %3680 = vmatpush1.xpose.msra.mxu0 0.0
    %3681 = vmatprep.subr.mxu0 0.0
    %3682 = vmatpush1.xpose.msra.mxu0 0.0
    %3683 = vmatprep.subr.mxu0 0.0
    %3684 = vmatpush1.xpose.msra.mxu0 0.0
    %3685 = vmatprep.subr.mxu0 0.0
    %3686 = vmatpush1.xpose.msra.mxu0 0.0
    %3687 = vmatprep.subr.mxu0 0.0
    %3688 = vmatpush1.xpose.msra.mxu0 0.0
    %3689 = vmatprep.subr.mxu0 0.0
    %3690 = vmatpush1.xpose.msra.mxu0 0.0
    %3691 = vmatprep.subr.mxu0 0.0
    %3692 = vmatpush1.xpose.msra.mxu0 0.0
    %3693 = vmatprep.subr.mxu0 0.0
    %3694 = vmatpush1.xpose.msra.mxu0 0.0
    %3695 = vmatprep.subr.mxu0 0.0
    %3696 = vmatpush1.xpose.msra.mxu0 0.0
    %3697 = vmatprep.subr.mxu0 0.0
    %3698 = vmatpush1.xpose.msra.mxu0 0.0
    %3699 = vmatprep.subr.mxu0 0.0
    %3700 = vmatpush1.xpose.msra.mxu0 0.0
    %3701 = vmatprep.subr.mxu0 0.0
    %3702 = vmatpush1.xpose.msra.mxu0 0.0
    %3703 = vmatprep.subr.mxu0 0.0
    %3704 = vmatpush1.xpose.msra.mxu0 0.0
    %3705 = vmatprep.subr.mxu0 0.0
    %3706 = vmatpush1.xpose.msra.mxu0 0.0
    %3707 = vmatprep.subr.mxu0 0.0
    %3708 = vmatpush1.xpose.msra.mxu0 0.0
    %3709 = vmatprep.subr.mxu0 0.0
    %3710 = vmatpush1.xpose.msra.mxu0 0.0
    %3711 = vmatprep.mubr.f32.mxu0 0.0
    %v3712 = vand.u32 %v2890, 4294901760
    %3713 = vmatmul.mubr.f32.gmra.mrb[0].mxu0 %v3712
    %v3714 = vpop.f32.mrb[0].mxu0
    %v3715 = vadd.f32 %v3594, %v3714
    %v3716 = vpop.f32.mrb[0].mxu0
    %3717 = vmatprep.mubr.f32.mxu0 0.0
    %v3718 = vand.u32 %v2892, 4294901760
    %3719 = vmatmul.mubr.f32.gmra.mrb[0].mxu0 %v3718
    %v3720 = vpop.f32.mrb[0].mxu0
    %v3721 = vadd.f32 %v3600, %v3720
    %v3722 = vpop.f32.mrb[0].mxu0
    %3723 = vmatprep.mubr.f32.mxu0 0.0
    %v3724 = vand.u32 %v2894, 4294901760
    %3725 = vmatmul.mubr.f32.gmra.mrb[0].mxu0 %v3724
    %v3726 = vpop.f32.mrb[0].mxu0
    %v3727 = vadd.f32 %v3606, %v3726
    %v3728 = vpop.f32.mrb[0].mxu0
    %3729 = vmatprep.mubr.f32.mxu0 0.0
    %v3730 = vand.u32 %v2896, 4294901760
    %3731 = vmatmul.mubr.f32.gmra.mrb[0].mxu0 %v3730
    %v3732 = vpop.f32.mrb[0].mxu0
    %v3733 = vadd.f32 %v3612, %v3732
    %v3734 = vpop.f32.mrb[0].mxu0
    %3735 = vmatprep.mubr.f32.mxu0 0.0
    %v3736 = vand.u32 %v2898, 4294901760
    %3737 = vmatmul.mubr.f32.gmra.mrb[0].mxu0 %v3736
    %v3738 = vpop.f32.mrb[0].mxu0
    %v3739 = vadd.f32 %v3618, %v3738
    %v3740 = vpop.f32.mrb[0].mxu0
    %3741 = vmatprep.mubr.f32.mxu0 0.0
    %v3742 = vand.u32 %v2900, 4294901760
    %3743 = vmatmul.mubr.f32.gmra.mrb[0].mxu0 %v3742
    %v3744 = vpop.f32.mrb[0].mxu0
    %v3745 = vadd.f32 %v3624, %v3744
    %v3746 = vpop.f32.mrb[0].mxu0
    %3747 = vmatprep.mubr.f32.mxu0 0.0
    %v3748 = vand.u32 %v2902, 4294901760
    %3749 = vmatmul.mubr.f32.gmra.mrb[0].mxu0 %v3748
    %v3750 = vpop.f32.mrb[0].mxu0
    %v3751 = vadd.f32 %v3630, %v3750
    %v3752 = vpop.f32.mrb[0].mxu0
    %3753 = vmatprep.mubr.f32.mxu0 0.0
    %v3754 = vand.u32 %v2904, 4294901760
    %3755 = vmatmul.mubr.f32.gmra.mrb[0].mxu0 %v3754
    %v3756 = vpop.f32.mrb[0].mxu0
    %v3757 = vadd.f32 %v3636, %v3756
    %v3758 = vpop.f32.mrb[0].mxu0
    %3759 = vdwg.mxu0
    %v3760 = vmul.f32 %v3715, 0.35355338
    %v3761 = vmul.f32 %v3721, 0.35355338
    %v3762 = vmul.f32 %v3727, 0.35355338
    %v3763 = vmul.f32 %v3733, 0.35355338
    %v3764 = vmul.f32 %v3739, 0.35355338
    %v3765 = vmul.f32 %v3745, 0.35355338
    %v3766 = vmul.f32 %v3751, 0.35355338
    %v3767 = vmul.f32 %v3757, 0.35355338
    %v3768 = vadd.f32 %v3760, %v988
    %v3769 = vadd.f32 %v3761, %v989
    %v3770 = vadd.f32 %v3762, %v990
    %v3771 = vadd.f32 %v3763, %v991
    %v3772 = vadd.f32 %v3764, %v992
    %v3773 = vadd.f32 %v3765, %v993
    %v3774 = vadd.f32 %v3766, %v994
    %v3775 = vadd.f32 %v3767, %v995
    %v3776 = vsel %vm1907, %v3768, -inf
    %3777 = vmax.xlane.f32.xlu0 %v3776
    %v3778 = vpop.xlane.xlu0 %3777
    %v3779 = vsel %vm1907, %v3769, -inf
    %3780 = vmax.xlane.f32.xlu0 %v3779
    %v3781 = vpop.xlane.xlu0 %3780
    %v3782 = vsel %vm1907, %v3770, -inf
    %3783 = vmax.xlane.f32.xlu0 %v3782
    %v3784 = vpop.xlane.xlu0 %3783
    %v3785 = vsel %vm1907, %v3771, -inf
    %3786 = vmax.xlane.f32.xlu0 %v3785
    %v3787 = vpop.xlane.xlu0 %3786
    %v3788 = vsel %vm1907, %v3772, -inf
    %3789 = vmax.xlane.f32.xlu0 %v3788
    %v3790 = vpop.xlane.xlu0 %3789
    %v3791 = vsel %vm1907, %v3773, -inf
    %3792 = vmax.xlane.f32.xlu0 %v3791
    %v3793 = vpop.xlane.xlu0 %3792
    %v3794 = vsel %vm1907, %v3774, -inf
    %3795 = vmax.xlane.f32.xlu0 %v3794
    %v3796 = vpop.xlane.xlu0 %3795
    %v3797 = vsel %vm1907, %v3775, -inf
    %3798 = vmax.xlane.f32.xlu0 %v3797
    %v3799 = vpop.xlane.xlu0 %3798
    %v3800 = vsub.f32 %v3768, %v3778
    %v3801 = vsub.f32 %v3769, %v3781
    %v3802 = vsub.f32 %v3770, %v3784
    %v3803 = vsub.f32 %v3771, %v3787
    %v3804 = vsub.f32 %v3772, %v3790
    %v3805 = vsub.f32 %v3773, %v3793
    %v3806 = vsub.f32 %v3774, %v3796
    %v3807 = vsub.f32 %v3775, %v3799
    %v3808 = vmul.f32 %v3800, 1.442695
    %v3809 = vpow.pop %v3808
    %v3810 = vmul.f32 %v3801, 1.442695
    %v3811 = vpow.pop %v3810
    %v3812 = vmul.f32 %v3802, 1.442695
    %v3813 = vpow.pop %v3812
    %v3814 = vmul.f32 %v3803, 1.442695
    %v3815 = vpow.pop %v3814
    %v3816 = vmul.f32 %v3804, 1.442695
    %v3817 = vpow.pop %v3816
    %v3818 = vmul.f32 %v3805, 1.442695
    %v3819 = vpow.pop %v3818
    %v3820 = vmul.f32 %v3806, 1.442695
    %v3821 = vpow.pop %v3820
    %v3822 = vmul.f32 %v3807, 1.442695
    %v3823 = vpow.pop %v3822
    %v3824 = vsel %vm1907, %v3809, 0.0
    %3825 = vadd.xlane.f32.xlu0 %v3824
    %v3826 = vpop.xlane.xlu0 %3825
    %v3827 = vsel %vm1907, %v3811, 0.0
    %3828 = vadd.xlane.f32.xlu0 %v3827
    %v3829 = vpop.xlane.xlu0 %3828
    %v3830 = vsel %vm1907, %v3813, 0.0
    %3831 = vadd.xlane.f32.xlu0 %v3830
    %v3832 = vpop.xlane.xlu0 %3831
    %v3833 = vsel %vm1907, %v3815, 0.0
    %3834 = vadd.xlane.f32.xlu0 %v3833
    %v3835 = vpop.xlane.xlu0 %3834
    %v3836 = vsel %vm1907, %v3817, 0.0
    %3837 = vadd.xlane.f32.xlu0 %v3836
    %v3838 = vpop.xlane.xlu0 %3837
    %v3839 = vsel %vm1907, %v3819, 0.0
    %3840 = vadd.xlane.f32.xlu0 %v3839
    %v3841 = vpop.xlane.xlu0 %3840
    %v3842 = vsel %vm1907, %v3821, 0.0
    %3843 = vadd.xlane.f32.xlu0 %v3842
    %v3844 = vpop.xlane.xlu0 %3843
    %v3845 = vsel %vm1907, %v3823, 0.0
    %3846 = vadd.xlane.f32.xlu0 %v3845
    %v3847 = vpop.xlane.xlu0 %3846
    %v3848 = vrcp.pop %v3826
    %v3849 = vrcp.pop %v3829
    %v3850 = vrcp.pop %v3832
    %v3851 = vrcp.pop %v3835
    %v3852 = vrcp.pop %v3838
    %v3853 = vrcp.pop %v3841
    %v3854 = vrcp.pop %v3844
    %v3855 = vrcp.pop %v3847
    %v3856 = vmul.f32 %v3809, %v3848
    %v3857 = vmul.f32 %v3811, %v3849
    %v3858 = vmul.f32 %v3813, %v3850
    %v3859 = vmul.f32 %v3815, %v3851
    %v3860 = vmul.f32 %v3817, %v3852
    %v3861 = vmul.f32 %v3819, %v3853
    %v3862 = vmul.f32 %v3821, %v3854
    %v3863 = vmul.f32 %v3823, %v3855
    %3872 = vrot.lane.b32.xlu0 %v937, 112
    %v3873 = vpop.permute.xlu0 %3872
    %3874 = vrot.lane.b32.xlu0 %v944, 112
    %v3875 = vpop.permute.xlu0 %3874
    %3876 = vrot.lane.b32.xlu0 %v951, 112
    %v3877 = vpop.permute.xlu0 %3876
    %3878 = vrot.lane.b32.xlu0 %v958, 112
    %v3879 = vpop.permute.xlu0 %3878
    %3880 = vrot.lane.b32.xlu0 %v965, 112
    %v3881 = vpop.permute.xlu0 %3880
    %3882 = vrot.lane.b32.xlu0 %v972, 112
    %v3883 = vpop.permute.xlu0 %3882
    %3884 = vrot.lane.b32.xlu0 %v979, 112
    %v3885 = vpop.permute.xlu0 %3884
    %3886 = vrot.lane.b32.xlu0 %v986, 112
    %v3887 = vpop.permute.xlu0 %3886
    %v3897 = vsel %vm1907, %v3856, 0
    %v3900 = vsel %vm1907, %v3857, 0
    %v3903 = vsel %vm1907, %v3858, 0
    %v3906 = vsel %vm1907, %v3859, 0
    %v3909 = vsel %vm1907, %v3860, 0
    %v3912 = vsel %vm1907, %v3861, 0
    %v3915 = vsel %vm1907, %v3862, 0
    %v3918 = vsel %vm1907, %v3863, 0
    %3920 = vmatprep.subr.mxu0 0.0
    %v3921 = vand.u32 %v3873, 4294901760
    %3922 = vmatpush1.msra.mxu0 %v3921
    %3923 = vmatprep.subr.mxu0 0.0
    %v3924 = vand.u32 %v3875, 4294901760
    %3925 = vmatpush1.msra.mxu0 %v3924
    %3926 = vmatprep.subr.mxu0 0.0
    %v3927 = vand.u32 %v3877, 4294901760
    %3928 = vmatpush1.msra.mxu0 %v3927
    %3929 = vmatprep.subr.mxu0 0.0
    %v3930 = vand.u32 %v3879, 4294901760
    %3931 = vmatpush1.msra.mxu0 %v3930
    %3932 = vmatprep.subr.mxu0 0.0
    %v3933 = vand.u32 %v3881, 4294901760
    %3934 = vmatpush1.msra.mxu0 %v3933
    %3935 = vmatprep.subr.mxu0 0.0
    %v3936 = vand.u32 %v3883, 4294901760
    %3937 = vmatpush1.msra.mxu0 %v3936
    %3938 = vmatprep.subr.mxu0 0.0
    %v3939 = vand.u32 %v3885, 4294901760
    %3940 = vmatpush1.msra.mxu0 %v3939
    %3941 = vmatprep.subr.mxu0 0.0
    %v3942 = vand.u32 %v3887, 4294901760
    %3943 = vmatpush1.msra.mxu0 %v3942
    %3944 = vmatprep.subr.mxu0 0.0
    %3945 = vmatpush1.msra.mxu0 0.0
    %3946 = vmatprep.subr.mxu0 0.0
    %3947 = vmatpush1.msra.mxu0 0.0
    %3948 = vmatprep.subr.mxu0 0.0
    %3949 = vmatpush1.msra.mxu0 0.0
    %3950 = vmatprep.subr.mxu0 0.0
    %3951 = vmatpush1.msra.mxu0 0.0
    %3952 = vmatprep.subr.mxu0 0.0
    %3953 = vmatpush1.msra.mxu0 0.0
    %3954 = vmatprep.subr.mxu0 0.0
    %3955 = vmatpush1.msra.mxu0 0.0
    %3956 = vmatprep.subr.mxu0 0.0
    %3957 = vmatpush1.msra.mxu0 0.0
    %3958 = vmatprep.subr.mxu0 0.0
    %3959 = vmatpush1.msra.mxu0 0.0
    %3960 = vmatprep.subr.mxu0 0.0
    %3961 = vmatpush1.msra.mxu0 0.0
    %3962 = vmatprep.subr.mxu0 0.0
    %3963 = vmatpush1.msra.mxu0 0.0
    %3964 = vmatprep.subr.mxu0 0.0
    %3965 = vmatpush1.msra.mxu0 0.0
    %3966 = vmatprep.subr.mxu0 0.0
    %3967 = vmatpush1.msra.mxu0 0.0
    %3968 = vmatprep.subr.mxu0 0.0
    %3969 = vmatpush1.msra.mxu0 0.0
    %3970 = vmatprep.subr.mxu0 0.0
    %3971 = vmatpush1.msra.mxu0 0.0
    %3972 = vmatprep.subr.mxu0 0.0
    %3973 = vmatpush1.msra.mxu0 0.0
    %3974 = vmatprep.subr.mxu0 0.0
    %3975 = vmatpush1.msra.mxu0 0.0
    %3976 = vmatprep.subr.mxu0 0.0
    %3977 = vmatpush1.msra.mxu0 0.0
    %3978 = vmatprep.subr.mxu0 0.0
    %3979 = vmatpush1.msra.mxu0 0.0
    %3980 = vmatprep.subr.mxu0 0.0
    %3981 = vmatpush1.msra.mxu0 0.0
    %3982 = vmatprep.subr.mxu0 0.0
    %3983 = vmatpush1.msra.mxu0 0.0
    %3984 = vmatprep.subr.mxu0 0.0
    %3985 = vmatpush1.msra.mxu0 0.0
    %3986 = vmatprep.subr.mxu0 0.0
    %3987 = vmatpush1.msra.mxu0 0.0
    %3988 = vmatprep.subr.mxu0 0.0
    %3989 = vmatpush1.msra.mxu0 0.0
    %3990 = vmatprep.subr.mxu0 0.0
    %3991 = vmatpush1.msra.mxu0 0.0
    %3992 = vmatprep.mubr.f32.mxu0 0.0
    %v3993 = vand.u32 %v3897, 4294901760
    %v3994 = vsub.f32 %v3897, %v3993
    %v3995 = vand.u32 %v3994, 4294901760
    %v3996 = vsub.f32 %v3994, %v3995
    %v3997 = vand.u32 %v3996, 4294901760
    %3998 = vmatmul.mubr.f32.gmra.mrb[0].mxu0 %v3997
    %v3999 = vpop.f32.mrb[0].mxu0
    %v4000 = vadd.f32 0.0, %v3999
    %v4001 = vpop.f32.mrb[0].mxu0
    %4002 = vmatprep.mubr.f32.mxu0 0.0
    %v4003 = vand.u32 %v3900, 4294901760
    %v4004 = vsub.f32 %v3900, %v4003
    %v4005 = vand.u32 %v4004, 4294901760
    %v4006 = vsub.f32 %v4004, %v4005
    %v4007 = vand.u32 %v4006, 4294901760
    %4008 = vmatmul.mubr.f32.gmra.mrb[0].mxu0 %v4007
    %v4009 = vpop.f32.mrb[0].mxu0
    %v4010 = vadd.f32 0.0, %v4009
    %v4011 = vpop.f32.mrb[0].mxu0
    %4012 = vmatprep.mubr.f32.mxu0 0.0
    %v4013 = vand.u32 %v3903, 4294901760
    %v4014 = vsub.f32 %v3903, %v4013
    %v4015 = vand.u32 %v4014, 4294901760
    %v4016 = vsub.f32 %v4014, %v4015
    %v4017 = vand.u32 %v4016, 4294901760
    %4018 = vmatmul.mubr.f32.gmra.mrb[0].mxu0 %v4017
    %v4019 = vpop.f32.mrb[0].mxu0
    %v4020 = vadd.f32 0.0, %v4019
    %v4021 = vpop.f32.mrb[0].mxu0
    %4022 = vmatprep.mubr.f32.mxu0 0.0
    %v4023 = vand.u32 %v3906, 4294901760
    %v4024 = vsub.f32 %v3906, %v4023
    %v4025 = vand.u32 %v4024, 4294901760
    %v4026 = vsub.f32 %v4024, %v4025
    %v4027 = vand.u32 %v4026, 4294901760
    %4028 = vmatmul.mubr.f32.gmra.mrb[0].mxu0 %v4027
    %v4029 = vpop.f32.mrb[0].mxu0
    %v4030 = vadd.f32 0.0, %v4029
    %v4031 = vpop.f32.mrb[0].mxu0
    %4032 = vmatprep.mubr.f32.mxu0 0.0
    %v4033 = vand.u32 %v3909, 4294901760
    %v4034 = vsub.f32 %v3909, %v4033
    %v4035 = vand.u32 %v4034, 4294901760
    %v4036 = vsub.f32 %v4034, %v4035
    %v4037 = vand.u32 %v4036, 4294901760
    %4038 = vmatmul.mubr.f32.gmra.mrb[0].mxu0 %v4037
    %v4039 = vpop.f32.mrb[0].mxu0
    %v4040 = vadd.f32 0.0, %v4039
    %v4041 = vpop.f32.mrb[0].mxu0
    %4042 = vmatprep.mubr.f32.mxu0 0.0
    %v4043 = vand.u32 %v3912, 4294901760
    %v4044 = vsub.f32 %v3912, %v4043
    %v4045 = vand.u32 %v4044, 4294901760
    %v4046 = vsub.f32 %v4044, %v4045
    %v4047 = vand.u32 %v4046, 4294901760
    %4048 = vmatmul.mubr.f32.gmra.mrb[0].mxu0 %v4047
    %v4049 = vpop.f32.mrb[0].mxu0
    %v4050 = vadd.f32 0.0, %v4049
    %v4051 = vpop.f32.mrb[0].mxu0
    %4052 = vmatprep.mubr.f32.mxu0 0.0
    %v4053 = vand.u32 %v3915, 4294901760
    %v4054 = vsub.f32 %v3915, %v4053
    %v4055 = vand.u32 %v4054, 4294901760
    %v4056 = vsub.f32 %v4054, %v4055
    %v4057 = vand.u32 %v4056, 4294901760
    %4058 = vmatmul.mubr.f32.gmra.mrb[0].mxu0 %v4057
    %v4059 = vpop.f32.mrb[0].mxu0
    %v4060 = vadd.f32 0.0, %v4059
    %v4061 = vpop.f32.mrb[0].mxu0
    %4062 = vmatprep.mubr.f32.mxu0 0.0
    %v4063 = vand.u32 %v3918, 4294901760
    %v4064 = vsub.f32 %v3918, %v4063
    %v4065 = vand.u32 %v4064, 4294901760
    %v4066 = vsub.f32 %v4064, %v4065
    %v4067 = vand.u32 %v4066, 4294901760
    %4068 = vmatmul.mubr.f32.gmra.mrb[0].mxu0 %v4067
    %v4069 = vpop.f32.mrb[0].mxu0
    %v4070 = vadd.f32 0.0, %v4069
    %v4071 = vpop.f32.mrb[0].mxu0
    %4072 = vdwg.mxu0
    %4073 = vmatprep.subr.mxu0 0.0
    %v4074 = vand.u32 %v3873, 4294901760
    %v4075 = vsub.f32 %v3873, %v4074
    %v4076 = vand.u32 %v4075, 4294901760
    %v4077 = vsub.f32 %v4075, %v4076
    %v4078 = vand.u32 %v4077, 4294901760
    %4079 = vmatpush1.msra.mxu0 %v4078
    %4080 = vmatprep.subr.mxu0 0.0
    %v4081 = vand.u32 %v3875, 4294901760
    %v4082 = vsub.f32 %v3875, %v4081
    %v4083 = vand.u32 %v4082, 4294901760
    %v4084 = vsub.f32 %v4082, %v4083
    %v4085 = vand.u32 %v4084, 4294901760
    %4086 = vmatpush1.msra.mxu0 %v4085
    %4087 = vmatprep.subr.mxu0 0.0
    %v4088 = vand.u32 %v3877, 4294901760
    %v4089 = vsub.f32 %v3877, %v4088
    %v4090 = vand.u32 %v4089, 4294901760
    %v4091 = vsub.f32 %v4089, %v4090
    %v4092 = vand.u32 %v4091, 4294901760
    %4093 = vmatpush1.msra.mxu0 %v4092
    %4094 = vmatprep.subr.mxu0 0.0
    %v4095 = vand.u32 %v3879, 4294901760
    %v4096 = vsub.f32 %v3879, %v4095
    %v4097 = vand.u32 %v4096, 4294901760
    %v4098 = vsub.f32 %v4096, %v4097
    %v4099 = vand.u32 %v4098, 4294901760
    %4100 = vmatpush1.msra.mxu0 %v4099
    %4101 = vmatprep.subr.mxu0 0.0
    %v4102 = vand.u32 %v3881, 4294901760
    %v4103 = vsub.f32 %v3881, %v4102
    %v4104 = vand.u32 %v4103, 4294901760
    %v4105 = vsub.f32 %v4103, %v4104
    %v4106 = vand.u32 %v4105, 4294901760
    %4107 = vmatpush1.msra.mxu0 %v4106
    %4108 = vmatprep.subr.mxu0 0.0
    %v4109 = vand.u32 %v3883, 4294901760
    %v4110 = vsub.f32 %v3883, %v4109
    %v4111 = vand.u32 %v4110, 4294901760
    %v4112 = vsub.f32 %v4110, %v4111
    %v4113 = vand.u32 %v4112, 4294901760
    %4114 = vmatpush1.msra.mxu0 %v4113
    %4115 = vmatprep.subr.mxu0 0.0
    %v4116 = vand.u32 %v3885, 4294901760
    %v4117 = vsub.f32 %v3885, %v4116
    %v4118 = vand.u32 %v4117, 4294901760
    %v4119 = vsub.f32 %v4117, %v4118
    %v4120 = vand.u32 %v4119, 4294901760
    %4121 = vmatpush1.msra.mxu0 %v4120
    %4122 = vmatprep.subr.mxu0 0.0
    %v4123 = vand.u32 %v3887, 4294901760
    %v4124 = vsub.f32 %v3887, %v4123
    %v4125 = vand.u32 %v4124, 4294901760
    %v4126 = vsub.f32 %v4124, %v4125
    %v4127 = vand.u32 %v4126, 4294901760
    %4128 = vmatpush1.msra.mxu0 %v4127
    %4129 = vmatprep.subr.mxu0 0.0
    %4130 = vmatpush1.msra.mxu0 0.0
    %4131 = vmatprep.subr.mxu0 0.0
    %4132 = vmatpush1.msra.mxu0 0.0
    %4133 = vmatprep.subr.mxu0 0.0
    %4134 = vmatpush1.msra.mxu0 0.0
    %4135 = vmatprep.subr.mxu0 0.0
    %4136 = vmatpush1.msra.mxu0 0.0
    %4137 = vmatprep.subr.mxu0 0.0
    %4138 = vmatpush1.msra.mxu0 0.0
    %4139 = vmatprep.subr.mxu0 0.0
    %4140 = vmatpush1.msra.mxu0 0.0
    %4141 = vmatprep.subr.mxu0 0.0
    %4142 = vmatpush1.msra.mxu0 0.0
    %4143 = vmatprep.subr.mxu0 0.0
    %4144 = vmatpush1.msra.mxu0 0.0
    %4145 = vmatprep.subr.mxu0 0.0
    %4146 = vmatpush1.msra.mxu0 0.0
    %4147 = vmatprep.subr.mxu0 0.0
    %4148 = vmatpush1.msra.mxu0 0.0
    %4149 = vmatprep.subr.mxu0 0.0
    %4150 = vmatpush1.msra.mxu0 0.0
    %4151 = vmatprep.subr.mxu0 0.0
    %4152 = vmatpush1.msra.mxu0 0.0
    %4153 = vmatprep.subr.mxu0 0.0
    %4154 = vmatpush1.msra.mxu0 0.0
    %4155 = vmatprep.subr.mxu0 0.0
    %4156 = vmatpush1.msra.mxu0 0.0
    %4157 = vmatprep.subr.mxu0 0.0
    %4158 = vmatpush1.msra.mxu0 0.0
    %4159 = vmatprep.subr.mxu0 0.0
    %4160 = vmatpush1.msra.mxu0 0.0
    %4161 = vmatprep.subr.mxu0 0.0
    %4162 = vmatpush1.msra.mxu0 0.0
    %4163 = vmatprep.subr.mxu0 0.0
    %4164 = vmatpush1.msra.mxu0 0.0
    %4165 = vmatprep.subr.mxu0 0.0
    %4166 = vmatpush1.msra.mxu0 0.0
    %4167 = vmatprep.subr.mxu0 0.0
    %4168 = vmatpush1.msra.mxu0 0.0
    %4169 = vmatprep.subr.mxu0 0.0
    %4170 = vmatpush1.msra.mxu0 0.0
    %4171 = vmatprep.subr.mxu0 0.0
    %4172 = vmatpush1.msra.mxu0 0.0
    %4173 = vmatprep.subr.mxu0 0.0
    %4174 = vmatpush1.msra.mxu0 0.0
    %4175 = vmatprep.subr.mxu0 0.0
    %4176 = vmatpush1.msra.mxu0 0.0
    %4177 = vmatprep.mubr.f32.mxu0 0.0
    %v4178 = vand.u32 %v3897, 4294901760
    %4179 = vmatmul.mubr.f32.gmra.mrb[0].mxu0 %v4178
    %v4180 = vpop.f32.mrb[0].mxu0
    %v4181 = vadd.f32 %v4000, %v4180
    %v4182 = vpop.f32.mrb[0].mxu0
    %4183 = vmatprep.mubr.f32.mxu0 0.0
    %v4184 = vand.u32 %v3900, 4294901760
    %4185 = vmatmul.mubr.f32.gmra.mrb[0].mxu0 %v4184
    %v4186 = vpop.f32.mrb[0].mxu0
    %v4187 = vadd.f32 %v4010, %v4186
    %v4188 = vpop.f32.mrb[0].mxu0
    %4189 = vmatprep.mubr.f32.mxu0 0.0
    %v4190 = vand.u32 %v3903, 4294901760
    %4191 = vmatmul.mubr.f32.gmra.mrb[0].mxu0 %v4190
    %v4192 = vpop.f32.mrb[0].mxu0
    %v4193 = vadd.f32 %v4020, %v4192
    %v4194 = vpop.f32.mrb[0].mxu0
    %4195 = vmatprep.mubr.f32.mxu0 0.0
    %v4196 = vand.u32 %v3906, 4294901760
    %4197 = vmatmul.mubr.f32.gmra.mrb[0].mxu0 %v4196
    %v4198 = vpop.f32.mrb[0].mxu0
    %v4199 = vadd.f32 %v4030, %v4198
    %v4200 = vpop.f32.mrb[0].mxu0
    %4201 = vmatprep.mubr.f32.mxu0 0.0
    %v4202 = vand.u32 %v3909, 4294901760
    %4203 = vmatmul.mubr.f32.gmra.mrb[0].mxu0 %v4202
    %v4204 = vpop.f32.mrb[0].mxu0
    %v4205 = vadd.f32 %v4040, %v4204
    %v4206 = vpop.f32.mrb[0].mxu0
    %4207 = vmatprep.mubr.f32.mxu0 0.0
    %v4208 = vand.u32 %v3912, 4294901760
    %4209 = vmatmul.mubr.f32.gmra.mrb[0].mxu0 %v4208
    %v4210 = vpop.f32.mrb[0].mxu0
    %v4211 = vadd.f32 %v4050, %v4210
    %v4212 = vpop.f32.mrb[0].mxu0
    %4213 = vmatprep.mubr.f32.mxu0 0.0
    %v4214 = vand.u32 %v3915, 4294901760
    %4215 = vmatmul.mubr.f32.gmra.mrb[0].mxu0 %v4214
    %v4216 = vpop.f32.mrb[0].mxu0
    %v4217 = vadd.f32 %v4060, %v4216
    %v4218 = vpop.f32.mrb[0].mxu0
    %4219 = vmatprep.mubr.f32.mxu0 0.0
    %v4220 = vand.u32 %v3918, 4294901760
    %4221 = vmatmul.mubr.f32.gmra.mrb[0].mxu0 %v4220
    %v4222 = vpop.f32.mrb[0].mxu0
    %v4223 = vadd.f32 %v4070, %v4222
    %v4224 = vpop.f32.mrb[0].mxu0
    %4225 = vdwg.mxu0
    %4226 = vmatprep.subr.mxu0 0.0
    %v4227 = vand.u32 %v3873, 4294901760
    %v4228 = vsub.f32 %v3873, %v4227
    %4229 = vmatpush1.msra.mxu0 %v4228
    %4230 = vmatprep.subr.mxu0 0.0
    %v4231 = vand.u32 %v3875, 4294901760
    %v4232 = vsub.f32 %v3875, %v4231
    %4233 = vmatpush1.msra.mxu0 %v4232
    %4234 = vmatprep.subr.mxu0 0.0
    %v4235 = vand.u32 %v3877, 4294901760
    %v4236 = vsub.f32 %v3877, %v4235
    %4237 = vmatpush1.msra.mxu0 %v4236
    %4238 = vmatprep.subr.mxu0 0.0
    %v4239 = vand.u32 %v3879, 4294901760
    %v4240 = vsub.f32 %v3879, %v4239
    %4241 = vmatpush1.msra.mxu0 %v4240
    %4242 = vmatprep.subr.mxu0 0.0
    %v4243 = vand.u32 %v3881, 4294901760
    %v4244 = vsub.f32 %v3881, %v4243
    %4245 = vmatpush1.msra.mxu0 %v4244
    %4246 = vmatprep.subr.mxu0 0.0
    %v4247 = vand.u32 %v3883, 4294901760
    %v4248 = vsub.f32 %v3883, %v4247
    %4249 = vmatpush1.msra.mxu0 %v4248
    %4250 = vmatprep.subr.mxu0 0.0
    %v4251 = vand.u32 %v3885, 4294901760
    %v4252 = vsub.f32 %v3885, %v4251
    %4253 = vmatpush1.msra.mxu0 %v4252
    %4254 = vmatprep.subr.mxu0 0.0
    %v4255 = vand.u32 %v3887, 4294901760
    %v4256 = vsub.f32 %v3887, %v4255
    %4257 = vmatpush1.msra.mxu0 %v4256
    %4258 = vmatprep.subr.mxu0 0.0
    %4259 = vmatpush1.msra.mxu0 0.0
    %4260 = vmatprep.subr.mxu0 0.0
    %4261 = vmatpush1.msra.mxu0 0.0
    %4262 = vmatprep.subr.mxu0 0.0
    %4263 = vmatpush1.msra.mxu0 0.0
    %4264 = vmatprep.subr.mxu0 0.0
    %4265 = vmatpush1.msra.mxu0 0.0
    %4266 = vmatprep.subr.mxu0 0.0
    %4267 = vmatpush1.msra.mxu0 0.0
    %4268 = vmatprep.subr.mxu0 0.0
    %4269 = vmatpush1.msra.mxu0 0.0
    %4270 = vmatprep.subr.mxu0 0.0
    %4271 = vmatpush1.msra.mxu0 0.0
    %4272 = vmatprep.subr.mxu0 0.0
    %4273 = vmatpush1.msra.mxu0 0.0
    %4274 = vmatprep.subr.mxu0 0.0
    %4275 = vmatpush1.msra.mxu0 0.0
    %4276 = vmatprep.subr.mxu0 0.0
    %4277 = vmatpush1.msra.mxu0 0.0
    %4278 = vmatprep.subr.mxu0 0.0
    %4279 = vmatpush1.msra.mxu0 0.0
    %4280 = vmatprep.subr.mxu0 0.0
    %4281 = vmatpush1.msra.mxu0 0.0
    %4282 = vmatprep.subr.mxu0 0.0
    %4283 = vmatpush1.msra.mxu0 0.0
    %4284 = vmatprep.subr.mxu0 0.0
    %4285 = vmatpush1.msra.mxu0 0.0
    %4286 = vmatprep.subr.mxu0 0.0
    %4287 = vmatpush1.msra.mxu0 0.0
    %4288 = vmatprep.subr.mxu0 0.0
    %4289 = vmatpush1.msra.mxu0 0.0
    %4290 = vmatprep.subr.mxu0 0.0
    %4291 = vmatpush1.msra.mxu0 0.0
    %4292 = vmatprep.subr.mxu0 0.0
    %4293 = vmatpush1.msra.mxu0 0.0
    %4294 = vmatprep.subr.mxu0 0.0
    %4295 = vmatpush1.msra.mxu0 0.0
    %4296 = vmatprep.subr.mxu0 0.0
    %4297 = vmatpush1.msra.mxu0 0.0
    %4298 = vmatprep.subr.mxu0 0.0
    %4299 = vmatpush1.msra.mxu0 0.0
    %4300 = vmatprep.subr.mxu0 0.0
    %4301 = vmatpush1.msra.mxu0 0.0
    %4302 = vmatprep.subr.mxu0 0.0
    %4303 = vmatpush1.msra.mxu0 0.0
    %4304 = vmatprep.subr.mxu0 0.0
    %4305 = vmatpush1.msra.mxu0 0.0
    %4306 = vmatprep.mubr.f32.mxu0 0.0
    %v4307 = vand.u32 %v3897, 4294901760
    %v4308 = vsub.f32 %v3897, %v4307
    %4309 = vmatmul.mubr.f32.gmra.mrb[0].mxu0 %v4308
    %v4310 = vpop.f32.mrb[0].mxu0
    %v4311 = vadd.f32 %v4181, %v4310
    %v4312 = vpop.f32.mrb[0].mxu0
    %4313 = vmatprep.mubr.f32.mxu0 0.0
    %v4314 = vand.u32 %v3900, 4294901760
    %v4315 = vsub.f32 %v3900, %v4314
    %4316 = vmatmul.mubr.f32.gmra.mrb[0].mxu0 %v4315
    %v4317 = vpop.f32.mrb[0].mxu0
    %v4318 = vadd.f32 %v4187, %v4317
    %v4319 = vpop.f32.mrb[0].mxu0
    %4320 = vmatprep.mubr.f32.mxu0 0.0
    %v4321 = vand.u32 %v3903, 4294901760
    %v4322 = vsub.f32 %v3903, %v4321
    %4323 = vmatmul.mubr.f32.gmra.mrb[0].mxu0 %v4322
    %v4324 = vpop.f32.mrb[0].mxu0
    %v4325 = vadd.f32 %v4193, %v4324
    %v4326 = vpop.f32.mrb[0].mxu0
    %4327 = vmatprep.mubr.f32.mxu0 0.0
    %v4328 = vand.u32 %v3906, 4294901760
    %v4329 = vsub.f32 %v3906, %v4328
    %4330 = vmatmul.mubr.f32.gmra.mrb[0].mxu0 %v4329
    %v4331 = vpop.f32.mrb[0].mxu0
    %v4332 = vadd.f32 %v4199, %v4331
    %v4333 = vpop.f32.mrb[0].mxu0
    %4334 = vmatprep.mubr.f32.mxu0 0.0
    %v4335 = vand.u32 %v3909, 4294901760
    %v4336 = vsub.f32 %v3909, %v4335
    %4337 = vmatmul.mubr.f32.gmra.mrb[0].mxu0 %v4336
    %v4338 = vpop.f32.mrb[0].mxu0
    %v4339 = vadd.f32 %v4205, %v4338
    %v4340 = vpop.f32.mrb[0].mxu0
    %4341 = vmatprep.mubr.f32.mxu0 0.0
    %v4342 = vand.u32 %v3912, 4294901760
    %v4343 = vsub.f32 %v3912, %v4342
    %4344 = vmatmul.mubr.f32.gmra.mrb[0].mxu0 %v4343
    %v4345 = vpop.f32.mrb[0].mxu0
    %v4346 = vadd.f32 %v4211, %v4345
    %v4347 = vpop.f32.mrb[0].mxu0
    %4348 = vmatprep.mubr.f32.mxu0 0.0
    %v4349 = vand.u32 %v3915, 4294901760
    %v4350 = vsub.f32 %v3915, %v4349
    %4351 = vmatmul.mubr.f32.gmra.mrb[0].mxu0 %v4350
    %v4352 = vpop.f32.mrb[0].mxu0
    %v4353 = vadd.f32 %v4217, %v4352
    %v4354 = vpop.f32.mrb[0].mxu0
    %4355 = vmatprep.mubr.f32.mxu0 0.0
    %v4356 = vand.u32 %v3918, 4294901760
    %v4357 = vsub.f32 %v3918, %v4356
    %4358 = vmatmul.mubr.f32.gmra.mrb[0].mxu0 %v4357
    %v4359 = vpop.f32.mrb[0].mxu0
    %v4360 = vadd.f32 %v4223, %v4359
    %v4361 = vpop.f32.mrb[0].mxu0
    %4362 = vdwg.mxu0
    %4363 = vmatprep.subr.mxu0 0.0
    %v4364 = vand.u32 %v3873, 4294901760
    %4365 = vmatpush1.msra.mxu0 %v4364
    %4366 = vmatprep.subr.mxu0 0.0
    %v4367 = vand.u32 %v3875, 4294901760
    %4368 = vmatpush1.msra.mxu0 %v4367
    %4369 = vmatprep.subr.mxu0 0.0
    %v4370 = vand.u32 %v3877, 4294901760
    %4371 = vmatpush1.msra.mxu0 %v4370
    %4372 = vmatprep.subr.mxu0 0.0
    %v4373 = vand.u32 %v3879, 4294901760
    %4374 = vmatpush1.msra.mxu0 %v4373
    %4375 = vmatprep.subr.mxu0 0.0
    %v4376 = vand.u32 %v3881, 4294901760
    %4377 = vmatpush1.msra.mxu0 %v4376
    %4378 = vmatprep.subr.mxu0 0.0
    %v4379 = vand.u32 %v3883, 4294901760
    %4380 = vmatpush1.msra.mxu0 %v4379
    %4381 = vmatprep.subr.mxu0 0.0
    %v4382 = vand.u32 %v3885, 4294901760
    %4383 = vmatpush1.msra.mxu0 %v4382
    %4384 = vmatprep.subr.mxu0 0.0
    %v4385 = vand.u32 %v3887, 4294901760
    %4386 = vmatpush1.msra.mxu0 %v4385
    %4387 = vmatprep.subr.mxu0 0.0
    %4388 = vmatpush1.msra.mxu0 0.0
    %4389 = vmatprep.subr.mxu0 0.0
    %4390 = vmatpush1.msra.mxu0 0.0
    %4391 = vmatprep.subr.mxu0 0.0
    %4392 = vmatpush1.msra.mxu0 0.0
    %4393 = vmatprep.subr.mxu0 0.0
    %4394 = vmatpush1.msra.mxu0 0.0
    %4395 = vmatprep.subr.mxu0 0.0
    %4396 = vmatpush1.msra.mxu0 0.0
    %4397 = vmatprep.subr.mxu0 0.0
    %4398 = vmatpush1.msra.mxu0 0.0
    %4399 = vmatprep.subr.mxu0 0.0
    %4400 = vmatpush1.msra.mxu0 0.0
    %4401 = vmatprep.subr.mxu0 0.0
    %4402 = vmatpush1.msra.mxu0 0.0
    %4403 = vmatprep.subr.mxu0 0.0
    %4404 = vmatpush1.msra.mxu0 0.0
    %4405 = vmatprep.subr.mxu0 0.0
    %4406 = vmatpush1.msra.mxu0 0.0
    %4407 = vmatprep.subr.mxu0 0.0
    %4408 = vmatpush1.msra.mxu0 0.0
    %4409 = vmatprep.subr.mxu0 0.0
    %4410 = vmatpush1.msra.mxu0 0.0
    %4411 = vmatprep.subr.mxu0 0.0
    %4412 = vmatpush1.msra.mxu0 0.0
    %4413 = vmatprep.subr.mxu0 0.0
    %4414 = vmatpush1.msra.mxu0 0.0
    %4415 = vmatprep.subr.mxu0 0.0
    %4416 = vmatpush1.msra.mxu0 0.0
    %4417 = vmatprep.subr.mxu0 0.0
    %4418 = vmatpush1.msra.mxu0 0.0
    %4419 = vmatprep.subr.mxu0 0.0
    %4420 = vmatpush1.msra.mxu0 0.0
    %4421 = vmatprep.subr.mxu0 0.0
    %4422 = vmatpush1.msra.mxu0 0.0
    %4423 = vmatprep.subr.mxu0 0.0
    %4424 = vmatpush1.msra.mxu0 0.0
    %4425 = vmatprep.subr.mxu0 0.0
    %4426 = vmatpush1.msra.mxu0 0.0
    %4427 = vmatprep.subr.mxu0 0.0
    %4428 = vmatpush1.msra.mxu0 0.0
    %4429 = vmatprep.subr.mxu0 0.0
    %4430 = vmatpush1.msra.mxu0 0.0
    %4431 = vmatprep.subr.mxu0 0.0
    %4432 = vmatpush1.msra.mxu0 0.0
    %4433 = vmatprep.subr.mxu0 0.0
    %4434 = vmatpush1.msra.mxu0 0.0
    %4435 = vmatprep.mubr.f32.mxu0 0.0
    %v4436 = vand.u32 %v3897, 4294901760
    %v4437 = vsub.f32 %v3897, %v4436
    %v4438 = vand.u32 %v4437, 4294901760
    %4439 = vmatmul.mubr.f32.gmra.mrb[0].mxu0 %v4438
    %v4440 = vpop.f32.mrb[0].mxu0
    %v4441 = vadd.f32 %v4311, %v4440
    %v4442 = vpop.f32.mrb[0].mxu0
    %4443 = vmatprep.mubr.f32.mxu0 0.0
    %v4444 = vand.u32 %v3900, 4294901760
    %v4445 = vsub.f32 %v3900, %v4444
    %v4446 = vand.u32 %v4445, 4294901760
    %4447 = vmatmul.mubr.f32.gmra.mrb[0].mxu0 %v4446
    %v4448 = vpop.f32.mrb[0].mxu0
    %v4449 = vadd.f32 %v4318, %v4448
    %v4450 = vpop.f32.mrb[0].mxu0
    %4451 = vmatprep.mubr.f32.mxu0 0.0
    %v4452 = vand.u32 %v3903, 4294901760
    %v4453 = vsub.f32 %v3903, %v4452
    %v4454 = vand.u32 %v4453, 4294901760
    %4455 = vmatmul.mubr.f32.gmra.mrb[0].mxu0 %v4454
    %v4456 = vpop.f32.mrb[0].mxu0
    %v4457 = vadd.f32 %v4325, %v4456
    %v4458 = vpop.f32.mrb[0].mxu0
    %4459 = vmatprep.mubr.f32.mxu0 0.0
    %v4460 = vand.u32 %v3906, 4294901760
    %v4461 = vsub.f32 %v3906, %v4460
    %v4462 = vand.u32 %v4461, 4294901760
    %4463 = vmatmul.mubr.f32.gmra.mrb[0].mxu0 %v4462
    %v4464 = vpop.f32.mrb[0].mxu0
    %v4465 = vadd.f32 %v4332, %v4464
    %v4466 = vpop.f32.mrb[0].mxu0
    %4467 = vmatprep.mubr.f32.mxu0 0.0
    %v4468 = vand.u32 %v3909, 4294901760
    %v4469 = vsub.f32 %v3909, %v4468
    %v4470 = vand.u32 %v4469, 4294901760
    %4471 = vmatmul.mubr.f32.gmra.mrb[0].mxu0 %v4470
    %v4472 = vpop.f32.mrb[0].mxu0
    %v4473 = vadd.f32 %v4339, %v4472
    %v4474 = vpop.f32.mrb[0].mxu0
    %4475 = vmatprep.mubr.f32.mxu0 0.0
    %v4476 = vand.u32 %v3912, 4294901760
    %v4477 = vsub.f32 %v3912, %v4476
    %v4478 = vand.u32 %v4477, 4294901760
    %4479 = vmatmul.mubr.f32.gmra.mrb[0].mxu0 %v4478
    %v4480 = vpop.f32.mrb[0].mxu0
    %v4481 = vadd.f32 %v4346, %v4480
    %v4482 = vpop.f32.mrb[0].mxu0
    %4483 = vmatprep.mubr.f32.mxu0 0.0
    %v4484 = vand.u32 %v3915, 4294901760
    %v4485 = vsub.f32 %v3915, %v4484
    %v4486 = vand.u32 %v4485, 4294901760
    %4487 = vmatmul.mubr.f32.gmra.mrb[0].mxu0 %v4486
    %v4488 = vpop.f32.mrb[0].mxu0
    %v4489 = vadd.f32 %v4353, %v4488
    %v4490 = vpop.f32.mrb[0].mxu0
    %4491 = vmatprep.mubr.f32.mxu0 0.0
    %v4492 = vand.u32 %v3918, 4294901760
    %v4493 = vsub.f32 %v3918, %v4492
    %v4494 = vand.u32 %v4493, 4294901760
    %4495 = vmatmul.mubr.f32.gmra.mrb[0].mxu0 %v4494
    %v4496 = vpop.f32.mrb[0].mxu0
    %v4497 = vadd.f32 %v4360, %v4496
    %v4498 = vpop.f32.mrb[0].mxu0
    %4499 = vdwg.mxu0
    %4500 = vmatprep.subr.mxu0 0.0
    %v4501 = vand.u32 %v3873, 4294901760
    %v4502 = vsub.f32 %v3873, %v4501
    %v4503 = vand.u32 %v4502, 4294901760
    %4504 = vmatpush1.msra.mxu0 %v4503
    %4505 = vmatprep.subr.mxu0 0.0
    %v4506 = vand.u32 %v3875, 4294901760
    %v4507 = vsub.f32 %v3875, %v4506
    %v4508 = vand.u32 %v4507, 4294901760
    %4509 = vmatpush1.msra.mxu0 %v4508
    %4510 = vmatprep.subr.mxu0 0.0
    %v4511 = vand.u32 %v3877, 4294901760
    %v4512 = vsub.f32 %v3877, %v4511
    %v4513 = vand.u32 %v4512, 4294901760
    %4514 = vmatpush1.msra.mxu0 %v4513
    %4515 = vmatprep.subr.mxu0 0.0
    %v4516 = vand.u32 %v3879, 4294901760
    %v4517 = vsub.f32 %v3879, %v4516
    %v4518 = vand.u32 %v4517, 4294901760
    %4519 = vmatpush1.msra.mxu0 %v4518
    %4520 = vmatprep.subr.mxu0 0.0
    %v4521 = vand.u32 %v3881, 4294901760
    %v4522 = vsub.f32 %v3881, %v4521
    %v4523 = vand.u32 %v4522, 4294901760
    %4524 = vmatpush1.msra.mxu0 %v4523
    %4525 = vmatprep.subr.mxu0 0.0
    %v4526 = vand.u32 %v3883, 4294901760
    %v4527 = vsub.f32 %v3883, %v4526
    %v4528 = vand.u32 %v4527, 4294901760
    %4529 = vmatpush1.msra.mxu0 %v4528
    %4530 = vmatprep.subr.mxu0 0.0
    %v4531 = vand.u32 %v3885, 4294901760
    %v4532 = vsub.f32 %v3885, %v4531
    %v4533 = vand.u32 %v4532, 4294901760
    %4534 = vmatpush1.msra.mxu0 %v4533
    %4535 = vmatprep.subr.mxu0 0.0
    %v4536 = vand.u32 %v3887, 4294901760
    %v4537 = vsub.f32 %v3887, %v4536
    %v4538 = vand.u32 %v4537, 4294901760
    %4539 = vmatpush1.msra.mxu0 %v4538
    %4540 = vmatprep.subr.mxu0 0.0
    %4541 = vmatpush1.msra.mxu0 0.0
    %4542 = vmatprep.subr.mxu0 0.0
    %4543 = vmatpush1.msra.mxu0 0.0
    %4544 = vmatprep.subr.mxu0 0.0
    %4545 = vmatpush1.msra.mxu0 0.0
    %4546 = vmatprep.subr.mxu0 0.0
    %4547 = vmatpush1.msra.mxu0 0.0
    %4548 = vmatprep.subr.mxu0 0.0
    %4549 = vmatpush1.msra.mxu0 0.0
    %4550 = vmatprep.subr.mxu0 0.0
    %4551 = vmatpush1.msra.mxu0 0.0
    %4552 = vmatprep.subr.mxu0 0.0
    %4553 = vmatpush1.msra.mxu0 0.0
    %4554 = vmatprep.subr.mxu0 0.0
    %4555 = vmatpush1.msra.mxu0 0.0
    %4556 = vmatprep.subr.mxu0 0.0
    %4557 = vmatpush1.msra.mxu0 0.0
    %4558 = vmatprep.subr.mxu0 0.0
    %4559 = vmatpush1.msra.mxu0 0.0
    %4560 = vmatprep.subr.mxu0 0.0
    %4561 = vmatpush1.msra.mxu0 0.0
    %4562 = vmatprep.subr.mxu0 0.0
    %4563 = vmatpush1.msra.mxu0 0.0
    %4564 = vmatprep.subr.mxu0 0.0
    %4565 = vmatpush1.msra.mxu0 0.0
    %4566 = vmatprep.subr.mxu0 0.0
    %4567 = vmatpush1.msra.mxu0 0.0
    %4568 = vmatprep.subr.mxu0 0.0
    %4569 = vmatpush1.msra.mxu0 0.0
    %4570 = vmatprep.subr.mxu0 0.0
    %4571 = vmatpush1.msra.mxu0 0.0
    %4572 = vmatprep.subr.mxu0 0.0
    %4573 = vmatpush1.msra.mxu0 0.0
    %4574 = vmatprep.subr.mxu0 0.0
    %4575 = vmatpush1.msra.mxu0 0.0
    %4576 = vmatprep.subr.mxu0 0.0
    %4577 = vmatpush1.msra.mxu0 0.0
    %4578 = vmatprep.subr.mxu0 0.0
    %4579 = vmatpush1.msra.mxu0 0.0
    %4580 = vmatprep.subr.mxu0 0.0
    %4581 = vmatpush1.msra.mxu0 0.0
    %4582 = vmatprep.subr.mxu0 0.0
    %4583 = vmatpush1.msra.mxu0 0.0
    %4584 = vmatprep.subr.mxu0 0.0
    %4585 = vmatpush1.msra.mxu0 0.0
    %4586 = vmatprep.subr.mxu0 0.0
    %4587 = vmatpush1.msra.mxu0 0.0
    %4588 = vmatprep.mubr.f32.mxu0 0.0
    %v4589 = vand.u32 %v3897, 4294901760
    %4590 = vmatmul.mubr.f32.gmra.mrb[0].mxu0 %v4589
    %v4591 = vpop.f32.mrb[0].mxu0
    %v4592 = vadd.f32 %v4441, %v4591
    %v4593 = vpop.f32.mrb[0].mxu0
    %4594 = vmatprep.mubr.f32.mxu0 0.0
    %v4595 = vand.u32 %v3900, 4294901760
    %4596 = vmatmul.mubr.f32.gmra.mrb[0].mxu0 %v4595
    %v4597 = vpop.f32.mrb[0].mxu0
    %v4598 = vadd.f32 %v4449, %v4597
    %v4599 = vpop.f32.mrb[0].mxu0
    %4600 = vmatprep.mubr.f32.mxu0 0.0
    %v4601 = vand.u32 %v3903, 4294901760
    %4602 = vmatmul.mubr.f32.gmra.mrb[0].mxu0 %v4601
    %v4603 = vpop.f32.mrb[0].mxu0
    %v4604 = vadd.f32 %v4457, %v4603
    %v4605 = vpop.f32.mrb[0].mxu0
    %4606 = vmatprep.mubr.f32.mxu0 0.0
    %v4607 = vand.u32 %v3906, 4294901760
    %4608 = vmatmul.mubr.f32.gmra.mrb[0].mxu0 %v4607
    %v4609 = vpop.f32.mrb[0].mxu0
    %v4610 = vadd.f32 %v4465, %v4609
    %v4611 = vpop.f32.mrb[0].mxu0
    %4612 = vmatprep.mubr.f32.mxu0 0.0
    %v4613 = vand.u32 %v3909, 4294901760
    %4614 = vmatmul.mubr.f32.gmra.mrb[0].mxu0 %v4613
    %v4615 = vpop.f32.mrb[0].mxu0
    %v4616 = vadd.f32 %v4473, %v4615
    %v4617 = vpop.f32.mrb[0].mxu0
    %4618 = vmatprep.mubr.f32.mxu0 0.0
    %v4619 = vand.u32 %v3912, 4294901760
    %4620 = vmatmul.mubr.f32.gmra.mrb[0].mxu0 %v4619
    %v4621 = vpop.f32.mrb[0].mxu0
    %v4622 = vadd.f32 %v4481, %v4621
    %v4623 = vpop.f32.mrb[0].mxu0
    %4624 = vmatprep.mubr.f32.mxu0 0.0
    %v4625 = vand.u32 %v3915, 4294901760
    %4626 = vmatmul.mubr.f32.gmra.mrb[0].mxu0 %v4625
    %v4627 = vpop.f32.mrb[0].mxu0
    %v4628 = vadd.f32 %v4489, %v4627
    %v4629 = vpop.f32.mrb[0].mxu0
    %4630 = vmatprep.mubr.f32.mxu0 0.0
    %v4631 = vand.u32 %v3918, 4294901760
    %4632 = vmatmul.mubr.f32.gmra.mrb[0].mxu0 %v4631
    %v4633 = vpop.f32.mrb[0].mxu0
    %v4634 = vadd.f32 %v4497, %v4633
    %v4635 = vpop.f32.mrb[0].mxu0
    %4636 = vdwg.mxu0
    %4637 = vmatprep.subr.mxu0 0.0
    %v4638 = vand.u32 %v3873, 4294901760
    %4639 = vmatpush1.msra.mxu0 %v4638
    %4640 = vmatprep.subr.mxu0 0.0
    %v4641 = vand.u32 %v3875, 4294901760
    %4642 = vmatpush1.msra.mxu0 %v4641
    %4643 = vmatprep.subr.mxu0 0.0
    %v4644 = vand.u32 %v3877, 4294901760
    %4645 = vmatpush1.msra.mxu0 %v4644
    %4646 = vmatprep.subr.mxu0 0.0
    %v4647 = vand.u32 %v3879, 4294901760
    %4648 = vmatpush1.msra.mxu0 %v4647
    %4649 = vmatprep.subr.mxu0 0.0
    %v4650 = vand.u32 %v3881, 4294901760
    %4651 = vmatpush1.msra.mxu0 %v4650
    %4652 = vmatprep.subr.mxu0 0.0
    %v4653 = vand.u32 %v3883, 4294901760
    %4654 = vmatpush1.msra.mxu0 %v4653
    %4655 = vmatprep.subr.mxu0 0.0
    %v4656 = vand.u32 %v3885, 4294901760
    %4657 = vmatpush1.msra.mxu0 %v4656
    %4658 = vmatprep.subr.mxu0 0.0
    %v4659 = vand.u32 %v3887, 4294901760
    %4660 = vmatpush1.msra.mxu0 %v4659
    %4661 = vmatprep.subr.mxu0 0.0
    %4662 = vmatpush1.msra.mxu0 0.0
    %4663 = vmatprep.subr.mxu0 0.0
    %4664 = vmatpush1.msra.mxu0 0.0
    %4665 = vmatprep.subr.mxu0 0.0
    %4666 = vmatpush1.msra.mxu0 0.0
    %4667 = vmatprep.subr.mxu0 0.0
    %4668 = vmatpush1.msra.mxu0 0.0
    %4669 = vmatprep.subr.mxu0 0.0
    %4670 = vmatpush1.msra.mxu0 0.0
    %4671 = vmatprep.subr.mxu0 0.0
    %4672 = vmatpush1.msra.mxu0 0.0
    %4673 = vmatprep.subr.mxu0 0.0
    %4674 = vmatpush1.msra.mxu0 0.0
    %4675 = vmatprep.subr.mxu0 0.0
    %4676 = vmatpush1.msra.mxu0 0.0
    %4677 = vmatprep.subr.mxu0 0.0
    %4678 = vmatpush1.msra.mxu0 0.0
    %4679 = vmatprep.subr.mxu0 0.0
    %4680 = vmatpush1.msra.mxu0 0.0
    %4681 = vmatprep.subr.mxu0 0.0
    %4682 = vmatpush1.msra.mxu0 0.0
    %4683 = vmatprep.subr.mxu0 0.0
    %4684 = vmatpush1.msra.mxu0 0.0
    %4685 = vmatprep.subr.mxu0 0.0
    %4686 = vmatpush1.msra.mxu0 0.0
    %4687 = vmatprep.subr.mxu0 0.0
    %4688 = vmatpush1.msra.mxu0 0.0
    %4689 = vmatprep.subr.mxu0 0.0
    %4690 = vmatpush1.msra.mxu0 0.0
    %4691 = vmatprep.subr.mxu0 0.0
    %4692 = vmatpush1.msra.mxu0 0.0
    %4693 = vmatprep.subr.mxu0 0.0
    %4694 = vmatpush1.msra.mxu0 0.0
    %4695 = vmatprep.subr.mxu0 0.0
    %4696 = vmatpush1.msra.mxu0 0.0
    %4697 = vmatprep.subr.mxu0 0.0
    %4698 = vmatpush1.msra.mxu0 0.0
    %4699 = vmatprep.subr.mxu0 0.0
    %4700 = vmatpush1.msra.mxu0 0.0
    %4701 = vmatprep.subr.mxu0 0.0
    %4702 = vmatpush1.msra.mxu0 0.0
    %4703 = vmatprep.subr.mxu0 0.0
    %4704 = vmatpush1.msra.mxu0 0.0
    %4705 = vmatprep.subr.mxu0 0.0
    %4706 = vmatpush1.msra.mxu0 0.0
    %4707 = vmatprep.subr.mxu0 0.0
    %4708 = vmatpush1.msra.mxu0 0.0
    %4709 = vmatprep.mubr.f32.mxu0 0.0
    %v4710 = vand.u32 %v3897, 4294901760
    %4711 = vmatmul.mubr.f32.gmra.mrb[0].mxu0 %v4710
    %v4712 = vpop.f32.mrb[0].mxu0
    %v4713 = vadd.f32 %v4592, %v4712
    %v4714 = vpop.f32.mrb[0].mxu0
    %4715 = vmatprep.mubr.f32.mxu0 0.0
    %v4716 = vand.u32 %v3900, 4294901760
    %4717 = vmatmul.mubr.f32.gmra.mrb[0].mxu0 %v4716
    %v4718 = vpop.f32.mrb[0].mxu0
    %v4719 = vadd.f32 %v4598, %v4718
    %v4720 = vpop.f32.mrb[0].mxu0
    %4721 = vmatprep.mubr.f32.mxu0 0.0
    %v4722 = vand.u32 %v3903, 4294901760
    %4723 = vmatmul.mubr.f32.gmra.mrb[0].mxu0 %v4722
    %v4724 = vpop.f32.mrb[0].mxu0
    %v4725 = vadd.f32 %v4604, %v4724
    %v4726 = vpop.f32.mrb[0].mxu0
    %4727 = vmatprep.mubr.f32.mxu0 0.0
    %v4728 = vand.u32 %v3906, 4294901760
    %4729 = vmatmul.mubr.f32.gmra.mrb[0].mxu0 %v4728
    %v4730 = vpop.f32.mrb[0].mxu0
    %v4731 = vadd.f32 %v4610, %v4730
    %v4732 = vpop.f32.mrb[0].mxu0
    %4733 = vmatprep.mubr.f32.mxu0 0.0
    %v4734 = vand.u32 %v3909, 4294901760
    %4735 = vmatmul.mubr.f32.gmra.mrb[0].mxu0 %v4734
    %v4736 = vpop.f32.mrb[0].mxu0
    %v4737 = vadd.f32 %v4616, %v4736
    %v4738 = vpop.f32.mrb[0].mxu0
    %4739 = vmatprep.mubr.f32.mxu0 0.0
    %v4740 = vand.u32 %v3912, 4294901760
    %4741 = vmatmul.mubr.f32.gmra.mrb[0].mxu0 %v4740
    %v4742 = vpop.f32.mrb[0].mxu0
    %v4743 = vadd.f32 %v4622, %v4742
    %v4744 = vpop.f32.mrb[0].mxu0
    %4745 = vmatprep.mubr.f32.mxu0 0.0
    %v4746 = vand.u32 %v3915, 4294901760
    %4747 = vmatmul.mubr.f32.gmra.mrb[0].mxu0 %v4746
    %v4748 = vpop.f32.mrb[0].mxu0
    %v4749 = vadd.f32 %v4628, %v4748
    %v4750 = vpop.f32.mrb[0].mxu0
    %4751 = vmatprep.mubr.f32.mxu0 0.0
    %v4752 = vand.u32 %v3918, 4294901760
    %4753 = vmatmul.mubr.f32.gmra.mrb[0].mxu0 %v4752
    %v4754 = vpop.f32.mrb[0].mxu0
    %v4755 = vadd.f32 %v4634, %v4754
    %v4756 = vpop.f32.mrb[0].mxu0
    %4757 = vdwg.mxu0
    %4758 = vrot.lane.b32.xlu0 %v935, 96
    %v4759 = vpop.permute.xlu0 %4758
    %4760 = vrot.lane.b32.xlu0 %v942, 96
    %v4761 = vpop.permute.xlu0 %4760
    %4762 = vrot.lane.b32.xlu0 %v949, 96
    %v4763 = vpop.permute.xlu0 %4762
    %4764 = vrot.lane.b32.xlu0 %v956, 96
    %v4765 = vpop.permute.xlu0 %4764
    %4766 = vrot.lane.b32.xlu0 %v963, 96
    %v4767 = vpop.permute.xlu0 %4766
    %4768 = vrot.lane.b32.xlu0 %v970, 96
    %v4769 = vpop.permute.xlu0 %4768
    %4770 = vrot.lane.b32.xlu0 %v977, 96
    %v4771 = vpop.permute.xlu0 %4770
    %4772 = vrot.lane.b32.xlu0 %v984, 96
    %v4773 = vpop.permute.xlu0 %4772
    %4774 = vrot.lane.b32.xlu0 %v935, 32
    %v4775 = vpop.permute.xlu0 %4774
    %4776 = vrot.lane.b32.xlu0 %v942, 32
    %v4777 = vpop.permute.xlu0 %4776
    %4778 = vrot.lane.b32.xlu0 %v949, 32
    %v4779 = vpop.permute.xlu0 %4778
    %4780 = vrot.lane.b32.xlu0 %v956, 32
    %v4781 = vpop.permute.xlu0 %4780
    %4782 = vrot.lane.b32.xlu0 %v963, 32
    %v4783 = vpop.permute.xlu0 %4782
    %4784 = vrot.lane.b32.xlu0 %v970, 32
    %v4785 = vpop.permute.xlu0 %4784
    %4786 = vrot.lane.b32.xlu0 %v977, 32
    %v4787 = vpop.permute.xlu0 %4786
    %4788 = vrot.lane.b32.xlu0 %v984, 32
    %v4789 = vpop.permute.xlu0 %4788
    %v4790 = vsel %vm1020, %v4759, 0
    %v4792 = vsel %vm1020, %v4761, 0
    %v4794 = vsel %vm1020, %v4763, 0
    %v4796 = vsel %vm1020, %v4765, 0
    %v4798 = vsel %vm1020, %v4767, 0
    %v4800 = vsel %vm1020, %v4769, 0
    %v4802 = vsel %vm1020, %v4771, 0
    %v4804 = vsel %vm1020, %v4773, 0
    %v4806 = vsel %vm1020, %v4775, 0
    %v4808 = vsel %vm1020, %v4777, 0
    %v4810 = vsel %vm1020, %v4779, 0
    %v4812 = vsel %vm1020, %v4781, 0
    %v4814 = vsel %vm1020, %v4783, 0
    %v4816 = vsel %vm1020, %v4785, 0
    %v4818 = vsel %vm1020, %v4787, 0
    %v4820 = vsel %vm1020, %v4789, 0
    %4822 = vmatprep.subr.mxu0 0.0
    %v4823 = vand.u32 %v4806, 4294901760
    %4824 = vmatpush1.xpose.msra.mxu0 %v4823
    %4825 = vmatprep.subr.mxu0 0.0
    %v4826 = vand.u32 %v4808, 4294901760
    %4827 = vmatpush1.xpose.msra.mxu0 %v4826
    %4828 = vmatprep.subr.mxu0 0.0
    %v4829 = vand.u32 %v4810, 4294901760
    %4830 = vmatpush1.xpose.msra.mxu0 %v4829
    %4831 = vmatprep.subr.mxu0 0.0
    %v4832 = vand.u32 %v4812, 4294901760
    %4833 = vmatpush1.xpose.msra.mxu0 %v4832
    %4834 = vmatprep.subr.mxu0 0.0
    %v4835 = vand.u32 %v4814, 4294901760
    %4836 = vmatpush1.xpose.msra.mxu0 %v4835
    %4837 = vmatprep.subr.mxu0 0.0
    %v4838 = vand.u32 %v4816, 4294901760
    %4839 = vmatpush1.xpose.msra.mxu0 %v4838
    %4840 = vmatprep.subr.mxu0 0.0
    %v4841 = vand.u32 %v4818, 4294901760
    %4842 = vmatpush1.xpose.msra.mxu0 %v4841
    %4843 = vmatprep.subr.mxu0 0.0
    %v4844 = vand.u32 %v4820, 4294901760
    %4845 = vmatpush1.xpose.msra.mxu0 %v4844
    %4846 = vmatprep.subr.mxu0 0.0
    %4847 = vmatpush1.xpose.msra.mxu0 0.0
    %4848 = vmatprep.subr.mxu0 0.0
    %4849 = vmatpush1.xpose.msra.mxu0 0.0
    %4850 = vmatprep.subr.mxu0 0.0
    %4851 = vmatpush1.xpose.msra.mxu0 0.0
    %4852 = vmatprep.subr.mxu0 0.0
    %4853 = vmatpush1.xpose.msra.mxu0 0.0
    %4854 = vmatprep.subr.mxu0 0.0
    %4855 = vmatpush1.xpose.msra.mxu0 0.0
    %4856 = vmatprep.subr.mxu0 0.0
    %4857 = vmatpush1.xpose.msra.mxu0 0.0
    %4858 = vmatprep.subr.mxu0 0.0
    %4859 = vmatpush1.xpose.msra.mxu0 0.0
    %4860 = vmatprep.subr.mxu0 0.0
    %4861 = vmatpush1.xpose.msra.mxu0 0.0
    %4862 = vmatprep.subr.mxu0 0.0
    %4863 = vmatpush1.xpose.msra.mxu0 0.0
    %4864 = vmatprep.subr.mxu0 0.0
    %4865 = vmatpush1.xpose.msra.mxu0 0.0
    %4866 = vmatprep.subr.mxu0 0.0
    %4867 = vmatpush1.xpose.msra.mxu0 0.0
    %4868 = vmatprep.subr.mxu0 0.0
    %4869 = vmatpush1.xpose.msra.mxu0 0.0
    %4870 = vmatprep.subr.mxu0 0.0
    %4871 = vmatpush1.xpose.msra.mxu0 0.0
    %4872 = vmatprep.subr.mxu0 0.0
    %4873 = vmatpush1.xpose.msra.mxu0 0.0
    %4874 = vmatprep.subr.mxu0 0.0
    %4875 = vmatpush1.xpose.msra.mxu0 0.0
    %4876 = vmatprep.subr.mxu0 0.0
    %4877 = vmatpush1.xpose.msra.mxu0 0.0
    %4878 = vmatprep.subr.mxu0 0.0
    %4879 = vmatpush1.xpose.msra.mxu0 0.0
    %4880 = vmatprep.subr.mxu0 0.0
    %4881 = vmatpush1.xpose.msra.mxu0 0.0
    %4882 = vmatprep.subr.mxu0 0.0
    %4883 = vmatpush1.xpose.msra.mxu0 0.0
    %4884 = vmatprep.subr.mxu0 0.0
    %4885 = vmatpush1.xpose.msra.mxu0 0.0
    %4886 = vmatprep.subr.mxu0 0.0
    %4887 = vmatpush1.xpose.msra.mxu0 0.0
    %4888 = vmatprep.subr.mxu0 0.0
    %4889 = vmatpush1.xpose.msra.mxu0 0.0
    %4890 = vmatprep.subr.mxu0 0.0
    %4891 = vmatpush1.xpose.msra.mxu0 0.0
    %4892 = vmatprep.subr.mxu0 0.0
    %4893 = vmatpush1.xpose.msra.mxu0 0.0
    %4894 = vmatprep.mubr.f32.mxu0 0.0
    %v4895 = vand.u32 %v4790, 4294901760
    %v4896 = vsub.f32 %v4790, %v4895
    %v4897 = vand.u32 %v4896, 4294901760
    %v4898 = vsub.f32 %v4896, %v4897
    %v4899 = vand.u32 %v4898, 4294901760
    %4900 = vmatmul.mubr.f32.gmra.mrb[0].mxu0 %v4899
    %v4901 = vpop.f32.mrb[0].mxu0
    %v4902 = vadd.f32 0.0, %v4901
    %v4903 = vpop.f32.mrb[0].mxu0
    %4904 = vmatprep.mubr.f32.mxu0 0.0
    %v4905 = vand.u32 %v4792, 4294901760
    %v4906 = vsub.f32 %v4792, %v4905
    %v4907 = vand.u32 %v4906, 4294901760
    %v4908 = vsub.f32 %v4906, %v4907
    %v4909 = vand.u32 %v4908, 4294901760
    %4910 = vmatmul.mubr.f32.gmra.mrb[0].mxu0 %v4909
    %v4911 = vpop.f32.mrb[0].mxu0
    %v4912 = vadd.f32 0.0, %v4911
    %v4913 = vpop.f32.mrb[0].mxu0
    %4914 = vmatprep.mubr.f32.mxu0 0.0
    %v4915 = vand.u32 %v4794, 4294901760
    %v4916 = vsub.f32 %v4794, %v4915
    %v4917 = vand.u32 %v4916, 4294901760
    %v4918 = vsub.f32 %v4916, %v4917
    %v4919 = vand.u32 %v4918, 4294901760
    %4920 = vmatmul.mubr.f32.gmra.mrb[0].mxu0 %v4919
    %v4921 = vpop.f32.mrb[0].mxu0
    %v4922 = vadd.f32 0.0, %v4921
    %v4923 = vpop.f32.mrb[0].mxu0
    %4924 = vmatprep.mubr.f32.mxu0 0.0
    %v4925 = vand.u32 %v4796, 4294901760
    %v4926 = vsub.f32 %v4796, %v4925
    %v4927 = vand.u32 %v4926, 4294901760
    %v4928 = vsub.f32 %v4926, %v4927
    %v4929 = vand.u32 %v4928, 4294901760
    %4930 = vmatmul.mubr.f32.gmra.mrb[0].mxu0 %v4929
    %v4931 = vpop.f32.mrb[0].mxu0
    %v4932 = vadd.f32 0.0, %v4931
    %v4933 = vpop.f32.mrb[0].mxu0
    %4934 = vmatprep.mubr.f32.mxu0 0.0
    %v4935 = vand.u32 %v4798, 4294901760
    %v4936 = vsub.f32 %v4798, %v4935
    %v4937 = vand.u32 %v4936, 4294901760
    %v4938 = vsub.f32 %v4936, %v4937
    %v4939 = vand.u32 %v4938, 4294901760
    %4940 = vmatmul.mubr.f32.gmra.mrb[0].mxu0 %v4939
    %v4941 = vpop.f32.mrb[0].mxu0
    %v4942 = vadd.f32 0.0, %v4941
    %v4943 = vpop.f32.mrb[0].mxu0
    %4944 = vmatprep.mubr.f32.mxu0 0.0
    %v4945 = vand.u32 %v4800, 4294901760
    %v4946 = vsub.f32 %v4800, %v4945
    %v4947 = vand.u32 %v4946, 4294901760
    %v4948 = vsub.f32 %v4946, %v4947
    %v4949 = vand.u32 %v4948, 4294901760
    %4950 = vmatmul.mubr.f32.gmra.mrb[0].mxu0 %v4949
    %v4951 = vpop.f32.mrb[0].mxu0
    %v4952 = vadd.f32 0.0, %v4951
    %v4953 = vpop.f32.mrb[0].mxu0
    %4954 = vmatprep.mubr.f32.mxu0 0.0
    %v4955 = vand.u32 %v4802, 4294901760
    %v4956 = vsub.f32 %v4802, %v4955
    %v4957 = vand.u32 %v4956, 4294901760
    %v4958 = vsub.f32 %v4956, %v4957
    %v4959 = vand.u32 %v4958, 4294901760
    %4960 = vmatmul.mubr.f32.gmra.mrb[0].mxu0 %v4959
    %v4961 = vpop.f32.mrb[0].mxu0
    %v4962 = vadd.f32 0.0, %v4961
    %v4963 = vpop.f32.mrb[0].mxu0
    %4964 = vmatprep.mubr.f32.mxu0 0.0
    %v4965 = vand.u32 %v4804, 4294901760
    %v4966 = vsub.f32 %v4804, %v4965
    %v4967 = vand.u32 %v4966, 4294901760
    %v4968 = vsub.f32 %v4966, %v4967
    %v4969 = vand.u32 %v4968, 4294901760
    %4970 = vmatmul.mubr.f32.gmra.mrb[0].mxu0 %v4969
    %v4971 = vpop.f32.mrb[0].mxu0
    %v4972 = vadd.f32 0.0, %v4971
    %v4973 = vpop.f32.mrb[0].mxu0
    %4974 = vdwg.mxu0
    %4975 = vmatprep.subr.mxu0 0.0
    %v4976 = vand.u32 %v4806, 4294901760
    %v4977 = vsub.f32 %v4806, %v4976
    %v4978 = vand.u32 %v4977, 4294901760
    %v4979 = vsub.f32 %v4977, %v4978
    %v4980 = vand.u32 %v4979, 4294901760
    %4981 = vmatpush1.xpose.msra.mxu0 %v4980
    %4982 = vmatprep.subr.mxu0 0.0
    %v4983 = vand.u32 %v4808, 4294901760
    %v4984 = vsub.f32 %v4808, %v4983
    %v4985 = vand.u32 %v4984, 4294901760
    %v4986 = vsub.f32 %v4984, %v4985
    %v4987 = vand.u32 %v4986, 4294901760
    %4988 = vmatpush1.xpose.msra.mxu0 %v4987
    %4989 = vmatprep.subr.mxu0 0.0
    %v4990 = vand.u32 %v4810, 4294901760
    %v4991 = vsub.f32 %v4810, %v4990
    %v4992 = vand.u32 %v4991, 4294901760
    %v4993 = vsub.f32 %v4991, %v4992
    %v4994 = vand.u32 %v4993, 4294901760
    %4995 = vmatpush1.xpose.msra.mxu0 %v4994
    %4996 = vmatprep.subr.mxu0 0.0
    %v4997 = vand.u32 %v4812, 4294901760
    %v4998 = vsub.f32 %v4812, %v4997
    %v4999 = vand.u32 %v4998, 4294901760
    %v5000 = vsub.f32 %v4998, %v4999
    %v5001 = vand.u32 %v5000, 4294901760
    %5002 = vmatpush1.xpose.msra.mxu0 %v5001
    %5003 = vmatprep.subr.mxu0 0.0
    %v5004 = vand.u32 %v4814, 4294901760
    %v5005 = vsub.f32 %v4814, %v5004
    %v5006 = vand.u32 %v5005, 4294901760
    %v5007 = vsub.f32 %v5005, %v5006
    %v5008 = vand.u32 %v5007, 4294901760
    %5009 = vmatpush1.xpose.msra.mxu0 %v5008
    %5010 = vmatprep.subr.mxu0 0.0
    %v5011 = vand.u32 %v4816, 4294901760
    %v5012 = vsub.f32 %v4816, %v5011
    %v5013 = vand.u32 %v5012, 4294901760
    %v5014 = vsub.f32 %v5012, %v5013
    %v5015 = vand.u32 %v5014, 4294901760
    %5016 = vmatpush1.xpose.msra.mxu0 %v5015
    %5017 = vmatprep.subr.mxu0 0.0
    %v5018 = vand.u32 %v4818, 4294901760
    %v5019 = vsub.f32 %v4818, %v5018
    %v5020 = vand.u32 %v5019, 4294901760
    %v5021 = vsub.f32 %v5019, %v5020
    %v5022 = vand.u32 %v5021, 4294901760
    %5023 = vmatpush1.xpose.msra.mxu0 %v5022
    %5024 = vmatprep.subr.mxu0 0.0
    %v5025 = vand.u32 %v4820, 4294901760
    %v5026 = vsub.f32 %v4820, %v5025
    %v5027 = vand.u32 %v5026, 4294901760
    %v5028 = vsub.f32 %v5026, %v5027
    %v5029 = vand.u32 %v5028, 4294901760
    %5030 = vmatpush1.xpose.msra.mxu0 %v5029
    %5031 = vmatprep.subr.mxu0 0.0
    %5032 = vmatpush1.xpose.msra.mxu0 0.0
    %5033 = vmatprep.subr.mxu0 0.0
    %5034 = vmatpush1.xpose.msra.mxu0 0.0
    %5035 = vmatprep.subr.mxu0 0.0
    %5036 = vmatpush1.xpose.msra.mxu0 0.0
    %5037 = vmatprep.subr.mxu0 0.0
    %5038 = vmatpush1.xpose.msra.mxu0 0.0
    %5039 = vmatprep.subr.mxu0 0.0
    %5040 = vmatpush1.xpose.msra.mxu0 0.0
    %5041 = vmatprep.subr.mxu0 0.0
    %5042 = vmatpush1.xpose.msra.mxu0 0.0
    %5043 = vmatprep.subr.mxu0 0.0
    %5044 = vmatpush1.xpose.msra.mxu0 0.0
    %5045 = vmatprep.subr.mxu0 0.0
    %5046 = vmatpush1.xpose.msra.mxu0 0.0
    %5047 = vmatprep.subr.mxu0 0.0
    %5048 = vmatpush1.xpose.msra.mxu0 0.0
    %5049 = vmatprep.subr.mxu0 0.0
    %5050 = vmatpush1.xpose.msra.mxu0 0.0
    %5051 = vmatprep.subr.mxu0 0.0
    %5052 = vmatpush1.xpose.msra.mxu0 0.0
    %5053 = vmatprep.subr.mxu0 0.0
    %5054 = vmatpush1.xpose.msra.mxu0 0.0
    %5055 = vmatprep.subr.mxu0 0.0
    %5056 = vmatpush1.xpose.msra.mxu0 0.0
    %5057 = vmatprep.subr.mxu0 0.0
    %5058 = vmatpush1.xpose.msra.mxu0 0.0
    %5059 = vmatprep.subr.mxu0 0.0
    %5060 = vmatpush1.xpose.msra.mxu0 0.0
    %5061 = vmatprep.subr.mxu0 0.0
    %5062 = vmatpush1.xpose.msra.mxu0 0.0
    %5063 = vmatprep.subr.mxu0 0.0
    %5064 = vmatpush1.xpose.msra.mxu0 0.0
    %5065 = vmatprep.subr.mxu0 0.0
    %5066 = vmatpush1.xpose.msra.mxu0 0.0
    %5067 = vmatprep.subr.mxu0 0.0
    %5068 = vmatpush1.xpose.msra.mxu0 0.0
    %5069 = vmatprep.subr.mxu0 0.0
    %5070 = vmatpush1.xpose.msra.mxu0 0.0
    %5071 = vmatprep.subr.mxu0 0.0
    %5072 = vmatpush1.xpose.msra.mxu0 0.0
    %5073 = vmatprep.subr.mxu0 0.0
    %5074 = vmatpush1.xpose.msra.mxu0 0.0
    %5075 = vmatprep.subr.mxu0 0.0
    %5076 = vmatpush1.xpose.msra.mxu0 0.0
    %5077 = vmatprep.subr.mxu0 0.0
    %5078 = vmatpush1.xpose.msra.mxu0 0.0
    %5079 = vmatprep.mubr.f32.mxu0 0.0
    %v5080 = vand.u32 %v4790, 4294901760
    %5081 = vmatmul.mubr.f32.gmra.mrb[0].mxu0 %v5080
    %v5082 = vpop.f32.mrb[0].mxu0
    %v5083 = vadd.f32 %v4902, %v5082
    %v5084 = vpop.f32.mrb[0].mxu0
    %5085 = vmatprep.mubr.f32.mxu0 0.0
    %v5086 = vand.u32 %v4792, 4294901760
    %5087 = vmatmul.mubr.f32.gmra.mrb[0].mxu0 %v5086
    %v5088 = vpop.f32.mrb[0].mxu0
    %v5089 = vadd.f32 %v4912, %v5088
    %v5090 = vpop.f32.mrb[0].mxu0
    %5091 = vmatprep.mubr.f32.mxu0 0.0
    %v5092 = vand.u32 %v4794, 4294901760
    %5093 = vmatmul.mubr.f32.gmra.mrb[0].mxu0 %v5092
    %v5094 = vpop.f32.mrb[0].mxu0
    %v5095 = vadd.f32 %v4922, %v5094
    %v5096 = vpop.f32.mrb[0].mxu0
    %5097 = vmatprep.mubr.f32.mxu0 0.0
    %v5098 = vand.u32 %v4796, 4294901760
    %5099 = vmatmul.mubr.f32.gmra.mrb[0].mxu0 %v5098
    %v5100 = vpop.f32.mrb[0].mxu0
    %v5101 = vadd.f32 %v4932, %v5100
    %v5102 = vpop.f32.mrb[0].mxu0
    %5103 = vmatprep.mubr.f32.mxu0 0.0
    %v5104 = vand.u32 %v4798, 4294901760
    %5105 = vmatmul.mubr.f32.gmra.mrb[0].mxu0 %v5104
    %v5106 = vpop.f32.mrb[0].mxu0
    %v5107 = vadd.f32 %v4942, %v5106
    %v5108 = vpop.f32.mrb[0].mxu0
    %5109 = vmatprep.mubr.f32.mxu0 0.0
    %v5110 = vand.u32 %v4800, 4294901760
    %5111 = vmatmul.mubr.f32.gmra.mrb[0].mxu0 %v5110
    %v5112 = vpop.f32.mrb[0].mxu0
    %v5113 = vadd.f32 %v4952, %v5112
    %v5114 = vpop.f32.mrb[0].mxu0
    %5115 = vmatprep.mubr.f32.mxu0 0.0
    %v5116 = vand.u32 %v4802, 4294901760
    %5117 = vmatmul.mubr.f32.gmra.mrb[0].mxu0 %v5116
    %v5118 = vpop.f32.mrb[0].mxu0
    %v5119 = vadd.f32 %v4962, %v5118
    %v5120 = vpop.f32.mrb[0].mxu0
    %5121 = vmatprep.mubr.f32.mxu0 0.0
    %v5122 = vand.u32 %v4804, 4294901760
    %5123 = vmatmul.mubr.f32.gmra.mrb[0].mxu0 %v5122
    %v5124 = vpop.f32.mrb[0].mxu0
    %v5125 = vadd.f32 %v4972, %v5124
    %v5126 = vpop.f32.mrb[0].mxu0
    %5127 = vdwg.mxu0
    %5128 = vmatprep.subr.mxu0 0.0
    %v5129 = vand.u32 %v4806, 4294901760
    %v5130 = vsub.f32 %v4806, %v5129
    %5131 = vmatpush1.xpose.msra.mxu0 %v5130
    %5132 = vmatprep.subr.mxu0 0.0
    %v5133 = vand.u32 %v4808, 4294901760
    %v5134 = vsub.f32 %v4808, %v5133
    %5135 = vmatpush1.xpose.msra.mxu0 %v5134
    %5136 = vmatprep.subr.mxu0 0.0
    %v5137 = vand.u32 %v4810, 4294901760
    %v5138 = vsub.f32 %v4810, %v5137
    %5139 = vmatpush1.xpose.msra.mxu0 %v5138
    %5140 = vmatprep.subr.mxu0 0.0
    %v5141 = vand.u32 %v4812, 4294901760
    %v5142 = vsub.f32 %v4812, %v5141
    %5143 = vmatpush1.xpose.msra.mxu0 %v5142
    %5144 = vmatprep.subr.mxu0 0.0
    %v5145 = vand.u32 %v4814, 4294901760
    %v5146 = vsub.f32 %v4814, %v5145
    %5147 = vmatpush1.xpose.msra.mxu0 %v5146
    %5148 = vmatprep.subr.mxu0 0.0
    %v5149 = vand.u32 %v4816, 4294901760
    %v5150 = vsub.f32 %v4816, %v5149
    %5151 = vmatpush1.xpose.msra.mxu0 %v5150
    %5152 = vmatprep.subr.mxu0 0.0
    %v5153 = vand.u32 %v4818, 4294901760
    %v5154 = vsub.f32 %v4818, %v5153
    %5155 = vmatpush1.xpose.msra.mxu0 %v5154
    %5156 = vmatprep.subr.mxu0 0.0
    %v5157 = vand.u32 %v4820, 4294901760
    %v5158 = vsub.f32 %v4820, %v5157
    %5159 = vmatpush1.xpose.msra.mxu0 %v5158
    %5160 = vmatprep.subr.mxu0 0.0
    %5161 = vmatpush1.xpose.msra.mxu0 0.0
    %5162 = vmatprep.subr.mxu0 0.0
    %5163 = vmatpush1.xpose.msra.mxu0 0.0
    %5164 = vmatprep.subr.mxu0 0.0
    %5165 = vmatpush1.xpose.msra.mxu0 0.0
    %5166 = vmatprep.subr.mxu0 0.0
    %5167 = vmatpush1.xpose.msra.mxu0 0.0
    %5168 = vmatprep.subr.mxu0 0.0
    %5169 = vmatpush1.xpose.msra.mxu0 0.0
    %5170 = vmatprep.subr.mxu0 0.0
    %5171 = vmatpush1.xpose.msra.mxu0 0.0
    %5172 = vmatprep.subr.mxu0 0.0
    %5173 = vmatpush1.xpose.msra.mxu0 0.0
    %5174 = vmatprep.subr.mxu0 0.0
    %5175 = vmatpush1.xpose.msra.mxu0 0.0
    %5176 = vmatprep.subr.mxu0 0.0
    %5177 = vmatpush1.xpose.msra.mxu0 0.0
    %5178 = vmatprep.subr.mxu0 0.0
    %5179 = vmatpush1.xpose.msra.mxu0 0.0
    %5180 = vmatprep.subr.mxu0 0.0
    %5181 = vmatpush1.xpose.msra.mxu0 0.0
    %5182 = vmatprep.subr.mxu0 0.0
    %5183 = vmatpush1.xpose.msra.mxu0 0.0
    %5184 = vmatprep.subr.mxu0 0.0
    %5185 = vmatpush1.xpose.msra.mxu0 0.0
    %5186 = vmatprep.subr.mxu0 0.0
    %5187 = vmatpush1.xpose.msra.mxu0 0.0
    %5188 = vmatprep.subr.mxu0 0.0
    %5189 = vmatpush1.xpose.msra.mxu0 0.0
    %5190 = vmatprep.subr.mxu0 0.0
    %5191 = vmatpush1.xpose.msra.mxu0 0.0
    %5192 = vmatprep.subr.mxu0 0.0
    %5193 = vmatpush1.xpose.msra.mxu0 0.0
    %5194 = vmatprep.subr.mxu0 0.0
    %5195 = vmatpush1.xpose.msra.mxu0 0.0
    %5196 = vmatprep.subr.mxu0 0.0
    %5197 = vmatpush1.xpose.msra.mxu0 0.0
    %5198 = vmatprep.subr.mxu0 0.0
    %5199 = vmatpush1.xpose.msra.mxu0 0.0
    %5200 = vmatprep.subr.mxu0 0.0
    %5201 = vmatpush1.xpose.msra.mxu0 0.0
    %5202 = vmatprep.subr.mxu0 0.0
    %5203 = vmatpush1.xpose.msra.mxu0 0.0
    %5204 = vmatprep.subr.mxu0 0.0
    %5205 = vmatpush1.xpose.msra.mxu0 0.0
    %5206 = vmatprep.subr.mxu0 0.0
    %5207 = vmatpush1.xpose.msra.mxu0 0.0
    %5208 = vmatprep.mubr.f32.mxu0 0.0
    %v5209 = vand.u32 %v4790, 4294901760
    %v5210 = vsub.f32 %v4790, %v5209
    %5211 = vmatmul.mubr.f32.gmra.mrb[0].mxu0 %v5210
    %v5212 = vpop.f32.mrb[0].mxu0
    %v5213 = vadd.f32 %v5083, %v5212
    %v5214 = vpop.f32.mrb[0].mxu0
    %5215 = vmatprep.mubr.f32.mxu0 0.0
    %v5216 = vand.u32 %v4792, 4294901760
    %v5217 = vsub.f32 %v4792, %v5216
    %5218 = vmatmul.mubr.f32.gmra.mrb[0].mxu0 %v5217
    %v5219 = vpop.f32.mrb[0].mxu0
    %v5220 = vadd.f32 %v5089, %v5219
    %v5221 = vpop.f32.mrb[0].mxu0
    %5222 = vmatprep.mubr.f32.mxu0 0.0
    %v5223 = vand.u32 %v4794, 4294901760
    %v5224 = vsub.f32 %v4794, %v5223
    %5225 = vmatmul.mubr.f32.gmra.mrb[0].mxu0 %v5224
    %v5226 = vpop.f32.mrb[0].mxu0
    %v5227 = vadd.f32 %v5095, %v5226
    %v5228 = vpop.f32.mrb[0].mxu0
    %5229 = vmatprep.mubr.f32.mxu0 0.0
    %v5230 = vand.u32 %v4796, 4294901760
    %v5231 = vsub.f32 %v4796, %v5230
    %5232 = vmatmul.mubr.f32.gmra.mrb[0].mxu0 %v5231
    %v5233 = vpop.f32.mrb[0].mxu0
    %v5234 = vadd.f32 %v5101, %v5233
    %v5235 = vpop.f32.mrb[0].mxu0
    %5236 = vmatprep.mubr.f32.mxu0 0.0
    %v5237 = vand.u32 %v4798, 4294901760
    %v5238 = vsub.f32 %v4798, %v5237
    %5239 = vmatmul.mubr.f32.gmra.mrb[0].mxu0 %v5238
    %v5240 = vpop.f32.mrb[0].mxu0
    %v5241 = vadd.f32 %v5107, %v5240
    %v5242 = vpop.f32.mrb[0].mxu0
    %5243 = vmatprep.mubr.f32.mxu0 0.0
    %v5244 = vand.u32 %v4800, 4294901760
    %v5245 = vsub.f32 %v4800, %v5244
    %5246 = vmatmul.mubr.f32.gmra.mrb[0].mxu0 %v5245
    %v5247 = vpop.f32.mrb[0].mxu0
    %v5248 = vadd.f32 %v5113, %v5247
    %v5249 = vpop.f32.mrb[0].mxu0
    %5250 = vmatprep.mubr.f32.mxu0 0.0
    %v5251 = vand.u32 %v4802, 4294901760
    %v5252 = vsub.f32 %v4802, %v5251
    %5253 = vmatmul.mubr.f32.gmra.mrb[0].mxu0 %v5252
    %v5254 = vpop.f32.mrb[0].mxu0
    %v5255 = vadd.f32 %v5119, %v5254
    %v5256 = vpop.f32.mrb[0].mxu0
    %5257 = vmatprep.mubr.f32.mxu0 0.0
    %v5258 = vand.u32 %v4804, 4294901760
    %v5259 = vsub.f32 %v4804, %v5258
    %5260 = vmatmul.mubr.f32.gmra.mrb[0].mxu0 %v5259
    %v5261 = vpop.f32.mrb[0].mxu0
    %v5262 = vadd.f32 %v5125, %v5261
    %v5263 = vpop.f32.mrb[0].mxu0
    %5264 = vdwg.mxu0
    %5265 = vmatprep.subr.mxu0 0.0
    %v5266 = vand.u32 %v4806, 4294901760
    %5267 = vmatpush1.xpose.msra.mxu0 %v5266
    %5268 = vmatprep.subr.mxu0 0.0
    %v5269 = vand.u32 %v4808, 4294901760
    %5270 = vmatpush1.xpose.msra.mxu0 %v5269
    %5271 = vmatprep.subr.mxu0 0.0
    %v5272 = vand.u32 %v4810, 4294901760
    %5273 = vmatpush1.xpose.msra.mxu0 %v5272
    %5274 = vmatprep.subr.mxu0 0.0
    %v5275 = vand.u32 %v4812, 4294901760
    %5276 = vmatpush1.xpose.msra.mxu0 %v5275
    %5277 = vmatprep.subr.mxu0 0.0
    %v5278 = vand.u32 %v4814, 4294901760
    %5279 = vmatpush1.xpose.msra.mxu0 %v5278
    %5280 = vmatprep.subr.mxu0 0.0
    %v5281 = vand.u32 %v4816, 4294901760
    %5282 = vmatpush1.xpose.msra.mxu0 %v5281
    %5283 = vmatprep.subr.mxu0 0.0
    %v5284 = vand.u32 %v4818, 4294901760
    %5285 = vmatpush1.xpose.msra.mxu0 %v5284
    %5286 = vmatprep.subr.mxu0 0.0
    %v5287 = vand.u32 %v4820, 4294901760
    %5288 = vmatpush1.xpose.msra.mxu0 %v5287
    %5289 = vmatprep.subr.mxu0 0.0
    %5290 = vmatpush1.xpose.msra.mxu0 0.0
    %5291 = vmatprep.subr.mxu0 0.0
    %5292 = vmatpush1.xpose.msra.mxu0 0.0
    %5293 = vmatprep.subr.mxu0 0.0
    %5294 = vmatpush1.xpose.msra.mxu0 0.0
    %5295 = vmatprep.subr.mxu0 0.0
    %5296 = vmatpush1.xpose.msra.mxu0 0.0
    %5297 = vmatprep.subr.mxu0 0.0
    %5298 = vmatpush1.xpose.msra.mxu0 0.0
    %5299 = vmatprep.subr.mxu0 0.0
    %5300 = vmatpush1.xpose.msra.mxu0 0.0
    %5301 = vmatprep.subr.mxu0 0.0
    %5302 = vmatpush1.xpose.msra.mxu0 0.0
    %5303 = vmatprep.subr.mxu0 0.0
    %5304 = vmatpush1.xpose.msra.mxu0 0.0
    %5305 = vmatprep.subr.mxu0 0.0
    %5306 = vmatpush1.xpose.msra.mxu0 0.0
    %5307 = vmatprep.subr.mxu0 0.0
    %5308 = vmatpush1.xpose.msra.mxu0 0.0
    %5309 = vmatprep.subr.mxu0 0.0
    %5310 = vmatpush1.xpose.msra.mxu0 0.0
    %5311 = vmatprep.subr.mxu0 0.0
    %5312 = vmatpush1.xpose.msra.mxu0 0.0
    %5313 = vmatprep.subr.mxu0 0.0
    %5314 = vmatpush1.xpose.msra.mxu0 0.0
    %5315 = vmatprep.subr.mxu0 0.0
    %5316 = vmatpush1.xpose.msra.mxu0 0.0
    %5317 = vmatprep.subr.mxu0 0.0
    %5318 = vmatpush1.xpose.msra.mxu0 0.0
    %5319 = vmatprep.subr.mxu0 0.0
    %5320 = vmatpush1.xpose.msra.mxu0 0.0
    %5321 = vmatprep.subr.mxu0 0.0
    %5322 = vmatpush1.xpose.msra.mxu0 0.0
    %5323 = vmatprep.subr.mxu0 0.0
    %5324 = vmatpush1.xpose.msra.mxu0 0.0
    %5325 = vmatprep.subr.mxu0 0.0
    %5326 = vmatpush1.xpose.msra.mxu0 0.0
    %5327 = vmatprep.subr.mxu0 0.0
    %5328 = vmatpush1.xpose.msra.mxu0 0.0
    %5329 = vmatprep.subr.mxu0 0.0
    %5330 = vmatpush1.xpose.msra.mxu0 0.0
    %5331 = vmatprep.subr.mxu0 0.0
    %5332 = vmatpush1.xpose.msra.mxu0 0.0
    %5333 = vmatprep.subr.mxu0 0.0
    %5334 = vmatpush1.xpose.msra.mxu0 0.0
    %5335 = vmatprep.subr.mxu0 0.0
    %5336 = vmatpush1.xpose.msra.mxu0 0.0
    %5337 = vmatprep.mubr.f32.mxu0 0.0
    %v5338 = vand.u32 %v4790, 4294901760
    %v5339 = vsub.f32 %v4790, %v5338
    %v5340 = vand.u32 %v5339, 4294901760
    %5341 = vmatmul.mubr.f32.gmra.mrb[0].mxu0 %v5340
    %v5342 = vpop.f32.mrb[0].mxu0
    %v5343 = vadd.f32 %v5213, %v5342
    %v5344 = vpop.f32.mrb[0].mxu0
    %5345 = vmatprep.mubr.f32.mxu0 0.0
    %v5346 = vand.u32 %v4792, 4294901760
    %v5347 = vsub.f32 %v4792, %v5346
    %v5348 = vand.u32 %v5347, 4294901760
    %5349 = vmatmul.mubr.f32.gmra.mrb[0].mxu0 %v5348
    %v5350 = vpop.f32.mrb[0].mxu0
    %v5351 = vadd.f32 %v5220, %v5350
    %v5352 = vpop.f32.mrb[0].mxu0
    %5353 = vmatprep.mubr.f32.mxu0 0.0
    %v5354 = vand.u32 %v4794, 4294901760
    %v5355 = vsub.f32 %v4794, %v5354
    %v5356 = vand.u32 %v5355, 4294901760
    %5357 = vmatmul.mubr.f32.gmra.mrb[0].mxu0 %v5356
    %v5358 = vpop.f32.mrb[0].mxu0
    %v5359 = vadd.f32 %v5227, %v5358
    %v5360 = vpop.f32.mrb[0].mxu0
    %5361 = vmatprep.mubr.f32.mxu0 0.0
    %v5362 = vand.u32 %v4796, 4294901760
    %v5363 = vsub.f32 %v4796, %v5362
    %v5364 = vand.u32 %v5363, 4294901760
    %5365 = vmatmul.mubr.f32.gmra.mrb[0].mxu0 %v5364
    %v5366 = vpop.f32.mrb[0].mxu0
    %v5367 = vadd.f32 %v5234, %v5366
    %v5368 = vpop.f32.mrb[0].mxu0
    %5369 = vmatprep.mubr.f32.mxu0 0.0
    %v5370 = vand.u32 %v4798, 4294901760
    %v5371 = vsub.f32 %v4798, %v5370
    %v5372 = vand.u32 %v5371, 4294901760
    %5373 = vmatmul.mubr.f32.gmra.mrb[0].mxu0 %v5372
    %v5374 = vpop.f32.mrb[0].mxu0
    %v5375 = vadd.f32 %v5241, %v5374
    %v5376 = vpop.f32.mrb[0].mxu0
    %5377 = vmatprep.mubr.f32.mxu0 0.0
    %v5378 = vand.u32 %v4800, 4294901760
    %v5379 = vsub.f32 %v4800, %v5378
    %v5380 = vand.u32 %v5379, 4294901760
    %5381 = vmatmul.mubr.f32.gmra.mrb[0].mxu0 %v5380
    %v5382 = vpop.f32.mrb[0].mxu0
    %v5383 = vadd.f32 %v5248, %v5382
    %v5384 = vpop.f32.mrb[0].mxu0
    %5385 = vmatprep.mubr.f32.mxu0 0.0
    %v5386 = vand.u32 %v4802, 4294901760
    %v5387 = vsub.f32 %v4802, %v5386
    %v5388 = vand.u32 %v5387, 4294901760
    %5389 = vmatmul.mubr.f32.gmra.mrb[0].mxu0 %v5388
    %v5390 = vpop.f32.mrb[0].mxu0
    %v5391 = vadd.f32 %v5255, %v5390
    %v5392 = vpop.f32.mrb[0].mxu0
    %5393 = vmatprep.mubr.f32.mxu0 0.0
    %v5394 = vand.u32 %v4804, 4294901760
    %v5395 = vsub.f32 %v4804, %v5394
    %v5396 = vand.u32 %v5395, 4294901760
    %5397 = vmatmul.mubr.f32.gmra.mrb[0].mxu0 %v5396
    %v5398 = vpop.f32.mrb[0].mxu0
    %v5399 = vadd.f32 %v5262, %v5398
    %v5400 = vpop.f32.mrb[0].mxu0
    %5401 = vdwg.mxu0
    %5402 = vmatprep.subr.mxu0 0.0
    %v5403 = vand.u32 %v4806, 4294901760
    %v5404 = vsub.f32 %v4806, %v5403
    %v5405 = vand.u32 %v5404, 4294901760
    %5406 = vmatpush1.xpose.msra.mxu0 %v5405
    %5407 = vmatprep.subr.mxu0 0.0
    %v5408 = vand.u32 %v4808, 4294901760
    %v5409 = vsub.f32 %v4808, %v5408
    %v5410 = vand.u32 %v5409, 4294901760
    %5411 = vmatpush1.xpose.msra.mxu0 %v5410
    %5412 = vmatprep.subr.mxu0 0.0
    %v5413 = vand.u32 %v4810, 4294901760
    %v5414 = vsub.f32 %v4810, %v5413
    %v5415 = vand.u32 %v5414, 4294901760
    %5416 = vmatpush1.xpose.msra.mxu0 %v5415
    %5417 = vmatprep.subr.mxu0 0.0
    %v5418 = vand.u32 %v4812, 4294901760
    %v5419 = vsub.f32 %v4812, %v5418
    %v5420 = vand.u32 %v5419, 4294901760
    %5421 = vmatpush1.xpose.msra.mxu0 %v5420
    %5422 = vmatprep.subr.mxu0 0.0
    %v5423 = vand.u32 %v4814, 4294901760
    %v5424 = vsub.f32 %v4814, %v5423
    %v5425 = vand.u32 %v5424, 4294901760
    %5426 = vmatpush1.xpose.msra.mxu0 %v5425
    %5427 = vmatprep.subr.mxu0 0.0
    %v5428 = vand.u32 %v4816, 4294901760
    %v5429 = vsub.f32 %v4816, %v5428
    %v5430 = vand.u32 %v5429, 4294901760
    %5431 = vmatpush1.xpose.msra.mxu0 %v5430
    %5432 = vmatprep.subr.mxu0 0.0
    %v5433 = vand.u32 %v4818, 4294901760
    %v5434 = vsub.f32 %v4818, %v5433
    %v5435 = vand.u32 %v5434, 4294901760
    %5436 = vmatpush1.xpose.msra.mxu0 %v5435
    %5437 = vmatprep.subr.mxu0 0.0
    %v5438 = vand.u32 %v4820, 4294901760
    %v5439 = vsub.f32 %v4820, %v5438
    %v5440 = vand.u32 %v5439, 4294901760
    %5441 = vmatpush1.xpose.msra.mxu0 %v5440
    %5442 = vmatprep.subr.mxu0 0.0
    %5443 = vmatpush1.xpose.msra.mxu0 0.0
    %5444 = vmatprep.subr.mxu0 0.0
    %5445 = vmatpush1.xpose.msra.mxu0 0.0
    %5446 = vmatprep.subr.mxu0 0.0
    %5447 = vmatpush1.xpose.msra.mxu0 0.0
    %5448 = vmatprep.subr.mxu0 0.0
    %5449 = vmatpush1.xpose.msra.mxu0 0.0
    %5450 = vmatprep.subr.mxu0 0.0
    %5451 = vmatpush1.xpose.msra.mxu0 0.0
    %5452 = vmatprep.subr.mxu0 0.0
    %5453 = vmatpush1.xpose.msra.mxu0 0.0
    %5454 = vmatprep.subr.mxu0 0.0
    %5455 = vmatpush1.xpose.msra.mxu0 0.0
    %5456 = vmatprep.subr.mxu0 0.0
    %5457 = vmatpush1.xpose.msra.mxu0 0.0
    %5458 = vmatprep.subr.mxu0 0.0
    %5459 = vmatpush1.xpose.msra.mxu0 0.0
    %5460 = vmatprep.subr.mxu0 0.0
    %5461 = vmatpush1.xpose.msra.mxu0 0.0
    %5462 = vmatprep.subr.mxu0 0.0
    %5463 = vmatpush1.xpose.msra.mxu0 0.0
    %5464 = vmatprep.subr.mxu0 0.0
    %5465 = vmatpush1.xpose.msra.mxu0 0.0
    %5466 = vmatprep.subr.mxu0 0.0
    %5467 = vmatpush1.xpose.msra.mxu0 0.0
    %5468 = vmatprep.subr.mxu0 0.0
    %5469 = vmatpush1.xpose.msra.mxu0 0.0
    %5470 = vmatprep.subr.mxu0 0.0
    %5471 = vmatpush1.xpose.msra.mxu0 0.0
    %5472 = vmatprep.subr.mxu0 0.0
    %5473 = vmatpush1.xpose.msra.mxu0 0.0
    %5474 = vmatprep.subr.mxu0 0.0
    %5475 = vmatpush1.xpose.msra.mxu0 0.0
    %5476 = vmatprep.subr.mxu0 0.0
    %5477 = vmatpush1.xpose.msra.mxu0 0.0
    %5478 = vmatprep.subr.mxu0 0.0
    %5479 = vmatpush1.xpose.msra.mxu0 0.0
    %5480 = vmatprep.subr.mxu0 0.0
    %5481 = vmatpush1.xpose.msra.mxu0 0.0
    %5482 = vmatprep.subr.mxu0 0.0
    %5483 = vmatpush1.xpose.msra.mxu0 0.0
    %5484 = vmatprep.subr.mxu0 0.0
    %5485 = vmatpush1.xpose.msra.mxu0 0.0
    %5486 = vmatprep.subr.mxu0 0.0
    %5487 = vmatpush1.xpose.msra.mxu0 0.0
    %5488 = vmatprep.subr.mxu0 0.0
    %5489 = vmatpush1.xpose.msra.mxu0 0.0
    %5490 = vmatprep.mubr.f32.mxu0 0.0
    %v5491 = vand.u32 %v4790, 4294901760
    %5492 = vmatmul.mubr.f32.gmra.mrb[0].mxu0 %v5491
    %v5493 = vpop.f32.mrb[0].mxu0
    %v5494 = vadd.f32 %v5343, %v5493
    %v5495 = vpop.f32.mrb[0].mxu0
    %5496 = vmatprep.mubr.f32.mxu0 0.0
    %v5497 = vand.u32 %v4792, 4294901760
    %5498 = vmatmul.mubr.f32.gmra.mrb[0].mxu0 %v5497
    %v5499 = vpop.f32.mrb[0].mxu0
    %v5500 = vadd.f32 %v5351, %v5499
    %v5501 = vpop.f32.mrb[0].mxu0
    %5502 = vmatprep.mubr.f32.mxu0 0.0
    %v5503 = vand.u32 %v4794, 4294901760
    %5504 = vmatmul.mubr.f32.gmra.mrb[0].mxu0 %v5503
    %v5505 = vpop.f32.mrb[0].mxu0
    %v5506 = vadd.f32 %v5359, %v5505
    %v5507 = vpop.f32.mrb[0].mxu0
    %5508 = vmatprep.mubr.f32.mxu0 0.0
    %v5509 = vand.u32 %v4796, 4294901760
    %5510 = vmatmul.mubr.f32.gmra.mrb[0].mxu0 %v5509
    %v5511 = vpop.f32.mrb[0].mxu0
    %v5512 = vadd.f32 %v5367, %v5511
    %v5513 = vpop.f32.mrb[0].mxu0
    %5514 = vmatprep.mubr.f32.mxu0 0.0
    %v5515 = vand.u32 %v4798, 4294901760
    %5516 = vmatmul.mubr.f32.gmra.mrb[0].mxu0 %v5515
    %v5517 = vpop.f32.mrb[0].mxu0
    %v5518 = vadd.f32 %v5375, %v5517
    %v5519 = vpop.f32.mrb[0].mxu0
    %5520 = vmatprep.mubr.f32.mxu0 0.0
    %v5521 = vand.u32 %v4800, 4294901760
    %5522 = vmatmul.mubr.f32.gmra.mrb[0].mxu0 %v5521
    %v5523 = vpop.f32.mrb[0].mxu0
    %v5524 = vadd.f32 %v5383, %v5523
    %v5525 = vpop.f32.mrb[0].mxu0
    %5526 = vmatprep.mubr.f32.mxu0 0.0
    %v5527 = vand.u32 %v4802, 4294901760
    %5528 = vmatmul.mubr.f32.gmra.mrb[0].mxu0 %v5527
    %v5529 = vpop.f32.mrb[0].mxu0
    %v5530 = vadd.f32 %v5391, %v5529
    %v5531 = vpop.f32.mrb[0].mxu0
    %5532 = vmatprep.mubr.f32.mxu0 0.0
    %v5533 = vand.u32 %v4804, 4294901760
    %5534 = vmatmul.mubr.f32.gmra.mrb[0].mxu0 %v5533
    %v5535 = vpop.f32.mrb[0].mxu0
    %v5536 = vadd.f32 %v5399, %v5535
    %v5537 = vpop.f32.mrb[0].mxu0
    %5538 = vdwg.mxu0
    %5539 = vmatprep.subr.mxu0 0.0
    %v5540 = vand.u32 %v4806, 4294901760
    %5541 = vmatpush1.xpose.msra.mxu0 %v5540
    %5542 = vmatprep.subr.mxu0 0.0
    %v5543 = vand.u32 %v4808, 4294901760
    %5544 = vmatpush1.xpose.msra.mxu0 %v5543
    %5545 = vmatprep.subr.mxu0 0.0
    %v5546 = vand.u32 %v4810, 4294901760
    %5547 = vmatpush1.xpose.msra.mxu0 %v5546
    %5548 = vmatprep.subr.mxu0 0.0
    %v5549 = vand.u32 %v4812, 4294901760
    %5550 = vmatpush1.xpose.msra.mxu0 %v5549
    %5551 = vmatprep.subr.mxu0 0.0
    %v5552 = vand.u32 %v4814, 4294901760
    %5553 = vmatpush1.xpose.msra.mxu0 %v5552
    %5554 = vmatprep.subr.mxu0 0.0
    %v5555 = vand.u32 %v4816, 4294901760
    %5556 = vmatpush1.xpose.msra.mxu0 %v5555
    %5557 = vmatprep.subr.mxu0 0.0
    %v5558 = vand.u32 %v4818, 4294901760
    %5559 = vmatpush1.xpose.msra.mxu0 %v5558
    %5560 = vmatprep.subr.mxu0 0.0
    %v5561 = vand.u32 %v4820, 4294901760
    %5562 = vmatpush1.xpose.msra.mxu0 %v5561
    %5563 = vmatprep.subr.mxu0 0.0
    %5564 = vmatpush1.xpose.msra.mxu0 0.0
    %5565 = vmatprep.subr.mxu0 0.0
    %5566 = vmatpush1.xpose.msra.mxu0 0.0
    %5567 = vmatprep.subr.mxu0 0.0
    %5568 = vmatpush1.xpose.msra.mxu0 0.0
    %5569 = vmatprep.subr.mxu0 0.0
    %5570 = vmatpush1.xpose.msra.mxu0 0.0
    %5571 = vmatprep.subr.mxu0 0.0
    %5572 = vmatpush1.xpose.msra.mxu0 0.0
    %5573 = vmatprep.subr.mxu0 0.0
    %5574 = vmatpush1.xpose.msra.mxu0 0.0
    %5575 = vmatprep.subr.mxu0 0.0
    %5576 = vmatpush1.xpose.msra.mxu0 0.0
    %5577 = vmatprep.subr.mxu0 0.0
    %5578 = vmatpush1.xpose.msra.mxu0 0.0
    %5579 = vmatprep.subr.mxu0 0.0
    %5580 = vmatpush1.xpose.msra.mxu0 0.0
    %5581 = vmatprep.subr.mxu0 0.0
    %5582 = vmatpush1.xpose.msra.mxu0 0.0
    %5583 = vmatprep.subr.mxu0 0.0
    %5584 = vmatpush1.xpose.msra.mxu0 0.0
    %5585 = vmatprep.subr.mxu0 0.0
    %5586 = vmatpush1.xpose.msra.mxu0 0.0
    %5587 = vmatprep.subr.mxu0 0.0
    %5588 = vmatpush1.xpose.msra.mxu0 0.0
    %5589 = vmatprep.subr.mxu0 0.0
    %5590 = vmatpush1.xpose.msra.mxu0 0.0
    %5591 = vmatprep.subr.mxu0 0.0
    %5592 = vmatpush1.xpose.msra.mxu0 0.0
    %5593 = vmatprep.subr.mxu0 0.0
    %5594 = vmatpush1.xpose.msra.mxu0 0.0
    %5595 = vmatprep.subr.mxu0 0.0
    %5596 = vmatpush1.xpose.msra.mxu0 0.0
    %5597 = vmatprep.subr.mxu0 0.0
    %5598 = vmatpush1.xpose.msra.mxu0 0.0
    %5599 = vmatprep.subr.mxu0 0.0
    %5600 = vmatpush1.xpose.msra.mxu0 0.0
    %5601 = vmatprep.subr.mxu0 0.0
    %5602 = vmatpush1.xpose.msra.mxu0 0.0
    %5603 = vmatprep.subr.mxu0 0.0
    %5604 = vmatpush1.xpose.msra.mxu0 0.0
    %5605 = vmatprep.subr.mxu0 0.0
    %5606 = vmatpush1.xpose.msra.mxu0 0.0
    %5607 = vmatprep.subr.mxu0 0.0
    %5608 = vmatpush1.xpose.msra.mxu0 0.0
    %5609 = vmatprep.subr.mxu0 0.0
    %5610 = vmatpush1.xpose.msra.mxu0 0.0
    %5611 = vmatprep.mubr.f32.mxu0 0.0
    %v5612 = vand.u32 %v4790, 4294901760
    %5613 = vmatmul.mubr.f32.gmra.mrb[0].mxu0 %v5612
    %v5614 = vpop.f32.mrb[0].mxu0
    %v5615 = vadd.f32 %v5494, %v5614
    %v5616 = vpop.f32.mrb[0].mxu0
    %5617 = vmatprep.mubr.f32.mxu0 0.0
    %v5618 = vand.u32 %v4792, 4294901760
    %5619 = vmatmul.mubr.f32.gmra.mrb[0].mxu0 %v5618
    %v5620 = vpop.f32.mrb[0].mxu0
    %v5621 = vadd.f32 %v5500, %v5620
    %v5622 = vpop.f32.mrb[0].mxu0
    %5623 = vmatprep.mubr.f32.mxu0 0.0
    %v5624 = vand.u32 %v4794, 4294901760
    %5625 = vmatmul.mubr.f32.gmra.mrb[0].mxu0 %v5624
    %v5626 = vpop.f32.mrb[0].mxu0
    %v5627 = vadd.f32 %v5506, %v5626
    %v5628 = vpop.f32.mrb[0].mxu0
    %5629 = vmatprep.mubr.f32.mxu0 0.0
    %v5630 = vand.u32 %v4796, 4294901760
    %5631 = vmatmul.mubr.f32.gmra.mrb[0].mxu0 %v5630
    %v5632 = vpop.f32.mrb[0].mxu0
    %v5633 = vadd.f32 %v5512, %v5632
    %v5634 = vpop.f32.mrb[0].mxu0
    %5635 = vmatprep.mubr.f32.mxu0 0.0
    %v5636 = vand.u32 %v4798, 4294901760
    %5637 = vmatmul.mubr.f32.gmra.mrb[0].mxu0 %v5636
    %v5638 = vpop.f32.mrb[0].mxu0
    %v5639 = vadd.f32 %v5518, %v5638
    %v5640 = vpop.f32.mrb[0].mxu0
    %5641 = vmatprep.mubr.f32.mxu0 0.0
    %v5642 = vand.u32 %v4800, 4294901760
    %5643 = vmatmul.mubr.f32.gmra.mrb[0].mxu0 %v5642
    %v5644 = vpop.f32.mrb[0].mxu0
    %v5645 = vadd.f32 %v5524, %v5644
    %v5646 = vpop.f32.mrb[0].mxu0
    %5647 = vmatprep.mubr.f32.mxu0 0.0
    %v5648 = vand.u32 %v4802, 4294901760
    %5649 = vmatmul.mubr.f32.gmra.mrb[0].mxu0 %v5648
    %v5650 = vpop.f32.mrb[0].mxu0
    %v5651 = vadd.f32 %v5530, %v5650
    %v5652 = vpop.f32.mrb[0].mxu0
    %5653 = vmatprep.mubr.f32.mxu0 0.0
    %v5654 = vand.u32 %v4804, 4294901760
    %5655 = vmatmul.mubr.f32.gmra.mrb[0].mxu0 %v5654
    %v5656 = vpop.f32.mrb[0].mxu0
    %v5657 = vadd.f32 %v5536, %v5656
    %v5658 = vpop.f32.mrb[0].mxu0
    %5659 = vdwg.mxu0
    %v5660 = vmul.f32 %v5615, 0.35355338
    %v5661 = vmul.f32 %v5621, 0.35355338
    %v5662 = vmul.f32 %v5627, 0.35355338
    %v5663 = vmul.f32 %v5633, 0.35355338
    %v5664 = vmul.f32 %v5639, 0.35355338
    %v5665 = vmul.f32 %v5645, 0.35355338
    %v5666 = vmul.f32 %v5651, 0.35355338
    %v5667 = vmul.f32 %v5657, 0.35355338
    %v5668 = vadd.f32 %v5660, %v988
    %v5669 = vadd.f32 %v5661, %v989
    %v5670 = vadd.f32 %v5662, %v990
    %v5671 = vadd.f32 %v5663, %v991
    %v5672 = vadd.f32 %v5664, %v992
    %v5673 = vadd.f32 %v5665, %v993
    %v5674 = vadd.f32 %v5666, %v994
    %v5675 = vadd.f32 %v5667, %v995
    %v5676 = vsel %vm1907, %v5668, -inf
    %5677 = vmax.xlane.f32.xlu0 %v5676
    %v5678 = vpop.xlane.xlu0 %5677
    %v5679 = vsel %vm1907, %v5669, -inf
    %5680 = vmax.xlane.f32.xlu0 %v5679
    %v5681 = vpop.xlane.xlu0 %5680
    %v5682 = vsel %vm1907, %v5670, -inf
    %5683 = vmax.xlane.f32.xlu0 %v5682
    %v5684 = vpop.xlane.xlu0 %5683
    %v5685 = vsel %vm1907, %v5671, -inf
    %5686 = vmax.xlane.f32.xlu0 %v5685
    %v5687 = vpop.xlane.xlu0 %5686
    %v5688 = vsel %vm1907, %v5672, -inf
    %5689 = vmax.xlane.f32.xlu0 %v5688
    %v5690 = vpop.xlane.xlu0 %5689
    %v5691 = vsel %vm1907, %v5673, -inf
    %5692 = vmax.xlane.f32.xlu0 %v5691
    %v5693 = vpop.xlane.xlu0 %5692
    %v5694 = vsel %vm1907, %v5674, -inf
    %5695 = vmax.xlane.f32.xlu0 %v5694
    %v5696 = vpop.xlane.xlu0 %5695
    %v5697 = vsel %vm1907, %v5675, -inf
    %5698 = vmax.xlane.f32.xlu0 %v5697
    %v5699 = vpop.xlane.xlu0 %5698
    %v5700 = vsub.f32 %v5668, %v5678
    %v5701 = vsub.f32 %v5669, %v5681
    %v5702 = vsub.f32 %v5670, %v5684
    %v5703 = vsub.f32 %v5671, %v5687
    %v5704 = vsub.f32 %v5672, %v5690
    %v5705 = vsub.f32 %v5673, %v5693
    %v5706 = vsub.f32 %v5674, %v5696
    %v5707 = vsub.f32 %v5675, %v5699
    %v5708 = vmul.f32 %v5700, 1.442695
    %v5709 = vpow.pop %v5708
    %v5710 = vmul.f32 %v5701, 1.442695
    %v5711 = vpow.pop %v5710
    %v5712 = vmul.f32 %v5702, 1.442695
    %v5713 = vpow.pop %v5712
    %v5714 = vmul.f32 %v5703, 1.442695
    %v5715 = vpow.pop %v5714
    %v5716 = vmul.f32 %v5704, 1.442695
    %v5717 = vpow.pop %v5716
    %v5718 = vmul.f32 %v5705, 1.442695
    %v5719 = vpow.pop %v5718
    %v5720 = vmul.f32 %v5706, 1.442695
    %v5721 = vpow.pop %v5720
    %v5722 = vmul.f32 %v5707, 1.442695
    %v5723 = vpow.pop %v5722
    %v5724 = vsel %vm1907, %v5709, 0.0
    %5725 = vadd.xlane.f32.xlu0 %v5724
    %v5726 = vpop.xlane.xlu0 %5725
    %v5727 = vsel %vm1907, %v5711, 0.0
    %5728 = vadd.xlane.f32.xlu0 %v5727
    %v5729 = vpop.xlane.xlu0 %5728
    %v5730 = vsel %vm1907, %v5713, 0.0
    %5731 = vadd.xlane.f32.xlu0 %v5730
    %v5732 = vpop.xlane.xlu0 %5731
    %v5733 = vsel %vm1907, %v5715, 0.0
    %5734 = vadd.xlane.f32.xlu0 %v5733
    %v5735 = vpop.xlane.xlu0 %5734
    %v5736 = vsel %vm1907, %v5717, 0.0
    %5737 = vadd.xlane.f32.xlu0 %v5736
    %v5738 = vpop.xlane.xlu0 %5737
    %v5739 = vsel %vm1907, %v5719, 0.0
    %5740 = vadd.xlane.f32.xlu0 %v5739
    %v5741 = vpop.xlane.xlu0 %5740
    %v5742 = vsel %vm1907, %v5721, 0.0
    %5743 = vadd.xlane.f32.xlu0 %v5742
    %v5744 = vpop.xlane.xlu0 %5743
    %v5745 = vsel %vm1907, %v5723, 0.0
    %5746 = vadd.xlane.f32.xlu0 %v5745
    %v5747 = vpop.xlane.xlu0 %5746
    %v5748 = vrcp.pop %v5726
    %v5749 = vrcp.pop %v5729
    %v5750 = vrcp.pop %v5732
    %v5751 = vrcp.pop %v5735
    %v5752 = vrcp.pop %v5738
    %v5753 = vrcp.pop %v5741
    %v5754 = vrcp.pop %v5744
    %v5755 = vrcp.pop %v5747
    %v5756 = vmul.f32 %v5709, %v5748
    %v5757 = vmul.f32 %v5711, %v5749
    %v5758 = vmul.f32 %v5713, %v5750
    %v5759 = vmul.f32 %v5715, %v5751
    %v5760 = vmul.f32 %v5717, %v5752
    %v5761 = vmul.f32 %v5719, %v5753
    %v5762 = vmul.f32 %v5721, %v5754
    %v5763 = vmul.f32 %v5723, %v5755
    %5764 = vrot.lane.b32.xlu0 %v937, 96
    %v5765 = vpop.permute.xlu0 %5764
    %5766 = vrot.lane.b32.xlu0 %v944, 96
    %v5767 = vpop.permute.xlu0 %5766
    %5768 = vrot.lane.b32.xlu0 %v951, 96
    %v5769 = vpop.permute.xlu0 %5768
    %5770 = vrot.lane.b32.xlu0 %v958, 96
    %v5771 = vpop.permute.xlu0 %5770
    %5772 = vrot.lane.b32.xlu0 %v965, 96
    %v5773 = vpop.permute.xlu0 %5772
    %5774 = vrot.lane.b32.xlu0 %v972, 96
    %v5775 = vpop.permute.xlu0 %5774
    %5776 = vrot.lane.b32.xlu0 %v979, 96
    %v5777 = vpop.permute.xlu0 %5776
    %5778 = vrot.lane.b32.xlu0 %v986, 96
    %v5779 = vpop.permute.xlu0 %5778
    %v5789 = vsel %vm1907, %v5756, 0
    %v5792 = vsel %vm1907, %v5757, 0
    %v5795 = vsel %vm1907, %v5758, 0
    %v5798 = vsel %vm1907, %v5759, 0
    %v5801 = vsel %vm1907, %v5760, 0
    %v5804 = vsel %vm1907, %v5761, 0
    %v5807 = vsel %vm1907, %v5762, 0
    %v5810 = vsel %vm1907, %v5763, 0
    %5812 = vmatprep.subr.mxu0 0.0
    %v5813 = vand.u32 %v5765, 4294901760
    %5814 = vmatpush1.msra.mxu0 %v5813
    %5815 = vmatprep.subr.mxu0 0.0
    %v5816 = vand.u32 %v5767, 4294901760
    %5817 = vmatpush1.msra.mxu0 %v5816
    %5818 = vmatprep.subr.mxu0 0.0
    %v5819 = vand.u32 %v5769, 4294901760
    %5820 = vmatpush1.msra.mxu0 %v5819
    %5821 = vmatprep.subr.mxu0 0.0
    %v5822 = vand.u32 %v5771, 4294901760
    %5823 = vmatpush1.msra.mxu0 %v5822
    %5824 = vmatprep.subr.mxu0 0.0
    %v5825 = vand.u32 %v5773, 4294901760
    %5826 = vmatpush1.msra.mxu0 %v5825
    %5827 = vmatprep.subr.mxu0 0.0
    %v5828 = vand.u32 %v5775, 4294901760
    %5829 = vmatpush1.msra.mxu0 %v5828
    %5830 = vmatprep.subr.mxu0 0.0
    %v5831 = vand.u32 %v5777, 4294901760
    %5832 = vmatpush1.msra.mxu0 %v5831
    %5833 = vmatprep.subr.mxu0 0.0
    %v5834 = vand.u32 %v5779, 4294901760
    %5835 = vmatpush1.msra.mxu0 %v5834
    %5836 = vmatprep.subr.mxu0 0.0
    %5837 = vmatpush1.msra.mxu0 0.0
    %5838 = vmatprep.subr.mxu0 0.0
    %5839 = vmatpush1.msra.mxu0 0.0
    %5840 = vmatprep.subr.mxu0 0.0
    %5841 = vmatpush1.msra.mxu0 0.0
    %5842 = vmatprep.subr.mxu0 0.0
    %5843 = vmatpush1.msra.mxu0 0.0
    %5844 = vmatprep.subr.mxu0 0.0
    %5845 = vmatpush1.msra.mxu0 0.0
    %5846 = vmatprep.subr.mxu0 0.0
    %5847 = vmatpush1.msra.mxu0 0.0
    %5848 = vmatprep.subr.mxu0 0.0
    %5849 = vmatpush1.msra.mxu0 0.0
    %5850 = vmatprep.subr.mxu0 0.0
    %5851 = vmatpush1.msra.mxu0 0.0
    %5852 = vmatprep.subr.mxu0 0.0
    %5853 = vmatpush1.msra.mxu0 0.0
    %5854 = vmatprep.subr.mxu0 0.0
    %5855 = vmatpush1.msra.mxu0 0.0
    %5856 = vmatprep.subr.mxu0 0.0
    %5857 = vmatpush1.msra.mxu0 0.0
    %5858 = vmatprep.subr.mxu0 0.0
    %5859 = vmatpush1.msra.mxu0 0.0
    %5860 = vmatprep.subr.mxu0 0.0
    %5861 = vmatpush1.msra.mxu0 0.0
    %5862 = vmatprep.subr.mxu0 0.0
    %5863 = vmatpush1.msra.mxu0 0.0
    %5864 = vmatprep.subr.mxu0 0.0
    %5865 = vmatpush1.msra.mxu0 0.0
    %5866 = vmatprep.subr.mxu0 0.0
    %5867 = vmatpush1.msra.mxu0 0.0
    %5868 = vmatprep.subr.mxu0 0.0
    %5869 = vmatpush1.msra.mxu0 0.0
    %5870 = vmatprep.subr.mxu0 0.0
    %5871 = vmatpush1.msra.mxu0 0.0
    %5872 = vmatprep.subr.mxu0 0.0
    %5873 = vmatpush1.msra.mxu0 0.0
    %5874 = vmatprep.subr.mxu0 0.0
    %5875 = vmatpush1.msra.mxu0 0.0
    %5876 = vmatprep.subr.mxu0 0.0
    %5877 = vmatpush1.msra.mxu0 0.0
    %5878 = vmatprep.subr.mxu0 0.0
    %5879 = vmatpush1.msra.mxu0 0.0
    %5880 = vmatprep.subr.mxu0 0.0
    %5881 = vmatpush1.msra.mxu0 0.0
    %5882 = vmatprep.subr.mxu0 0.0
    %5883 = vmatpush1.msra.mxu0 0.0
    %5884 = vmatprep.mubr.f32.mxu0 0.0
    %v5885 = vand.u32 %v5789, 4294901760
    %v5886 = vsub.f32 %v5789, %v5885
    %v5887 = vand.u32 %v5886, 4294901760
    %v5888 = vsub.f32 %v5886, %v5887
    %v5889 = vand.u32 %v5888, 4294901760
    %5890 = vmatmul.mubr.f32.gmra.mrb[0].mxu0 %v5889
    %v5891 = vpop.f32.mrb[0].mxu0
    %v5892 = vadd.f32 0.0, %v5891
    %v5893 = vpop.f32.mrb[0].mxu0
    %5894 = vmatprep.mubr.f32.mxu0 0.0
    %v5895 = vand.u32 %v5792, 4294901760
    %v5896 = vsub.f32 %v5792, %v5895
    %v5897 = vand.u32 %v5896, 4294901760
    %v5898 = vsub.f32 %v5896, %v5897
    %v5899 = vand.u32 %v5898, 4294901760
    %5900 = vmatmul.mubr.f32.gmra.mrb[0].mxu0 %v5899
    %v5901 = vpop.f32.mrb[0].mxu0
    %v5902 = vadd.f32 0.0, %v5901
    %v5903 = vpop.f32.mrb[0].mxu0
    %5904 = vmatprep.mubr.f32.mxu0 0.0
    %v5905 = vand.u32 %v5795, 4294901760
    %v5906 = vsub.f32 %v5795, %v5905
    %v5907 = vand.u32 %v5906, 4294901760
    %v5908 = vsub.f32 %v5906, %v5907
    %v5909 = vand.u32 %v5908, 4294901760
    %5910 = vmatmul.mubr.f32.gmra.mrb[0].mxu0 %v5909
    %v5911 = vpop.f32.mrb[0].mxu0
    %v5912 = vadd.f32 0.0, %v5911
    %v5913 = vpop.f32.mrb[0].mxu0
    %5914 = vmatprep.mubr.f32.mxu0 0.0
    %v5915 = vand.u32 %v5798, 4294901760
    %v5916 = vsub.f32 %v5798, %v5915
    %v5917 = vand.u32 %v5916, 4294901760
    %v5918 = vsub.f32 %v5916, %v5917
    %v5919 = vand.u32 %v5918, 4294901760
    %5920 = vmatmul.mubr.f32.gmra.mrb[0].mxu0 %v5919
    %v5921 = vpop.f32.mrb[0].mxu0
    %v5922 = vadd.f32 0.0, %v5921
    %v5923 = vpop.f32.mrb[0].mxu0
    %5924 = vmatprep.mubr.f32.mxu0 0.0
    %v5925 = vand.u32 %v5801, 4294901760
    %v5926 = vsub.f32 %v5801, %v5925
    %v5927 = vand.u32 %v5926, 4294901760
    %v5928 = vsub.f32 %v5926, %v5927
    %v5929 = vand.u32 %v5928, 4294901760
    %5930 = vmatmul.mubr.f32.gmra.mrb[0].mxu0 %v5929
    %v5931 = vpop.f32.mrb[0].mxu0
    %v5932 = vadd.f32 0.0, %v5931
    %v5933 = vpop.f32.mrb[0].mxu0
    %5934 = vmatprep.mubr.f32.mxu0 0.0
    %v5935 = vand.u32 %v5804, 4294901760
    %v5936 = vsub.f32 %v5804, %v5935
    %v5937 = vand.u32 %v5936, 4294901760
    %v5938 = vsub.f32 %v5936, %v5937
    %v5939 = vand.u32 %v5938, 4294901760
    %5940 = vmatmul.mubr.f32.gmra.mrb[0].mxu0 %v5939
    %v5941 = vpop.f32.mrb[0].mxu0
    %v5942 = vadd.f32 0.0, %v5941
    %v5943 = vpop.f32.mrb[0].mxu0
    %5944 = vmatprep.mubr.f32.mxu0 0.0
    %v5945 = vand.u32 %v5807, 4294901760
    %v5946 = vsub.f32 %v5807, %v5945
    %v5947 = vand.u32 %v5946, 4294901760
    %v5948 = vsub.f32 %v5946, %v5947
    %v5949 = vand.u32 %v5948, 4294901760
    %5950 = vmatmul.mubr.f32.gmra.mrb[0].mxu0 %v5949
    %v5951 = vpop.f32.mrb[0].mxu0
    %v5952 = vadd.f32 0.0, %v5951
    %v5953 = vpop.f32.mrb[0].mxu0
    %5954 = vmatprep.mubr.f32.mxu0 0.0
    %v5955 = vand.u32 %v5810, 4294901760
    %v5956 = vsub.f32 %v5810, %v5955
    %v5957 = vand.u32 %v5956, 4294901760
    %v5958 = vsub.f32 %v5956, %v5957
    %v5959 = vand.u32 %v5958, 4294901760
    %5960 = vmatmul.mubr.f32.gmra.mrb[0].mxu0 %v5959
    %v5961 = vpop.f32.mrb[0].mxu0
    %v5962 = vadd.f32 0.0, %v5961
    %v5963 = vpop.f32.mrb[0].mxu0
    %5964 = vdwg.mxu0
    %5965 = vmatprep.subr.mxu0 0.0
    %v5966 = vand.u32 %v5765, 4294901760
    %v5967 = vsub.f32 %v5765, %v5966
    %v5968 = vand.u32 %v5967, 4294901760
    %v5969 = vsub.f32 %v5967, %v5968
    %v5970 = vand.u32 %v5969, 4294901760
    %5971 = vmatpush1.msra.mxu0 %v5970
    %5972 = vmatprep.subr.mxu0 0.0
    %v5973 = vand.u32 %v5767, 4294901760
    %v5974 = vsub.f32 %v5767, %v5973
    %v5975 = vand.u32 %v5974, 4294901760
    %v5976 = vsub.f32 %v5974, %v5975
    %v5977 = vand.u32 %v5976, 4294901760
    %5978 = vmatpush1.msra.mxu0 %v5977
    %5979 = vmatprep.subr.mxu0 0.0
    %v5980 = vand.u32 %v5769, 4294901760
    %v5981 = vsub.f32 %v5769, %v5980
    %v5982 = vand.u32 %v5981, 4294901760
    %v5983 = vsub.f32 %v5981, %v5982
    %v5984 = vand.u32 %v5983, 4294901760
    %5985 = vmatpush1.msra.mxu0 %v5984
    %5986 = vmatprep.subr.mxu0 0.0
    %v5987 = vand.u32 %v5771, 4294901760
    %v5988 = vsub.f32 %v5771, %v5987
    %v5989 = vand.u32 %v5988, 4294901760
    %v5990 = vsub.f32 %v5988, %v5989
    %v5991 = vand.u32 %v5990, 4294901760
    %5992 = vmatpush1.msra.mxu0 %v5991
    %5993 = vmatprep.subr.mxu0 0.0
    %v5994 = vand.u32 %v5773, 4294901760
    %v5995 = vsub.f32 %v5773, %v5994
    %v5996 = vand.u32 %v5995, 4294901760
    %v5997 = vsub.f32 %v5995, %v5996
    %v5998 = vand.u32 %v5997, 4294901760
    %5999 = vmatpush1.msra.mxu0 %v5998
    %6000 = vmatprep.subr.mxu0 0.0
    %v6001 = vand.u32 %v5775, 4294901760
    %v6002 = vsub.f32 %v5775, %v6001
    %v6003 = vand.u32 %v6002, 4294901760
    %v6004 = vsub.f32 %v6002, %v6003
    %v6005 = vand.u32 %v6004, 4294901760
    %6006 = vmatpush1.msra.mxu0 %v6005
    %6007 = vmatprep.subr.mxu0 0.0
    %v6008 = vand.u32 %v5777, 4294901760
    %v6009 = vsub.f32 %v5777, %v6008
    %v6010 = vand.u32 %v6009, 4294901760
    %v6011 = vsub.f32 %v6009, %v6010
    %v6012 = vand.u32 %v6011, 4294901760
    %6013 = vmatpush1.msra.mxu0 %v6012
    %6014 = vmatprep.subr.mxu0 0.0
    %v6015 = vand.u32 %v5779, 4294901760
    %v6016 = vsub.f32 %v5779, %v6015
    %v6017 = vand.u32 %v6016, 4294901760
    %v6018 = vsub.f32 %v6016, %v6017
    %v6019 = vand.u32 %v6018, 4294901760
    %6020 = vmatpush1.msra.mxu0 %v6019
    %6021 = vmatprep.subr.mxu0 0.0
    %6022 = vmatpush1.msra.mxu0 0.0
    %6023 = vmatprep.subr.mxu0 0.0
    %6024 = vmatpush1.msra.mxu0 0.0
    %6025 = vmatprep.subr.mxu0 0.0
    %6026 = vmatpush1.msra.mxu0 0.0
    %6027 = vmatprep.subr.mxu0 0.0
    %6028 = vmatpush1.msra.mxu0 0.0
    %6029 = vmatprep.subr.mxu0 0.0
    %6030 = vmatpush1.msra.mxu0 0.0
    %6031 = vmatprep.subr.mxu0 0.0
    %6032 = vmatpush1.msra.mxu0 0.0
    %6033 = vmatprep.subr.mxu0 0.0
    %6034 = vmatpush1.msra.mxu0 0.0
    %6035 = vmatprep.subr.mxu0 0.0
    %6036 = vmatpush1.msra.mxu0 0.0
    %6037 = vmatprep.subr.mxu0 0.0
    %6038 = vmatpush1.msra.mxu0 0.0
    %6039 = vmatprep.subr.mxu0 0.0
    %6040 = vmatpush1.msra.mxu0 0.0
    %6041 = vmatprep.subr.mxu0 0.0
    %6042 = vmatpush1.msra.mxu0 0.0
    %6043 = vmatprep.subr.mxu0 0.0
    %6044 = vmatpush1.msra.mxu0 0.0
    %6045 = vmatprep.subr.mxu0 0.0
    %6046 = vmatpush1.msra.mxu0 0.0
    %6047 = vmatprep.subr.mxu0 0.0
    %6048 = vmatpush1.msra.mxu0 0.0
    %6049 = vmatprep.subr.mxu0 0.0
    %6050 = vmatpush1.msra.mxu0 0.0
    %6051 = vmatprep.subr.mxu0 0.0
    %6052 = vmatpush1.msra.mxu0 0.0
    %6053 = vmatprep.subr.mxu0 0.0
    %6054 = vmatpush1.msra.mxu0 0.0
    %6055 = vmatprep.subr.mxu0 0.0
    %6056 = vmatpush1.msra.mxu0 0.0
    %6057 = vmatprep.subr.mxu0 0.0
    %6058 = vmatpush1.msra.mxu0 0.0
    %6059 = vmatprep.subr.mxu0 0.0
    %6060 = vmatpush1.msra.mxu0 0.0
    %6061 = vmatprep.subr.mxu0 0.0
    %6062 = vmatpush1.msra.mxu0 0.0
    %6063 = vmatprep.subr.mxu0 0.0
    %6064 = vmatpush1.msra.mxu0 0.0
    %6065 = vmatprep.subr.mxu0 0.0
    %6066 = vmatpush1.msra.mxu0 0.0
    %6067 = vmatprep.subr.mxu0 0.0
    %6068 = vmatpush1.msra.mxu0 0.0
    %6069 = vmatprep.mubr.f32.mxu0 0.0
    %v6070 = vand.u32 %v5789, 4294901760
    %6071 = vmatmul.mubr.f32.gmra.mrb[0].mxu0 %v6070
    %v6072 = vpop.f32.mrb[0].mxu0
    %v6073 = vadd.f32 %v5892, %v6072
    %v6074 = vpop.f32.mrb[0].mxu0
    %6075 = vmatprep.mubr.f32.mxu0 0.0
    %v6076 = vand.u32 %v5792, 4294901760
    %6077 = vmatmul.mubr.f32.gmra.mrb[0].mxu0 %v6076
    %v6078 = vpop.f32.mrb[0].mxu0
    %v6079 = vadd.f32 %v5902, %v6078
    %v6080 = vpop.f32.mrb[0].mxu0
    %6081 = vmatprep.mubr.f32.mxu0 0.0
    %v6082 = vand.u32 %v5795, 4294901760
    %6083 = vmatmul.mubr.f32.gmra.mrb[0].mxu0 %v6082
    %v6084 = vpop.f32.mrb[0].mxu0
    %v6085 = vadd.f32 %v5912, %v6084
    %v6086 = vpop.f32.mrb[0].mxu0
    %6087 = vmatprep.mubr.f32.mxu0 0.0
    %v6088 = vand.u32 %v5798, 4294901760
    %6089 = vmatmul.mubr.f32.gmra.mrb[0].mxu0 %v6088
    %v6090 = vpop.f32.mrb[0].mxu0
    %v6091 = vadd.f32 %v5922, %v6090
    %v6092 = vpop.f32.mrb[0].mxu0
    %6093 = vmatprep.mubr.f32.mxu0 0.0
    %v6094 = vand.u32 %v5801, 4294901760
    %6095 = vmatmul.mubr.f32.gmra.mrb[0].mxu0 %v6094
    %v6096 = vpop.f32.mrb[0].mxu0
    %v6097 = vadd.f32 %v5932, %v6096
    %v6098 = vpop.f32.mrb[0].mxu0
    %6099 = vmatprep.mubr.f32.mxu0 0.0
    %v6100 = vand.u32 %v5804, 4294901760
    %6101 = vmatmul.mubr.f32.gmra.mrb[0].mxu0 %v6100
    %v6102 = vpop.f32.mrb[0].mxu0
    %v6103 = vadd.f32 %v5942, %v6102
    %v6104 = vpop.f32.mrb[0].mxu0
    %6105 = vmatprep.mubr.f32.mxu0 0.0
    %v6106 = vand.u32 %v5807, 4294901760
    %6107 = vmatmul.mubr.f32.gmra.mrb[0].mxu0 %v6106
    %v6108 = vpop.f32.mrb[0].mxu0
    %v6109 = vadd.f32 %v5952, %v6108
    %v6110 = vpop.f32.mrb[0].mxu0
    %6111 = vmatprep.mubr.f32.mxu0 0.0
    %v6112 = vand.u32 %v5810, 4294901760
    %6113 = vmatmul.mubr.f32.gmra.mrb[0].mxu0 %v6112
    %v6114 = vpop.f32.mrb[0].mxu0
    %v6115 = vadd.f32 %v5962, %v6114
    %v6116 = vpop.f32.mrb[0].mxu0
    %6117 = vdwg.mxu0
    %6118 = vmatprep.subr.mxu0 0.0
    %v6119 = vand.u32 %v5765, 4294901760
    %v6120 = vsub.f32 %v5765, %v6119
    %6121 = vmatpush1.msra.mxu0 %v6120
    %6122 = vmatprep.subr.mxu0 0.0
    %v6123 = vand.u32 %v5767, 4294901760
    %v6124 = vsub.f32 %v5767, %v6123
    %6125 = vmatpush1.msra.mxu0 %v6124
    %6126 = vmatprep.subr.mxu0 0.0
    %v6127 = vand.u32 %v5769, 4294901760
    %v6128 = vsub.f32 %v5769, %v6127
    %6129 = vmatpush1.msra.mxu0 %v6128
    %6130 = vmatprep.subr.mxu0 0.0
    %v6131 = vand.u32 %v5771, 4294901760
    %v6132 = vsub.f32 %v5771, %v6131
    %6133 = vmatpush1.msra.mxu0 %v6132
    %6134 = vmatprep.subr.mxu0 0.0
    %v6135 = vand.u32 %v5773, 4294901760
    %v6136 = vsub.f32 %v5773, %v6135
    %6137 = vmatpush1.msra.mxu0 %v6136
    %6138 = vmatprep.subr.mxu0 0.0
    %v6139 = vand.u32 %v5775, 4294901760
    %v6140 = vsub.f32 %v5775, %v6139
    %6141 = vmatpush1.msra.mxu0 %v6140
    %6142 = vmatprep.subr.mxu0 0.0
    %v6143 = vand.u32 %v5777, 4294901760
    %v6144 = vsub.f32 %v5777, %v6143
    %6145 = vmatpush1.msra.mxu0 %v6144
    %6146 = vmatprep.subr.mxu0 0.0
    %v6147 = vand.u32 %v5779, 4294901760
    %v6148 = vsub.f32 %v5779, %v6147
    %6149 = vmatpush1.msra.mxu0 %v6148
    %6150 = vmatprep.subr.mxu0 0.0
    %6151 = vmatpush1.msra.mxu0 0.0
    %6152 = vmatprep.subr.mxu0 0.0
    %6153 = vmatpush1.msra.mxu0 0.0
    %6154 = vmatprep.subr.mxu0 0.0
    %6155 = vmatpush1.msra.mxu0 0.0
    %6156 = vmatprep.subr.mxu0 0.0
    %6157 = vmatpush1.msra.mxu0 0.0
    %6158 = vmatprep.subr.mxu0 0.0
    %6159 = vmatpush1.msra.mxu0 0.0
    %6160 = vmatprep.subr.mxu0 0.0
    %6161 = vmatpush1.msra.mxu0 0.0
    %6162 = vmatprep.subr.mxu0 0.0
    %6163 = vmatpush1.msra.mxu0 0.0
    %6164 = vmatprep.subr.mxu0 0.0
    %6165 = vmatpush1.msra.mxu0 0.0
    %6166 = vmatprep.subr.mxu0 0.0
    %6167 = vmatpush1.msra.mxu0 0.0
    %6168 = vmatprep.subr.mxu0 0.0
    %6169 = vmatpush1.msra.mxu0 0.0
    %6170 = vmatprep.subr.mxu0 0.0
    %6171 = vmatpush1.msra.mxu0 0.0
    %6172 = vmatprep.subr.mxu0 0.0
    %6173 = vmatpush1.msra.mxu0 0.0
    %6174 = vmatprep.subr.mxu0 0.0
    %6175 = vmatpush1.msra.mxu0 0.0
    %6176 = vmatprep.subr.mxu0 0.0
    %6177 = vmatpush1.msra.mxu0 0.0
    %6178 = vmatprep.subr.mxu0 0.0
    %6179 = vmatpush1.msra.mxu0 0.0
    %6180 = vmatprep.subr.mxu0 0.0
    %6181 = vmatpush1.msra.mxu0 0.0
    %6182 = vmatprep.subr.mxu0 0.0
    %6183 = vmatpush1.msra.mxu0 0.0
    %6184 = vmatprep.subr.mxu0 0.0
    %6185 = vmatpush1.msra.mxu0 0.0
    %6186 = vmatprep.subr.mxu0 0.0
    %6187 = vmatpush1.msra.mxu0 0.0
    %6188 = vmatprep.subr.mxu0 0.0
    %6189 = vmatpush1.msra.mxu0 0.0
    %6190 = vmatprep.subr.mxu0 0.0
    %6191 = vmatpush1.msra.mxu0 0.0
    %6192 = vmatprep.subr.mxu0 0.0
    %6193 = vmatpush1.msra.mxu0 0.0
    %6194 = vmatprep.subr.mxu0 0.0
    %6195 = vmatpush1.msra.mxu0 0.0
    %6196 = vmatprep.subr.mxu0 0.0
    %6197 = vmatpush1.msra.mxu0 0.0
    %6198 = vmatprep.mubr.f32.mxu0 0.0
    %v6199 = vand.u32 %v5789, 4294901760
    %v6200 = vsub.f32 %v5789, %v6199
    %6201 = vmatmul.mubr.f32.gmra.mrb[0].mxu0 %v6200
    %v6202 = vpop.f32.mrb[0].mxu0
    %v6203 = vadd.f32 %v6073, %v6202
    %v6204 = vpop.f32.mrb[0].mxu0
    %6205 = vmatprep.mubr.f32.mxu0 0.0
    %v6206 = vand.u32 %v5792, 4294901760
    %v6207 = vsub.f32 %v5792, %v6206
    %6208 = vmatmul.mubr.f32.gmra.mrb[0].mxu0 %v6207
    %v6209 = vpop.f32.mrb[0].mxu0
    %v6210 = vadd.f32 %v6079, %v6209
    %v6211 = vpop.f32.mrb[0].mxu0
    %6212 = vmatprep.mubr.f32.mxu0 0.0
    %v6213 = vand.u32 %v5795, 4294901760
    %v6214 = vsub.f32 %v5795, %v6213
    %6215 = vmatmul.mubr.f32.gmra.mrb[0].mxu0 %v6214
    %v6216 = vpop.f32.mrb[0].mxu0
    %v6217 = vadd.f32 %v6085, %v6216
    %v6218 = vpop.f32.mrb[0].mxu0
    %6219 = vmatprep.mubr.f32.mxu0 0.0
    %v6220 = vand.u32 %v5798, 4294901760
    %v6221 = vsub.f32 %v5798, %v6220
    %6222 = vmatmul.mubr.f32.gmra.mrb[0].mxu0 %v6221
    %v6223 = vpop.f32.mrb[0].mxu0
    %v6224 = vadd.f32 %v6091, %v6223
    %v6225 = vpop.f32.mrb[0].mxu0
    %6226 = vmatprep.mubr.f32.mxu0 0.0
    %v6227 = vand.u32 %v5801, 4294901760
    %v6228 = vsub.f32 %v5801, %v6227
    %6229 = vmatmul.mubr.f32.gmra.mrb[0].mxu0 %v6228
    %v6230 = vpop.f32.mrb[0].mxu0
    %v6231 = vadd.f32 %v6097, %v6230
    %v6232 = vpop.f32.mrb[0].mxu0
    %6233 = vmatprep.mubr.f32.mxu0 0.0
    %v6234 = vand.u32 %v5804, 4294901760
    %v6235 = vsub.f32 %v5804, %v6234
    %6236 = vmatmul.mubr.f32.gmra.mrb[0].mxu0 %v6235
    %v6237 = vpop.f32.mrb[0].mxu0
    %v6238 = vadd.f32 %v6103, %v6237
    %v6239 = vpop.f32.mrb[0].mxu0
    %6240 = vmatprep.mubr.f32.mxu0 0.0
    %v6241 = vand.u32 %v5807, 4294901760
    %v6242 = vsub.f32 %v5807, %v6241
    %6243 = vmatmul.mubr.f32.gmra.mrb[0].mxu0 %v6242
    %v6244 = vpop.f32.mrb[0].mxu0
    %v6245 = vadd.f32 %v6109, %v6244
    %v6246 = vpop.f32.mrb[0].mxu0
    %6247 = vmatprep.mubr.f32.mxu0 0.0
    %v6248 = vand.u32 %v5810, 4294901760
    %v6249 = vsub.f32 %v5810, %v6248
    %6250 = vmatmul.mubr.f32.gmra.mrb[0].mxu0 %v6249
    %v6251 = vpop.f32.mrb[0].mxu0
    %v6252 = vadd.f32 %v6115, %v6251
    %v6253 = vpop.f32.mrb[0].mxu0
    %6254 = vdwg.mxu0
    %6255 = vmatprep.subr.mxu0 0.0
    %v6256 = vand.u32 %v5765, 4294901760
    %6257 = vmatpush1.msra.mxu0 %v6256
    %6258 = vmatprep.subr.mxu0 0.0
    %v6259 = vand.u32 %v5767, 4294901760
    %6260 = vmatpush1.msra.mxu0 %v6259
    %6261 = vmatprep.subr.mxu0 0.0
    %v6262 = vand.u32 %v5769, 4294901760
    %6263 = vmatpush1.msra.mxu0 %v6262
    %6264 = vmatprep.subr.mxu0 0.0
    %v6265 = vand.u32 %v5771, 4294901760
    %6266 = vmatpush1.msra.mxu0 %v6265
    %6267 = vmatprep.subr.mxu0 0.0
    %v6268 = vand.u32 %v5773, 4294901760
    %6269 = vmatpush1.msra.mxu0 %v6268
    %6270 = vmatprep.subr.mxu0 0.0
    %v6271 = vand.u32 %v5775, 4294901760
    %6272 = vmatpush1.msra.mxu0 %v6271
    %6273 = vmatprep.subr.mxu0 0.0
    %v6274 = vand.u32 %v5777, 4294901760
    %6275 = vmatpush1.msra.mxu0 %v6274
    %6276 = vmatprep.subr.mxu0 0.0
    %v6277 = vand.u32 %v5779, 4294901760
    %6278 = vmatpush1.msra.mxu0 %v6277
    %6279 = vmatprep.subr.mxu0 0.0
    %6280 = vmatpush1.msra.mxu0 0.0
    %6281 = vmatprep.subr.mxu0 0.0
    %6282 = vmatpush1.msra.mxu0 0.0
    %6283 = vmatprep.subr.mxu0 0.0
    %6284 = vmatpush1.msra.mxu0 0.0
    %6285 = vmatprep.subr.mxu0 0.0
    %6286 = vmatpush1.msra.mxu0 0.0
    %6287 = vmatprep.subr.mxu0 0.0
    %6288 = vmatpush1.msra.mxu0 0.0
    %6289 = vmatprep.subr.mxu0 0.0
    %6290 = vmatpush1.msra.mxu0 0.0
    %6291 = vmatprep.subr.mxu0 0.0
    %6292 = vmatpush1.msra.mxu0 0.0
    %6293 = vmatprep.subr.mxu0 0.0
    %6294 = vmatpush1.msra.mxu0 0.0
    %6295 = vmatprep.subr.mxu0 0.0
    %6296 = vmatpush1.msra.mxu0 0.0
    %6297 = vmatprep.subr.mxu0 0.0
    %6298 = vmatpush1.msra.mxu0 0.0
    %6299 = vmatprep.subr.mxu0 0.0
    %6300 = vmatpush1.msra.mxu0 0.0
    %6301 = vmatprep.subr.mxu0 0.0
    %6302 = vmatpush1.msra.mxu0 0.0
    %6303 = vmatprep.subr.mxu0 0.0
    %6304 = vmatpush1.msra.mxu0 0.0
    %6305 = vmatprep.subr.mxu0 0.0
    %6306 = vmatpush1.msra.mxu0 0.0
    %6307 = vmatprep.subr.mxu0 0.0
    %6308 = vmatpush1.msra.mxu0 0.0
    %6309 = vmatprep.subr.mxu0 0.0
    %6310 = vmatpush1.msra.mxu0 0.0
    %6311 = vmatprep.subr.mxu0 0.0
    %6312 = vmatpush1.msra.mxu0 0.0
    %6313 = vmatprep.subr.mxu0 0.0
    %6314 = vmatpush1.msra.mxu0 0.0
    %6315 = vmatprep.subr.mxu0 0.0
    %6316 = vmatpush1.msra.mxu0 0.0
    %6317 = vmatprep.subr.mxu0 0.0
    %6318 = vmatpush1.msra.mxu0 0.0
    %6319 = vmatprep.subr.mxu0 0.0
    %6320 = vmatpush1.msra.mxu0 0.0
    %6321 = vmatprep.subr.mxu0 0.0
    %6322 = vmatpush1.msra.mxu0 0.0
    %6323 = vmatprep.subr.mxu0 0.0
    %6324 = vmatpush1.msra.mxu0 0.0
    %6325 = vmatprep.subr.mxu0 0.0
    %6326 = vmatpush1.msra.mxu0 0.0
    %6327 = vmatprep.mubr.f32.mxu0 0.0
    %v6328 = vand.u32 %v5789, 4294901760
    %v6329 = vsub.f32 %v5789, %v6328
    %v6330 = vand.u32 %v6329, 4294901760
    %6331 = vmatmul.mubr.f32.gmra.mrb[0].mxu0 %v6330
    %v6332 = vpop.f32.mrb[0].mxu0
    %v6333 = vadd.f32 %v6203, %v6332
    %v6334 = vpop.f32.mrb[0].mxu0
    %6335 = vmatprep.mubr.f32.mxu0 0.0
    %v6336 = vand.u32 %v5792, 4294901760
    %v6337 = vsub.f32 %v5792, %v6336
    %v6338 = vand.u32 %v6337, 4294901760
    %6339 = vmatmul.mubr.f32.gmra.mrb[0].mxu0 %v6338
    %v6340 = vpop.f32.mrb[0].mxu0
    %v6341 = vadd.f32 %v6210, %v6340
    %v6342 = vpop.f32.mrb[0].mxu0
    %6343 = vmatprep.mubr.f32.mxu0 0.0
    %v6344 = vand.u32 %v5795, 4294901760
    %v6345 = vsub.f32 %v5795, %v6344
    %v6346 = vand.u32 %v6345, 4294901760
    %6347 = vmatmul.mubr.f32.gmra.mrb[0].mxu0 %v6346
    %v6348 = vpop.f32.mrb[0].mxu0
    %v6349 = vadd.f32 %v6217, %v6348
    %v6350 = vpop.f32.mrb[0].mxu0
    %6351 = vmatprep.mubr.f32.mxu0 0.0
    %v6352 = vand.u32 %v5798, 4294901760
    %v6353 = vsub.f32 %v5798, %v6352
    %v6354 = vand.u32 %v6353, 4294901760
    %6355 = vmatmul.mubr.f32.gmra.mrb[0].mxu0 %v6354
    %v6356 = vpop.f32.mrb[0].mxu0
    %v6357 = vadd.f32 %v6224, %v6356
    %v6358 = vpop.f32.mrb[0].mxu0
    %6359 = vmatprep.mubr.f32.mxu0 0.0
    %v6360 = vand.u32 %v5801, 4294901760
    %v6361 = vsub.f32 %v5801, %v6360
    %v6362 = vand.u32 %v6361, 4294901760
    %6363 = vmatmul.mubr.f32.gmra.mrb[0].mxu0 %v6362
    %v6364 = vpop.f32.mrb[0].mxu0
    %v6365 = vadd.f32 %v6231, %v6364
    %v6366 = vpop.f32.mrb[0].mxu0
    %6367 = vmatprep.mubr.f32.mxu0 0.0
    %v6368 = vand.u32 %v5804, 4294901760
    %v6369 = vsub.f32 %v5804, %v6368
    %v6370 = vand.u32 %v6369, 4294901760
    %6371 = vmatmul.mubr.f32.gmra.mrb[0].mxu0 %v6370
    %v6372 = vpop.f32.mrb[0].mxu0
    %v6373 = vadd.f32 %v6238, %v6372
    %v6374 = vpop.f32.mrb[0].mxu0
    %6375 = vmatprep.mubr.f32.mxu0 0.0
    %v6376 = vand.u32 %v5807, 4294901760
    %v6377 = vsub.f32 %v5807, %v6376
    %v6378 = vand.u32 %v6377, 4294901760
    %6379 = vmatmul.mubr.f32.gmra.mrb[0].mxu0 %v6378
    %v6380 = vpop.f32.mrb[0].mxu0
    %v6381 = vadd.f32 %v6245, %v6380
    %v6382 = vpop.f32.mrb[0].mxu0
    %6383 = vmatprep.mubr.f32.mxu0 0.0
    %v6384 = vand.u32 %v5810, 4294901760
    %v6385 = vsub.f32 %v5810, %v6384
    %v6386 = vand.u32 %v6385, 4294901760
    %6387 = vmatmul.mubr.f32.gmra.mrb[0].mxu0 %v6386
    %v6388 = vpop.f32.mrb[0].mxu0
    %v6389 = vadd.f32 %v6252, %v6388
    %v6390 = vpop.f32.mrb[0].mxu0
    %6391 = vdwg.mxu0
    %6392 = vmatprep.subr.mxu0 0.0
    %v6393 = vand.u32 %v5765, 4294901760
    %v6394 = vsub.f32 %v5765, %v6393
    %v6395 = vand.u32 %v6394, 4294901760
    %6396 = vmatpush1.msra.mxu0 %v6395
    %6397 = vmatprep.subr.mxu0 0.0
    %v6398 = vand.u32 %v5767, 4294901760
    %v6399 = vsub.f32 %v5767, %v6398
    %v6400 = vand.u32 %v6399, 4294901760
    %6401 = vmatpush1.msra.mxu0 %v6400
    %6402 = vmatprep.subr.mxu0 0.0
    %v6403 = vand.u32 %v5769, 4294901760
    %v6404 = vsub.f32 %v5769, %v6403
    %v6405 = vand.u32 %v6404, 4294901760
    %6406 = vmatpush1.msra.mxu0 %v6405
    %6407 = vmatprep.subr.mxu0 0.0
    %v6408 = vand.u32 %v5771, 4294901760
    %v6409 = vsub.f32 %v5771, %v6408
    %v6410 = vand.u32 %v6409, 4294901760
    %6411 = vmatpush1.msra.mxu0 %v6410
    %6412 = vmatprep.subr.mxu0 0.0
    %v6413 = vand.u32 %v5773, 4294901760
    %v6414 = vsub.f32 %v5773, %v6413
    %v6415 = vand.u32 %v6414, 4294901760
    %6416 = vmatpush1.msra.mxu0 %v6415
    %6417 = vmatprep.subr.mxu0 0.0
    %v6418 = vand.u32 %v5775, 4294901760
    %v6419 = vsub.f32 %v5775, %v6418
    %v6420 = vand.u32 %v6419, 4294901760
    %6421 = vmatpush1.msra.mxu0 %v6420
    %6422 = vmatprep.subr.mxu0 0.0
    %v6423 = vand.u32 %v5777, 4294901760
    %v6424 = vsub.f32 %v5777, %v6423
    %v6425 = vand.u32 %v6424, 4294901760
    %6426 = vmatpush1.msra.mxu0 %v6425
    %6427 = vmatprep.subr.mxu0 0.0
    %v6428 = vand.u32 %v5779, 4294901760
    %v6429 = vsub.f32 %v5779, %v6428
    %v6430 = vand.u32 %v6429, 4294901760
    %6431 = vmatpush1.msra.mxu0 %v6430
    %6432 = vmatprep.subr.mxu0 0.0
    %6433 = vmatpush1.msra.mxu0 0.0
    %6434 = vmatprep.subr.mxu0 0.0
    %6435 = vmatpush1.msra.mxu0 0.0
    %6436 = vmatprep.subr.mxu0 0.0
    %6437 = vmatpush1.msra.mxu0 0.0
    %6438 = vmatprep.subr.mxu0 0.0
    %6439 = vmatpush1.msra.mxu0 0.0
    %6440 = vmatprep.subr.mxu0 0.0
    %6441 = vmatpush1.msra.mxu0 0.0
    %6442 = vmatprep.subr.mxu0 0.0
    %6443 = vmatpush1.msra.mxu0 0.0
    %6444 = vmatprep.subr.mxu0 0.0
    %6445 = vmatpush1.msra.mxu0 0.0
    %6446 = vmatprep.subr.mxu0 0.0
    %6447 = vmatpush1.msra.mxu0 0.0
    %6448 = vmatprep.subr.mxu0 0.0
    %6449 = vmatpush1.msra.mxu0 0.0
    %6450 = vmatprep.subr.mxu0 0.0
    %6451 = vmatpush1.msra.mxu0 0.0
    %6452 = vmatprep.subr.mxu0 0.0
    %6453 = vmatpush1.msra.mxu0 0.0
    %6454 = vmatprep.subr.mxu0 0.0
    %6455 = vmatpush1.msra.mxu0 0.0
    %6456 = vmatprep.subr.mxu0 0.0
    %6457 = vmatpush1.msra.mxu0 0.0
    %6458 = vmatprep.subr.mxu0 0.0
    %6459 = vmatpush1.msra.mxu0 0.0
    %6460 = vmatprep.subr.mxu0 0.0
    %6461 = vmatpush1.msra.mxu0 0.0
    %6462 = vmatprep.subr.mxu0 0.0
    %6463 = vmatpush1.msra.mxu0 0.0
    %6464 = vmatprep.subr.mxu0 0.0
    %6465 = vmatpush1.msra.mxu0 0.0
    %6466 = vmatprep.subr.mxu0 0.0
    %6467 = vmatpush1.msra.mxu0 0.0
    %6468 = vmatprep.subr.mxu0 0.0
    %6469 = vmatpush1.msra.mxu0 0.0
    %6470 = vmatprep.subr.mxu0 0.0
    %6471 = vmatpush1.msra.mxu0 0.0
    %6472 = vmatprep.subr.mxu0 0.0
    %6473 = vmatpush1.msra.mxu0 0.0
    %6474 = vmatprep.subr.mxu0 0.0
    %6475 = vmatpush1.msra.mxu0 0.0
    %6476 = vmatprep.subr.mxu0 0.0
    %6477 = vmatpush1.msra.mxu0 0.0
    %6478 = vmatprep.subr.mxu0 0.0
    %6479 = vmatpush1.msra.mxu0 0.0
    %6480 = vmatprep.mubr.f32.mxu0 0.0
    %v6481 = vand.u32 %v5789, 4294901760
    %6482 = vmatmul.mubr.f32.gmra.mrb[0].mxu0 %v6481
    %v6483 = vpop.f32.mrb[0].mxu0
    %v6484 = vadd.f32 %v6333, %v6483
    %v6485 = vpop.f32.mrb[0].mxu0
    %6486 = vmatprep.mubr.f32.mxu0 0.0
    %v6487 = vand.u32 %v5792, 4294901760
    %6488 = vmatmul.mubr.f32.gmra.mrb[0].mxu0 %v6487
    %v6489 = vpop.f32.mrb[0].mxu0
    %v6490 = vadd.f32 %v6341, %v6489
    %v6491 = vpop.f32.mrb[0].mxu0
    %6492 = vmatprep.mubr.f32.mxu0 0.0
    %v6493 = vand.u32 %v5795, 4294901760
    %6494 = vmatmul.mubr.f32.gmra.mrb[0].mxu0 %v6493
    %v6495 = vpop.f32.mrb[0].mxu0
    %v6496 = vadd.f32 %v6349, %v6495
    %v6497 = vpop.f32.mrb[0].mxu0
    %6498 = vmatprep.mubr.f32.mxu0 0.0
    %v6499 = vand.u32 %v5798, 4294901760
    %6500 = vmatmul.mubr.f32.gmra.mrb[0].mxu0 %v6499
    %v6501 = vpop.f32.mrb[0].mxu0
    %v6502 = vadd.f32 %v6357, %v6501
    %v6503 = vpop.f32.mrb[0].mxu0
    %6504 = vmatprep.mubr.f32.mxu0 0.0
    %v6505 = vand.u32 %v5801, 4294901760
    %6506 = vmatmul.mubr.f32.gmra.mrb[0].mxu0 %v6505
    %v6507 = vpop.f32.mrb[0].mxu0
    %v6508 = vadd.f32 %v6365, %v6507
    %v6509 = vpop.f32.mrb[0].mxu0
    %6510 = vmatprep.mubr.f32.mxu0 0.0
    %v6511 = vand.u32 %v5804, 4294901760
    %6512 = vmatmul.mubr.f32.gmra.mrb[0].mxu0 %v6511
    %v6513 = vpop.f32.mrb[0].mxu0
    %v6514 = vadd.f32 %v6373, %v6513
    %v6515 = vpop.f32.mrb[0].mxu0
    %6516 = vmatprep.mubr.f32.mxu0 0.0
    %v6517 = vand.u32 %v5807, 4294901760
    %6518 = vmatmul.mubr.f32.gmra.mrb[0].mxu0 %v6517
    %v6519 = vpop.f32.mrb[0].mxu0
    %v6520 = vadd.f32 %v6381, %v6519
    %v6521 = vpop.f32.mrb[0].mxu0
    %6522 = vmatprep.mubr.f32.mxu0 0.0
    %v6523 = vand.u32 %v5810, 4294901760
    %6524 = vmatmul.mubr.f32.gmra.mrb[0].mxu0 %v6523
    %v6525 = vpop.f32.mrb[0].mxu0
    %v6526 = vadd.f32 %v6389, %v6525
    %v6527 = vpop.f32.mrb[0].mxu0
    %6528 = vdwg.mxu0
    %6529 = vmatprep.subr.mxu0 0.0
    %v6530 = vand.u32 %v5765, 4294901760
    %6531 = vmatpush1.msra.mxu0 %v6530
    %6532 = vmatprep.subr.mxu0 0.0
    %v6533 = vand.u32 %v5767, 4294901760
    %6534 = vmatpush1.msra.mxu0 %v6533
    %6535 = vmatprep.subr.mxu0 0.0
    %v6536 = vand.u32 %v5769, 4294901760
    %6537 = vmatpush1.msra.mxu0 %v6536
    %6538 = vmatprep.subr.mxu0 0.0
    %v6539 = vand.u32 %v5771, 4294901760
    %6540 = vmatpush1.msra.mxu0 %v6539
    %6541 = vmatprep.subr.mxu0 0.0
    %v6542 = vand.u32 %v5773, 4294901760
    %6543 = vmatpush1.msra.mxu0 %v6542
    %6544 = vmatprep.subr.mxu0 0.0
    %v6545 = vand.u32 %v5775, 4294901760
    %6546 = vmatpush1.msra.mxu0 %v6545
    %6547 = vmatprep.subr.mxu0 0.0
    %v6548 = vand.u32 %v5777, 4294901760
    %6549 = vmatpush1.msra.mxu0 %v6548
    %6550 = vmatprep.subr.mxu0 0.0
    %v6551 = vand.u32 %v5779, 4294901760
    %6552 = vmatpush1.msra.mxu0 %v6551
    %6553 = vmatprep.subr.mxu0 0.0
    %6554 = vmatpush1.msra.mxu0 0.0
    %6555 = vmatprep.subr.mxu0 0.0
    %6556 = vmatpush1.msra.mxu0 0.0
    %6557 = vmatprep.subr.mxu0 0.0
    %6558 = vmatpush1.msra.mxu0 0.0
    %6559 = vmatprep.subr.mxu0 0.0
    %6560 = vmatpush1.msra.mxu0 0.0
    %6561 = vmatprep.subr.mxu0 0.0
    %6562 = vmatpush1.msra.mxu0 0.0
    %6563 = vmatprep.subr.mxu0 0.0
    %6564 = vmatpush1.msra.mxu0 0.0
    %6565 = vmatprep.subr.mxu0 0.0
    %6566 = vmatpush1.msra.mxu0 0.0
    %6567 = vmatprep.subr.mxu0 0.0
    %6568 = vmatpush1.msra.mxu0 0.0
    %6569 = vmatprep.subr.mxu0 0.0
    %6570 = vmatpush1.msra.mxu0 0.0
    %6571 = vmatprep.subr.mxu0 0.0
    %6572 = vmatpush1.msra.mxu0 0.0
    %6573 = vmatprep.subr.mxu0 0.0
    %6574 = vmatpush1.msra.mxu0 0.0
    %6575 = vmatprep.subr.mxu0 0.0
    %6576 = vmatpush1.msra.mxu0 0.0
    %6577 = vmatprep.subr.mxu0 0.0
    %6578 = vmatpush1.msra.mxu0 0.0
    %6579 = vmatprep.subr.mxu0 0.0
    %6580 = vmatpush1.msra.mxu0 0.0
    %6581 = vmatprep.subr.mxu0 0.0
    %6582 = vmatpush1.msra.mxu0 0.0
    %6583 = vmatprep.subr.mxu0 0.0
    %6584 = vmatpush1.msra.mxu0 0.0
    %6585 = vmatprep.subr.mxu0 0.0
    %6586 = vmatpush1.msra.mxu0 0.0
    %6587 = vmatprep.subr.mxu0 0.0
    %6588 = vmatpush1.msra.mxu0 0.0
    %6589 = vmatprep.subr.mxu0 0.0
    %6590 = vmatpush1.msra.mxu0 0.0
    %6591 = vmatprep.subr.mxu0 0.0
    %6592 = vmatpush1.msra.mxu0 0.0
    %6593 = vmatprep.subr.mxu0 0.0
    %6594 = vmatpush1.msra.mxu0 0.0
    %6595 = vmatprep.subr.mxu0 0.0
    %6596 = vmatpush1.msra.mxu0 0.0
    %6597 = vmatprep.subr.mxu0 0.0
    %6598 = vmatpush1.msra.mxu0 0.0
    %6599 = vmatprep.subr.mxu0 0.0
    %6600 = vmatpush1.msra.mxu0 0.0
    %6601 = vmatprep.mubr.f32.mxu0 0.0
    %v6602 = vand.u32 %v5789, 4294901760
    %6603 = vmatmul.mubr.f32.gmra.mrb[0].mxu0 %v6602
    %v6604 = vpop.f32.mrb[0].mxu0
    %v6605 = vadd.f32 %v6484, %v6604
    %v6606 = vpop.f32.mrb[0].mxu0
    %6607 = vmatprep.mubr.f32.mxu0 0.0
    %v6608 = vand.u32 %v5792, 4294901760
    %6609 = vmatmul.mubr.f32.gmra.mrb[0].mxu0 %v6608
    %v6610 = vpop.f32.mrb[0].mxu0
    %v6611 = vadd.f32 %v6490, %v6610
    %v6612 = vpop.f32.mrb[0].mxu0
    %6613 = vmatprep.mubr.f32.mxu0 0.0
    %v6614 = vand.u32 %v5795, 4294901760
    %6615 = vmatmul.mubr.f32.gmra.mrb[0].mxu0 %v6614
    %v6616 = vpop.f32.mrb[0].mxu0
    %v6617 = vadd.f32 %v6496, %v6616
    %v6618 = vpop.f32.mrb[0].mxu0
    %6619 = vmatprep.mubr.f32.mxu0 0.0
    %v6620 = vand.u32 %v5798, 4294901760
    %6621 = vmatmul.mubr.f32.gmra.mrb[0].mxu0 %v6620
    %v6622 = vpop.f32.mrb[0].mxu0
    %v6623 = vadd.f32 %v6502, %v6622
    %v6624 = vpop.f32.mrb[0].mxu0
    %6625 = vmatprep.mubr.f32.mxu0 0.0
    %v6626 = vand.u32 %v5801, 4294901760
    %6627 = vmatmul.mubr.f32.gmra.mrb[0].mxu0 %v6626
    %v6628 = vpop.f32.mrb[0].mxu0
    %v6629 = vadd.f32 %v6508, %v6628
    %v6630 = vpop.f32.mrb[0].mxu0
    %6631 = vmatprep.mubr.f32.mxu0 0.0
    %v6632 = vand.u32 %v5804, 4294901760
    %6633 = vmatmul.mubr.f32.gmra.mrb[0].mxu0 %v6632
    %v6634 = vpop.f32.mrb[0].mxu0
    %v6635 = vadd.f32 %v6514, %v6634
    %v6636 = vpop.f32.mrb[0].mxu0
    %6637 = vmatprep.mubr.f32.mxu0 0.0
    %v6638 = vand.u32 %v5807, 4294901760
    %6639 = vmatmul.mubr.f32.gmra.mrb[0].mxu0 %v6638
    %v6640 = vpop.f32.mrb[0].mxu0
    %v6641 = vadd.f32 %v6520, %v6640
    %v6642 = vpop.f32.mrb[0].mxu0
    %6643 = vmatprep.mubr.f32.mxu0 0.0
    %v6644 = vand.u32 %v5810, 4294901760
    %6645 = vmatmul.mubr.f32.gmra.mrb[0].mxu0 %v6644
    %v6646 = vpop.f32.mrb[0].mxu0
    %v6647 = vadd.f32 %v6526, %v6646
    %v6648 = vpop.f32.mrb[0].mxu0
    %6649 = vdwg.mxu0
    %6650 = vrot.lane.b32.xlu0 %v935, 80
    %v6651 = vpop.permute.xlu0 %6650
    %6652 = vrot.lane.b32.xlu0 %v942, 80
    %v6653 = vpop.permute.xlu0 %6652
    %6654 = vrot.lane.b32.xlu0 %v949, 80
    %v6655 = vpop.permute.xlu0 %6654
    %6656 = vrot.lane.b32.xlu0 %v956, 80
    %v6657 = vpop.permute.xlu0 %6656
    %6658 = vrot.lane.b32.xlu0 %v963, 80
    %v6659 = vpop.permute.xlu0 %6658
    %6660 = vrot.lane.b32.xlu0 %v970, 80
    %v6661 = vpop.permute.xlu0 %6660
    %6662 = vrot.lane.b32.xlu0 %v977, 80
    %v6663 = vpop.permute.xlu0 %6662
    %6664 = vrot.lane.b32.xlu0 %v984, 80
    %v6665 = vpop.permute.xlu0 %6664
    %6666 = vrot.lane.b32.xlu0 %v935, 16
    %v6667 = vpop.permute.xlu0 %6666
    %6668 = vrot.lane.b32.xlu0 %v942, 16
    %v6669 = vpop.permute.xlu0 %6668
    %6670 = vrot.lane.b32.xlu0 %v949, 16
    %v6671 = vpop.permute.xlu0 %6670
    %6672 = vrot.lane.b32.xlu0 %v956, 16
    %v6673 = vpop.permute.xlu0 %6672
    %6674 = vrot.lane.b32.xlu0 %v963, 16
    %v6675 = vpop.permute.xlu0 %6674
    %6676 = vrot.lane.b32.xlu0 %v970, 16
    %v6677 = vpop.permute.xlu0 %6676
    %6678 = vrot.lane.b32.xlu0 %v977, 16
    %v6679 = vpop.permute.xlu0 %6678
    %6680 = vrot.lane.b32.xlu0 %v984, 16
    %v6681 = vpop.permute.xlu0 %6680
    %v6682 = vsel %vm1020, %v6651, 0
    %v6684 = vsel %vm1020, %v6653, 0
    %v6686 = vsel %vm1020, %v6655, 0
    %v6688 = vsel %vm1020, %v6657, 0
    %v6690 = vsel %vm1020, %v6659, 0
    %v6692 = vsel %vm1020, %v6661, 0
    %v6694 = vsel %vm1020, %v6663, 0
    %v6696 = vsel %vm1020, %v6665, 0
    %v6698 = vsel %vm1020, %v6667, 0
    %v6700 = vsel %vm1020, %v6669, 0
    %v6702 = vsel %vm1020, %v6671, 0
    %v6704 = vsel %vm1020, %v6673, 0
    %v6706 = vsel %vm1020, %v6675, 0
    %v6708 = vsel %vm1020, %v6677, 0
    %v6710 = vsel %vm1020, %v6679, 0
    %v6712 = vsel %vm1020, %v6681, 0
    %6714 = vmatprep.subr.mxu0 0.0
    %v6715 = vand.u32 %v6698, 4294901760
    %6716 = vmatpush1.xpose.msra.mxu0 %v6715
    %6717 = vmatprep.subr.mxu0 0.0
    %v6718 = vand.u32 %v6700, 4294901760
    %6719 = vmatpush1.xpose.msra.mxu0 %v6718
    %6720 = vmatprep.subr.mxu0 0.0
    %v6721 = vand.u32 %v6702, 4294901760
    %6722 = vmatpush1.xpose.msra.mxu0 %v6721
    %6723 = vmatprep.subr.mxu0 0.0
    %v6724 = vand.u32 %v6704, 4294901760
    %6725 = vmatpush1.xpose.msra.mxu0 %v6724
    %6726 = vmatprep.subr.mxu0 0.0
    %v6727 = vand.u32 %v6706, 4294901760
    %6728 = vmatpush1.xpose.msra.mxu0 %v6727
    %6729 = vmatprep.subr.mxu0 0.0
    %v6730 = vand.u32 %v6708, 4294901760
    %6731 = vmatpush1.xpose.msra.mxu0 %v6730
    %6732 = vmatprep.subr.mxu0 0.0
    %v6733 = vand.u32 %v6710, 4294901760
    %6734 = vmatpush1.xpose.msra.mxu0 %v6733
    %6735 = vmatprep.subr.mxu0 0.0
    %v6736 = vand.u32 %v6712, 4294901760
    %6737 = vmatpush1.xpose.msra.mxu0 %v6736
    %6738 = vmatprep.subr.mxu0 0.0
    %6739 = vmatpush1.xpose.msra.mxu0 0.0
    %6740 = vmatprep.subr.mxu0 0.0
    %6741 = vmatpush1.xpose.msra.mxu0 0.0
    %6742 = vmatprep.subr.mxu0 0.0
    %6743 = vmatpush1.xpose.msra.mxu0 0.0
    %6744 = vmatprep.subr.mxu0 0.0
    %6745 = vmatpush1.xpose.msra.mxu0 0.0
    %6746 = vmatprep.subr.mxu0 0.0
    %6747 = vmatpush1.xpose.msra.mxu0 0.0
    %6748 = vmatprep.subr.mxu0 0.0
    %6749 = vmatpush1.xpose.msra.mxu0 0.0
    %6750 = vmatprep.subr.mxu0 0.0
    %6751 = vmatpush1.xpose.msra.mxu0 0.0
    %6752 = vmatprep.subr.mxu0 0.0
    %6753 = vmatpush1.xpose.msra.mxu0 0.0
    %6754 = vmatprep.subr.mxu0 0.0
    %6755 = vmatpush1.xpose.msra.mxu0 0.0
    %6756 = vmatprep.subr.mxu0 0.0
    %6757 = vmatpush1.xpose.msra.mxu0 0.0
    %6758 = vmatprep.subr.mxu0 0.0
    %6759 = vmatpush1.xpose.msra.mxu0 0.0
    %6760 = vmatprep.subr.mxu0 0.0
    %6761 = vmatpush1.xpose.msra.mxu0 0.0
    %6762 = vmatprep.subr.mxu0 0.0
    %6763 = vmatpush1.xpose.msra.mxu0 0.0
    %6764 = vmatprep.subr.mxu0 0.0
    %6765 = vmatpush1.xpose.msra.mxu0 0.0
    %6766 = vmatprep.subr.mxu0 0.0
    %6767 = vmatpush1.xpose.msra.mxu0 0.0
    %6768 = vmatprep.subr.mxu0 0.0
    %6769 = vmatpush1.xpose.msra.mxu0 0.0
    %6770 = vmatprep.subr.mxu0 0.0
    %6771 = vmatpush1.xpose.msra.mxu0 0.0
    %6772 = vmatprep.subr.mxu0 0.0
    %6773 = vmatpush1.xpose.msra.mxu0 0.0
    %6774 = vmatprep.subr.mxu0 0.0
    %6775 = vmatpush1.xpose.msra.mxu0 0.0
    %6776 = vmatprep.subr.mxu0 0.0
    %6777 = vmatpush1.xpose.msra.mxu0 0.0
    %6778 = vmatprep.subr.mxu0 0.0
    %6779 = vmatpush1.xpose.msra.mxu0 0.0
    %6780 = vmatprep.subr.mxu0 0.0
    %6781 = vmatpush1.xpose.msra.mxu0 0.0
    %6782 = vmatprep.subr.mxu0 0.0
    %6783 = vmatpush1.xpose.msra.mxu0 0.0
    %6784 = vmatprep.subr.mxu0 0.0
    %6785 = vmatpush1.xpose.msra.mxu0 0.0
    %6786 = vmatprep.mubr.f32.mxu0 0.0
    %v6787 = vand.u32 %v6682, 4294901760
    %v6788 = vsub.f32 %v6682, %v6787
    %v6789 = vand.u32 %v6788, 4294901760
    %v6790 = vsub.f32 %v6788, %v6789
    %v6791 = vand.u32 %v6790, 4294901760
    %6792 = vmatmul.mubr.f32.gmra.mrb[0].mxu0 %v6791
    %v6793 = vpop.f32.mrb[0].mxu0
    %v6794 = vadd.f32 0.0, %v6793
    %v6795 = vpop.f32.mrb[0].mxu0
    %6796 = vmatprep.mubr.f32.mxu0 0.0
    %v6797 = vand.u32 %v6684, 4294901760
    %v6798 = vsub.f32 %v6684, %v6797
    %v6799 = vand.u32 %v6798, 4294901760
    %v6800 = vsub.f32 %v6798, %v6799
    %v6801 = vand.u32 %v6800, 4294901760
    %6802 = vmatmul.mubr.f32.gmra.mrb[0].mxu0 %v6801
    %v6803 = vpop.f32.mrb[0].mxu0
    %v6804 = vadd.f32 0.0, %v6803
    %v6805 = vpop.f32.mrb[0].mxu0
    %6806 = vmatprep.mubr.f32.mxu0 0.0
    %v6807 = vand.u32 %v6686, 4294901760
    %v6808 = vsub.f32 %v6686, %v6807
    %v6809 = vand.u32 %v6808, 4294901760
    %v6810 = vsub.f32 %v6808, %v6809
    %v6811 = vand.u32 %v6810, 4294901760
    %6812 = vmatmul.mubr.f32.gmra.mrb[0].mxu0 %v6811
    %v6813 = vpop.f32.mrb[0].mxu0
    %v6814 = vadd.f32 0.0, %v6813
    %v6815 = vpop.f32.mrb[0].mxu0
    %6816 = vmatprep.mubr.f32.mxu0 0.0
    %v6817 = vand.u32 %v6688, 4294901760
    %v6818 = vsub.f32 %v6688, %v6817
    %v6819 = vand.u32 %v6818, 4294901760
    %v6820 = vsub.f32 %v6818, %v6819
    %v6821 = vand.u32 %v6820, 4294901760
    %6822 = vmatmul.mubr.f32.gmra.mrb[0].mxu0 %v6821
    %v6823 = vpop.f32.mrb[0].mxu0
    %v6824 = vadd.f32 0.0, %v6823
    %v6825 = vpop.f32.mrb[0].mxu0
    %6826 = vmatprep.mubr.f32.mxu0 0.0
    %v6827 = vand.u32 %v6690, 4294901760
    %v6828 = vsub.f32 %v6690, %v6827
    %v6829 = vand.u32 %v6828, 4294901760
    %v6830 = vsub.f32 %v6828, %v6829
    %v6831 = vand.u32 %v6830, 4294901760
    %6832 = vmatmul.mubr.f32.gmra.mrb[0].mxu0 %v6831
    %v6833 = vpop.f32.mrb[0].mxu0
    %v6834 = vadd.f32 0.0, %v6833
    %v6835 = vpop.f32.mrb[0].mxu0
    %6836 = vmatprep.mubr.f32.mxu0 0.0
    %v6837 = vand.u32 %v6692, 4294901760
    %v6838 = vsub.f32 %v6692, %v6837
    %v6839 = vand.u32 %v6838, 4294901760
    %v6840 = vsub.f32 %v6838, %v6839
    %v6841 = vand.u32 %v6840, 4294901760
    %6842 = vmatmul.mubr.f32.gmra.mrb[0].mxu0 %v6841
    %v6843 = vpop.f32.mrb[0].mxu0
    %v6844 = vadd.f32 0.0, %v6843
    %v6845 = vpop.f32.mrb[0].mxu0
    %6846 = vmatprep.mubr.f32.mxu0 0.0
    %v6847 = vand.u32 %v6694, 4294901760
    %v6848 = vsub.f32 %v6694, %v6847
    %v6849 = vand.u32 %v6848, 4294901760
    %v6850 = vsub.f32 %v6848, %v6849
    %v6851 = vand.u32 %v6850, 4294901760
    %6852 = vmatmul.mubr.f32.gmra.mrb[0].mxu0 %v6851
    %v6853 = vpop.f32.mrb[0].mxu0
    %v6854 = vadd.f32 0.0, %v6853
    %v6855 = vpop.f32.mrb[0].mxu0
    %6856 = vmatprep.mubr.f32.mxu0 0.0
    %v6857 = vand.u32 %v6696, 4294901760
    %v6858 = vsub.f32 %v6696, %v6857
    %v6859 = vand.u32 %v6858, 4294901760
    %v6860 = vsub.f32 %v6858, %v6859
    %v6861 = vand.u32 %v6860, 4294901760
    %6862 = vmatmul.mubr.f32.gmra.mrb[0].mxu0 %v6861
    %v6863 = vpop.f32.mrb[0].mxu0
    %v6864 = vadd.f32 0.0, %v6863
    %v6865 = vpop.f32.mrb[0].mxu0
    %6866 = vdwg.mxu0
    %6867 = vmatprep.subr.mxu0 0.0
    %v6868 = vand.u32 %v6698, 4294901760
    %v6869 = vsub.f32 %v6698, %v6868
    %v6870 = vand.u32 %v6869, 4294901760
    %v6871 = vsub.f32 %v6869, %v6870
    %v6872 = vand.u32 %v6871, 4294901760
    %6873 = vmatpush1.xpose.msra.mxu0 %v6872
    %6874 = vmatprep.subr.mxu0 0.0
    %v6875 = vand.u32 %v6700, 4294901760
    %v6876 = vsub.f32 %v6700, %v6875
    %v6877 = vand.u32 %v6876, 4294901760
    %v6878 = vsub.f32 %v6876, %v6877
    %v6879 = vand.u32 %v6878, 4294901760
    %6880 = vmatpush1.xpose.msra.mxu0 %v6879
    %6881 = vmatprep.subr.mxu0 0.0
    %v6882 = vand.u32 %v6702, 4294901760
    %v6883 = vsub.f32 %v6702, %v6882
    %v6884 = vand.u32 %v6883, 4294901760
    %v6885 = vsub.f32 %v6883, %v6884
    %v6886 = vand.u32 %v6885, 4294901760
    %6887 = vmatpush1.xpose.msra.mxu0 %v6886
    %6888 = vmatprep.subr.mxu0 0.0
    %v6889 = vand.u32 %v6704, 4294901760
    %v6890 = vsub.f32 %v6704, %v6889
    %v6891 = vand.u32 %v6890, 4294901760
    %v6892 = vsub.f32 %v6890, %v6891
    %v6893 = vand.u32 %v6892, 4294901760
    %6894 = vmatpush1.xpose.msra.mxu0 %v6893
    %6895 = vmatprep.subr.mxu0 0.0
    %v6896 = vand.u32 %v6706, 4294901760
    %v6897 = vsub.f32 %v6706, %v6896
    %v6898 = vand.u32 %v6897, 4294901760
    %v6899 = vsub.f32 %v6897, %v6898
    %v6900 = vand.u32 %v6899, 4294901760
    %6901 = vmatpush1.xpose.msra.mxu0 %v6900
    %6902 = vmatprep.subr.mxu0 0.0
    %v6903 = vand.u32 %v6708, 4294901760
    %v6904 = vsub.f32 %v6708, %v6903
    %v6905 = vand.u32 %v6904, 4294901760
    %v6906 = vsub.f32 %v6904, %v6905
    %v6907 = vand.u32 %v6906, 4294901760
    %6908 = vmatpush1.xpose.msra.mxu0 %v6907
    %6909 = vmatprep.subr.mxu0 0.0
    %v6910 = vand.u32 %v6710, 4294901760
    %v6911 = vsub.f32 %v6710, %v6910
    %v6912 = vand.u32 %v6911, 4294901760
    %v6913 = vsub.f32 %v6911, %v6912
    %v6914 = vand.u32 %v6913, 4294901760
    %6915 = vmatpush1.xpose.msra.mxu0 %v6914
    %6916 = vmatprep.subr.mxu0 0.0
    %v6917 = vand.u32 %v6712, 4294901760
    %v6918 = vsub.f32 %v6712, %v6917
    %v6919 = vand.u32 %v6918, 4294901760
    %v6920 = vsub.f32 %v6918, %v6919
    %v6921 = vand.u32 %v6920, 4294901760
    %6922 = vmatpush1.xpose.msra.mxu0 %v6921
    %6923 = vmatprep.subr.mxu0 0.0
    %6924 = vmatpush1.xpose.msra.mxu0 0.0
    %6925 = vmatprep.subr.mxu0 0.0
    %6926 = vmatpush1.xpose.msra.mxu0 0.0
    %6927 = vmatprep.subr.mxu0 0.0
    %6928 = vmatpush1.xpose.msra.mxu0 0.0
    %6929 = vmatprep.subr.mxu0 0.0
    %6930 = vmatpush1.xpose.msra.mxu0 0.0
    %6931 = vmatprep.subr.mxu0 0.0
    %6932 = vmatpush1.xpose.msra.mxu0 0.0
    %6933 = vmatprep.subr.mxu0 0.0
    %6934 = vmatpush1.xpose.msra.mxu0 0.0
    %6935 = vmatprep.subr.mxu0 0.0
    %6936 = vmatpush1.xpose.msra.mxu0 0.0
    %6937 = vmatprep.subr.mxu0 0.0
    %6938 = vmatpush1.xpose.msra.mxu0 0.0
    %6939 = vmatprep.subr.mxu0 0.0
    %6940 = vmatpush1.xpose.msra.mxu0 0.0
    %6941 = vmatprep.subr.mxu0 0.0
    %6942 = vmatpush1.xpose.msra.mxu0 0.0
    %6943 = vmatprep.subr.mxu0 0.0
    %6944 = vmatpush1.xpose.msra.mxu0 0.0
    %6945 = vmatprep.subr.mxu0 0.0
    %6946 = vmatpush1.xpose.msra.mxu0 0.0
    %6947 = vmatprep.subr.mxu0 0.0
    %6948 = vmatpush1.xpose.msra.mxu0 0.0
    %6949 = vmatprep.subr.mxu0 0.0
    %6950 = vmatpush1.xpose.msra.mxu0 0.0
    %6951 = vmatprep.subr.mxu0 0.0
    %6952 = vmatpush1.xpose.msra.mxu0 0.0
    %6953 = vmatprep.subr.mxu0 0.0
    %6954 = vmatpush1.xpose.msra.mxu0 0.0
    %6955 = vmatprep.subr.mxu0 0.0
    %6956 = vmatpush1.xpose.msra.mxu0 0.0
    %6957 = vmatprep.subr.mxu0 0.0
    %6958 = vmatpush1.xpose.msra.mxu0 0.0
    %6959 = vmatprep.subr.mxu0 0.0
    %6960 = vmatpush1.xpose.msra.mxu0 0.0
    %6961 = vmatprep.subr.mxu0 0.0
    %6962 = vmatpush1.xpose.msra.mxu0 0.0
    %6963 = vmatprep.subr.mxu0 0.0
    %6964 = vmatpush1.xpose.msra.mxu0 0.0
    %6965 = vmatprep.subr.mxu0 0.0
    %6966 = vmatpush1.xpose.msra.mxu0 0.0
    %6967 = vmatprep.subr.mxu0 0.0
    %6968 = vmatpush1.xpose.msra.mxu0 0.0
    %6969 = vmatprep.subr.mxu0 0.0
    %6970 = vmatpush1.xpose.msra.mxu0 0.0
    %6971 = vmatprep.mubr.f32.mxu0 0.0
    %v6972 = vand.u32 %v6682, 4294901760
    %6973 = vmatmul.mubr.f32.gmra.mrb[0].mxu0 %v6972
    %v6974 = vpop.f32.mrb[0].mxu0
    %v6975 = vadd.f32 %v6794, %v6974
    %v6976 = vpop.f32.mrb[0].mxu0
    %6977 = vmatprep.mubr.f32.mxu0 0.0
    %v6978 = vand.u32 %v6684, 4294901760
    %6979 = vmatmul.mubr.f32.gmra.mrb[0].mxu0 %v6978
    %v6980 = vpop.f32.mrb[0].mxu0
    %v6981 = vadd.f32 %v6804, %v6980
    %v6982 = vpop.f32.mrb[0].mxu0
    %6983 = vmatprep.mubr.f32.mxu0 0.0
    %v6984 = vand.u32 %v6686, 4294901760
    %6985 = vmatmul.mubr.f32.gmra.mrb[0].mxu0 %v6984
    %v6986 = vpop.f32.mrb[0].mxu0
    %v6987 = vadd.f32 %v6814, %v6986
    %v6988 = vpop.f32.mrb[0].mxu0
    %6989 = vmatprep.mubr.f32.mxu0 0.0
    %v6990 = vand.u32 %v6688, 4294901760
    %6991 = vmatmul.mubr.f32.gmra.mrb[0].mxu0 %v6990
    %v6992 = vpop.f32.mrb[0].mxu0
    %v6993 = vadd.f32 %v6824, %v6992
    %v6994 = vpop.f32.mrb[0].mxu0
    %6995 = vmatprep.mubr.f32.mxu0 0.0
    %v6996 = vand.u32 %v6690, 4294901760
    %6997 = vmatmul.mubr.f32.gmra.mrb[0].mxu0 %v6996
    %v6998 = vpop.f32.mrb[0].mxu0
    %v6999 = vadd.f32 %v6834, %v6998
    %v7000 = vpop.f32.mrb[0].mxu0
    %7001 = vmatprep.mubr.f32.mxu0 0.0
    %v7002 = vand.u32 %v6692, 4294901760
    %7003 = vmatmul.mubr.f32.gmra.mrb[0].mxu0 %v7002
    %v7004 = vpop.f32.mrb[0].mxu0
    %v7005 = vadd.f32 %v6844, %v7004
    %v7006 = vpop.f32.mrb[0].mxu0
    %7007 = vmatprep.mubr.f32.mxu0 0.0
    %v7008 = vand.u32 %v6694, 4294901760
    %7009 = vmatmul.mubr.f32.gmra.mrb[0].mxu0 %v7008
    %v7010 = vpop.f32.mrb[0].mxu0
    %v7011 = vadd.f32 %v6854, %v7010
    %v7012 = vpop.f32.mrb[0].mxu0
    %7013 = vmatprep.mubr.f32.mxu0 0.0
    %v7014 = vand.u32 %v6696, 4294901760
    %7015 = vmatmul.mubr.f32.gmra.mrb[0].mxu0 %v7014
    %v7016 = vpop.f32.mrb[0].mxu0
    %v7017 = vadd.f32 %v6864, %v7016
    %v7018 = vpop.f32.mrb[0].mxu0
    %7019 = vdwg.mxu0
    %7020 = vmatprep.subr.mxu0 0.0
    %v7021 = vand.u32 %v6698, 4294901760
    %v7022 = vsub.f32 %v6698, %v7021
    %7023 = vmatpush1.xpose.msra.mxu0 %v7022
    %7024 = vmatprep.subr.mxu0 0.0
    %v7025 = vand.u32 %v6700, 4294901760
    %v7026 = vsub.f32 %v6700, %v7025
    %7027 = vmatpush1.xpose.msra.mxu0 %v7026
    %7028 = vmatprep.subr.mxu0 0.0
    %v7029 = vand.u32 %v6702, 4294901760
    %v7030 = vsub.f32 %v6702, %v7029
    %7031 = vmatpush1.xpose.msra.mxu0 %v7030
    %7032 = vmatprep.subr.mxu0 0.0
    %v7033 = vand.u32 %v6704, 4294901760
    %v7034 = vsub.f32 %v6704, %v7033
    %7035 = vmatpush1.xpose.msra.mxu0 %v7034
    %7036 = vmatprep.subr.mxu0 0.0
    %v7037 = vand.u32 %v6706, 4294901760
    %v7038 = vsub.f32 %v6706, %v7037
    %7039 = vmatpush1.xpose.msra.mxu0 %v7038
    %7040 = vmatprep.subr.mxu0 0.0
    %v7041 = vand.u32 %v6708, 4294901760
    %v7042 = vsub.f32 %v6708, %v7041
    %7043 = vmatpush1.xpose.msra.mxu0 %v7042
    %7044 = vmatprep.subr.mxu0 0.0
    %v7045 = vand.u32 %v6710, 4294901760
    %v7046 = vsub.f32 %v6710, %v7045
    %7047 = vmatpush1.xpose.msra.mxu0 %v7046
    %7048 = vmatprep.subr.mxu0 0.0
    %v7049 = vand.u32 %v6712, 4294901760
    %v7050 = vsub.f32 %v6712, %v7049
    %7051 = vmatpush1.xpose.msra.mxu0 %v7050
    %7052 = vmatprep.subr.mxu0 0.0
    %7053 = vmatpush1.xpose.msra.mxu0 0.0
    %7054 = vmatprep.subr.mxu0 0.0
    %7055 = vmatpush1.xpose.msra.mxu0 0.0
    %7056 = vmatprep.subr.mxu0 0.0
    %7057 = vmatpush1.xpose.msra.mxu0 0.0
    %7058 = vmatprep.subr.mxu0 0.0
    %7059 = vmatpush1.xpose.msra.mxu0 0.0
    %7060 = vmatprep.subr.mxu0 0.0
    %7061 = vmatpush1.xpose.msra.mxu0 0.0
    %7062 = vmatprep.subr.mxu0 0.0
    %7063 = vmatpush1.xpose.msra.mxu0 0.0
    %7064 = vmatprep.subr.mxu0 0.0
    %7065 = vmatpush1.xpose.msra.mxu0 0.0
    %7066 = vmatprep.subr.mxu0 0.0
    %7067 = vmatpush1.xpose.msra.mxu0 0.0
    %7068 = vmatprep.subr.mxu0 0.0
    %7069 = vmatpush1.xpose.msra.mxu0 0.0
    %7070 = vmatprep.subr.mxu0 0.0
    %7071 = vmatpush1.xpose.msra.mxu0 0.0
    %7072 = vmatprep.subr.mxu0 0.0
    %7073 = vmatpush1.xpose.msra.mxu0 0.0
    %7074 = vmatprep.subr.mxu0 0.0
    %7075 = vmatpush1.xpose.msra.mxu0 0.0
    %7076 = vmatprep.subr.mxu0 0.0
    %7077 = vmatpush1.xpose.msra.mxu0 0.0
    %7078 = vmatprep.subr.mxu0 0.0
    %7079 = vmatpush1.xpose.msra.mxu0 0.0
    %7080 = vmatprep.subr.mxu0 0.0
    %7081 = vmatpush1.xpose.msra.mxu0 0.0
    %7082 = vmatprep.subr.mxu0 0.0
    %7083 = vmatpush1.xpose.msra.mxu0 0.0
    %7084 = vmatprep.subr.mxu0 0.0
    %7085 = vmatpush1.xpose.msra.mxu0 0.0
    %7086 = vmatprep.subr.mxu0 0.0
    %7087 = vmatpush1.xpose.msra.mxu0 0.0
    %7088 = vmatprep.subr.mxu0 0.0
    %7089 = vmatpush1.xpose.msra.mxu0 0.0
    %7090 = vmatprep.subr.mxu0 0.0
    %7091 = vmatpush1.xpose.msra.mxu0 0.0
    %7092 = vmatprep.subr.mxu0 0.0
    %7093 = vmatpush1.xpose.msra.mxu0 0.0
    %7094 = vmatprep.subr.mxu0 0.0
    %7095 = vmatpush1.xpose.msra.mxu0 0.0
    %7096 = vmatprep.subr.mxu0 0.0
    %7097 = vmatpush1.xpose.msra.mxu0 0.0
    %7098 = vmatprep.subr.mxu0 0.0
    %7099 = vmatpush1.xpose.msra.mxu0 0.0
    %7100 = vmatprep.mubr.f32.mxu0 0.0
    %v7101 = vand.u32 %v6682, 4294901760
    %v7102 = vsub.f32 %v6682, %v7101
    %7103 = vmatmul.mubr.f32.gmra.mrb[0].mxu0 %v7102
    %v7104 = vpop.f32.mrb[0].mxu0
    %v7105 = vadd.f32 %v6975, %v7104
    %v7106 = vpop.f32.mrb[0].mxu0
    %7107 = vmatprep.mubr.f32.mxu0 0.0
    %v7108 = vand.u32 %v6684, 4294901760
    %v7109 = vsub.f32 %v6684, %v7108
    %7110 = vmatmul.mubr.f32.gmra.mrb[0].mxu0 %v7109
    %v7111 = vpop.f32.mrb[0].mxu0
    %v7112 = vadd.f32 %v6981, %v7111
    %v7113 = vpop.f32.mrb[0].mxu0
    %7114 = vmatprep.mubr.f32.mxu0 0.0
    %v7115 = vand.u32 %v6686, 4294901760
    %v7116 = vsub.f32 %v6686, %v7115
    %7117 = vmatmul.mubr.f32.gmra.mrb[0].mxu0 %v7116
    %v7118 = vpop.f32.mrb[0].mxu0
    %v7119 = vadd.f32 %v6987, %v7118
    %v7120 = vpop.f32.mrb[0].mxu0
    %7121 = vmatprep.mubr.f32.mxu0 0.0
    %v7122 = vand.u32 %v6688, 4294901760
    %v7123 = vsub.f32 %v6688, %v7122
    %7124 = vmatmul.mubr.f32.gmra.mrb[0].mxu0 %v7123
    %v7125 = vpop.f32.mrb[0].mxu0
    %v7126 = vadd.f32 %v6993, %v7125
    %v7127 = vpop.f32.mrb[0].mxu0
    %7128 = vmatprep.mubr.f32.mxu0 0.0
    %v7129 = vand.u32 %v6690, 4294901760
    %v7130 = vsub.f32 %v6690, %v7129
    %7131 = vmatmul.mubr.f32.gmra.mrb[0].mxu0 %v7130
    %v7132 = vpop.f32.mrb[0].mxu0
    %v7133 = vadd.f32 %v6999, %v7132
    %v7134 = vpop.f32.mrb[0].mxu0
    %7135 = vmatprep.mubr.f32.mxu0 0.0
    %v7136 = vand.u32 %v6692, 4294901760
    %v7137 = vsub.f32 %v6692, %v7136
    %7138 = vmatmul.mubr.f32.gmra.mrb[0].mxu0 %v7137
    %v7139 = vpop.f32.mrb[0].mxu0
    %v7140 = vadd.f32 %v7005, %v7139
    %v7141 = vpop.f32.mrb[0].mxu0
    %7142 = vmatprep.mubr.f32.mxu0 0.0
    %v7143 = vand.u32 %v6694, 4294901760
    %v7144 = vsub.f32 %v6694, %v7143
    %7145 = vmatmul.mubr.f32.gmra.mrb[0].mxu0 %v7144
    %v7146 = vpop.f32.mrb[0].mxu0
    %v7147 = vadd.f32 %v7011, %v7146
    %v7148 = vpop.f32.mrb[0].mxu0
    %7149 = vmatprep.mubr.f32.mxu0 0.0
    %v7150 = vand.u32 %v6696, 4294901760
    %v7151 = vsub.f32 %v6696, %v7150
    %7152 = vmatmul.mubr.f32.gmra.mrb[0].mxu0 %v7151
    %v7153 = vpop.f32.mrb[0].mxu0
    %v7154 = vadd.f32 %v7017, %v7153
    %v7155 = vpop.f32.mrb[0].mxu0
    %7156 = vdwg.mxu0
    %7157 = vmatprep.subr.mxu0 0.0
    %v7158 = vand.u32 %v6698, 4294901760
    %7159 = vmatpush1.xpose.msra.mxu0 %v7158
    %7160 = vmatprep.subr.mxu0 0.0
    %v7161 = vand.u32 %v6700, 4294901760
    %7162 = vmatpush1.xpose.msra.mxu0 %v7161
    %7163 = vmatprep.subr.mxu0 0.0
    %v7164 = vand.u32 %v6702, 4294901760
    %7165 = vmatpush1.xpose.msra.mxu0 %v7164
    %7166 = vmatprep.subr.mxu0 0.0
    %v7167 = vand.u32 %v6704, 4294901760
    %7168 = vmatpush1.xpose.msra.mxu0 %v7167
    %7169 = vmatprep.subr.mxu0 0.0
    %v7170 = vand.u32 %v6706, 4294901760
    %7171 = vmatpush1.xpose.msra.mxu0 %v7170
    %7172 = vmatprep.subr.mxu0 0.0
    %v7173 = vand.u32 %v6708, 4294901760
    %7174 = vmatpush1.xpose.msra.mxu0 %v7173
    %7175 = vmatprep.subr.mxu0 0.0
    %v7176 = vand.u32 %v6710, 4294901760
    %7177 = vmatpush1.xpose.msra.mxu0 %v7176
    %7178 = vmatprep.subr.mxu0 0.0
    %v7179 = vand.u32 %v6712, 4294901760
    %7180 = vmatpush1.xpose.msra.mxu0 %v7179
    %7181 = vmatprep.subr.mxu0 0.0
    %7182 = vmatpush1.xpose.msra.mxu0 0.0
    %7183 = vmatprep.subr.mxu0 0.0
    %7184 = vmatpush1.xpose.msra.mxu0 0.0
    %7185 = vmatprep.subr.mxu0 0.0
    %7186 = vmatpush1.xpose.msra.mxu0 0.0
    %7187 = vmatprep.subr.mxu0 0.0
    %7188 = vmatpush1.xpose.msra.mxu0 0.0
    %7189 = vmatprep.subr.mxu0 0.0
    %7190 = vmatpush1.xpose.msra.mxu0 0.0
    %7191 = vmatprep.subr.mxu0 0.0
    %7192 = vmatpush1.xpose.msra.mxu0 0.0
    %7193 = vmatprep.subr.mxu0 0.0
    %7194 = vmatpush1.xpose.msra.mxu0 0.0
    %7195 = vmatprep.subr.mxu0 0.0
    %7196 = vmatpush1.xpose.msra.mxu0 0.0
    %7197 = vmatprep.subr.mxu0 0.0
    %7198 = vmatpush1.xpose.msra.mxu0 0.0
    %7199 = vmatprep.subr.mxu0 0.0
    %7200 = vmatpush1.xpose.msra.mxu0 0.0
    %7201 = vmatprep.subr.mxu0 0.0
    %7202 = vmatpush1.xpose.msra.mxu0 0.0
    %7203 = vmatprep.subr.mxu0 0.0
    %7204 = vmatpush1.xpose.msra.mxu0 0.0
    %7205 = vmatprep.subr.mxu0 0.0
    %7206 = vmatpush1.xpose.msra.mxu0 0.0
    %7207 = vmatprep.subr.mxu0 0.0
    %7208 = vmatpush1.xpose.msra.mxu0 0.0
    %7209 = vmatprep.subr.mxu0 0.0
    %7210 = vmatpush1.xpose.msra.mxu0 0.0
    %7211 = vmatprep.subr.mxu0 0.0
    %7212 = vmatpush1.xpose.msra.mxu0 0.0
    %7213 = vmatprep.subr.mxu0 0.0
    %7214 = vmatpush1.xpose.msra.mxu0 0.0
    %7215 = vmatprep.subr.mxu0 0.0
    %7216 = vmatpush1.xpose.msra.mxu0 0.0
    %7217 = vmatprep.subr.mxu0 0.0
    %7218 = vmatpush1.xpose.msra.mxu0 0.0
    %7219 = vmatprep.subr.mxu0 0.0
    %7220 = vmatpush1.xpose.msra.mxu0 0.0
    %7221 = vmatprep.subr.mxu0 0.0
    %7222 = vmatpush1.xpose.msra.mxu0 0.0
    %7223 = vmatprep.subr.mxu0 0.0
    %7224 = vmatpush1.xpose.msra.mxu0 0.0
    %7225 = vmatprep.subr.mxu0 0.0
    %7226 = vmatpush1.xpose.msra.mxu0 0.0
    %7227 = vmatprep.subr.mxu0 0.0
    %7228 = vmatpush1.xpose.msra.mxu0 0.0
    %7229 = vmatprep.mubr.f32.mxu0 0.0
    %v7230 = vand.u32 %v6682, 4294901760
    %v7231 = vsub.f32 %v6682, %v7230
    %v7232 = vand.u32 %v7231, 4294901760
    %7233 = vmatmul.mubr.f32.gmra.mrb[0].mxu0 %v7232
    %v7234 = vpop.f32.mrb[0].mxu0
    %v7235 = vadd.f32 %v7105, %v7234
    %v7236 = vpop.f32.mrb[0].mxu0
    %7237 = vmatprep.mubr.f32.mxu0 0.0
    %v7238 = vand.u32 %v6684, 4294901760
    %v7239 = vsub.f32 %v6684, %v7238
    %v7240 = vand.u32 %v7239, 4294901760
    %7241 = vmatmul.mubr.f32.gmra.mrb[0].mxu0 %v7240
    %v7242 = vpop.f32.mrb[0].mxu0
    %v7243 = vadd.f32 %v7112, %v7242
    %v7244 = vpop.f32.mrb[0].mxu0
    %7245 = vmatprep.mubr.f32.mxu0 0.0
    %v7246 = vand.u32 %v6686, 4294901760
    %v7247 = vsub.f32 %v6686, %v7246
    %v7248 = vand.u32 %v7247, 4294901760
    %7249 = vmatmul.mubr.f32.gmra.mrb[0].mxu0 %v7248
    %v7250 = vpop.f32.mrb[0].mxu0
    %v7251 = vadd.f32 %v7119, %v7250
    %v7252 = vpop.f32.mrb[0].mxu0
    %7253 = vmatprep.mubr.f32.mxu0 0.0
    %v7254 = vand.u32 %v6688, 4294901760
    %v7255 = vsub.f32 %v6688, %v7254
    %v7256 = vand.u32 %v7255, 4294901760
    %7257 = vmatmul.mubr.f32.gmra.mrb[0].mxu0 %v7256
    %v7258 = vpop.f32.mrb[0].mxu0
    %v7259 = vadd.f32 %v7126, %v7258
    %v7260 = vpop.f32.mrb[0].mxu0
    %7261 = vmatprep.mubr.f32.mxu0 0.0
    %v7262 = vand.u32 %v6690, 4294901760
    %v7263 = vsub.f32 %v6690, %v7262
    %v7264 = vand.u32 %v7263, 4294901760
    %7265 = vmatmul.mubr.f32.gmra.mrb[0].mxu0 %v7264
    %v7266 = vpop.f32.mrb[0].mxu0
    %v7267 = vadd.f32 %v7133, %v7266
    %v7268 = vpop.f32.mrb[0].mxu0
    %7269 = vmatprep.mubr.f32.mxu0 0.0
    %v7270 = vand.u32 %v6692, 4294901760
    %v7271 = vsub.f32 %v6692, %v7270
    %v7272 = vand.u32 %v7271, 4294901760
    %7273 = vmatmul.mubr.f32.gmra.mrb[0].mxu0 %v7272
    %v7274 = vpop.f32.mrb[0].mxu0
    %v7275 = vadd.f32 %v7140, %v7274
    %v7276 = vpop.f32.mrb[0].mxu0
    %7277 = vmatprep.mubr.f32.mxu0 0.0
    %v7278 = vand.u32 %v6694, 4294901760
    %v7279 = vsub.f32 %v6694, %v7278
    %v7280 = vand.u32 %v7279, 4294901760
    %7281 = vmatmul.mubr.f32.gmra.mrb[0].mxu0 %v7280
    %v7282 = vpop.f32.mrb[0].mxu0
    %v7283 = vadd.f32 %v7147, %v7282
    %v7284 = vpop.f32.mrb[0].mxu0
    %7285 = vmatprep.mubr.f32.mxu0 0.0
    %v7286 = vand.u32 %v6696, 4294901760
    %v7287 = vsub.f32 %v6696, %v7286
    %v7288 = vand.u32 %v7287, 4294901760
    %7289 = vmatmul.mubr.f32.gmra.mrb[0].mxu0 %v7288
    %v7290 = vpop.f32.mrb[0].mxu0
    %v7291 = vadd.f32 %v7154, %v7290
    %v7292 = vpop.f32.mrb[0].mxu0
    %7293 = vdwg.mxu0
    %7294 = vmatprep.subr.mxu0 0.0
    %v7295 = vand.u32 %v6698, 4294901760
    %v7296 = vsub.f32 %v6698, %v7295
    %v7297 = vand.u32 %v7296, 4294901760
    %7298 = vmatpush1.xpose.msra.mxu0 %v7297
    %7299 = vmatprep.subr.mxu0 0.0
    %v7300 = vand.u32 %v6700, 4294901760
    %v7301 = vsub.f32 %v6700, %v7300
    %v7302 = vand.u32 %v7301, 4294901760
    %7303 = vmatpush1.xpose.msra.mxu0 %v7302
    %7304 = vmatprep.subr.mxu0 0.0
    %v7305 = vand.u32 %v6702, 4294901760
    %v7306 = vsub.f32 %v6702, %v7305
    %v7307 = vand.u32 %v7306, 4294901760
    %7308 = vmatpush1.xpose.msra.mxu0 %v7307
    %7309 = vmatprep.subr.mxu0 0.0
    %v7310 = vand.u32 %v6704, 4294901760
    %v7311 = vsub.f32 %v6704, %v7310
    %v7312 = vand.u32 %v7311, 4294901760
    %7313 = vmatpush1.xpose.msra.mxu0 %v7312
    %7314 = vmatprep.subr.mxu0 0.0
    %v7315 = vand.u32 %v6706, 4294901760
    %v7316 = vsub.f32 %v6706, %v7315
    %v7317 = vand.u32 %v7316, 4294901760
    %7318 = vmatpush1.xpose.msra.mxu0 %v7317
    %7319 = vmatprep.subr.mxu0 0.0
    %v7320 = vand.u32 %v6708, 4294901760
    %v7321 = vsub.f32 %v6708, %v7320
    %v7322 = vand.u32 %v7321, 4294901760
    %7323 = vmatpush1.xpose.msra.mxu0 %v7322
    %7324 = vmatprep.subr.mxu0 0.0
    %v7325 = vand.u32 %v6710, 4294901760
    %v7326 = vsub.f32 %v6710, %v7325
    %v7327 = vand.u32 %v7326, 4294901760
    %7328 = vmatpush1.xpose.msra.mxu0 %v7327
    %7329 = vmatprep.subr.mxu0 0.0
    %v7330 = vand.u32 %v6712, 4294901760
    %v7331 = vsub.f32 %v6712, %v7330
    %v7332 = vand.u32 %v7331, 4294901760
    %7333 = vmatpush1.xpose.msra.mxu0 %v7332
    %7334 = vmatprep.subr.mxu0 0.0
    %7335 = vmatpush1.xpose.msra.mxu0 0.0
    %7336 = vmatprep.subr.mxu0 0.0
    %7337 = vmatpush1.xpose.msra.mxu0 0.0
    %7338 = vmatprep.subr.mxu0 0.0
    %7339 = vmatpush1.xpose.msra.mxu0 0.0
    %7340 = vmatprep.subr.mxu0 0.0
    %7341 = vmatpush1.xpose.msra.mxu0 0.0
    %7342 = vmatprep.subr.mxu0 0.0
    %7343 = vmatpush1.xpose.msra.mxu0 0.0
    %7344 = vmatprep.subr.mxu0 0.0
    %7345 = vmatpush1.xpose.msra.mxu0 0.0
    %7346 = vmatprep.subr.mxu0 0.0
    %7347 = vmatpush1.xpose.msra.mxu0 0.0
    %7348 = vmatprep.subr.mxu0 0.0
    %7349 = vmatpush1.xpose.msra.mxu0 0.0
    %7350 = vmatprep.subr.mxu0 0.0
    %7351 = vmatpush1.xpose.msra.mxu0 0.0
    %7352 = vmatprep.subr.mxu0 0.0
    %7353 = vmatpush1.xpose.msra.mxu0 0.0
    %7354 = vmatprep.subr.mxu0 0.0
    %7355 = vmatpush1.xpose.msra.mxu0 0.0
    %7356 = vmatprep.subr.mxu0 0.0
    %7357 = vmatpush1.xpose.msra.mxu0 0.0
    %7358 = vmatprep.subr.mxu0 0.0
    %7359 = vmatpush1.xpose.msra.mxu0 0.0
    %7360 = vmatprep.subr.mxu0 0.0
    %7361 = vmatpush1.xpose.msra.mxu0 0.0
    %7362 = vmatprep.subr.mxu0 0.0
    %7363 = vmatpush1.xpose.msra.mxu0 0.0
    %7364 = vmatprep.subr.mxu0 0.0
    %7365 = vmatpush1.xpose.msra.mxu0 0.0
    %7366 = vmatprep.subr.mxu0 0.0
    %7367 = vmatpush1.xpose.msra.mxu0 0.0
    %7368 = vmatprep.subr.mxu0 0.0
    %7369 = vmatpush1.xpose.msra.mxu0 0.0
    %7370 = vmatprep.subr.mxu0 0.0
    %7371 = vmatpush1.xpose.msra.mxu0 0.0
    %7372 = vmatprep.subr.mxu0 0.0
    %7373 = vmatpush1.xpose.msra.mxu0 0.0
    %7374 = vmatprep.subr.mxu0 0.0
    %7375 = vmatpush1.xpose.msra.mxu0 0.0
    %7376 = vmatprep.subr.mxu0 0.0
    %7377 = vmatpush1.xpose.msra.mxu0 0.0
    %7378 = vmatprep.subr.mxu0 0.0
    %7379 = vmatpush1.xpose.msra.mxu0 0.0
    %7380 = vmatprep.subr.mxu0 0.0
    %7381 = vmatpush1.xpose.msra.mxu0 0.0
    %7382 = vmatprep.mubr.f32.mxu0 0.0
    %v7383 = vand.u32 %v6682, 4294901760
    %7384 = vmatmul.mubr.f32.gmra.mrb[0].mxu0 %v7383
    %v7385 = vpop.f32.mrb[0].mxu0
    %v7386 = vadd.f32 %v7235, %v7385
    %v7387 = vpop.f32.mrb[0].mxu0
    %7388 = vmatprep.mubr.f32.mxu0 0.0
    %v7389 = vand.u32 %v6684, 4294901760
    %7390 = vmatmul.mubr.f32.gmra.mrb[0].mxu0 %v7389
    %v7391 = vpop.f32.mrb[0].mxu0
    %v7392 = vadd.f32 %v7243, %v7391
    %v7393 = vpop.f32.mrb[0].mxu0
    %7394 = vmatprep.mubr.f32.mxu0 0.0
    %v7395 = vand.u32 %v6686, 4294901760
    %7396 = vmatmul.mubr.f32.gmra.mrb[0].mxu0 %v7395
    %v7397 = vpop.f32.mrb[0].mxu0
    %v7398 = vadd.f32 %v7251, %v7397
    %v7399 = vpop.f32.mrb[0].mxu0
    %7400 = vmatprep.mubr.f32.mxu0 0.0
    %v7401 = vand.u32 %v6688, 4294901760
    %7402 = vmatmul.mubr.f32.gmra.mrb[0].mxu0 %v7401
    %v7403 = vpop.f32.mrb[0].mxu0
    %v7404 = vadd.f32 %v7259, %v7403
    %v7405 = vpop.f32.mrb[0].mxu0
    %7406 = vmatprep.mubr.f32.mxu0 0.0
    %v7407 = vand.u32 %v6690, 4294901760
    %7408 = vmatmul.mubr.f32.gmra.mrb[0].mxu0 %v7407
    %v7409 = vpop.f32.mrb[0].mxu0
    %v7410 = vadd.f32 %v7267, %v7409
    %v7411 = vpop.f32.mrb[0].mxu0
    %7412 = vmatprep.mubr.f32.mxu0 0.0
    %v7413 = vand.u32 %v6692, 4294901760
    %7414 = vmatmul.mubr.f32.gmra.mrb[0].mxu0 %v7413
    %v7415 = vpop.f32.mrb[0].mxu0
    %v7416 = vadd.f32 %v7275, %v7415
    %v7417 = vpop.f32.mrb[0].mxu0
    %7418 = vmatprep.mubr.f32.mxu0 0.0
    %v7419 = vand.u32 %v6694, 4294901760
    %7420 = vmatmul.mubr.f32.gmra.mrb[0].mxu0 %v7419
    %v7421 = vpop.f32.mrb[0].mxu0
    %v7422 = vadd.f32 %v7283, %v7421
    %v7423 = vpop.f32.mrb[0].mxu0
    %7424 = vmatprep.mubr.f32.mxu0 0.0
    %v7425 = vand.u32 %v6696, 4294901760
    %7426 = vmatmul.mubr.f32.gmra.mrb[0].mxu0 %v7425
    %v7427 = vpop.f32.mrb[0].mxu0
    %v7428 = vadd.f32 %v7291, %v7427
    %v7429 = vpop.f32.mrb[0].mxu0
    %7430 = vdwg.mxu0
    %7431 = vmatprep.subr.mxu0 0.0
    %v7432 = vand.u32 %v6698, 4294901760
    %7433 = vmatpush1.xpose.msra.mxu0 %v7432
    %7434 = vmatprep.subr.mxu0 0.0
    %v7435 = vand.u32 %v6700, 4294901760
    %7436 = vmatpush1.xpose.msra.mxu0 %v7435
    %7437 = vmatprep.subr.mxu0 0.0
    %v7438 = vand.u32 %v6702, 4294901760
    %7439 = vmatpush1.xpose.msra.mxu0 %v7438
    %7440 = vmatprep.subr.mxu0 0.0
    %v7441 = vand.u32 %v6704, 4294901760
    %7442 = vmatpush1.xpose.msra.mxu0 %v7441
    %7443 = vmatprep.subr.mxu0 0.0
    %v7444 = vand.u32 %v6706, 4294901760
    %7445 = vmatpush1.xpose.msra.mxu0 %v7444
    %7446 = vmatprep.subr.mxu0 0.0
    %v7447 = vand.u32 %v6708, 4294901760
    %7448 = vmatpush1.xpose.msra.mxu0 %v7447
    %7449 = vmatprep.subr.mxu0 0.0
    %v7450 = vand.u32 %v6710, 4294901760
    %7451 = vmatpush1.xpose.msra.mxu0 %v7450
    %7452 = vmatprep.subr.mxu0 0.0
    %v7453 = vand.u32 %v6712, 4294901760
    %7454 = vmatpush1.xpose.msra.mxu0 %v7453
    %7455 = vmatprep.subr.mxu0 0.0
    %7456 = vmatpush1.xpose.msra.mxu0 0.0
    %7457 = vmatprep.subr.mxu0 0.0
    %7458 = vmatpush1.xpose.msra.mxu0 0.0
    %7459 = vmatprep.subr.mxu0 0.0
    %7460 = vmatpush1.xpose.msra.mxu0 0.0
    %7461 = vmatprep.subr.mxu0 0.0
    %7462 = vmatpush1.xpose.msra.mxu0 0.0
    %7463 = vmatprep.subr.mxu0 0.0
    %7464 = vmatpush1.xpose.msra.mxu0 0.0
    %7465 = vmatprep.subr.mxu0 0.0
    %7466 = vmatpush1.xpose.msra.mxu0 0.0
    %7467 = vmatprep.subr.mxu0 0.0
    %7468 = vmatpush1.xpose.msra.mxu0 0.0
    %7469 = vmatprep.subr.mxu0 0.0
    %7470 = vmatpush1.xpose.msra.mxu0 0.0
    %7471 = vmatprep.subr.mxu0 0.0
    %7472 = vmatpush1.xpose.msra.mxu0 0.0
    %7473 = vmatprep.subr.mxu0 0.0
    %7474 = vmatpush1.xpose.msra.mxu0 0.0
    %7475 = vmatprep.subr.mxu0 0.0
    %7476 = vmatpush1.xpose.msra.mxu0 0.0
    %7477 = vmatprep.subr.mxu0 0.0
    %7478 = vmatpush1.xpose.msra.mxu0 0.0
    %7479 = vmatprep.subr.mxu0 0.0
    %7480 = vmatpush1.xpose.msra.mxu0 0.0
    %7481 = vmatprep.subr.mxu0 0.0
    %7482 = vmatpush1.xpose.msra.mxu0 0.0
    %7483 = vmatprep.subr.mxu0 0.0
    %7484 = vmatpush1.xpose.msra.mxu0 0.0
    %7485 = vmatprep.subr.mxu0 0.0
    %7486 = vmatpush1.xpose.msra.mxu0 0.0
    %7487 = vmatprep.subr.mxu0 0.0
    %7488 = vmatpush1.xpose.msra.mxu0 0.0
    %7489 = vmatprep.subr.mxu0 0.0
    %7490 = vmatpush1.xpose.msra.mxu0 0.0
    %7491 = vmatprep.subr.mxu0 0.0
    %7492 = vmatpush1.xpose.msra.mxu0 0.0
    %7493 = vmatprep.subr.mxu0 0.0
    %7494 = vmatpush1.xpose.msra.mxu0 0.0
    %7495 = vmatprep.subr.mxu0 0.0
    %7496 = vmatpush1.xpose.msra.mxu0 0.0
    %7497 = vmatprep.subr.mxu0 0.0
    %7498 = vmatpush1.xpose.msra.mxu0 0.0
    %7499 = vmatprep.subr.mxu0 0.0
    %7500 = vmatpush1.xpose.msra.mxu0 0.0
    %7501 = vmatprep.subr.mxu0 0.0
    %7502 = vmatpush1.xpose.msra.mxu0 0.0
    %7503 = vmatprep.mubr.f32.mxu0 0.0
    %v7504 = vand.u32 %v6682, 4294901760
    %7505 = vmatmul.mubr.f32.gmra.mrb[0].mxu0 %v7504
    %v7506 = vpop.f32.mrb[0].mxu0
    %v7507 = vadd.f32 %v7386, %v7506
    %v7508 = vpop.f32.mrb[0].mxu0
    %7509 = vmatprep.mubr.f32.mxu0 0.0
    %v7510 = vand.u32 %v6684, 4294901760
    %7511 = vmatmul.mubr.f32.gmra.mrb[0].mxu0 %v7510
    %v7512 = vpop.f32.mrb[0].mxu0
    %v7513 = vadd.f32 %v7392, %v7512
    %v7514 = vpop.f32.mrb[0].mxu0
    %7515 = vmatprep.mubr.f32.mxu0 0.0
    %v7516 = vand.u32 %v6686, 4294901760
    %7517 = vmatmul.mubr.f32.gmra.mrb[0].mxu0 %v7516
    %v7518 = vpop.f32.mrb[0].mxu0
    %v7519 = vadd.f32 %v7398, %v7518
    %v7520 = vpop.f32.mrb[0].mxu0
    %7521 = vmatprep.mubr.f32.mxu0 0.0
    %v7522 = vand.u32 %v6688, 4294901760
    %7523 = vmatmul.mubr.f32.gmra.mrb[0].mxu0 %v7522
    %v7524 = vpop.f32.mrb[0].mxu0
    %v7525 = vadd.f32 %v7404, %v7524
    %v7526 = vpop.f32.mrb[0].mxu0
    %7527 = vmatprep.mubr.f32.mxu0 0.0
    %v7528 = vand.u32 %v6690, 4294901760
    %7529 = vmatmul.mubr.f32.gmra.mrb[0].mxu0 %v7528
    %v7530 = vpop.f32.mrb[0].mxu0
    %v7531 = vadd.f32 %v7410, %v7530
    %v7532 = vpop.f32.mrb[0].mxu0
    %7533 = vmatprep.mubr.f32.mxu0 0.0
    %v7534 = vand.u32 %v6692, 4294901760
    %7535 = vmatmul.mubr.f32.gmra.mrb[0].mxu0 %v7534
    %v7536 = vpop.f32.mrb[0].mxu0
    %v7537 = vadd.f32 %v7416, %v7536
    %v7538 = vpop.f32.mrb[0].mxu0
    %7539 = vmatprep.mubr.f32.mxu0 0.0
    %v7540 = vand.u32 %v6694, 4294901760
    %7541 = vmatmul.mubr.f32.gmra.mrb[0].mxu0 %v7540
    %v7542 = vpop.f32.mrb[0].mxu0
    %v7543 = vadd.f32 %v7422, %v7542
    %v7544 = vpop.f32.mrb[0].mxu0
    %7545 = vmatprep.mubr.f32.mxu0 0.0
    %v7546 = vand.u32 %v6696, 4294901760
    %7547 = vmatmul.mubr.f32.gmra.mrb[0].mxu0 %v7546
    %v7548 = vpop.f32.mrb[0].mxu0
    %v7549 = vadd.f32 %v7428, %v7548
    %v7550 = vpop.f32.mrb[0].mxu0
    %7551 = vdwg.mxu0
    %v7552 = vmul.f32 %v7507, 0.35355338
    %v7553 = vmul.f32 %v7513, 0.35355338
    %v7554 = vmul.f32 %v7519, 0.35355338
    %v7555 = vmul.f32 %v7525, 0.35355338
    %v7556 = vmul.f32 %v7531, 0.35355338
    %v7557 = vmul.f32 %v7537, 0.35355338
    %v7558 = vmul.f32 %v7543, 0.35355338
    %v7559 = vmul.f32 %v7549, 0.35355338
    %v7560 = vadd.f32 %v7552, %v988
    %v7561 = vadd.f32 %v7553, %v989
    %v7562 = vadd.f32 %v7554, %v990
    %v7563 = vadd.f32 %v7555, %v991
    %v7564 = vadd.f32 %v7556, %v992
    %v7565 = vadd.f32 %v7557, %v993
    %v7566 = vadd.f32 %v7558, %v994
    %v7567 = vadd.f32 %v7559, %v995
    %v7568 = vsel %vm1907, %v7560, -inf
    %7569 = vmax.xlane.f32.xlu0 %v7568
    %v7570 = vpop.xlane.xlu0 %7569
    %v7571 = vsel %vm1907, %v7561, -inf
    %7572 = vmax.xlane.f32.xlu0 %v7571
    %v7573 = vpop.xlane.xlu0 %7572
    %v7574 = vsel %vm1907, %v7562, -inf
    %7575 = vmax.xlane.f32.xlu0 %v7574
    %v7576 = vpop.xlane.xlu0 %7575
    %v7577 = vsel %vm1907, %v7563, -inf
    %7578 = vmax.xlane.f32.xlu0 %v7577
    %v7579 = vpop.xlane.xlu0 %7578
    %v7580 = vsel %vm1907, %v7564, -inf
    %7581 = vmax.xlane.f32.xlu0 %v7580
    %v7582 = vpop.xlane.xlu0 %7581
    %v7583 = vsel %vm1907, %v7565, -inf
    %7584 = vmax.xlane.f32.xlu0 %v7583
    %v7585 = vpop.xlane.xlu0 %7584
    %v7586 = vsel %vm1907, %v7566, -inf
    %7587 = vmax.xlane.f32.xlu0 %v7586
    %v7588 = vpop.xlane.xlu0 %7587
    %v7589 = vsel %vm1907, %v7567, -inf
    %7590 = vmax.xlane.f32.xlu0 %v7589
    %v7591 = vpop.xlane.xlu0 %7590
    %v7592 = vsub.f32 %v7560, %v7570
    %v7593 = vsub.f32 %v7561, %v7573
    %v7594 = vsub.f32 %v7562, %v7576
    %v7595 = vsub.f32 %v7563, %v7579
    %v7596 = vsub.f32 %v7564, %v7582
    %v7597 = vsub.f32 %v7565, %v7585
    %v7598 = vsub.f32 %v7566, %v7588
    %v7599 = vsub.f32 %v7567, %v7591
    %v7600 = vmul.f32 %v7592, 1.442695
    %v7601 = vpow.pop %v7600
    %v7602 = vmul.f32 %v7593, 1.442695
    %v7603 = vpow.pop %v7602
    %v7604 = vmul.f32 %v7594, 1.442695
    %v7605 = vpow.pop %v7604
    %v7606 = vmul.f32 %v7595, 1.442695
    %v7607 = vpow.pop %v7606
    %v7608 = vmul.f32 %v7596, 1.442695
    %v7609 = vpow.pop %v7608
    %v7610 = vmul.f32 %v7597, 1.442695
    %v7611 = vpow.pop %v7610
    %v7612 = vmul.f32 %v7598, 1.442695
    %v7613 = vpow.pop %v7612
    %v7614 = vmul.f32 %v7599, 1.442695
    %v7615 = vpow.pop %v7614
    %v7616 = vsel %vm1907, %v7601, 0.0
    %7617 = vadd.xlane.f32.xlu0 %v7616
    %v7618 = vpop.xlane.xlu0 %7617
    %v7619 = vsel %vm1907, %v7603, 0.0
    %7620 = vadd.xlane.f32.xlu0 %v7619
    %v7621 = vpop.xlane.xlu0 %7620
    %v7622 = vsel %vm1907, %v7605, 0.0
    %7623 = vadd.xlane.f32.xlu0 %v7622
    %v7624 = vpop.xlane.xlu0 %7623
    %v7625 = vsel %vm1907, %v7607, 0.0
    %7626 = vadd.xlane.f32.xlu0 %v7625
    %v7627 = vpop.xlane.xlu0 %7626
    %v7628 = vsel %vm1907, %v7609, 0.0
    %7629 = vadd.xlane.f32.xlu0 %v7628
    %v7630 = vpop.xlane.xlu0 %7629
    %v7631 = vsel %vm1907, %v7611, 0.0
    %7632 = vadd.xlane.f32.xlu0 %v7631
    %v7633 = vpop.xlane.xlu0 %7632
    %v7634 = vsel %vm1907, %v7613, 0.0
    %7635 = vadd.xlane.f32.xlu0 %v7634
    %v7636 = vpop.xlane.xlu0 %7635
    %v7637 = vsel %vm1907, %v7615, 0.0
    %7638 = vadd.xlane.f32.xlu0 %v7637
    %v7639 = vpop.xlane.xlu0 %7638
    %v7640 = vrcp.pop %v7618
    %v7641 = vrcp.pop %v7621
    %v7642 = vrcp.pop %v7624
    %v7643 = vrcp.pop %v7627
    %v7644 = vrcp.pop %v7630
    %v7645 = vrcp.pop %v7633
    %v7646 = vrcp.pop %v7636
    %v7647 = vrcp.pop %v7639
    %v7648 = vmul.f32 %v7601, %v7640
    %v7649 = vmul.f32 %v7603, %v7641
    %v7650 = vmul.f32 %v7605, %v7642
    %v7651 = vmul.f32 %v7607, %v7643
    %v7652 = vmul.f32 %v7609, %v7644
    %v7653 = vmul.f32 %v7611, %v7645
    %v7654 = vmul.f32 %v7613, %v7646
    %v7655 = vmul.f32 %v7615, %v7647
    %7656 = vrot.lane.b32.xlu0 %v937, 80
    %v7657 = vpop.permute.xlu0 %7656
    %7658 = vrot.lane.b32.xlu0 %v944, 80
    %v7659 = vpop.permute.xlu0 %7658
    %7660 = vrot.lane.b32.xlu0 %v951, 80
    %v7661 = vpop.permute.xlu0 %7660
    %7662 = vrot.lane.b32.xlu0 %v958, 80
    %v7663 = vpop.permute.xlu0 %7662
    %7664 = vrot.lane.b32.xlu0 %v965, 80
    %v7665 = vpop.permute.xlu0 %7664
    %7666 = vrot.lane.b32.xlu0 %v972, 80
    %v7667 = vpop.permute.xlu0 %7666
    %7668 = vrot.lane.b32.xlu0 %v979, 80
    %v7669 = vpop.permute.xlu0 %7668
    %7670 = vrot.lane.b32.xlu0 %v986, 80
    %v7671 = vpop.permute.xlu0 %7670
    %v7681 = vsel %vm1907, %v7648, 0
    %v7684 = vsel %vm1907, %v7649, 0
    %v7687 = vsel %vm1907, %v7650, 0
    %v7690 = vsel %vm1907, %v7651, 0
    %v7693 = vsel %vm1907, %v7652, 0
    %v7696 = vsel %vm1907, %v7653, 0
    %v7699 = vsel %vm1907, %v7654, 0
    %v7702 = vsel %vm1907, %v7655, 0
    %7704 = vmatprep.subr.mxu0 0.0
    %v7705 = vand.u32 %v7657, 4294901760
    %7706 = vmatpush1.msra.mxu0 %v7705
    %7707 = vmatprep.subr.mxu0 0.0
    %v7708 = vand.u32 %v7659, 4294901760
    %7709 = vmatpush1.msra.mxu0 %v7708
    %7710 = vmatprep.subr.mxu0 0.0
    %v7711 = vand.u32 %v7661, 4294901760
    %7712 = vmatpush1.msra.mxu0 %v7711
    %7713 = vmatprep.subr.mxu0 0.0
    %v7714 = vand.u32 %v7663, 4294901760
    %7715 = vmatpush1.msra.mxu0 %v7714
    %7716 = vmatprep.subr.mxu0 0.0
    %v7717 = vand.u32 %v7665, 4294901760
    %7718 = vmatpush1.msra.mxu0 %v7717
    %7719 = vmatprep.subr.mxu0 0.0
    %v7720 = vand.u32 %v7667, 4294901760
    %7721 = vmatpush1.msra.mxu0 %v7720
    %7722 = vmatprep.subr.mxu0 0.0
    %v7723 = vand.u32 %v7669, 4294901760
    %7724 = vmatpush1.msra.mxu0 %v7723
    %7725 = vmatprep.subr.mxu0 0.0
    %v7726 = vand.u32 %v7671, 4294901760
    %7727 = vmatpush1.msra.mxu0 %v7726
    %7728 = vmatprep.subr.mxu0 0.0
    %7729 = vmatpush1.msra.mxu0 0.0
    %7730 = vmatprep.subr.mxu0 0.0
    %7731 = vmatpush1.msra.mxu0 0.0
    %7732 = vmatprep.subr.mxu0 0.0
    %7733 = vmatpush1.msra.mxu0 0.0
    %7734 = vmatprep.subr.mxu0 0.0
    %7735 = vmatpush1.msra.mxu0 0.0
    %7736 = vmatprep.subr.mxu0 0.0
    %7737 = vmatpush1.msra.mxu0 0.0
    %7738 = vmatprep.subr.mxu0 0.0
    %7739 = vmatpush1.msra.mxu0 0.0
    %7740 = vmatprep.subr.mxu0 0.0
    %7741 = vmatpush1.msra.mxu0 0.0
    %7742 = vmatprep.subr.mxu0 0.0
    %7743 = vmatpush1.msra.mxu0 0.0
    %7744 = vmatprep.subr.mxu0 0.0
    %7745 = vmatpush1.msra.mxu0 0.0
    %7746 = vmatprep.subr.mxu0 0.0
    %7747 = vmatpush1.msra.mxu0 0.0
    %7748 = vmatprep.subr.mxu0 0.0
    %7749 = vmatpush1.msra.mxu0 0.0
    %7750 = vmatprep.subr.mxu0 0.0
    %7751 = vmatpush1.msra.mxu0 0.0
    %7752 = vmatprep.subr.mxu0 0.0
    %7753 = vmatpush1.msra.mxu0 0.0
    %7754 = vmatprep.subr.mxu0 0.0
    %7755 = vmatpush1.msra.mxu0 0.0
    %7756 = vmatprep.subr.mxu0 0.0
    %7757 = vmatpush1.msra.mxu0 0.0
    %7758 = vmatprep.subr.mxu0 0.0
    %7759 = vmatpush1.msra.mxu0 0.0
    %7760 = vmatprep.subr.mxu0 0.0
    %7761 = vmatpush1.msra.mxu0 0.0
    %7762 = vmatprep.subr.mxu0 0.0
    %7763 = vmatpush1.msra.mxu0 0.0
    %7764 = vmatprep.subr.mxu0 0.0
    %7765 = vmatpush1.msra.mxu0 0.0
    %7766 = vmatprep.subr.mxu0 0.0
    %7767 = vmatpush1.msra.mxu0 0.0
    %7768 = vmatprep.subr.mxu0 0.0
    %7769 = vmatpush1.msra.mxu0 0.0
    %7770 = vmatprep.subr.mxu0 0.0
    %7771 = vmatpush1.msra.mxu0 0.0
    %7772 = vmatprep.subr.mxu0 0.0
    %7773 = vmatpush1.msra.mxu0 0.0
    %7774 = vmatprep.subr.mxu0 0.0
    %7775 = vmatpush1.msra.mxu0 0.0
    %7776 = vmatprep.mubr.f32.mxu0 0.0
    %v7777 = vand.u32 %v7681, 4294901760
    %v7778 = vsub.f32 %v7681, %v7777
    %v7779 = vand.u32 %v7778, 4294901760
    %v7780 = vsub.f32 %v7778, %v7779
    %v7781 = vand.u32 %v7780, 4294901760
    %7782 = vmatmul.mubr.f32.gmra.mrb[0].mxu0 %v7781
    %v7783 = vpop.f32.mrb[0].mxu0
    %v7784 = vadd.f32 0.0, %v7783
    %v7785 = vpop.f32.mrb[0].mxu0
    %7786 = vmatprep.mubr.f32.mxu0 0.0
    %v7787 = vand.u32 %v7684, 4294901760
    %v7788 = vsub.f32 %v7684, %v7787
    %v7789 = vand.u32 %v7788, 4294901760
    %v7790 = vsub.f32 %v7788, %v7789
    %v7791 = vand.u32 %v7790, 4294901760
    %7792 = vmatmul.mubr.f32.gmra.mrb[0].mxu0 %v7791
    %v7793 = vpop.f32.mrb[0].mxu0
    %v7794 = vadd.f32 0.0, %v7793
    %v7795 = vpop.f32.mrb[0].mxu0
    %7796 = vmatprep.mubr.f32.mxu0 0.0
    %v7797 = vand.u32 %v7687, 4294901760
    %v7798 = vsub.f32 %v7687, %v7797
    %v7799 = vand.u32 %v7798, 4294901760
    %v7800 = vsub.f32 %v7798, %v7799
    %v7801 = vand.u32 %v7800, 4294901760
    %7802 = vmatmul.mubr.f32.gmra.mrb[0].mxu0 %v7801
    %v7803 = vpop.f32.mrb[0].mxu0
    %v7804 = vadd.f32 0.0, %v7803
    %v7805 = vpop.f32.mrb[0].mxu0
    %7806 = vmatprep.mubr.f32.mxu0 0.0
    %v7807 = vand.u32 %v7690, 4294901760
    %v7808 = vsub.f32 %v7690, %v7807
    %v7809 = vand.u32 %v7808, 4294901760
    %v7810 = vsub.f32 %v7808, %v7809
    %v7811 = vand.u32 %v7810, 4294901760
    %7812 = vmatmul.mubr.f32.gmra.mrb[0].mxu0 %v7811
    %v7813 = vpop.f32.mrb[0].mxu0
    %v7814 = vadd.f32 0.0, %v7813
    %v7815 = vpop.f32.mrb[0].mxu0
    %7816 = vmatprep.mubr.f32.mxu0 0.0
    %v7817 = vand.u32 %v7693, 4294901760
    %v7818 = vsub.f32 %v7693, %v7817
    %v7819 = vand.u32 %v7818, 4294901760
    %v7820 = vsub.f32 %v7818, %v7819
    %v7821 = vand.u32 %v7820, 4294901760
    %7822 = vmatmul.mubr.f32.gmra.mrb[0].mxu0 %v7821
    %v7823 = vpop.f32.mrb[0].mxu0
    %v7824 = vadd.f32 0.0, %v7823
    %v7825 = vpop.f32.mrb[0].mxu0
    %7826 = vmatprep.mubr.f32.mxu0 0.0
    %v7827 = vand.u32 %v7696, 4294901760
    %v7828 = vsub.f32 %v7696, %v7827
    %v7829 = vand.u32 %v7828, 4294901760
    %v7830 = vsub.f32 %v7828, %v7829
    %v7831 = vand.u32 %v7830, 4294901760
    %7832 = vmatmul.mubr.f32.gmra.mrb[0].mxu0 %v7831
    %v7833 = vpop.f32.mrb[0].mxu0
    %v7834 = vadd.f32 0.0, %v7833
    %v7835 = vpop.f32.mrb[0].mxu0
    %7836 = vmatprep.mubr.f32.mxu0 0.0
    %v7837 = vand.u32 %v7699, 4294901760
    %v7838 = vsub.f32 %v7699, %v7837
    %v7839 = vand.u32 %v7838, 4294901760
    %v7840 = vsub.f32 %v7838, %v7839
    %v7841 = vand.u32 %v7840, 4294901760
    %7842 = vmatmul.mubr.f32.gmra.mrb[0].mxu0 %v7841
    %v7843 = vpop.f32.mrb[0].mxu0
    %v7844 = vadd.f32 0.0, %v7843
    %v7845 = vpop.f32.mrb[0].mxu0
    %7846 = vmatprep.mubr.f32.mxu0 0.0
    %v7847 = vand.u32 %v7702, 4294901760
    %v7848 = vsub.f32 %v7702, %v7847
    %v7849 = vand.u32 %v7848, 4294901760
    %v7850 = vsub.f32 %v7848, %v7849
    %v7851 = vand.u32 %v7850, 4294901760
    %7852 = vmatmul.mubr.f32.gmra.mrb[0].mxu0 %v7851
    %v7853 = vpop.f32.mrb[0].mxu0
    %v7854 = vadd.f32 0.0, %v7853
    %v7855 = vpop.f32.mrb[0].mxu0
    %7856 = vdwg.mxu0
    %7857 = vmatprep.subr.mxu0 0.0
    %v7858 = vand.u32 %v7657, 4294901760
    %v7859 = vsub.f32 %v7657, %v7858
    %v7860 = vand.u32 %v7859, 4294901760
    %v7861 = vsub.f32 %v7859, %v7860
    %v7862 = vand.u32 %v7861, 4294901760
    %7863 = vmatpush1.msra.mxu0 %v7862
    %7864 = vmatprep.subr.mxu0 0.0
    %v7865 = vand.u32 %v7659, 4294901760
    %v7866 = vsub.f32 %v7659, %v7865
    %v7867 = vand.u32 %v7866, 4294901760
    %v7868 = vsub.f32 %v7866, %v7867
    %v7869 = vand.u32 %v7868, 4294901760
    %7870 = vmatpush1.msra.mxu0 %v7869
    %7871 = vmatprep.subr.mxu0 0.0
    %v7872 = vand.u32 %v7661, 4294901760
    %v7873 = vsub.f32 %v7661, %v7872
    %v7874 = vand.u32 %v7873, 4294901760
    %v7875 = vsub.f32 %v7873, %v7874
    %v7876 = vand.u32 %v7875, 4294901760
    %7877 = vmatpush1.msra.mxu0 %v7876
    %7878 = vmatprep.subr.mxu0 0.0
    %v7879 = vand.u32 %v7663, 4294901760
    %v7880 = vsub.f32 %v7663, %v7879
    %v7881 = vand.u32 %v7880, 4294901760
    %v7882 = vsub.f32 %v7880, %v7881
    %v7883 = vand.u32 %v7882, 4294901760
    %7884 = vmatpush1.msra.mxu0 %v7883
    %7885 = vmatprep.subr.mxu0 0.0
    %v7886 = vand.u32 %v7665, 4294901760
    %v7887 = vsub.f32 %v7665, %v7886
    %v7888 = vand.u32 %v7887, 4294901760
    %v7889 = vsub.f32 %v7887, %v7888
    %v7890 = vand.u32 %v7889, 4294901760
    %7891 = vmatpush1.msra.mxu0 %v7890
    %7892 = vmatprep.subr.mxu0 0.0
    %v7893 = vand.u32 %v7667, 4294901760
    %v7894 = vsub.f32 %v7667, %v7893
    %v7895 = vand.u32 %v7894, 4294901760
    %v7896 = vsub.f32 %v7894, %v7895
    %v7897 = vand.u32 %v7896, 4294901760
    %7898 = vmatpush1.msra.mxu0 %v7897
    %7899 = vmatprep.subr.mxu0 0.0
    %v7900 = vand.u32 %v7669, 4294901760
    %v7901 = vsub.f32 %v7669, %v7900
    %v7902 = vand.u32 %v7901, 4294901760
    %v7903 = vsub.f32 %v7901, %v7902
    %v7904 = vand.u32 %v7903, 4294901760
    %7905 = vmatpush1.msra.mxu0 %v7904
    %7906 = vmatprep.subr.mxu0 0.0
    %v7907 = vand.u32 %v7671, 4294901760
    %v7908 = vsub.f32 %v7671, %v7907
    %v7909 = vand.u32 %v7908, 4294901760
    %v7910 = vsub.f32 %v7908, %v7909
    %v7911 = vand.u32 %v7910, 4294901760
    %7912 = vmatpush1.msra.mxu0 %v7911
    %7913 = vmatprep.subr.mxu0 0.0
    %7914 = vmatpush1.msra.mxu0 0.0
    %7915 = vmatprep.subr.mxu0 0.0
    %7916 = vmatpush1.msra.mxu0 0.0
    %7917 = vmatprep.subr.mxu0 0.0
    %7918 = vmatpush1.msra.mxu0 0.0
    %7919 = vmatprep.subr.mxu0 0.0
    %7920 = vmatpush1.msra.mxu0 0.0
    %7921 = vmatprep.subr.mxu0 0.0
    %7922 = vmatpush1.msra.mxu0 0.0
    %7923 = vmatprep.subr.mxu0 0.0
    %7924 = vmatpush1.msra.mxu0 0.0
    %7925 = vmatprep.subr.mxu0 0.0
    %7926 = vmatpush1.msra.mxu0 0.0
    %7927 = vmatprep.subr.mxu0 0.0
    %7928 = vmatpush1.msra.mxu0 0.0
    %7929 = vmatprep.subr.mxu0 0.0
    %7930 = vmatpush1.msra.mxu0 0.0
    %7931 = vmatprep.subr.mxu0 0.0
    %7932 = vmatpush1.msra.mxu0 0.0
    %7933 = vmatprep.subr.mxu0 0.0
    %7934 = vmatpush1.msra.mxu0 0.0
    %7935 = vmatprep.subr.mxu0 0.0
    %7936 = vmatpush1.msra.mxu0 0.0
    %7937 = vmatprep.subr.mxu0 0.0
    %7938 = vmatpush1.msra.mxu0 0.0
    %7939 = vmatprep.subr.mxu0 0.0
    %7940 = vmatpush1.msra.mxu0 0.0
    %7941 = vmatprep.subr.mxu0 0.0
    %7942 = vmatpush1.msra.mxu0 0.0
    %7943 = vmatprep.subr.mxu0 0.0
    %7944 = vmatpush1.msra.mxu0 0.0
    %7945 = vmatprep.subr.mxu0 0.0
    %7946 = vmatpush1.msra.mxu0 0.0
    %7947 = vmatprep.subr.mxu0 0.0
    %7948 = vmatpush1.msra.mxu0 0.0
    %7949 = vmatprep.subr.mxu0 0.0
    %7950 = vmatpush1.msra.mxu0 0.0
    %7951 = vmatprep.subr.mxu0 0.0
    %7952 = vmatpush1.msra.mxu0 0.0
    %7953 = vmatprep.subr.mxu0 0.0
    %7954 = vmatpush1.msra.mxu0 0.0
    %7955 = vmatprep.subr.mxu0 0.0
    %7956 = vmatpush1.msra.mxu0 0.0
    %7957 = vmatprep.subr.mxu0 0.0
    %7958 = vmatpush1.msra.mxu0 0.0
    %7959 = vmatprep.subr.mxu0 0.0
    %7960 = vmatpush1.msra.mxu0 0.0
    %7961 = vmatprep.mubr.f32.mxu0 0.0
    %v7962 = vand.u32 %v7681, 4294901760
    %7963 = vmatmul.mubr.f32.gmra.mrb[0].mxu0 %v7962
    %v7964 = vpop.f32.mrb[0].mxu0
    %v7965 = vadd.f32 %v7784, %v7964
    %v7966 = vpop.f32.mrb[0].mxu0
    %7967 = vmatprep.mubr.f32.mxu0 0.0
    %v7968 = vand.u32 %v7684, 4294901760
    %7969 = vmatmul.mubr.f32.gmra.mrb[0].mxu0 %v7968
    %v7970 = vpop.f32.mrb[0].mxu0
    %v7971 = vadd.f32 %v7794, %v7970
    %v7972 = vpop.f32.mrb[0].mxu0
    %7973 = vmatprep.mubr.f32.mxu0 0.0
    %v7974 = vand.u32 %v7687, 4294901760
    %7975 = vmatmul.mubr.f32.gmra.mrb[0].mxu0 %v7974
    %v7976 = vpop.f32.mrb[0].mxu0
    %v7977 = vadd.f32 %v7804, %v7976
    %v7978 = vpop.f32.mrb[0].mxu0
    %7979 = vmatprep.mubr.f32.mxu0 0.0
    %v7980 = vand.u32 %v7690, 4294901760
    %7981 = vmatmul.mubr.f32.gmra.mrb[0].mxu0 %v7980
    %v7982 = vpop.f32.mrb[0].mxu0
    %v7983 = vadd.f32 %v7814, %v7982
    %v7984 = vpop.f32.mrb[0].mxu0
    %7985 = vmatprep.mubr.f32.mxu0 0.0
    %v7986 = vand.u32 %v7693, 4294901760
    %7987 = vmatmul.mubr.f32.gmra.mrb[0].mxu0 %v7986
    %v7988 = vpop.f32.mrb[0].mxu0
    %v7989 = vadd.f32 %v7824, %v7988
    %v7990 = vpop.f32.mrb[0].mxu0
    %7991 = vmatprep.mubr.f32.mxu0 0.0
    %v7992 = vand.u32 %v7696, 4294901760
    %7993 = vmatmul.mubr.f32.gmra.mrb[0].mxu0 %v7992
    %v7994 = vpop.f32.mrb[0].mxu0
    %v7995 = vadd.f32 %v7834, %v7994
    %v7996 = vpop.f32.mrb[0].mxu0
    %7997 = vmatprep.mubr.f32.mxu0 0.0
    %v7998 = vand.u32 %v7699, 4294901760
    %7999 = vmatmul.mubr.f32.gmra.mrb[0].mxu0 %v7998
    %v8000 = vpop.f32.mrb[0].mxu0
    %v8001 = vadd.f32 %v7844, %v8000
    %v8002 = vpop.f32.mrb[0].mxu0
    %8003 = vmatprep.mubr.f32.mxu0 0.0
    %v8004 = vand.u32 %v7702, 4294901760
    %8005 = vmatmul.mubr.f32.gmra.mrb[0].mxu0 %v8004
    %v8006 = vpop.f32.mrb[0].mxu0
    %v8007 = vadd.f32 %v7854, %v8006
    %v8008 = vpop.f32.mrb[0].mxu0
    %8009 = vdwg.mxu0
    %8010 = vmatprep.subr.mxu0 0.0
    %v8011 = vand.u32 %v7657, 4294901760
    %v8012 = vsub.f32 %v7657, %v8011
    %8013 = vmatpush1.msra.mxu0 %v8012
    %8014 = vmatprep.subr.mxu0 0.0
    %v8015 = vand.u32 %v7659, 4294901760
    %v8016 = vsub.f32 %v7659, %v8015
    %8017 = vmatpush1.msra.mxu0 %v8016
    %8018 = vmatprep.subr.mxu0 0.0
    %v8019 = vand.u32 %v7661, 4294901760
    %v8020 = vsub.f32 %v7661, %v8019
    %8021 = vmatpush1.msra.mxu0 %v8020
    %8022 = vmatprep.subr.mxu0 0.0
    %v8023 = vand.u32 %v7663, 4294901760
    %v8024 = vsub.f32 %v7663, %v8023
    %8025 = vmatpush1.msra.mxu0 %v8024
    %8026 = vmatprep.subr.mxu0 0.0
    %v8027 = vand.u32 %v7665, 4294901760
    %v8028 = vsub.f32 %v7665, %v8027
    %8029 = vmatpush1.msra.mxu0 %v8028
    %8030 = vmatprep.subr.mxu0 0.0
    %v8031 = vand.u32 %v7667, 4294901760
    %v8032 = vsub.f32 %v7667, %v8031
    %8033 = vmatpush1.msra.mxu0 %v8032
    %8034 = vmatprep.subr.mxu0 0.0
    %v8035 = vand.u32 %v7669, 4294901760
    %v8036 = vsub.f32 %v7669, %v8035
    %8037 = vmatpush1.msra.mxu0 %v8036
    %8038 = vmatprep.subr.mxu0 0.0
    %v8039 = vand.u32 %v7671, 4294901760
    %v8040 = vsub.f32 %v7671, %v8039
    %8041 = vmatpush1.msra.mxu0 %v8040
    %8042 = vmatprep.subr.mxu0 0.0
    %8043 = vmatpush1.msra.mxu0 0.0
    %8044 = vmatprep.subr.mxu0 0.0
    %8045 = vmatpush1.msra.mxu0 0.0
    %8046 = vmatprep.subr.mxu0 0.0
    %8047 = vmatpush1.msra.mxu0 0.0
    %8048 = vmatprep.subr.mxu0 0.0
    %8049 = vmatpush1.msra.mxu0 0.0
    %8050 = vmatprep.subr.mxu0 0.0
    %8051 = vmatpush1.msra.mxu0 0.0
    %8052 = vmatprep.subr.mxu0 0.0
    %8053 = vmatpush1.msra.mxu0 0.0
    %8054 = vmatprep.subr.mxu0 0.0
    %8055 = vmatpush1.msra.mxu0 0.0
    %8056 = vmatprep.subr.mxu0 0.0
    %8057 = vmatpush1.msra.mxu0 0.0
    %8058 = vmatprep.subr.mxu0 0.0
    %8059 = vmatpush1.msra.mxu0 0.0
    %8060 = vmatprep.subr.mxu0 0.0
    %8061 = vmatpush1.msra.mxu0 0.0
    %8062 = vmatprep.subr.mxu0 0.0
    %8063 = vmatpush1.msra.mxu0 0.0
    %8064 = vmatprep.subr.mxu0 0.0
    %8065 = vmatpush1.msra.mxu0 0.0
    %8066 = vmatprep.subr.mxu0 0.0
    %8067 = vmatpush1.msra.mxu0 0.0
    %8068 = vmatprep.subr.mxu0 0.0
    %8069 = vmatpush1.msra.mxu0 0.0
    %8070 = vmatprep.subr.mxu0 0.0
    %8071 = vmatpush1.msra.mxu0 0.0
    %8072 = vmatprep.subr.mxu0 0.0
    %8073 = vmatpush1.msra.mxu0 0.0
    %8074 = vmatprep.subr.mxu0 0.0
    %8075 = vmatpush1.msra.mxu0 0.0
    %8076 = vmatprep.subr.mxu0 0.0
    %8077 = vmatpush1.msra.mxu0 0.0
    %8078 = vmatprep.subr.mxu0 0.0
    %8079 = vmatpush1.msra.mxu0 0.0
    %8080 = vmatprep.subr.mxu0 0.0
    %8081 = vmatpush1.msra.mxu0 0.0
    %8082 = vmatprep.subr.mxu0 0.0
    %8083 = vmatpush1.msra.mxu0 0.0
    %8084 = vmatprep.subr.mxu0 0.0
    %8085 = vmatpush1.msra.mxu0 0.0
    %8086 = vmatprep.subr.mxu0 0.0
    %8087 = vmatpush1.msra.mxu0 0.0
    %8088 = vmatprep.subr.mxu0 0.0
    %8089 = vmatpush1.msra.mxu0 0.0
    %8090 = vmatprep.mubr.f32.mxu0 0.0
    %v8091 = vand.u32 %v7681, 4294901760
    %v8092 = vsub.f32 %v7681, %v8091
    %8093 = vmatmul.mubr.f32.gmra.mrb[0].mxu0 %v8092
    %v8094 = vpop.f32.mrb[0].mxu0
    %v8095 = vadd.f32 %v7965, %v8094
    %v8096 = vpop.f32.mrb[0].mxu0
    %8097 = vmatprep.mubr.f32.mxu0 0.0
    %v8098 = vand.u32 %v7684, 4294901760
    %v8099 = vsub.f32 %v7684, %v8098
    %8100 = vmatmul.mubr.f32.gmra.mrb[0].mxu0 %v8099
    %v8101 = vpop.f32.mrb[0].mxu0
    %v8102 = vadd.f32 %v7971, %v8101
    %v8103 = vpop.f32.mrb[0].mxu0
    %8104 = vmatprep.mubr.f32.mxu0 0.0
    %v8105 = vand.u32 %v7687, 4294901760
    %v8106 = vsub.f32 %v7687, %v8105
    %8107 = vmatmul.mubr.f32.gmra.mrb[0].mxu0 %v8106
    %v8108 = vpop.f32.mrb[0].mxu0
    %v8109 = vadd.f32 %v7977, %v8108
    %v8110 = vpop.f32.mrb[0].mxu0
    %8111 = vmatprep.mubr.f32.mxu0 0.0
    %v8112 = vand.u32 %v7690, 4294901760
    %v8113 = vsub.f32 %v7690, %v8112
    %8114 = vmatmul.mubr.f32.gmra.mrb[0].mxu0 %v8113
    %v8115 = vpop.f32.mrb[0].mxu0
    %v8116 = vadd.f32 %v7983, %v8115
    %v8117 = vpop.f32.mrb[0].mxu0
    %8118 = vmatprep.mubr.f32.mxu0 0.0
    %v8119 = vand.u32 %v7693, 4294901760
    %v8120 = vsub.f32 %v7693, %v8119
    %8121 = vmatmul.mubr.f32.gmra.mrb[0].mxu0 %v8120
    %v8122 = vpop.f32.mrb[0].mxu0
    %v8123 = vadd.f32 %v7989, %v8122
    %v8124 = vpop.f32.mrb[0].mxu0
    %8125 = vmatprep.mubr.f32.mxu0 0.0
    %v8126 = vand.u32 %v7696, 4294901760
    %v8127 = vsub.f32 %v7696, %v8126
    %8128 = vmatmul.mubr.f32.gmra.mrb[0].mxu0 %v8127
    %v8129 = vpop.f32.mrb[0].mxu0
    %v8130 = vadd.f32 %v7995, %v8129
    %v8131 = vpop.f32.mrb[0].mxu0
    %8132 = vmatprep.mubr.f32.mxu0 0.0
    %v8133 = vand.u32 %v7699, 4294901760
    %v8134 = vsub.f32 %v7699, %v8133
    %8135 = vmatmul.mubr.f32.gmra.mrb[0].mxu0 %v8134
    %v8136 = vpop.f32.mrb[0].mxu0
    %v8137 = vadd.f32 %v8001, %v8136
    %v8138 = vpop.f32.mrb[0].mxu0
    %8139 = vmatprep.mubr.f32.mxu0 0.0
    %v8140 = vand.u32 %v7702, 4294901760
    %v8141 = vsub.f32 %v7702, %v8140
    %8142 = vmatmul.mubr.f32.gmra.mrb[0].mxu0 %v8141
    %v8143 = vpop.f32.mrb[0].mxu0
    %v8144 = vadd.f32 %v8007, %v8143
    %v8145 = vpop.f32.mrb[0].mxu0
    %8146 = vdwg.mxu0
    %8147 = vmatprep.subr.mxu0 0.0
    %v8148 = vand.u32 %v7657, 4294901760
    %8149 = vmatpush1.msra.mxu0 %v8148
    %8150 = vmatprep.subr.mxu0 0.0
    %v8151 = vand.u32 %v7659, 4294901760
    %8152 = vmatpush1.msra.mxu0 %v8151
    %8153 = vmatprep.subr.mxu0 0.0
    %v8154 = vand.u32 %v7661, 4294901760
    %8155 = vmatpush1.msra.mxu0 %v8154
    %8156 = vmatprep.subr.mxu0 0.0
    %v8157 = vand.u32 %v7663, 4294901760
    %8158 = vmatpush1.msra.mxu0 %v8157
    %8159 = vmatprep.subr.mxu0 0.0
    %v8160 = vand.u32 %v7665, 4294901760
    %8161 = vmatpush1.msra.mxu0 %v8160
    %8162 = vmatprep.subr.mxu0 0.0
    %v8163 = vand.u32 %v7667, 4294901760
    %8164 = vmatpush1.msra.mxu0 %v8163
    %8165 = vmatprep.subr.mxu0 0.0
    %v8166 = vand.u32 %v7669, 4294901760
    %8167 = vmatpush1.msra.mxu0 %v8166
    %8168 = vmatprep.subr.mxu0 0.0
    %v8169 = vand.u32 %v7671, 4294901760
    %8170 = vmatpush1.msra.mxu0 %v8169
    %8171 = vmatprep.subr.mxu0 0.0
    %8172 = vmatpush1.msra.mxu0 0.0
    %8173 = vmatprep.subr.mxu0 0.0
    %8174 = vmatpush1.msra.mxu0 0.0
    %8175 = vmatprep.subr.mxu0 0.0
    %8176 = vmatpush1.msra.mxu0 0.0
    %8177 = vmatprep.subr.mxu0 0.0
    %8178 = vmatpush1.msra.mxu0 0.0
    %8179 = vmatprep.subr.mxu0 0.0
    %8180 = vmatpush1.msra.mxu0 0.0
    %8181 = vmatprep.subr.mxu0 0.0
    %8182 = vmatpush1.msra.mxu0 0.0
    %8183 = vmatprep.subr.mxu0 0.0
    %8184 = vmatpush1.msra.mxu0 0.0
    %8185 = vmatprep.subr.mxu0 0.0
    %8186 = vmatpush1.msra.mxu0 0.0
    %8187 = vmatprep.subr.mxu0 0.0
    %8188 = vmatpush1.msra.mxu0 0.0
    %8189 = vmatprep.subr.mxu0 0.0
    %8190 = vmatpush1.msra.mxu0 0.0
    %8191 = vmatprep.subr.mxu0 0.0
    %8192 = vmatpush1.msra.mxu0 0.0
    %8193 = vmatprep.subr.mxu0 0.0
    %8194 = vmatpush1.msra.mxu0 0.0
    %8195 = vmatprep.subr.mxu0 0.0
    %8196 = vmatpush1.msra.mxu0 0.0
    %8197 = vmatprep.subr.mxu0 0.0
    %8198 = vmatpush1.msra.mxu0 0.0
    %8199 = vmatprep.subr.mxu0 0.0
    %8200 = vmatpush1.msra.mxu0 0.0
    %8201 = vmatprep.subr.mxu0 0.0
    %8202 = vmatpush1.msra.mxu0 0.0
    %8203 = vmatprep.subr.mxu0 0.0
    %8204 = vmatpush1.msra.mxu0 0.0
    %8205 = vmatprep.subr.mxu0 0.0
    %8206 = vmatpush1.msra.mxu0 0.0
    %8207 = vmatprep.subr.mxu0 0.0
    %8208 = vmatpush1.msra.mxu0 0.0
    %8209 = vmatprep.subr.mxu0 0.0
    %8210 = vmatpush1.msra.mxu0 0.0
    %8211 = vmatprep.subr.mxu0 0.0
    %8212 = vmatpush1.msra.mxu0 0.0
    %8213 = vmatprep.subr.mxu0 0.0
    %8214 = vmatpush1.msra.mxu0 0.0
    %8215 = vmatprep.subr.mxu0 0.0
    %8216 = vmatpush1.msra.mxu0 0.0
    %8217 = vmatprep.subr.mxu0 0.0
    %8218 = vmatpush1.msra.mxu0 0.0
    %8219 = vmatprep.mubr.f32.mxu0 0.0
    %v8220 = vand.u32 %v7681, 4294901760
    %v8221 = vsub.f32 %v7681, %v8220
    %v8222 = vand.u32 %v8221, 4294901760
    %8223 = vmatmul.mubr.f32.gmra.mrb[0].mxu0 %v8222
    %v8224 = vpop.f32.mrb[0].mxu0
    %v8225 = vadd.f32 %v8095, %v8224
    %v8226 = vpop.f32.mrb[0].mxu0
    %8227 = vmatprep.mubr.f32.mxu0 0.0
    %v8228 = vand.u32 %v7684, 4294901760
    %v8229 = vsub.f32 %v7684, %v8228
    %v8230 = vand.u32 %v8229, 4294901760
    %8231 = vmatmul.mubr.f32.gmra.mrb[0].mxu0 %v8230
    %v8232 = vpop.f32.mrb[0].mxu0
    %v8233 = vadd.f32 %v8102, %v8232
    %v8234 = vpop.f32.mrb[0].mxu0
    %8235 = vmatprep.mubr.f32.mxu0 0.0
    %v8236 = vand.u32 %v7687, 4294901760
    %v8237 = vsub.f32 %v7687, %v8236
    %v8238 = vand.u32 %v8237, 4294901760
    %8239 = vmatmul.mubr.f32.gmra.mrb[0].mxu0 %v8238
    %v8240 = vpop.f32.mrb[0].mxu0
    %v8241 = vadd.f32 %v8109, %v8240
    %v8242 = vpop.f32.mrb[0].mxu0
    %8243 = vmatprep.mubr.f32.mxu0 0.0
    %v8244 = vand.u32 %v7690, 4294901760
    %v8245 = vsub.f32 %v7690, %v8244
    %v8246 = vand.u32 %v8245, 4294901760
    %8247 = vmatmul.mubr.f32.gmra.mrb[0].mxu0 %v8246
    %v8248 = vpop.f32.mrb[0].mxu0
    %v8249 = vadd.f32 %v8116, %v8248
    %v8250 = vpop.f32.mrb[0].mxu0
    %8251 = vmatprep.mubr.f32.mxu0 0.0
    %v8252 = vand.u32 %v7693, 4294901760
    %v8253 = vsub.f32 %v7693, %v8252
    %v8254 = vand.u32 %v8253, 4294901760
    %8255 = vmatmul.mubr.f32.gmra.mrb[0].mxu0 %v8254
    %v8256 = vpop.f32.mrb[0].mxu0
    %v8257 = vadd.f32 %v8123, %v8256
    %v8258 = vpop.f32.mrb[0].mxu0
    %8259 = vmatprep.mubr.f32.mxu0 0.0
    %v8260 = vand.u32 %v7696, 4294901760
    %v8261 = vsub.f32 %v7696, %v8260
    %v8262 = vand.u32 %v8261, 4294901760
    %8263 = vmatmul.mubr.f32.gmra.mrb[0].mxu0 %v8262
    %v8264 = vpop.f32.mrb[0].mxu0
    %v8265 = vadd.f32 %v8130, %v8264
    %v8266 = vpop.f32.mrb[0].mxu0
    %8267 = vmatprep.mubr.f32.mxu0 0.0
    %v8268 = vand.u32 %v7699, 4294901760
    %v8269 = vsub.f32 %v7699, %v8268
    %v8270 = vand.u32 %v8269, 4294901760
    %8271 = vmatmul.mubr.f32.gmra.mrb[0].mxu0 %v8270
    %v8272 = vpop.f32.mrb[0].mxu0
    %v8273 = vadd.f32 %v8137, %v8272
    %v8274 = vpop.f32.mrb[0].mxu0
    %8275 = vmatprep.mubr.f32.mxu0 0.0
    %v8276 = vand.u32 %v7702, 4294901760
    %v8277 = vsub.f32 %v7702, %v8276
    %v8278 = vand.u32 %v8277, 4294901760
    %8279 = vmatmul.mubr.f32.gmra.mrb[0].mxu0 %v8278
    %v8280 = vpop.f32.mrb[0].mxu0
    %v8281 = vadd.f32 %v8144, %v8280
    %v8282 = vpop.f32.mrb[0].mxu0
    %8283 = vdwg.mxu0
    %8284 = vmatprep.subr.mxu0 0.0
    %v8285 = vand.u32 %v7657, 4294901760
    %v8286 = vsub.f32 %v7657, %v8285
    %v8287 = vand.u32 %v8286, 4294901760
    %8288 = vmatpush1.msra.mxu0 %v8287
    %8289 = vmatprep.subr.mxu0 0.0
    %v8290 = vand.u32 %v7659, 4294901760
    %v8291 = vsub.f32 %v7659, %v8290
    %v8292 = vand.u32 %v8291, 4294901760
    %8293 = vmatpush1.msra.mxu0 %v8292
    %8294 = vmatprep.subr.mxu0 0.0
    %v8295 = vand.u32 %v7661, 4294901760
    %v8296 = vsub.f32 %v7661, %v8295
    %v8297 = vand.u32 %v8296, 4294901760
    %8298 = vmatpush1.msra.mxu0 %v8297
    %8299 = vmatprep.subr.mxu0 0.0
    %v8300 = vand.u32 %v7663, 4294901760
    %v8301 = vsub.f32 %v7663, %v8300
    %v8302 = vand.u32 %v8301, 4294901760
    %8303 = vmatpush1.msra.mxu0 %v8302
    %8304 = vmatprep.subr.mxu0 0.0
    %v8305 = vand.u32 %v7665, 4294901760
    %v8306 = vsub.f32 %v7665, %v8305
    %v8307 = vand.u32 %v8306, 4294901760
    %8308 = vmatpush1.msra.mxu0 %v8307
    %8309 = vmatprep.subr.mxu0 0.0
    %v8310 = vand.u32 %v7667, 4294901760
    %v8311 = vsub.f32 %v7667, %v8310
    %v8312 = vand.u32 %v8311, 4294901760
    %8313 = vmatpush1.msra.mxu0 %v8312
    %8314 = vmatprep.subr.mxu0 0.0
    %v8315 = vand.u32 %v7669, 4294901760
    %v8316 = vsub.f32 %v7669, %v8315
    %v8317 = vand.u32 %v8316, 4294901760
    %8318 = vmatpush1.msra.mxu0 %v8317
    %8319 = vmatprep.subr.mxu0 0.0
    %v8320 = vand.u32 %v7671, 4294901760
    %v8321 = vsub.f32 %v7671, %v8320
    %v8322 = vand.u32 %v8321, 4294901760
    %8323 = vmatpush1.msra.mxu0 %v8322
    %8324 = vmatprep.subr.mxu0 0.0
    %8325 = vmatpush1.msra.mxu0 0.0
    %8326 = vmatprep.subr.mxu0 0.0
    %8327 = vmatpush1.msra.mxu0 0.0
    %8328 = vmatprep.subr.mxu0 0.0
    %8329 = vmatpush1.msra.mxu0 0.0
    %8330 = vmatprep.subr.mxu0 0.0
    %8331 = vmatpush1.msra.mxu0 0.0
    %8332 = vmatprep.subr.mxu0 0.0
    %8333 = vmatpush1.msra.mxu0 0.0
    %8334 = vmatprep.subr.mxu0 0.0
    %8335 = vmatpush1.msra.mxu0 0.0
    %8336 = vmatprep.subr.mxu0 0.0
    %8337 = vmatpush1.msra.mxu0 0.0
    %8338 = vmatprep.subr.mxu0 0.0
    %8339 = vmatpush1.msra.mxu0 0.0
    %8340 = vmatprep.subr.mxu0 0.0
    %8341 = vmatpush1.msra.mxu0 0.0
    %8342 = vmatprep.subr.mxu0 0.0
    %8343 = vmatpush1.msra.mxu0 0.0
    %8344 = vmatprep.subr.mxu0 0.0
    %8345 = vmatpush1.msra.mxu0 0.0
    %8346 = vmatprep.subr.mxu0 0.0
    %8347 = vmatpush1.msra.mxu0 0.0
    %8348 = vmatprep.subr.mxu0 0.0
    %8349 = vmatpush1.msra.mxu0 0.0
    %8350 = vmatprep.subr.mxu0 0.0
    %8351 = vmatpush1.msra.mxu0 0.0
    %8352 = vmatprep.subr.mxu0 0.0
    %8353 = vmatpush1.msra.mxu0 0.0
    %8354 = vmatprep.subr.mxu0 0.0
    %8355 = vmatpush1.msra.mxu0 0.0
    %8356 = vmatprep.subr.mxu0 0.0
    %8357 = vmatpush1.msra.mxu0 0.0
    %8358 = vmatprep.subr.mxu0 0.0
    %8359 = vmatpush1.msra.mxu0 0.0
    %8360 = vmatprep.subr.mxu0 0.0
    %8361 = vmatpush1.msra.mxu0 0.0
    %8362 = vmatprep.subr.mxu0 0.0
    %8363 = vmatpush1.msra.mxu0 0.0
    %8364 = vmatprep.subr.mxu0 0.0
    %8365 = vmatpush1.msra.mxu0 0.0
    %8366 = vmatprep.subr.mxu0 0.0
    %8367 = vmatpush1.msra.mxu0 0.0
    %8368 = vmatprep.subr.mxu0 0.0
    %8369 = vmatpush1.msra.mxu0 0.0
    %8370 = vmatprep.subr.mxu0 0.0
    %8371 = vmatpush1.msra.mxu0 0.0
    %8372 = vmatprep.mubr.f32.mxu0 0.0
    %v8373 = vand.u32 %v7681, 4294901760
    %8374 = vmatmul.mubr.f32.gmra.mrb[0].mxu0 %v8373
    %v8375 = vpop.f32.mrb[0].mxu0
    %v8376 = vadd.f32 %v8225, %v8375
    %v8377 = vpop.f32.mrb[0].mxu0
    %8378 = vmatprep.mubr.f32.mxu0 0.0
    %v8379 = vand.u32 %v7684, 4294901760
    %8380 = vmatmul.mubr.f32.gmra.mrb[0].mxu0 %v8379
    %v8381 = vpop.f32.mrb[0].mxu0
    %v8382 = vadd.f32 %v8233, %v8381
    %v8383 = vpop.f32.mrb[0].mxu0
    %8384 = vmatprep.mubr.f32.mxu0 0.0
    %v8385 = vand.u32 %v7687, 4294901760
    %8386 = vmatmul.mubr.f32.gmra.mrb[0].mxu0 %v8385
    %v8387 = vpop.f32.mrb[0].mxu0
    %v8388 = vadd.f32 %v8241, %v8387
    %v8389 = vpop.f32.mrb[0].mxu0
    %8390 = vmatprep.mubr.f32.mxu0 0.0
    %v8391 = vand.u32 %v7690, 4294901760
    %8392 = vmatmul.mubr.f32.gmra.mrb[0].mxu0 %v8391
    %v8393 = vpop.f32.mrb[0].mxu0
    %v8394 = vadd.f32 %v8249, %v8393
    %v8395 = vpop.f32.mrb[0].mxu0
    %8396 = vmatprep.mubr.f32.mxu0 0.0
    %v8397 = vand.u32 %v7693, 4294901760
    %8398 = vmatmul.mubr.f32.gmra.mrb[0].mxu0 %v8397
    %v8399 = vpop.f32.mrb[0].mxu0
    %v8400 = vadd.f32 %v8257, %v8399
    %v8401 = vpop.f32.mrb[0].mxu0
    %8402 = vmatprep.mubr.f32.mxu0 0.0
    %v8403 = vand.u32 %v7696, 4294901760
    %8404 = vmatmul.mubr.f32.gmra.mrb[0].mxu0 %v8403
    %v8405 = vpop.f32.mrb[0].mxu0
    %v8406 = vadd.f32 %v8265, %v8405
    %v8407 = vpop.f32.mrb[0].mxu0
    %8408 = vmatprep.mubr.f32.mxu0 0.0
    %v8409 = vand.u32 %v7699, 4294901760
    %8410 = vmatmul.mubr.f32.gmra.mrb[0].mxu0 %v8409
    %v8411 = vpop.f32.mrb[0].mxu0
    %v8412 = vadd.f32 %v8273, %v8411
    %v8413 = vpop.f32.mrb[0].mxu0
    %8414 = vmatprep.mubr.f32.mxu0 0.0
    %v8415 = vand.u32 %v7702, 4294901760
    %8416 = vmatmul.mubr.f32.gmra.mrb[0].mxu0 %v8415
    %v8417 = vpop.f32.mrb[0].mxu0
    %v8418 = vadd.f32 %v8281, %v8417
    %v8419 = vpop.f32.mrb[0].mxu0
    %8420 = vdwg.mxu0
    %8421 = vmatprep.subr.mxu0 0.0
    %v8422 = vand.u32 %v7657, 4294901760
    %8423 = vmatpush1.msra.mxu0 %v8422
    %8424 = vmatprep.subr.mxu0 0.0
    %v8425 = vand.u32 %v7659, 4294901760
    %8426 = vmatpush1.msra.mxu0 %v8425
    %8427 = vmatprep.subr.mxu0 0.0
    %v8428 = vand.u32 %v7661, 4294901760
    %8429 = vmatpush1.msra.mxu0 %v8428
    %8430 = vmatprep.subr.mxu0 0.0
    %v8431 = vand.u32 %v7663, 4294901760
    %8432 = vmatpush1.msra.mxu0 %v8431
    %8433 = vmatprep.subr.mxu0 0.0
    %v8434 = vand.u32 %v7665, 4294901760
    %8435 = vmatpush1.msra.mxu0 %v8434
    %8436 = vmatprep.subr.mxu0 0.0
    %v8437 = vand.u32 %v7667, 4294901760
    %8438 = vmatpush1.msra.mxu0 %v8437
    %8439 = vmatprep.subr.mxu0 0.0
    %v8440 = vand.u32 %v7669, 4294901760
    %8441 = vmatpush1.msra.mxu0 %v8440
    %8442 = vmatprep.subr.mxu0 0.0
    %v8443 = vand.u32 %v7671, 4294901760
    %8444 = vmatpush1.msra.mxu0 %v8443
    %8445 = vmatprep.subr.mxu0 0.0
    %8446 = vmatpush1.msra.mxu0 0.0
    %8447 = vmatprep.subr.mxu0 0.0
    %8448 = vmatpush1.msra.mxu0 0.0
    %8449 = vmatprep.subr.mxu0 0.0
    %8450 = vmatpush1.msra.mxu0 0.0
    %8451 = vmatprep.subr.mxu0 0.0
    %8452 = vmatpush1.msra.mxu0 0.0
    %8453 = vmatprep.subr.mxu0 0.0
    %8454 = vmatpush1.msra.mxu0 0.0
    %8455 = vmatprep.subr.mxu0 0.0
    %8456 = vmatpush1.msra.mxu0 0.0
    %8457 = vmatprep.subr.mxu0 0.0
    %8458 = vmatpush1.msra.mxu0 0.0
    %8459 = vmatprep.subr.mxu0 0.0
    %8460 = vmatpush1.msra.mxu0 0.0
    %8461 = vmatprep.subr.mxu0 0.0
    %8462 = vmatpush1.msra.mxu0 0.0
    %8463 = vmatprep.subr.mxu0 0.0
    %8464 = vmatpush1.msra.mxu0 0.0
    %8465 = vmatprep.subr.mxu0 0.0
    %8466 = vmatpush1.msra.mxu0 0.0
    %8467 = vmatprep.subr.mxu0 0.0
    %8468 = vmatpush1.msra.mxu0 0.0
    %8469 = vmatprep.subr.mxu0 0.0
    %8470 = vmatpush1.msra.mxu0 0.0
    %8471 = vmatprep.subr.mxu0 0.0
    %8472 = vmatpush1.msra.mxu0 0.0
    %8473 = vmatprep.subr.mxu0 0.0
    %8474 = vmatpush1.msra.mxu0 0.0
    %8475 = vmatprep.subr.mxu0 0.0
    %8476 = vmatpush1.msra.mxu0 0.0
    %8477 = vmatprep.subr.mxu0 0.0
    %8478 = vmatpush1.msra.mxu0 0.0
    %8479 = vmatprep.subr.mxu0 0.0
    %8480 = vmatpush1.msra.mxu0 0.0
    %8481 = vmatprep.subr.mxu0 0.0
    %8482 = vmatpush1.msra.mxu0 0.0
    %8483 = vmatprep.subr.mxu0 0.0
    %8484 = vmatpush1.msra.mxu0 0.0
    %8485 = vmatprep.subr.mxu0 0.0
    %8486 = vmatpush1.msra.mxu0 0.0
    %8487 = vmatprep.subr.mxu0 0.0
    %8488 = vmatpush1.msra.mxu0 0.0
    %8489 = vmatprep.subr.mxu0 0.0
    %8490 = vmatpush1.msra.mxu0 0.0
    %8491 = vmatprep.subr.mxu0 0.0
    %8492 = vmatpush1.msra.mxu0 0.0
    %8493 = vmatprep.mubr.f32.mxu0 0.0
    %v8494 = vand.u32 %v7681, 4294901760
    %8495 = vmatmul.mubr.f32.gmra.mrb[0].mxu0 %v8494
    %v8496 = vpop.f32.mrb[0].mxu0
    %v8497 = vadd.f32 %v8376, %v8496
    %v8498 = vpop.f32.mrb[0].mxu0
    %8499 = vmatprep.mubr.f32.mxu0 0.0
    %v8500 = vand.u32 %v7684, 4294901760
    %8501 = vmatmul.mubr.f32.gmra.mrb[0].mxu0 %v8500
    %v8502 = vpop.f32.mrb[0].mxu0
    %v8503 = vadd.f32 %v8382, %v8502
    %v8504 = vpop.f32.mrb[0].mxu0
    %8505 = vmatprep.mubr.f32.mxu0 0.0
    %v8506 = vand.u32 %v7687, 4294901760
    %8507 = vmatmul.mubr.f32.gmra.mrb[0].mxu0 %v8506
    %v8508 = vpop.f32.mrb[0].mxu0
    %v8509 = vadd.f32 %v8388, %v8508
    %v8510 = vpop.f32.mrb[0].mxu0
    %8511 = vmatprep.mubr.f32.mxu0 0.0
    %v8512 = vand.u32 %v7690, 4294901760
    %8513 = vmatmul.mubr.f32.gmra.mrb[0].mxu0 %v8512
    %v8514 = vpop.f32.mrb[0].mxu0
    %v8515 = vadd.f32 %v8394, %v8514
    %v8516 = vpop.f32.mrb[0].mxu0
    %8517 = vmatprep.mubr.f32.mxu0 0.0
    %v8518 = vand.u32 %v7693, 4294901760
    %8519 = vmatmul.mubr.f32.gmra.mrb[0].mxu0 %v8518
    %v8520 = vpop.f32.mrb[0].mxu0
    %v8521 = vadd.f32 %v8400, %v8520
    %v8522 = vpop.f32.mrb[0].mxu0
    %8523 = vmatprep.mubr.f32.mxu0 0.0
    %v8524 = vand.u32 %v7696, 4294901760
    %8525 = vmatmul.mubr.f32.gmra.mrb[0].mxu0 %v8524
    %v8526 = vpop.f32.mrb[0].mxu0
    %v8527 = vadd.f32 %v8406, %v8526
    %v8528 = vpop.f32.mrb[0].mxu0
    %8529 = vmatprep.mubr.f32.mxu0 0.0
    %v8530 = vand.u32 %v7699, 4294901760
    %8531 = vmatmul.mubr.f32.gmra.mrb[0].mxu0 %v8530
    %v8532 = vpop.f32.mrb[0].mxu0
    %v8533 = vadd.f32 %v8412, %v8532
    %v8534 = vpop.f32.mrb[0].mxu0
    %8535 = vmatprep.mubr.f32.mxu0 0.0
    %v8536 = vand.u32 %v7702, 4294901760
    %8537 = vmatmul.mubr.f32.gmra.mrb[0].mxu0 %v8536
    %v8538 = vpop.f32.mrb[0].mxu0
    %v8539 = vadd.f32 %v8418, %v8538
    %v8540 = vpop.f32.mrb[0].mxu0
    %8541 = vdwg.mxu0
    %8550 = vrot.lane.b32.xlu0 %v4713, 16
    %v8551 = vpop.permute.xlu0 %8550
    %8552 = vrot.lane.b32.xlu0 %v4719, 16
    %v8553 = vpop.permute.xlu0 %8552
    %8554 = vrot.lane.b32.xlu0 %v4725, 16
    %v8555 = vpop.permute.xlu0 %8554
    %8556 = vrot.lane.b32.xlu0 %v4731, 16
    %v8557 = vpop.permute.xlu0 %8556
    %8558 = vrot.lane.b32.xlu0 %v4737, 16
    %v8559 = vpop.permute.xlu0 %8558
    %8560 = vrot.lane.b32.xlu0 %v4743, 16
    %v8561 = vpop.permute.xlu0 %8560
    %8562 = vrot.lane.b32.xlu0 %v4749, 16
    %v8563 = vpop.permute.xlu0 %8562
    %8564 = vrot.lane.b32.xlu0 %v4755, 16
    %v8565 = vpop.permute.xlu0 %8564
    %8582 = vrot.lane.b32.xlu0 %v6605, 32
    %v8583 = vpop.permute.xlu0 %8582
    %8584 = vrot.lane.b32.xlu0 %v6611, 32
    %v8585 = vpop.permute.xlu0 %8584
    %8586 = vrot.lane.b32.xlu0 %v6617, 32
    %v8587 = vpop.permute.xlu0 %8586
    %8588 = vrot.lane.b32.xlu0 %v6623, 32
    %v8589 = vpop.permute.xlu0 %8588
    %8590 = vrot.lane.b32.xlu0 %v6629, 32
    %v8591 = vpop.permute.xlu0 %8590
    %8592 = vrot.lane.b32.xlu0 %v6635, 32
    %v8593 = vpop.permute.xlu0 %8592
    %8594 = vrot.lane.b32.xlu0 %v6641, 32
    %v8595 = vpop.permute.xlu0 %8594
    %8596 = vrot.lane.b32.xlu0 %v6647, 32
    %v8597 = vpop.permute.xlu0 %8596
    %8614 = vrot.lane.b32.xlu0 %v8497, 48
    %v8615 = vpop.permute.xlu0 %8614
    %8616 = vrot.lane.b32.xlu0 %v8503, 48
    %v8617 = vpop.permute.xlu0 %8616
    %8618 = vrot.lane.b32.xlu0 %v8509, 48
    %v8619 = vpop.permute.xlu0 %8618
    %8620 = vrot.lane.b32.xlu0 %v8515, 48
    %v8621 = vpop.permute.xlu0 %8620
    %8622 = vrot.lane.b32.xlu0 %v8521, 48
    %v8623 = vpop.permute.xlu0 %8622
    %8624 = vrot.lane.b32.xlu0 %v8527, 48
    %v8625 = vpop.permute.xlu0 %8624
    %8626 = vrot.lane.b32.xlu0 %v8533, 48
    %v8627 = vpop.permute.xlu0 %8626
    %8628 = vrot.lane.b32.xlu0 %v8539, 48
    %v8629 = vpop.permute.xlu0 %8628
    %v8638 = vsel %vm1020, %v2813, %v8551
    %v8639 = vsel %vm1020, %v2819, %v8553
    %v8640 = vsel %vm1020, %v2825, %v8555
    %v8641 = vsel %vm1020, %v2831, %v8557
    %v8642 = vsel %vm1020, %v2837, %v8559
    %v8643 = vsel %vm1020, %v2843, %v8561
    %v8644 = vsel %vm1020, %v2849, %v8563
    %v8645 = vsel %vm1020, %v2855, %v8565
    %v8646 = vsel %vm77, %v8638, %v8583
    %v8647 = vsel %vm77, %v8639, %v8585
    %v8648 = vsel %vm77, %v8640, %v8587
    %v8649 = vsel %vm77, %v8641, %v8589
    %v8650 = vsel %vm77, %v8642, %v8591
    %v8651 = vsel %vm77, %v8643, %v8593
    %v8652 = vsel %vm77, %v8644, %v8595
    %v8653 = vsel %vm77, %v8645, %v8597
    %vm8654 = vcmask 392192
    %v8655 = vsel %vm8654, %v8646, %v8615
    %v8656 = vsel %vm8654, %v8647, %v8617
    %v8657 = vsel %vm8654, %v8648, %v8619
    %v8658 = vsel %vm8654, %v8649, %v8621
    %v8659 = vsel %vm8654, %v8650, %v8623
    %v8660 = vsel %vm8654, %v8651, %v8625
    %v8661 = vsel %vm8654, %v8652, %v8627
    %v8662 = vsel %vm8654, %v8653, %v8629
    %v8663 = vld [vmem:[%s3] sm:$0x1]
    %v8664 = vld [vmem:[%s4] sm:$0x1]
    %v8665 = vsel %vm1907, %v8655, 0.0
    %8666 = vadd.xlane.f32.xlu0 %v8665
    %v8667 = vpop.xlane.xlu0 %8666
    %v8668 = vsel %vm1907, %v8656, 0.0
    %8669 = vadd.xlane.f32.xlu0 %v8668
    %v8670 = vpop.xlane.xlu0 %8669
    %v8671 = vsel %vm1907, %v8657, 0.0
    %8672 = vadd.xlane.f32.xlu0 %v8671
    %v8673 = vpop.xlane.xlu0 %8672
    %v8674 = vsel %vm1907, %v8658, 0.0
    %8675 = vadd.xlane.f32.xlu0 %v8674
    %v8676 = vpop.xlane.xlu0 %8675
    %v8677 = vsel %vm1907, %v8659, 0.0
    %8678 = vadd.xlane.f32.xlu0 %v8677
    %v8679 = vpop.xlane.xlu0 %8678
    %v8680 = vsel %vm1907, %v8660, 0.0
    %8681 = vadd.xlane.f32.xlu0 %v8680
    %v8682 = vpop.xlane.xlu0 %8681
    %v8683 = vsel %vm1907, %v8661, 0.0
    %8684 = vadd.xlane.f32.xlu0 %v8683
    %v8685 = vpop.xlane.xlu0 %8684
    %v8686 = vsel %vm1907, %v8662, 0.0
    %8687 = vadd.xlane.f32.xlu0 %v8686
    %v8688 = vpop.xlane.xlu0 %8687
    %v8689 = vrcp.pop 64.0
    %v8690 = vmul.f32 %v8667, %v8689
    %v8691 = vmul.f32 %v8670, %v8689
    %v8692 = vmul.f32 %v8673, %v8689
    %v8693 = vmul.f32 %v8676, %v8689
    %v8694 = vmul.f32 %v8679, %v8689
    %v8695 = vmul.f32 %v8682, %v8689
    %v8696 = vmul.f32 %v8685, %v8689
    %v8697 = vmul.f32 %v8688, %v8689
    %v8698 = vsub.f32 %v8655, %v8690
    %v8699 = vsub.f32 %v8656, %v8691
    %v8700 = vsub.f32 %v8657, %v8692
    %v8701 = vsub.f32 %v8658, %v8693
    %v8702 = vsub.f32 %v8659, %v8694
    %v8703 = vsub.f32 %v8660, %v8695
    %v8704 = vsub.f32 %v8661, %v8696
    %v8705 = vsub.f32 %v8662, %v8697
    %v8706 = vmul.f32 %v8698, %v8698
    %v8707 = vmul.f32 %v8699, %v8699
    %v8708 = vmul.f32 %v8700, %v8700
    %v8709 = vmul.f32 %v8701, %v8701
    %v8710 = vmul.f32 %v8702, %v8702
    %v8711 = vmul.f32 %v8703, %v8703
    %v8712 = vmul.f32 %v8704, %v8704
    %v8713 = vmul.f32 %v8705, %v8705
    %v8714 = vsel %vm1907, %v8706, 0.0
    %8715 = vadd.xlane.f32.xlu0 %v8714
    %v8716 = vpop.xlane.xlu0 %8715
    %v8717 = vsel %vm1907, %v8707, 0.0
    %8718 = vadd.xlane.f32.xlu0 %v8717
    %v8719 = vpop.xlane.xlu0 %8718
    %v8720 = vsel %vm1907, %v8708, 0.0
    %8721 = vadd.xlane.f32.xlu0 %v8720
    %v8722 = vpop.xlane.xlu0 %8721
    %v8723 = vsel %vm1907, %v8709, 0.0
    %8724 = vadd.xlane.f32.xlu0 %v8723
    %v8725 = vpop.xlane.xlu0 %8724
    %v8726 = vsel %vm1907, %v8710, 0.0
    %8727 = vadd.xlane.f32.xlu0 %v8726
    %v8728 = vpop.xlane.xlu0 %8727
    %v8729 = vsel %vm1907, %v8711, 0.0
    %8730 = vadd.xlane.f32.xlu0 %v8729
    %v8731 = vpop.xlane.xlu0 %8730
    %v8732 = vsel %vm1907, %v8712, 0.0
    %8733 = vadd.xlane.f32.xlu0 %v8732
    %v8734 = vpop.xlane.xlu0 %8733
    %v8735 = vsel %vm1907, %v8713, 0.0
    %8736 = vadd.xlane.f32.xlu0 %v8735
    %v8737 = vpop.xlane.xlu0 %8736
    %v8738 = vmul.f32 %v8716, %v8689
    %v8739 = vmul.f32 %v8719, %v8689
    %v8740 = vmul.f32 %v8722, %v8689
    %v8741 = vmul.f32 %v8725, %v8689
    %v8742 = vmul.f32 %v8728, %v8689
    %v8743 = vmul.f32 %v8731, %v8689
    %v8744 = vmul.f32 %v8734, %v8689
    %v8745 = vmul.f32 %v8737, %v8689
    %v8746 = vadd.f32 %v8738, 1e-05
    %v8747 = vadd.f32 %v8739, 1e-05
    %v8748 = vadd.f32 %v8740, 1e-05
    %v8749 = vadd.f32 %v8741, 1e-05
    %v8750 = vadd.f32 %v8742, 1e-05
    %v8751 = vadd.f32 %v8743, 1e-05
    %v8752 = vadd.f32 %v8744, 1e-05
    %v8753 = vadd.f32 %v8745, 1e-05
    %v8754 = vrsqrt.pop %v8746
    %v8755 = vrsqrt.pop %v8747
    %v8756 = vrsqrt.pop %v8748
    %v8757 = vrsqrt.pop %v8749
    %v8758 = vrsqrt.pop %v8750
    %v8759 = vrsqrt.pop %v8751
    %v8760 = vrsqrt.pop %v8752
    %v8761 = vrsqrt.pop %v8753
    %v8762 = vmul.f32 %v8698, %v8754
    %v8763 = vmul.f32 %v8699, %v8755
    %v8764 = vmul.f32 %v8700, %v8756
    %v8765 = vmul.f32 %v8701, %v8757
    %v8766 = vmul.f32 %v8702, %v8758
    %v8767 = vmul.f32 %v8703, %v8759
    %v8768 = vmul.f32 %v8704, %v8760
    %v8769 = vmul.f32 %v8705, %v8761
    %v8771 = vlaneseq
    %v8772 = vshrl.u32 %v8771, 7
    %v8773 = vsub.s32 0, %v8772
    %v8774 = vrot.slane %v8663, %v8773
    %v8776 = vmul.f32 %v8762, %v8774
    %v8777 = vmul.f32 %v8763, %v8774
    %v8778 = vmul.f32 %v8764, %v8774
    %v8779 = vmul.f32 %v8765, %v8774
    %v8780 = vmul.f32 %v8766, %v8774
    %v8781 = vmul.f32 %v8767, %v8774
    %v8782 = vmul.f32 %v8768, %v8774
    %v8783 = vmul.f32 %v8769, %v8774
    %v8785 = vlaneseq
    %v8786 = vshrl.u32 %v8785, 7
    %v8787 = vsub.s32 0, %v8786
    %v8788 = vrot.slane %v8664, %v8787
    %v8790 = vadd.f32 %v8776, %v8788
    %v8791 = vadd.f32 %v8777, %v8788
    %v8792 = vadd.f32 %v8778, %v8788
    %v8793 = vadd.f32 %v8779, %v8788
    %v8794 = vadd.f32 %v8780, %v8788
    %v8795 = vadd.f32 %v8781, %v8788
    %v8796 = vadd.f32 %v8782, %v8788
    %v8797 = vadd.f32 %v8783, %v8788
    %v8798 = vld [vmem:[#allocation5] sm:$0xff]
    %v8799 = vld [vmem:[#allocation5 + $0x8] sm:$0xff]
    %v8800 = vld [vmem:[#allocation5 + $0x10] sm:$0xff]
    %v8801 = vld [vmem:[#allocation5 + $0x18] sm:$0xff]
    %v8802 = vld [vmem:[#allocation5 + $0x20] sm:$0xff]
    %v8803 = vld [vmem:[#allocation5 + $0x28] sm:$0xff]
    %v8804 = vld [vmem:[#allocation5 + $0x30] sm:$0xff]
    %v8805 = vld [vmem:[#allocation5 + $0x38] sm:$0xff]
    %v8806 = vld [vmem:[%s6] sm:$0xff]
    %v8807 = vld [vmem:[%s6 + $0x8] sm:$0xff]
    %v8808 = vld [vmem:[%s6 + $0x10] sm:$0xff]
    %v8809 = vld [vmem:[%s6 + $0x18] sm:$0xff]
    %8810 = vmatprep.subr.mxu0 0.0
    %v8811 = vand.u32 %v8806, 4294901760
    %8812 = vmatpush1.msra.mxu0 %v8811
    %8813 = vmatprep.subr.mxu0 0.0
    %v8814 = vand.u32 %v8807, 4294901760
    %8815 = vmatpush1.msra.mxu0 %v8814
    %8816 = vmatprep.subr.mxu0 0.0
    %v8817 = vand.u32 %v8808, 4294901760
    %8818 = vmatpush1.msra.mxu0 %v8817
    %8819 = vmatprep.subr.mxu0 0.0
    %v8820 = vand.u32 %v8809, 4294901760
    %8821 = vmatpush1.msra.mxu0 %v8820
    %8822 = vmatprep.subr.mxu0 0.0
    %8823 = vmatpush1.msra.mxu0 0.0
    %8824 = vmatprep.subr.mxu0 0.0
    %8825 = vmatpush1.msra.mxu0 0.0
    %8826 = vmatprep.subr.mxu0 0.0
    %8827 = vmatpush1.msra.mxu0 0.0
    %8828 = vmatprep.subr.mxu0 0.0
    %8829 = vmatpush1.msra.mxu0 0.0
    %8830 = vmatprep.subr.mxu0 0.0
    %8831 = vmatpush1.msra.mxu0 0.0
    %8832 = vmatprep.subr.mxu0 0.0
    %8833 = vmatpush1.msra.mxu0 0.0
    %8834 = vmatprep.subr.mxu0 0.0
    %8835 = vmatpush1.msra.mxu0 0.0
    %8836 = vmatprep.subr.mxu0 0.0
    %8837 = vmatpush1.msra.mxu0 0.0
    %8838 = vmatprep.subr.mxu0 0.0
    %8839 = vmatpush1.msra.mxu0 0.0
    %8840 = vmatprep.subr.mxu0 0.0
    %8841 = vmatpush1.msra.mxu0 0.0
    %8842 = vmatprep.subr.mxu0 0.0
    %8843 = vmatpush1.msra.mxu0 0.0
    %8844 = vmatprep.subr.mxu0 0.0
    %8845 = vmatpush1.msra.mxu0 0.0
    %8846 = vmatprep.subr.mxu0 0.0
    %8847 = vmatpush1.msra.mxu0 0.0
    %8848 = vmatprep.subr.mxu0 0.0
    %8849 = vmatpush1.msra.mxu0 0.0
    %8850 = vmatprep.subr.mxu0 0.0
    %8851 = vmatpush1.msra.mxu0 0.0
    %8852 = vmatprep.subr.mxu0 0.0
    %8853 = vmatpush1.msra.mxu0 0.0
    %8854 = vmatprep.subr.mxu0 0.0
    %8855 = vmatpush1.msra.mxu0 0.0
    %8856 = vmatprep.subr.mxu0 0.0
    %8857 = vmatpush1.msra.mxu0 0.0
    %8858 = vmatprep.subr.mxu0 0.0
    %8859 = vmatpush1.msra.mxu0 0.0
    %8860 = vmatprep.subr.mxu0 0.0
    %8861 = vmatpush1.msra.mxu0 0.0
    %8862 = vmatprep.subr.mxu0 0.0
    %8863 = vmatpush1.msra.mxu0 0.0
    %8864 = vmatprep.subr.mxu0 0.0
    %8865 = vmatpush1.msra.mxu0 0.0
    %8866 = vmatprep.subr.mxu0 0.0
    %8867 = vmatpush1.msra.mxu0 0.0
    %8868 = vmatprep.subr.mxu0 0.0
    %8869 = vmatpush1.msra.mxu0 0.0
    %8870 = vmatprep.subr.mxu0 0.0
    %8871 = vmatpush1.msra.mxu0 0.0
    %8872 = vmatprep.subr.mxu0 0.0
    %8873 = vmatpush1.msra.mxu0 0.0
    %8874 = vmatprep.subr.mxu0 0.0
    %8875 = vmatpush1.msra.mxu0 0.0
    %8876 = vmatprep.subr.mxu0 0.0
    %8877 = vmatpush1.msra.mxu0 0.0
    %8878 = vmatprep.mubr.f32.mxu0 0.0
    %v8879 = vand.u32 %v79, 4294901760
    %v8880 = vsub.f32 %v79, %v8879
    %v8881 = vand.u32 %v8880, 4294901760
    %v8882 = vsub.f32 %v8880, %v8881
    %v8883 = vand.u32 %v8882, 4294901760
    %8884 = vmatmul.mubr.f32.gmra.mrb[0].mxu0 %v8883
    %v8885 = vpop.f32.mrb[0].mxu0
    %v8886 = vadd.f32 0.0, %v8885
    %v8887 = vpop.f32.mrb[0].mxu0
    %8888 = vmatprep.mubr.f32.mxu0 0.0
    %v8889 = vand.u32 %v82, 4294901760
    %v8890 = vsub.f32 %v82, %v8889
    %v8891 = vand.u32 %v8890, 4294901760
    %v8892 = vsub.f32 %v8890, %v8891
    %v8893 = vand.u32 %v8892, 4294901760
    %8894 = vmatmul.mubr.f32.gmra.mrb[0].mxu0 %v8893
    %v8895 = vpop.f32.mrb[0].mxu0
    %v8896 = vadd.f32 0.0, %v8895
    %v8897 = vpop.f32.mrb[0].mxu0
    %8898 = vmatprep.mubr.f32.mxu0 0.0
    %v8899 = vand.u32 %v85, 4294901760
    %v8900 = vsub.f32 %v85, %v8899
    %v8901 = vand.u32 %v8900, 4294901760
    %v8902 = vsub.f32 %v8900, %v8901
    %v8903 = vand.u32 %v8902, 4294901760
    %8904 = vmatmul.mubr.f32.gmra.mrb[0].mxu0 %v8903
    %v8905 = vpop.f32.mrb[0].mxu0
    %v8906 = vadd.f32 0.0, %v8905
    %v8907 = vpop.f32.mrb[0].mxu0
    %8908 = vmatprep.mubr.f32.mxu0 0.0
    %v8909 = vand.u32 %v88, 4294901760
    %v8910 = vsub.f32 %v88, %v8909
    %v8911 = vand.u32 %v8910, 4294901760
    %v8912 = vsub.f32 %v8910, %v8911
    %v8913 = vand.u32 %v8912, 4294901760
    %8914 = vmatmul.mubr.f32.gmra.mrb[0].mxu0 %v8913
    %v8915 = vpop.f32.mrb[0].mxu0
    %v8916 = vadd.f32 0.0, %v8915
    %v8917 = vpop.f32.mrb[0].mxu0
    %8918 = vmatprep.mubr.f32.mxu0 0.0
    %v8919 = vand.u32 %v91, 4294901760
    %v8920 = vsub.f32 %v91, %v8919
    %v8921 = vand.u32 %v8920, 4294901760
    %v8922 = vsub.f32 %v8920, %v8921
    %v8923 = vand.u32 %v8922, 4294901760
    %8924 = vmatmul.mubr.f32.gmra.mrb[0].mxu0 %v8923
    %v8925 = vpop.f32.mrb[0].mxu0
    %v8926 = vadd.f32 0.0, %v8925
    %v8927 = vpop.f32.mrb[0].mxu0
    %8928 = vmatprep.mubr.f32.mxu0 0.0
    %v8929 = vand.u32 %v94, 4294901760
    %v8930 = vsub.f32 %v94, %v8929
    %v8931 = vand.u32 %v8930, 4294901760
    %v8932 = vsub.f32 %v8930, %v8931
    %v8933 = vand.u32 %v8932, 4294901760
    %8934 = vmatmul.mubr.f32.gmra.mrb[0].mxu0 %v8933
    %v8935 = vpop.f32.mrb[0].mxu0
    %v8936 = vadd.f32 0.0, %v8935
    %v8937 = vpop.f32.mrb[0].mxu0
    %8938 = vmatprep.mubr.f32.mxu0 0.0
    %v8939 = vand.u32 %v97, 4294901760
    %v8940 = vsub.f32 %v97, %v8939
    %v8941 = vand.u32 %v8940, 4294901760
    %v8942 = vsub.f32 %v8940, %v8941
    %v8943 = vand.u32 %v8942, 4294901760
    %8944 = vmatmul.mubr.f32.gmra.mrb[0].mxu0 %v8943
    %v8945 = vpop.f32.mrb[0].mxu0
    %v8946 = vadd.f32 0.0, %v8945
    %v8947 = vpop.f32.mrb[0].mxu0
    %8948 = vmatprep.mubr.f32.mxu0 0.0
    %v8949 = vand.u32 %v100, 4294901760
    %v8950 = vsub.f32 %v100, %v8949
    %v8951 = vand.u32 %v8950, 4294901760
    %v8952 = vsub.f32 %v8950, %v8951
    %v8953 = vand.u32 %v8952, 4294901760
    %8954 = vmatmul.mubr.f32.gmra.mrb[0].mxu0 %v8953
    %v8955 = vpop.f32.mrb[0].mxu0
    %v8956 = vadd.f32 0.0, %v8955
    %v8957 = vpop.f32.mrb[0].mxu0
    %8958 = vdwg.mxu0
    %8959 = vmatprep.subr.mxu0 0.0
    %v8960 = vand.u32 %v8806, 4294901760
    %v8961 = vsub.f32 %v8806, %v8960
    %v8962 = vand.u32 %v8961, 4294901760
    %v8963 = vsub.f32 %v8961, %v8962
    %v8964 = vand.u32 %v8963, 4294901760
    %8965 = vmatpush1.msra.mxu0 %v8964
    %8966 = vmatprep.subr.mxu0 0.0
    %v8967 = vand.u32 %v8807, 4294901760
    %v8968 = vsub.f32 %v8807, %v8967
    %v8969 = vand.u32 %v8968, 4294901760
    %v8970 = vsub.f32 %v8968, %v8969
    %v8971 = vand.u32 %v8970, 4294901760
    %8972 = vmatpush1.msra.mxu0 %v8971
    %8973 = vmatprep.subr.mxu0 0.0
    %v8974 = vand.u32 %v8808, 4294901760
    %v8975 = vsub.f32 %v8808, %v8974
    %v8976 = vand.u32 %v8975, 4294901760
    %v8977 = vsub.f32 %v8975, %v8976
    %v8978 = vand.u32 %v8977, 4294901760
    %8979 = vmatpush1.msra.mxu0 %v8978
    %8980 = vmatprep.subr.mxu0 0.0
    %v8981 = vand.u32 %v8809, 4294901760
    %v8982 = vsub.f32 %v8809, %v8981
    %v8983 = vand.u32 %v8982, 4294901760
    %v8984 = vsub.f32 %v8982, %v8983
    %v8985 = vand.u32 %v8984, 4294901760
    %8986 = vmatpush1.msra.mxu0 %v8985
    %8987 = vmatprep.subr.mxu0 0.0
    %8988 = vmatpush1.msra.mxu0 0.0
    %8989 = vmatprep.subr.mxu0 0.0
    %8990 = vmatpush1.msra.mxu0 0.0
    %8991 = vmatprep.subr.mxu0 0.0
    %8992 = vmatpush1.msra.mxu0 0.0
    %8993 = vmatprep.subr.mxu0 0.0
    %8994 = vmatpush1.msra.mxu0 0.0
    %8995 = vmatprep.subr.mxu0 0.0
    %8996 = vmatpush1.msra.mxu0 0.0
    %8997 = vmatprep.subr.mxu0 0.0
    %8998 = vmatpush1.msra.mxu0 0.0
    %8999 = vmatprep.subr.mxu0 0.0
    %9000 = vmatpush1.msra.mxu0 0.0
    %9001 = vmatprep.subr.mxu0 0.0
    %9002 = vmatpush1.msra.mxu0 0.0
    %9003 = vmatprep.subr.mxu0 0.0
    %9004 = vmatpush1.msra.mxu0 0.0
    %9005 = vmatprep.subr.mxu0 0.0
    %9006 = vmatpush1.msra.mxu0 0.0
    %9007 = vmatprep.subr.mxu0 0.0
    %9008 = vmatpush1.msra.mxu0 0.0
    %9009 = vmatprep.subr.mxu0 0.0
    %9010 = vmatpush1.msra.mxu0 0.0
    %9011 = vmatprep.subr.mxu0 0.0
    %9012 = vmatpush1.msra.mxu0 0.0
    %9013 = vmatprep.subr.mxu0 0.0
    %9014 = vmatpush1.msra.mxu0 0.0
    %9015 = vmatprep.subr.mxu0 0.0
    %9016 = vmatpush1.msra.mxu0 0.0
    %9017 = vmatprep.subr.mxu0 0.0
    %9018 = vmatpush1.msra.mxu0 0.0
    %9019 = vmatprep.subr.mxu0 0.0
    %9020 = vmatpush1.msra.mxu0 0.0
    %9021 = vmatprep.subr.mxu0 0.0
    %9022 = vmatpush1.msra.mxu0 0.0
    %9023 = vmatprep.subr.mxu0 0.0
    %9024 = vmatpush1.msra.mxu0 0.0
    %9025 = vmatprep.subr.mxu0 0.0
    %9026 = vmatpush1.msra.mxu0 0.0
    %9027 = vmatprep.subr.mxu0 0.0
    %9028 = vmatpush1.msra.mxu0 0.0
    %9029 = vmatprep.subr.mxu0 0.0
    %9030 = vmatpush1.msra.mxu0 0.0
    %9031 = vmatprep.subr.mxu0 0.0
    %9032 = vmatpush1.msra.mxu0 0.0
    %9033 = vmatprep.subr.mxu0 0.0
    %9034 = vmatpush1.msra.mxu0 0.0
    %9035 = vmatprep.subr.mxu0 0.0
    %9036 = vmatpush1.msra.mxu0 0.0
    %9037 = vmatprep.subr.mxu0 0.0
    %9038 = vmatpush1.msra.mxu0 0.0
    %9039 = vmatprep.subr.mxu0 0.0
    %9040 = vmatpush1.msra.mxu0 0.0
    %9041 = vmatprep.subr.mxu0 0.0
    %9042 = vmatpush1.msra.mxu0 0.0
    %9043 = vmatprep.mubr.f32.mxu0 0.0
    %v9044 = vand.u32 %v79, 4294901760
    %9045 = vmatmul.mubr.f32.gmra.mrb[0].mxu0 %v9044
    %v9046 = vpop.f32.mrb[0].mxu0
    %v9047 = vadd.f32 %v8886, %v9046
    %v9048 = vpop.f32.mrb[0].mxu0
    %9049 = vmatprep.mubr.f32.mxu0 0.0
    %v9050 = vand.u32 %v82, 4294901760
    %9051 = vmatmul.mubr.f32.gmra.mrb[0].mxu0 %v9050
    %v9052 = vpop.f32.mrb[0].mxu0
    %v9053 = vadd.f32 %v8896, %v9052
    %v9054 = vpop.f32.mrb[0].mxu0
    %9055 = vmatprep.mubr.f32.mxu0 0.0
    %v9056 = vand.u32 %v85, 4294901760
    %9057 = vmatmul.mubr.f32.gmra.mrb[0].mxu0 %v9056
    %v9058 = vpop.f32.mrb[0].mxu0
    %v9059 = vadd.f32 %v8906, %v9058
    %v9060 = vpop.f32.mrb[0].mxu0
    %9061 = vmatprep.mubr.f32.mxu0 0.0
    %v9062 = vand.u32 %v88, 4294901760
    %9063 = vmatmul.mubr.f32.gmra.mrb[0].mxu0 %v9062
    %v9064 = vpop.f32.mrb[0].mxu0
    %v9065 = vadd.f32 %v8916, %v9064
    %v9066 = vpop.f32.mrb[0].mxu0
    %9067 = vmatprep.mubr.f32.mxu0 0.0
    %v9068 = vand.u32 %v91, 4294901760
    %9069 = vmatmul.mubr.f32.gmra.mrb[0].mxu0 %v9068
    %v9070 = vpop.f32.mrb[0].mxu0
    %v9071 = vadd.f32 %v8926, %v9070
    %v9072 = vpop.f32.mrb[0].mxu0
    %9073 = vmatprep.mubr.f32.mxu0 0.0
    %v9074 = vand.u32 %v94, 4294901760
    %9075 = vmatmul.mubr.f32.gmra.mrb[0].mxu0 %v9074
    %v9076 = vpop.f32.mrb[0].mxu0
    %v9077 = vadd.f32 %v8936, %v9076
    %v9078 = vpop.f32.mrb[0].mxu0
    %9079 = vmatprep.mubr.f32.mxu0 0.0
    %v9080 = vand.u32 %v97, 4294901760
    %9081 = vmatmul.mubr.f32.gmra.mrb[0].mxu0 %v9080
    %v9082 = vpop.f32.mrb[0].mxu0
    %v9083 = vadd.f32 %v8946, %v9082
    %v9084 = vpop.f32.mrb[0].mxu0
    %9085 = vmatprep.mubr.f32.mxu0 0.0
    %v9086 = vand.u32 %v100, 4294901760
    %9087 = vmatmul.mubr.f32.gmra.mrb[0].mxu0 %v9086
    %v9088 = vpop.f32.mrb[0].mxu0
    %v9089 = vadd.f32 %v8956, %v9088
    %v9090 = vpop.f32.mrb[0].mxu0
    %9091 = vdwg.mxu0
    %9092 = vmatprep.subr.mxu0 0.0
    %v9093 = vand.u32 %v8806, 4294901760
    %v9094 = vsub.f32 %v8806, %v9093
    %9095 = vmatpush1.msra.mxu0 %v9094
    %9096 = vmatprep.subr.mxu0 0.0
    %v9097 = vand.u32 %v8807, 4294901760
    %v9098 = vsub.f32 %v8807, %v9097
    %9099 = vmatpush1.msra.mxu0 %v9098
    %9100 = vmatprep.subr.mxu0 0.0
    %v9101 = vand.u32 %v8808, 4294901760
    %v9102 = vsub.f32 %v8808, %v9101
    %9103 = vmatpush1.msra.mxu0 %v9102
    %9104 = vmatprep.subr.mxu0 0.0
    %v9105 = vand.u32 %v8809, 4294901760
    %v9106 = vsub.f32 %v8809, %v9105
    %9107 = vmatpush1.msra.mxu0 %v9106
    %9108 = vmatprep.subr.mxu0 0.0
    %9109 = vmatpush1.msra.mxu0 0.0
    %9110 = vmatprep.subr.mxu0 0.0
    %9111 = vmatpush1.msra.mxu0 0.0
    %9112 = vmatprep.subr.mxu0 0.0
    %9113 = vmatpush1.msra.mxu0 0.0
    %9114 = vmatprep.subr.mxu0 0.0
    %9115 = vmatpush1.msra.mxu0 0.0
    %9116 = vmatprep.subr.mxu0 0.0
    %9117 = vmatpush1.msra.mxu0 0.0
    %9118 = vmatprep.subr.mxu0 0.0
    %9119 = vmatpush1.msra.mxu0 0.0
    %9120 = vmatprep.subr.mxu0 0.0
    %9121 = vmatpush1.msra.mxu0 0.0
    %9122 = vmatprep.subr.mxu0 0.0
    %9123 = vmatpush1.msra.mxu0 0.0
    %9124 = vmatprep.subr.mxu0 0.0
    %9125 = vmatpush1.msra.mxu0 0.0
    %9126 = vmatprep.subr.mxu0 0.0
    %9127 = vmatpush1.msra.mxu0 0.0
    %9128 = vmatprep.subr.mxu0 0.0
    %9129 = vmatpush1.msra.mxu0 0.0
    %9130 = vmatprep.subr.mxu0 0.0
    %9131 = vmatpush1.msra.mxu0 0.0
    %9132 = vmatprep.subr.mxu0 0.0
    %9133 = vmatpush1.msra.mxu0 0.0
    %9134 = vmatprep.subr.mxu0 0.0
    %9135 = vmatpush1.msra.mxu0 0.0
    %9136 = vmatprep.subr.mxu0 0.0
    %9137 = vmatpush1.msra.mxu0 0.0
    %9138 = vmatprep.subr.mxu0 0.0
    %9139 = vmatpush1.msra.mxu0 0.0
    %9140 = vmatprep.subr.mxu0 0.0
    %9141 = vmatpush1.msra.mxu0 0.0
    %9142 = vmatprep.subr.mxu0 0.0
    %9143 = vmatpush1.msra.mxu0 0.0
    %9144 = vmatprep.subr.mxu0 0.0
    %9145 = vmatpush1.msra.mxu0 0.0
    %9146 = vmatprep.subr.mxu0 0.0
    %9147 = vmatpush1.msra.mxu0 0.0
    %9148 = vmatprep.subr.mxu0 0.0
    %9149 = vmatpush1.msra.mxu0 0.0
    %9150 = vmatprep.subr.mxu0 0.0
    %9151 = vmatpush1.msra.mxu0 0.0
    %9152 = vmatprep.subr.mxu0 0.0
    %9153 = vmatpush1.msra.mxu0 0.0
    %9154 = vmatprep.subr.mxu0 0.0
    %9155 = vmatpush1.msra.mxu0 0.0
    %9156 = vmatprep.subr.mxu0 0.0
    %9157 = vmatpush1.msra.mxu0 0.0
    %9158 = vmatprep.subr.mxu0 0.0
    %9159 = vmatpush1.msra.mxu0 0.0
    %9160 = vmatprep.subr.mxu0 0.0
    %9161 = vmatpush1.msra.mxu0 0.0
    %9162 = vmatprep.subr.mxu0 0.0
    %9163 = vmatpush1.msra.mxu0 0.0
    %9164 = vmatprep.mubr.f32.mxu0 0.0
    %v9165 = vand.u32 %v79, 4294901760
    %v9166 = vsub.f32 %v79, %v9165
    %9167 = vmatmul.mubr.f32.gmra.mrb[0].mxu0 %v9166
    %v9168 = vpop.f32.mrb[0].mxu0
    %v9169 = vadd.f32 %v9047, %v9168
    %v9170 = vpop.f32.mrb[0].mxu0
    %9171 = vmatprep.mubr.f32.mxu0 0.0
    %v9172 = vand.u32 %v82, 4294901760
    %v9173 = vsub.f32 %v82, %v9172
    %9174 = vmatmul.mubr.f32.gmra.mrb[0].mxu0 %v9173
    %v9175 = vpop.f32.mrb[0].mxu0
    %v9176 = vadd.f32 %v9053, %v9175
    %v9177 = vpop.f32.mrb[0].mxu0
    %9178 = vmatprep.mubr.f32.mxu0 0.0
    %v9179 = vand.u32 %v85, 4294901760
    %v9180 = vsub.f32 %v85, %v9179
    %9181 = vmatmul.mubr.f32.gmra.mrb[0].mxu0 %v9180
    %v9182 = vpop.f32.mrb[0].mxu0
    %v9183 = vadd.f32 %v9059, %v9182
    %v9184 = vpop.f32.mrb[0].mxu0
    %9185 = vmatprep.mubr.f32.mxu0 0.0
    %v9186 = vand.u32 %v88, 4294901760
    %v9187 = vsub.f32 %v88, %v9186
    %9188 = vmatmul.mubr.f32.gmra.mrb[0].mxu0 %v9187
    %v9189 = vpop.f32.mrb[0].mxu0
    %v9190 = vadd.f32 %v9065, %v9189
    %v9191 = vpop.f32.mrb[0].mxu0
    %9192 = vmatprep.mubr.f32.mxu0 0.0
    %v9193 = vand.u32 %v91, 4294901760
    %v9194 = vsub.f32 %v91, %v9193
    %9195 = vmatmul.mubr.f32.gmra.mrb[0].mxu0 %v9194
    %v9196 = vpop.f32.mrb[0].mxu0
    %v9197 = vadd.f32 %v9071, %v9196
    %v9198 = vpop.f32.mrb[0].mxu0
    %9199 = vmatprep.mubr.f32.mxu0 0.0
    %v9200 = vand.u32 %v94, 4294901760
    %v9201 = vsub.f32 %v94, %v9200
    %9202 = vmatmul.mubr.f32.gmra.mrb[0].mxu0 %v9201
    %v9203 = vpop.f32.mrb[0].mxu0
    %v9204 = vadd.f32 %v9077, %v9203
    %v9205 = vpop.f32.mrb[0].mxu0
    %9206 = vmatprep.mubr.f32.mxu0 0.0
    %v9207 = vand.u32 %v97, 4294901760
    %v9208 = vsub.f32 %v97, %v9207
    %9209 = vmatmul.mubr.f32.gmra.mrb[0].mxu0 %v9208
    %v9210 = vpop.f32.mrb[0].mxu0
    %v9211 = vadd.f32 %v9083, %v9210
    %v9212 = vpop.f32.mrb[0].mxu0
    %9213 = vmatprep.mubr.f32.mxu0 0.0
    %v9214 = vand.u32 %v100, 4294901760
    %v9215 = vsub.f32 %v100, %v9214
    %9216 = vmatmul.mubr.f32.gmra.mrb[0].mxu0 %v9215
    %v9217 = vpop.f32.mrb[0].mxu0
    %v9218 = vadd.f32 %v9089, %v9217
    %v9219 = vpop.f32.mrb[0].mxu0
    %9220 = vdwg.mxu0
    %9221 = vmatprep.subr.mxu0 0.0
    %v9222 = vand.u32 %v8806, 4294901760
    %9223 = vmatpush1.msra.mxu0 %v9222
    %9224 = vmatprep.subr.mxu0 0.0
    %v9225 = vand.u32 %v8807, 4294901760
    %9226 = vmatpush1.msra.mxu0 %v9225
    %9227 = vmatprep.subr.mxu0 0.0
    %v9228 = vand.u32 %v8808, 4294901760
    %9229 = vmatpush1.msra.mxu0 %v9228
    %9230 = vmatprep.subr.mxu0 0.0
    %v9231 = vand.u32 %v8809, 4294901760
    %9232 = vmatpush1.msra.mxu0 %v9231
    %9233 = vmatprep.subr.mxu0 0.0
    %9234 = vmatpush1.msra.mxu0 0.0
    %9235 = vmatprep.subr.mxu0 0.0
    %9236 = vmatpush1.msra.mxu0 0.0
    %9237 = vmatprep.subr.mxu0 0.0
    %9238 = vmatpush1.msra.mxu0 0.0
    %9239 = vmatprep.subr.mxu0 0.0
    %9240 = vmatpush1.msra.mxu0 0.0
    %9241 = vmatprep.subr.mxu0 0.0
    %9242 = vmatpush1.msra.mxu0 0.0
    %9243 = vmatprep.subr.mxu0 0.0
    %9244 = vmatpush1.msra.mxu0 0.0
    %9245 = vmatprep.subr.mxu0 0.0
    %9246 = vmatpush1.msra.mxu0 0.0
    %9247 = vmatprep.subr.mxu0 0.0
    %9248 = vmatpush1.msra.mxu0 0.0
    %9249 = vmatprep.subr.mxu0 0.0
    %9250 = vmatpush1.msra.mxu0 0.0
    %9251 = vmatprep.subr.mxu0 0.0
    %9252 = vmatpush1.msra.mxu0 0.0
    %9253 = vmatprep.subr.mxu0 0.0
    %9254 = vmatpush1.msra.mxu0 0.0
    %9255 = vmatprep.subr.mxu0 0.0
    %9256 = vmatpush1.msra.mxu0 0.0
    %9257 = vmatprep.subr.mxu0 0.0
    %9258 = vmatpush1.msra.mxu0 0.0
    %9259 = vmatprep.subr.mxu0 0.0
    %9260 = vmatpush1.msra.mxu0 0.0
    %9261 = vmatprep.subr.mxu0 0.0
    %9262 = vmatpush1.msra.mxu0 0.0
    %9263 = vmatprep.subr.mxu0 0.0
    %9264 = vmatpush1.msra.mxu0 0.0
    %9265 = vmatprep.subr.mxu0 0.0
    %9266 = vmatpush1.msra.mxu0 0.0
    %9267 = vmatprep.subr.mxu0 0.0
    %9268 = vmatpush1.msra.mxu0 0.0
    %9269 = vmatprep.subr.mxu0 0.0
    %9270 = vmatpush1.msra.mxu0 0.0
    %9271 = vmatprep.subr.mxu0 0.0
    %9272 = vmatpush1.msra.mxu0 0.0
    %9273 = vmatprep.subr.mxu0 0.0
    %9274 = vmatpush1.msra.mxu0 0.0
    %9275 = vmatprep.subr.mxu0 0.0
    %9276 = vmatpush1.msra.mxu0 0.0
    %9277 = vmatprep.subr.mxu0 0.0
    %9278 = vmatpush1.msra.mxu0 0.0
    %9279 = vmatprep.subr.mxu0 0.0
    %9280 = vmatpush1.msra.mxu0 0.0
    %9281 = vmatprep.subr.mxu0 0.0
    %9282 = vmatpush1.msra.mxu0 0.0
    %9283 = vmatprep.subr.mxu0 0.0
    %9284 = vmatpush1.msra.mxu0 0.0
    %9285 = vmatprep.subr.mxu0 0.0
    %9286 = vmatpush1.msra.mxu0 0.0
    %9287 = vmatprep.subr.mxu0 0.0
    %9288 = vmatpush1.msra.mxu0 0.0
    %9289 = vmatprep.mubr.f32.mxu0 0.0
    %v9290 = vand.u32 %v79, 4294901760
    %v9291 = vsub.f32 %v79, %v9290
    %v9292 = vand.u32 %v9291, 4294901760
    %9293 = vmatmul.mubr.f32.gmra.mrb[0].mxu0 %v9292
    %v9294 = vpop.f32.mrb[0].mxu0
    %v9295 = vadd.f32 %v9169, %v9294
    %v9296 = vpop.f32.mrb[0].mxu0
    %9297 = vmatprep.mubr.f32.mxu0 0.0
    %v9298 = vand.u32 %v82, 4294901760
    %v9299 = vsub.f32 %v82, %v9298
    %v9300 = vand.u32 %v9299, 4294901760
    %9301 = vmatmul.mubr.f32.gmra.mrb[0].mxu0 %v9300
    %v9302 = vpop.f32.mrb[0].mxu0
    %v9303 = vadd.f32 %v9176, %v9302
    %v9304 = vpop.f32.mrb[0].mxu0
    %9305 = vmatprep.mubr.f32.mxu0 0.0
    %v9306 = vand.u32 %v85, 4294901760
    %v9307 = vsub.f32 %v85, %v9306
    %v9308 = vand.u32 %v9307, 4294901760
    %9309 = vmatmul.mubr.f32.gmra.mrb[0].mxu0 %v9308
    %v9310 = vpop.f32.mrb[0].mxu0
    %v9311 = vadd.f32 %v9183, %v9310
    %v9312 = vpop.f32.mrb[0].mxu0
    %9313 = vmatprep.mubr.f32.mxu0 0.0
    %v9314 = vand.u32 %v88, 4294901760
    %v9315 = vsub.f32 %v88, %v9314
    %v9316 = vand.u32 %v9315, 4294901760
    %9317 = vmatmul.mubr.f32.gmra.mrb[0].mxu0 %v9316
    %v9318 = vpop.f32.mrb[0].mxu0
    %v9319 = vadd.f32 %v9190, %v9318
    %v9320 = vpop.f32.mrb[0].mxu0
    %9321 = vmatprep.mubr.f32.mxu0 0.0
    %v9322 = vand.u32 %v91, 4294901760
    %v9323 = vsub.f32 %v91, %v9322
    %v9324 = vand.u32 %v9323, 4294901760
    %9325 = vmatmul.mubr.f32.gmra.mrb[0].mxu0 %v9324
    %v9326 = vpop.f32.mrb[0].mxu0
    %v9327 = vadd.f32 %v9197, %v9326
    %v9328 = vpop.f32.mrb[0].mxu0
    %9329 = vmatprep.mubr.f32.mxu0 0.0
    %v9330 = vand.u32 %v94, 4294901760
    %v9331 = vsub.f32 %v94, %v9330
    %v9332 = vand.u32 %v9331, 4294901760
    %9333 = vmatmul.mubr.f32.gmra.mrb[0].mxu0 %v9332
    %v9334 = vpop.f32.mrb[0].mxu0
    %v9335 = vadd.f32 %v9204, %v9334
    %v9336 = vpop.f32.mrb[0].mxu0
    %9337 = vmatprep.mubr.f32.mxu0 0.0
    %v9338 = vand.u32 %v97, 4294901760
    %v9339 = vsub.f32 %v97, %v9338
    %v9340 = vand.u32 %v9339, 4294901760
    %9341 = vmatmul.mubr.f32.gmra.mrb[0].mxu0 %v9340
    %v9342 = vpop.f32.mrb[0].mxu0
    %v9343 = vadd.f32 %v9211, %v9342
    %v9344 = vpop.f32.mrb[0].mxu0
    %9345 = vmatprep.mubr.f32.mxu0 0.0
    %v9346 = vand.u32 %v100, 4294901760
    %v9347 = vsub.f32 %v100, %v9346
    %v9348 = vand.u32 %v9347, 4294901760
    %9349 = vmatmul.mubr.f32.gmra.mrb[0].mxu0 %v9348
    %v9350 = vpop.f32.mrb[0].mxu0
    %v9351 = vadd.f32 %v9218, %v9350
    %v9352 = vpop.f32.mrb[0].mxu0
    %9353 = vdwg.mxu0
    %9354 = vmatprep.subr.mxu0 0.0
    %v9355 = vand.u32 %v8806, 4294901760
    %v9356 = vsub.f32 %v8806, %v9355
    %v9357 = vand.u32 %v9356, 4294901760
    %9358 = vmatpush1.msra.mxu0 %v9357
    %9359 = vmatprep.subr.mxu0 0.0
    %v9360 = vand.u32 %v8807, 4294901760
    %v9361 = vsub.f32 %v8807, %v9360
    %v9362 = vand.u32 %v9361, 4294901760
    %9363 = vmatpush1.msra.mxu0 %v9362
    %9364 = vmatprep.subr.mxu0 0.0
    %v9365 = vand.u32 %v8808, 4294901760
    %v9366 = vsub.f32 %v8808, %v9365
    %v9367 = vand.u32 %v9366, 4294901760
    %9368 = vmatpush1.msra.mxu0 %v9367
    %9369 = vmatprep.subr.mxu0 0.0
    %v9370 = vand.u32 %v8809, 4294901760
    %v9371 = vsub.f32 %v8809, %v9370
    %v9372 = vand.u32 %v9371, 4294901760
    %9373 = vmatpush1.msra.mxu0 %v9372
    %9374 = vmatprep.subr.mxu0 0.0
    %9375 = vmatpush1.msra.mxu0 0.0
    %9376 = vmatprep.subr.mxu0 0.0
    %9377 = vmatpush1.msra.mxu0 0.0
    %9378 = vmatprep.subr.mxu0 0.0
    %9379 = vmatpush1.msra.mxu0 0.0
    %9380 = vmatprep.subr.mxu0 0.0
    %9381 = vmatpush1.msra.mxu0 0.0
    %9382 = vmatprep.subr.mxu0 0.0
    %9383 = vmatpush1.msra.mxu0 0.0
    %9384 = vmatprep.subr.mxu0 0.0
    %9385 = vmatpush1.msra.mxu0 0.0
    %9386 = vmatprep.subr.mxu0 0.0
    %9387 = vmatpush1.msra.mxu0 0.0
    %9388 = vmatprep.subr.mxu0 0.0
    %9389 = vmatpush1.msra.mxu0 0.0
    %9390 = vmatprep.subr.mxu0 0.0
    %9391 = vmatpush1.msra.mxu0 0.0
    %9392 = vmatprep.subr.mxu0 0.0
    %9393 = vmatpush1.msra.mxu0 0.0
    %9394 = vmatprep.subr.mxu0 0.0
    %9395 = vmatpush1.msra.mxu0 0.0
    %9396 = vmatprep.subr.mxu0 0.0
    %9397 = vmatpush1.msra.mxu0 0.0
    %9398 = vmatprep.subr.mxu0 0.0
    %9399 = vmatpush1.msra.mxu0 0.0
    %9400 = vmatprep.subr.mxu0 0.0
    %9401 = vmatpush1.msra.mxu0 0.0
    %9402 = vmatprep.subr.mxu0 0.0
    %9403 = vmatpush1.msra.mxu0 0.0
    %9404 = vmatprep.subr.mxu0 0.0
    %9405 = vmatpush1.msra.mxu0 0.0
    %9406 = vmatprep.subr.mxu0 0.0
    %9407 = vmatpush1.msra.mxu0 0.0
    %9408 = vmatprep.subr.mxu0 0.0
    %9409 = vmatpush1.msra.mxu0 0.0
    %9410 = vmatprep.subr.mxu0 0.0
    %9411 = vmatpush1.msra.mxu0 0.0
    %9412 = vmatprep.subr.mxu0 0.0
    %9413 = vmatpush1.msra.mxu0 0.0
    %9414 = vmatprep.subr.mxu0 0.0
    %9415 = vmatpush1.msra.mxu0 0.0
    %9416 = vmatprep.subr.mxu0 0.0
    %9417 = vmatpush1.msra.mxu0 0.0
    %9418 = vmatprep.subr.mxu0 0.0
    %9419 = vmatpush1.msra.mxu0 0.0
    %9420 = vmatprep.subr.mxu0 0.0
    %9421 = vmatpush1.msra.mxu0 0.0
    %9422 = vmatprep.subr.mxu0 0.0
    %9423 = vmatpush1.msra.mxu0 0.0
    %9424 = vmatprep.subr.mxu0 0.0
    %9425 = vmatpush1.msra.mxu0 0.0
    %9426 = vmatprep.subr.mxu0 0.0
    %9427 = vmatpush1.msra.mxu0 0.0
    %9428 = vmatprep.subr.mxu0 0.0
    %9429 = vmatpush1.msra.mxu0 0.0
    %9430 = vmatprep.mubr.f32.mxu0 0.0
    %v9431 = vand.u32 %v79, 4294901760
    %9432 = vmatmul.mubr.f32.gmra.mrb[0].mxu0 %v9431
    %v9433 = vpop.f32.mrb[0].mxu0
    %v9434 = vadd.f32 %v9295, %v9433
    %v9435 = vpop.f32.mrb[0].mxu0
    %9436 = vmatprep.mubr.f32.mxu0 0.0
    %v9437 = vand.u32 %v82, 4294901760
    %9438 = vmatmul.mubr.f32.gmra.mrb[0].mxu0 %v9437
    %v9439 = vpop.f32.mrb[0].mxu0
    %v9440 = vadd.f32 %v9303, %v9439
    %v9441 = vpop.f32.mrb[0].mxu0
    %9442 = vmatprep.mubr.f32.mxu0 0.0
    %v9443 = vand.u32 %v85, 4294901760
    %9444 = vmatmul.mubr.f32.gmra.mrb[0].mxu0 %v9443
    %v9445 = vpop.f32.mrb[0].mxu0
    %v9446 = vadd.f32 %v9311, %v9445
    %v9447 = vpop.f32.mrb[0].mxu0
    %9448 = vmatprep.mubr.f32.mxu0 0.0
    %v9449 = vand.u32 %v88, 4294901760
    %9450 = vmatmul.mubr.f32.gmra.mrb[0].mxu0 %v9449
    %v9451 = vpop.f32.mrb[0].mxu0
    %v9452 = vadd.f32 %v9319, %v9451
    %v9453 = vpop.f32.mrb[0].mxu0
    %9454 = vmatprep.mubr.f32.mxu0 0.0
    %v9455 = vand.u32 %v91, 4294901760
    %9456 = vmatmul.mubr.f32.gmra.mrb[0].mxu0 %v9455
    %v9457 = vpop.f32.mrb[0].mxu0
    %v9458 = vadd.f32 %v9327, %v9457
    %v9459 = vpop.f32.mrb[0].mxu0
    %9460 = vmatprep.mubr.f32.mxu0 0.0
    %v9461 = vand.u32 %v94, 4294901760
    %9462 = vmatmul.mubr.f32.gmra.mrb[0].mxu0 %v9461
    %v9463 = vpop.f32.mrb[0].mxu0
    %v9464 = vadd.f32 %v9335, %v9463
    %v9465 = vpop.f32.mrb[0].mxu0
    %9466 = vmatprep.mubr.f32.mxu0 0.0
    %v9467 = vand.u32 %v97, 4294901760
    %9468 = vmatmul.mubr.f32.gmra.mrb[0].mxu0 %v9467
    %v9469 = vpop.f32.mrb[0].mxu0
    %v9470 = vadd.f32 %v9343, %v9469
    %v9471 = vpop.f32.mrb[0].mxu0
    %9472 = vmatprep.mubr.f32.mxu0 0.0
    %v9473 = vand.u32 %v100, 4294901760
    %9474 = vmatmul.mubr.f32.gmra.mrb[0].mxu0 %v9473
    %v9475 = vpop.f32.mrb[0].mxu0
    %v9476 = vadd.f32 %v9351, %v9475
    %v9477 = vpop.f32.mrb[0].mxu0
    %9478 = vdwg.mxu0
    %9479 = vmatprep.subr.mxu0 0.0
    %v9480 = vand.u32 %v8806, 4294901760
    %9481 = vmatpush1.msra.mxu0 %v9480
    %9482 = vmatprep.subr.mxu0 0.0
    %v9483 = vand.u32 %v8807, 4294901760
    %9484 = vmatpush1.msra.mxu0 %v9483
    %9485 = vmatprep.subr.mxu0 0.0
    %v9486 = vand.u32 %v8808, 4294901760
    %9487 = vmatpush1.msra.mxu0 %v9486
    %9488 = vmatprep.subr.mxu0 0.0
    %v9489 = vand.u32 %v8809, 4294901760
    %9490 = vmatpush1.msra.mxu0 %v9489
    %9491 = vmatprep.subr.mxu0 0.0
    %9492 = vmatpush1.msra.mxu0 0.0
    %9493 = vmatprep.subr.mxu0 0.0
    %9494 = vmatpush1.msra.mxu0 0.0
    %9495 = vmatprep.subr.mxu0 0.0
    %9496 = vmatpush1.msra.mxu0 0.0
    %9497 = vmatprep.subr.mxu0 0.0
    %9498 = vmatpush1.msra.mxu0 0.0
    %9499 = vmatprep.subr.mxu0 0.0
    %9500 = vmatpush1.msra.mxu0 0.0
    %9501 = vmatprep.subr.mxu0 0.0
    %9502 = vmatpush1.msra.mxu0 0.0
    %9503 = vmatprep.subr.mxu0 0.0
    %9504 = vmatpush1.msra.mxu0 0.0
    %9505 = vmatprep.subr.mxu0 0.0
    %9506 = vmatpush1.msra.mxu0 0.0
    %9507 = vmatprep.subr.mxu0 0.0
    %9508 = vmatpush1.msra.mxu0 0.0
    %9509 = vmatprep.subr.mxu0 0.0
    %9510 = vmatpush1.msra.mxu0 0.0
    %9511 = vmatprep.subr.mxu0 0.0
    %9512 = vmatpush1.msra.mxu0 0.0
    %9513 = vmatprep.subr.mxu0 0.0
    %9514 = vmatpush1.msra.mxu0 0.0
    %9515 = vmatprep.subr.mxu0 0.0
    %9516 = vmatpush1.msra.mxu0 0.0
    %9517 = vmatprep.subr.mxu0 0.0
    %9518 = vmatpush1.msra.mxu0 0.0
    %9519 = vmatprep.subr.mxu0 0.0
    %9520 = vmatpush1.msra.mxu0 0.0
    %9521 = vmatprep.subr.mxu0 0.0
    %9522 = vmatpush1.msra.mxu0 0.0
    %9523 = vmatprep.subr.mxu0 0.0
    %9524 = vmatpush1.msra.mxu0 0.0
    %9525 = vmatprep.subr.mxu0 0.0
    %9526 = vmatpush1.msra.mxu0 0.0
    %9527 = vmatprep.subr.mxu0 0.0
    %9528 = vmatpush1.msra.mxu0 0.0
    %9529 = vmatprep.subr.mxu0 0.0
    %9530 = vmatpush1.msra.mxu0 0.0
    %9531 = vmatprep.subr.mxu0 0.0
    %9532 = vmatpush1.msra.mxu0 0.0
    %9533 = vmatprep.subr.mxu0 0.0
    %9534 = vmatpush1.msra.mxu0 0.0
    %9535 = vmatprep.subr.mxu0 0.0
    %9536 = vmatpush1.msra.mxu0 0.0
    %9537 = vmatprep.subr.mxu0 0.0
    %9538 = vmatpush1.msra.mxu0 0.0
    %9539 = vmatprep.subr.mxu0 0.0
    %9540 = vmatpush1.msra.mxu0 0.0
    %9541 = vmatprep.subr.mxu0 0.0
    %9542 = vmatpush1.msra.mxu0 0.0
    %9543 = vmatprep.subr.mxu0 0.0
    %9544 = vmatpush1.msra.mxu0 0.0
    %9545 = vmatprep.subr.mxu0 0.0
    %9546 = vmatpush1.msra.mxu0 0.0
    %9547 = vmatprep.mubr.f32.mxu0 0.0
    %v9548 = vand.u32 %v79, 4294901760
    %9549 = vmatmul.mubr.f32.gmra.mrb[0].mxu0 %v9548
    %v9550 = vpop.f32.mrb[0].mxu0
    %v9551 = vadd.f32 %v9434, %v9550
    %v9552 = vpop.f32.mrb[0].mxu0
    %9553 = vmatprep.mubr.f32.mxu0 0.0
    %v9554 = vand.u32 %v82, 4294901760
    %9555 = vmatmul.mubr.f32.gmra.mrb[0].mxu0 %v9554
    %v9556 = vpop.f32.mrb[0].mxu0
    %v9557 = vadd.f32 %v9440, %v9556
    %v9558 = vpop.f32.mrb[0].mxu0
    %9559 = vmatprep.mubr.f32.mxu0 0.0
    %v9560 = vand.u32 %v85, 4294901760
    %9561 = vmatmul.mubr.f32.gmra.mrb[0].mxu0 %v9560
    %v9562 = vpop.f32.mrb[0].mxu0
    %v9563 = vadd.f32 %v9446, %v9562
    %v9564 = vpop.f32.mrb[0].mxu0
    %9565 = vmatprep.mubr.f32.mxu0 0.0
    %v9566 = vand.u32 %v88, 4294901760
    %9567 = vmatmul.mubr.f32.gmra.mrb[0].mxu0 %v9566
    %v9568 = vpop.f32.mrb[0].mxu0
    %v9569 = vadd.f32 %v9452, %v9568
    %v9570 = vpop.f32.mrb[0].mxu0
    %9571 = vmatprep.mubr.f32.mxu0 0.0
    %v9572 = vand.u32 %v91, 4294901760
    %9573 = vmatmul.mubr.f32.gmra.mrb[0].mxu0 %v9572
    %v9574 = vpop.f32.mrb[0].mxu0
    %v9575 = vadd.f32 %v9458, %v9574
    %v9576 = vpop.f32.mrb[0].mxu0
    %9577 = vmatprep.mubr.f32.mxu0 0.0
    %v9578 = vand.u32 %v94, 4294901760
    %9579 = vmatmul.mubr.f32.gmra.mrb[0].mxu0 %v9578
    %v9580 = vpop.f32.mrb[0].mxu0
    %v9581 = vadd.f32 %v9464, %v9580
    %v9582 = vpop.f32.mrb[0].mxu0
    %9583 = vmatprep.mubr.f32.mxu0 0.0
    %v9584 = vand.u32 %v97, 4294901760
    %9585 = vmatmul.mubr.f32.gmra.mrb[0].mxu0 %v9584
    %v9586 = vpop.f32.mrb[0].mxu0
    %v9587 = vadd.f32 %v9470, %v9586
    %v9588 = vpop.f32.mrb[0].mxu0
    %9589 = vmatprep.mubr.f32.mxu0 0.0
    %v9590 = vand.u32 %v100, 4294901760
    %9591 = vmatmul.mubr.f32.gmra.mrb[0].mxu0 %v9590
    %v9592 = vpop.f32.mrb[0].mxu0
    %v9593 = vadd.f32 %v9476, %v9592
    %v9594 = vpop.f32.mrb[0].mxu0
    %9595 = vdwg.mxu0
    %v9597 = vsel %vm1907, %v8790, 0
    %v9600 = vsel %vm1907, %v8791, 0
    %v9603 = vsel %vm1907, %v8792, 0
    %v9606 = vsel %vm1907, %v8793, 0
    %v9609 = vsel %vm1907, %v8794, 0
    %v9612 = vsel %vm1907, %v8795, 0
    %v9615 = vsel %vm1907, %v8796, 0
    %v9618 = vsel %vm1907, %v8797, 0
    %9620 = vmatprep.subr.mxu0 0.0
    %v9621 = vand.u32 %v8798, 4294901760
    %9622 = vmatpush1.msra.mxu0 %v9621
    %9623 = vmatprep.subr.mxu0 0.0
    %v9624 = vand.u32 %v8799, 4294901760
    %9625 = vmatpush1.msra.mxu0 %v9624
    %9626 = vmatprep.subr.mxu0 0.0
    %v9627 = vand.u32 %v8800, 4294901760
    %9628 = vmatpush1.msra.mxu0 %v9627
    %9629 = vmatprep.subr.mxu0 0.0
    %v9630 = vand.u32 %v8801, 4294901760
    %9631 = vmatpush1.msra.mxu0 %v9630
    %9632 = vmatprep.subr.mxu0 0.0
    %v9633 = vand.u32 %v8802, 4294901760
    %9634 = vmatpush1.msra.mxu0 %v9633
    %9635 = vmatprep.subr.mxu0 0.0
    %v9636 = vand.u32 %v8803, 4294901760
    %9637 = vmatpush1.msra.mxu0 %v9636
    %9638 = vmatprep.subr.mxu0 0.0
    %v9639 = vand.u32 %v8804, 4294901760
    %9640 = vmatpush1.msra.mxu0 %v9639
    %9641 = vmatprep.subr.mxu0 0.0
    %v9642 = vand.u32 %v8805, 4294901760
    %9643 = vmatpush1.msra.mxu0 %v9642
    %9644 = vmatprep.subr.mxu0 0.0
    %9645 = vmatpush1.msra.mxu0 0.0
    %9646 = vmatprep.subr.mxu0 0.0
    %9647 = vmatpush1.msra.mxu0 0.0
    %9648 = vmatprep.subr.mxu0 0.0
    %9649 = vmatpush1.msra.mxu0 0.0
    %9650 = vmatprep.subr.mxu0 0.0
    %9651 = vmatpush1.msra.mxu0 0.0
    %9652 = vmatprep.subr.mxu0 0.0
    %9653 = vmatpush1.msra.mxu0 0.0
    %9654 = vmatprep.subr.mxu0 0.0
    %9655 = vmatpush1.msra.mxu0 0.0
    %9656 = vmatprep.subr.mxu0 0.0
    %9657 = vmatpush1.msra.mxu0 0.0
    %9658 = vmatprep.subr.mxu0 0.0
    %9659 = vmatpush1.msra.mxu0 0.0
    %9660 = vmatprep.subr.mxu0 0.0
    %9661 = vmatpush1.msra.mxu0 0.0
    %9662 = vmatprep.subr.mxu0 0.0
    %9663 = vmatpush1.msra.mxu0 0.0
    %9664 = vmatprep.subr.mxu0 0.0
    %9665 = vmatpush1.msra.mxu0 0.0
    %9666 = vmatprep.subr.mxu0 0.0
    %9667 = vmatpush1.msra.mxu0 0.0
    %9668 = vmatprep.subr.mxu0 0.0
    %9669 = vmatpush1.msra.mxu0 0.0
    %9670 = vmatprep.subr.mxu0 0.0
    %9671 = vmatpush1.msra.mxu0 0.0
    %9672 = vmatprep.subr.mxu0 0.0
    %9673 = vmatpush1.msra.mxu0 0.0
    %9674 = vmatprep.subr.mxu0 0.0
    %9675 = vmatpush1.msra.mxu0 0.0
    %9676 = vmatprep.subr.mxu0 0.0
    %9677 = vmatpush1.msra.mxu0 0.0
    %9678 = vmatprep.subr.mxu0 0.0
    %9679 = vmatpush1.msra.mxu0 0.0
    %9680 = vmatprep.subr.mxu0 0.0
    %9681 = vmatpush1.msra.mxu0 0.0
    %9682 = vmatprep.subr.mxu0 0.0
    %9683 = vmatpush1.msra.mxu0 0.0
    %9684 = vmatprep.subr.mxu0 0.0
    %9685 = vmatpush1.msra.mxu0 0.0
    %9686 = vmatprep.subr.mxu0 0.0
    %9687 = vmatpush1.msra.mxu0 0.0
    %9688 = vmatprep.subr.mxu0 0.0
    %9689 = vmatpush1.msra.mxu0 0.0
    %9690 = vmatprep.subr.mxu0 0.0
    %9691 = vmatpush1.msra.mxu0 0.0
    %9692 = vmatprep.mubr.f32.mxu0 0.0
    %v9693 = vand.u32 %v9597, 4294901760
    %v9694 = vsub.f32 %v9597, %v9693
    %v9695 = vand.u32 %v9694, 4294901760
    %v9696 = vsub.f32 %v9694, %v9695
    %v9697 = vand.u32 %v9696, 4294901760
    %9698 = vmatmul.mubr.f32.gmra.mrb[0].mxu0 %v9697
    %v9699 = vpop.f32.mrb[0].mxu0
    %v9700 = vadd.f32 %v9551, %v9699
    %v9701 = vpop.f32.mrb[0].mxu0
    %9702 = vmatprep.mubr.f32.mxu0 0.0
    %v9703 = vand.u32 %v9600, 4294901760
    %v9704 = vsub.f32 %v9600, %v9703
    %v9705 = vand.u32 %v9704, 4294901760
    %v9706 = vsub.f32 %v9704, %v9705
    %v9707 = vand.u32 %v9706, 4294901760
    %9708 = vmatmul.mubr.f32.gmra.mrb[0].mxu0 %v9707
    %v9709 = vpop.f32.mrb[0].mxu0
    %v9710 = vadd.f32 %v9557, %v9709
    %v9711 = vpop.f32.mrb[0].mxu0
    %9712 = vmatprep.mubr.f32.mxu0 0.0
    %v9713 = vand.u32 %v9603, 4294901760
    %v9714 = vsub.f32 %v9603, %v9713
    %v9715 = vand.u32 %v9714, 4294901760
    %v9716 = vsub.f32 %v9714, %v9715
    %v9717 = vand.u32 %v9716, 4294901760
    %9718 = vmatmul.mubr.f32.gmra.mrb[0].mxu0 %v9717
    %v9719 = vpop.f32.mrb[0].mxu0
    %v9720 = vadd.f32 %v9563, %v9719
    %v9721 = vpop.f32.mrb[0].mxu0
    %9722 = vmatprep.mubr.f32.mxu0 0.0
    %v9723 = vand.u32 %v9606, 4294901760
    %v9724 = vsub.f32 %v9606, %v9723
    %v9725 = vand.u32 %v9724, 4294901760
    %v9726 = vsub.f32 %v9724, %v9725
    %v9727 = vand.u32 %v9726, 4294901760
    %9728 = vmatmul.mubr.f32.gmra.mrb[0].mxu0 %v9727
    %v9729 = vpop.f32.mrb[0].mxu0
    %v9730 = vadd.f32 %v9569, %v9729
    %v9731 = vpop.f32.mrb[0].mxu0
    %9732 = vmatprep.mubr.f32.mxu0 0.0
    %v9733 = vand.u32 %v9609, 4294901760
    %v9734 = vsub.f32 %v9609, %v9733
    %v9735 = vand.u32 %v9734, 4294901760
    %v9736 = vsub.f32 %v9734, %v9735
    %v9737 = vand.u32 %v9736, 4294901760
    %9738 = vmatmul.mubr.f32.gmra.mrb[0].mxu0 %v9737
    %v9739 = vpop.f32.mrb[0].mxu0
    %v9740 = vadd.f32 %v9575, %v9739
    %v9741 = vpop.f32.mrb[0].mxu0
    %9742 = vmatprep.mubr.f32.mxu0 0.0
    %v9743 = vand.u32 %v9612, 4294901760
    %v9744 = vsub.f32 %v9612, %v9743
    %v9745 = vand.u32 %v9744, 4294901760
    %v9746 = vsub.f32 %v9744, %v9745
    %v9747 = vand.u32 %v9746, 4294901760
    %9748 = vmatmul.mubr.f32.gmra.mrb[0].mxu0 %v9747
    %v9749 = vpop.f32.mrb[0].mxu0
    %v9750 = vadd.f32 %v9581, %v9749
    %v9751 = vpop.f32.mrb[0].mxu0
    %9752 = vmatprep.mubr.f32.mxu0 0.0
    %v9753 = vand.u32 %v9615, 4294901760
    %v9754 = vsub.f32 %v9615, %v9753
    %v9755 = vand.u32 %v9754, 4294901760
    %v9756 = vsub.f32 %v9754, %v9755
    %v9757 = vand.u32 %v9756, 4294901760
    %9758 = vmatmul.mubr.f32.gmra.mrb[0].mxu0 %v9757
    %v9759 = vpop.f32.mrb[0].mxu0
    %v9760 = vadd.f32 %v9587, %v9759
    %v9761 = vpop.f32.mrb[0].mxu0
    %9762 = vmatprep.mubr.f32.mxu0 0.0
    %v9763 = vand.u32 %v9618, 4294901760
    %v9764 = vsub.f32 %v9618, %v9763
    %v9765 = vand.u32 %v9764, 4294901760
    %v9766 = vsub.f32 %v9764, %v9765
    %v9767 = vand.u32 %v9766, 4294901760
    %9768 = vmatmul.mubr.f32.gmra.mrb[0].mxu0 %v9767
    %v9769 = vpop.f32.mrb[0].mxu0
    %v9770 = vadd.f32 %v9593, %v9769
    %v9771 = vpop.f32.mrb[0].mxu0
    %9772 = vdwg.mxu0
    %9773 = vmatprep.subr.mxu0 0.0
    %v9774 = vand.u32 %v8798, 4294901760
    %v9775 = vsub.f32 %v8798, %v9774
    %v9776 = vand.u32 %v9775, 4294901760
    %v9777 = vsub.f32 %v9775, %v9776
    %v9778 = vand.u32 %v9777, 4294901760
    %9779 = vmatpush1.msra.mxu0 %v9778
    %9780 = vmatprep.subr.mxu0 0.0
    %v9781 = vand.u32 %v8799, 4294901760
    %v9782 = vsub.f32 %v8799, %v9781
    %v9783 = vand.u32 %v9782, 4294901760
    %v9784 = vsub.f32 %v9782, %v9783
    %v9785 = vand.u32 %v9784, 4294901760
    %9786 = vmatpush1.msra.mxu0 %v9785
    %9787 = vmatprep.subr.mxu0 0.0
    %v9788 = vand.u32 %v8800, 4294901760
    %v9789 = vsub.f32 %v8800, %v9788
    %v9790 = vand.u32 %v9789, 4294901760
    %v9791 = vsub.f32 %v9789, %v9790
    %v9792 = vand.u32 %v9791, 4294901760
    %9793 = vmatpush1.msra.mxu0 %v9792
    %9794 = vmatprep.subr.mxu0 0.0
    %v9795 = vand.u32 %v8801, 4294901760
    %v9796 = vsub.f32 %v8801, %v9795
    %v9797 = vand.u32 %v9796, 4294901760
    %v9798 = vsub.f32 %v9796, %v9797
    %v9799 = vand.u32 %v9798, 4294901760
    %9800 = vmatpush1.msra.mxu0 %v9799
    %9801 = vmatprep.subr.mxu0 0.0
    %v9802 = vand.u32 %v8802, 4294901760
    %v9803 = vsub.f32 %v8802, %v9802
    %v9804 = vand.u32 %v9803, 4294901760
    %v9805 = vsub.f32 %v9803, %v9804
    %v9806 = vand.u32 %v9805, 4294901760
    %9807 = vmatpush1.msra.mxu0 %v9806
    %9808 = vmatprep.subr.mxu0 0.0
    %v9809 = vand.u32 %v8803, 4294901760
    %v9810 = vsub.f32 %v8803, %v9809
    %v9811 = vand.u32 %v9810, 4294901760
    %v9812 = vsub.f32 %v9810, %v9811
    %v9813 = vand.u32 %v9812, 4294901760
    %9814 = vmatpush1.msra.mxu0 %v9813
    %9815 = vmatprep.subr.mxu0 0.0
    %v9816 = vand.u32 %v8804, 4294901760
    %v9817 = vsub.f32 %v8804, %v9816
    %v9818 = vand.u32 %v9817, 4294901760
    %v9819 = vsub.f32 %v9817, %v9818
    %v9820 = vand.u32 %v9819, 4294901760
    %9821 = vmatpush1.msra.mxu0 %v9820
    %9822 = vmatprep.subr.mxu0 0.0
    %v9823 = vand.u32 %v8805, 4294901760
    %v9824 = vsub.f32 %v8805, %v9823
    %v9825 = vand.u32 %v9824, 4294901760
    %v9826 = vsub.f32 %v9824, %v9825
    %v9827 = vand.u32 %v9826, 4294901760
    %9828 = vmatpush1.msra.mxu0 %v9827
    %9829 = vmatprep.subr.mxu0 0.0
    %9830 = vmatpush1.msra.mxu0 0.0
    %9831 = vmatprep.subr.mxu0 0.0
    %9832 = vmatpush1.msra.mxu0 0.0
    %9833 = vmatprep.subr.mxu0 0.0
    %9834 = vmatpush1.msra.mxu0 0.0
    %9835 = vmatprep.subr.mxu0 0.0
    %9836 = vmatpush1.msra.mxu0 0.0
    %9837 = vmatprep.subr.mxu0 0.0
    %9838 = vmatpush1.msra.mxu0 0.0
    %9839 = vmatprep.subr.mxu0 0.0
    %9840 = vmatpush1.msra.mxu0 0.0
    %9841 = vmatprep.subr.mxu0 0.0
    %9842 = vmatpush1.msra.mxu0 0.0
    %9843 = vmatprep.subr.mxu0 0.0
    %9844 = vmatpush1.msra.mxu0 0.0
    %9845 = vmatprep.subr.mxu0 0.0
    %9846 = vmatpush1.msra.mxu0 0.0
    %9847 = vmatprep.subr.mxu0 0.0
    %9848 = vmatpush1.msra.mxu0 0.0
    %9849 = vmatprep.subr.mxu0 0.0
    %9850 = vmatpush1.msra.mxu0 0.0
    %9851 = vmatprep.subr.mxu0 0.0
    %9852 = vmatpush1.msra.mxu0 0.0
    %9853 = vmatprep.subr.mxu0 0.0
    %9854 = vmatpush1.msra.mxu0 0.0
    %9855 = vmatprep.subr.mxu0 0.0
    %9856 = vmatpush1.msra.mxu0 0.0
    %9857 = vmatprep.subr.mxu0 0.0
    %9858 = vmatpush1.msra.mxu0 0.0
    %9859 = vmatprep.subr.mxu0 0.0
    %9860 = vmatpush1.msra.mxu0 0.0
    %9861 = vmatprep.subr.mxu0 0.0
    %9862 = vmatpush1.msra.mxu0 0.0
    %9863 = vmatprep.subr.mxu0 0.0
    %9864 = vmatpush1.msra.mxu0 0.0
    %9865 = vmatprep.subr.mxu0 0.0
    %9866 = vmatpush1.msra.mxu0 0.0
    %9867 = vmatprep.subr.mxu0 0.0
    %9868 = vmatpush1.msra.mxu0 0.0
    %9869 = vmatprep.subr.mxu0 0.0
    %9870 = vmatpush1.msra.mxu0 0.0
    %9871 = vmatprep.subr.mxu0 0.0
    %9872 = vmatpush1.msra.mxu0 0.0
    %9873 = vmatprep.subr.mxu0 0.0
    %9874 = vmatpush1.msra.mxu0 0.0
    %9875 = vmatprep.subr.mxu0 0.0
    %9876 = vmatpush1.msra.mxu0 0.0
    %9877 = vmatprep.mubr.f32.mxu0 0.0
    %v9878 = vand.u32 %v9597, 4294901760
    %9879 = vmatmul.mubr.f32.gmra.mrb[0].mxu0 %v9878
    %v9880 = vpop.f32.mrb[0].mxu0
    %v9881 = vadd.f32 %v9700, %v9880
    %v9882 = vpop.f32.mrb[0].mxu0
    %9883 = vmatprep.mubr.f32.mxu0 0.0
    %v9884 = vand.u32 %v9600, 4294901760
    %9885 = vmatmul.mubr.f32.gmra.mrb[0].mxu0 %v9884
    %v9886 = vpop.f32.mrb[0].mxu0
    %v9887 = vadd.f32 %v9710, %v9886
    %v9888 = vpop.f32.mrb[0].mxu0
    %9889 = vmatprep.mubr.f32.mxu0 0.0
    %v9890 = vand.u32 %v9603, 4294901760
    %9891 = vmatmul.mubr.f32.gmra.mrb[0].mxu0 %v9890
    %v9892 = vpop.f32.mrb[0].mxu0
    %v9893 = vadd.f32 %v9720, %v9892
    %v9894 = vpop.f32.mrb[0].mxu0
    %9895 = vmatprep.mubr.f32.mxu0 0.0
    %v9896 = vand.u32 %v9606, 4294901760
    %9897 = vmatmul.mubr.f32.gmra.mrb[0].mxu0 %v9896
    %v9898 = vpop.f32.mrb[0].mxu0
    %v9899 = vadd.f32 %v9730, %v9898
    %v9900 = vpop.f32.mrb[0].mxu0
    %9901 = vmatprep.mubr.f32.mxu0 0.0
    %v9902 = vand.u32 %v9609, 4294901760
    %9903 = vmatmul.mubr.f32.gmra.mrb[0].mxu0 %v9902
    %v9904 = vpop.f32.mrb[0].mxu0
    %v9905 = vadd.f32 %v9740, %v9904
    %v9906 = vpop.f32.mrb[0].mxu0
    %9907 = vmatprep.mubr.f32.mxu0 0.0
    %v9908 = vand.u32 %v9612, 4294901760
    %9909 = vmatmul.mubr.f32.gmra.mrb[0].mxu0 %v9908
    %v9910 = vpop.f32.mrb[0].mxu0
    %v9911 = vadd.f32 %v9750, %v9910
    %v9912 = vpop.f32.mrb[0].mxu0
    %9913 = vmatprep.mubr.f32.mxu0 0.0
    %v9914 = vand.u32 %v9615, 4294901760
    %9915 = vmatmul.mubr.f32.gmra.mrb[0].mxu0 %v9914
    %v9916 = vpop.f32.mrb[0].mxu0
    %v9917 = vadd.f32 %v9760, %v9916
    %v9918 = vpop.f32.mrb[0].mxu0
    %9919 = vmatprep.mubr.f32.mxu0 0.0
    %v9920 = vand.u32 %v9618, 4294901760
    %9921 = vmatmul.mubr.f32.gmra.mrb[0].mxu0 %v9920
    %v9922 = vpop.f32.mrb[0].mxu0
    %v9923 = vadd.f32 %v9770, %v9922
    %v9924 = vpop.f32.mrb[0].mxu0
    %9925 = vdwg.mxu0
    %9926 = vmatprep.subr.mxu0 0.0
    %v9927 = vand.u32 %v8798, 4294901760
    %v9928 = vsub.f32 %v8798, %v9927
    %9929 = vmatpush1.msra.mxu0 %v9928
    %9930 = vmatprep.subr.mxu0 0.0
    %v9931 = vand.u32 %v8799, 4294901760
    %v9932 = vsub.f32 %v8799, %v9931
    %9933 = vmatpush1.msra.mxu0 %v9932
    %9934 = vmatprep.subr.mxu0 0.0
    %v9935 = vand.u32 %v8800, 4294901760
    %v9936 = vsub.f32 %v8800, %v9935
    %9937 = vmatpush1.msra.mxu0 %v9936
    %9938 = vmatprep.subr.mxu0 0.0
    %v9939 = vand.u32 %v8801, 4294901760
    %v9940 = vsub.f32 %v8801, %v9939
    %9941 = vmatpush1.msra.mxu0 %v9940
    %9942 = vmatprep.subr.mxu0 0.0
    %v9943 = vand.u32 %v8802, 4294901760
    %v9944 = vsub.f32 %v8802, %v9943
    %9945 = vmatpush1.msra.mxu0 %v9944
    %9946 = vmatprep.subr.mxu0 0.0
    %v9947 = vand.u32 %v8803, 4294901760
    %v9948 = vsub.f32 %v8803, %v9947
    %9949 = vmatpush1.msra.mxu0 %v9948
    %9950 = vmatprep.subr.mxu0 0.0
    %v9951 = vand.u32 %v8804, 4294901760
    %v9952 = vsub.f32 %v8804, %v9951
    %9953 = vmatpush1.msra.mxu0 %v9952
    %9954 = vmatprep.subr.mxu0 0.0
    %v9955 = vand.u32 %v8805, 4294901760
    %v9956 = vsub.f32 %v8805, %v9955
    %9957 = vmatpush1.msra.mxu0 %v9956
    %9958 = vmatprep.subr.mxu0 0.0
    %9959 = vmatpush1.msra.mxu0 0.0
    %9960 = vmatprep.subr.mxu0 0.0
    %9961 = vmatpush1.msra.mxu0 0.0
    %9962 = vmatprep.subr.mxu0 0.0
    %9963 = vmatpush1.msra.mxu0 0.0
    %9964 = vmatprep.subr.mxu0 0.0
    %9965 = vmatpush1.msra.mxu0 0.0
    %9966 = vmatprep.subr.mxu0 0.0
    %9967 = vmatpush1.msra.mxu0 0.0
    %9968 = vmatprep.subr.mxu0 0.0
    %9969 = vmatpush1.msra.mxu0 0.0
    %9970 = vmatprep.subr.mxu0 0.0
    %9971 = vmatpush1.msra.mxu0 0.0
    %9972 = vmatprep.subr.mxu0 0.0
    %9973 = vmatpush1.msra.mxu0 0.0
    %9974 = vmatprep.subr.mxu0 0.0
    %9975 = vmatpush1.msra.mxu0 0.0
    %9976 = vmatprep.subr.mxu0 0.0
    %9977 = vmatpush1.msra.mxu0 0.0
    %9978 = vmatprep.subr.mxu0 0.0
    %9979 = vmatpush1.msra.mxu0 0.0
    %9980 = vmatprep.subr.mxu0 0.0
    %9981 = vmatpush1.msra.mxu0 0.0
    %9982 = vmatprep.subr.mxu0 0.0
    %9983 = vmatpush1.msra.mxu0 0.0
    %9984 = vmatprep.subr.mxu0 0.0
    %9985 = vmatpush1.msra.mxu0 0.0
    %9986 = vmatprep.subr.mxu0 0.0
    %9987 = vmatpush1.msra.mxu0 0.0
    %9988 = vmatprep.subr.mxu0 0.0
    %9989 = vmatpush1.msra.mxu0 0.0
    %9990 = vmatprep.subr.mxu0 0.0
    %9991 = vmatpush1.msra.mxu0 0.0
    %9992 = vmatprep.subr.mxu0 0.0
    %9993 = vmatpush1.msra.mxu0 0.0
    %9994 = vmatprep.subr.mxu0 0.0
    %9995 = vmatpush1.msra.mxu0 0.0
    %9996 = vmatprep.subr.mxu0 0.0
    %9997 = vmatpush1.msra.mxu0 0.0
    %9998 = vmatprep.subr.mxu0 0.0
    %9999 = vmatpush1.msra.mxu0 0.0
    %10000 = vmatprep.subr.mxu0 0.0
    %10001 = vmatpush1.msra.mxu0 0.0
    %10002 = vmatprep.subr.mxu0 0.0
    %10003 = vmatpush1.msra.mxu0 0.0
    %10004 = vmatprep.subr.mxu0 0.0
    %10005 = vmatpush1.msra.mxu0 0.0
    %10006 = vmatprep.mubr.f32.mxu0 0.0
    %v10007 = vand.u32 %v9597, 4294901760
    %v10008 = vsub.f32 %v9597, %v10007
    %10009 = vmatmul.mubr.f32.gmra.mrb[0].mxu0 %v10008
    %v10010 = vpop.f32.mrb[0].mxu0
    %v10011 = vadd.f32 %v9881, %v10010
    %v10012 = vpop.f32.mrb[0].mxu0
    %10013 = vmatprep.mubr.f32.mxu0 0.0
    %v10014 = vand.u32 %v9600, 4294901760
    %v10015 = vsub.f32 %v9600, %v10014
    %10016 = vmatmul.mubr.f32.gmra.mrb[0].mxu0 %v10015
    %v10017 = vpop.f32.mrb[0].mxu0
    %v10018 = vadd.f32 %v9887, %v10017
    %v10019 = vpop.f32.mrb[0].mxu0
    %10020 = vmatprep.mubr.f32.mxu0 0.0
    %v10021 = vand.u32 %v9603, 4294901760
    %v10022 = vsub.f32 %v9603, %v10021
    %10023 = vmatmul.mubr.f32.gmra.mrb[0].mxu0 %v10022
    %v10024 = vpop.f32.mrb[0].mxu0
    %v10025 = vadd.f32 %v9893, %v10024
    %v10026 = vpop.f32.mrb[0].mxu0
    %10027 = vmatprep.mubr.f32.mxu0 0.0
    %v10028 = vand.u32 %v9606, 4294901760
    %v10029 = vsub.f32 %v9606, %v10028
    %10030 = vmatmul.mubr.f32.gmra.mrb[0].mxu0 %v10029
    %v10031 = vpop.f32.mrb[0].mxu0
    %v10032 = vadd.f32 %v9899, %v10031
    %v10033 = vpop.f32.mrb[0].mxu0
    %10034 = vmatprep.mubr.f32.mxu0 0.0
    %v10035 = vand.u32 %v9609, 4294901760
    %v10036 = vsub.f32 %v9609, %v10035
    %10037 = vmatmul.mubr.f32.gmra.mrb[0].mxu0 %v10036
    %v10038 = vpop.f32.mrb[0].mxu0
    %v10039 = vadd.f32 %v9905, %v10038
    %v10040 = vpop.f32.mrb[0].mxu0
    %10041 = vmatprep.mubr.f32.mxu0 0.0
    %v10042 = vand.u32 %v9612, 4294901760
    %v10043 = vsub.f32 %v9612, %v10042
    %10044 = vmatmul.mubr.f32.gmra.mrb[0].mxu0 %v10043
    %v10045 = vpop.f32.mrb[0].mxu0
    %v10046 = vadd.f32 %v9911, %v10045
    %v10047 = vpop.f32.mrb[0].mxu0
    %10048 = vmatprep.mubr.f32.mxu0 0.0
    %v10049 = vand.u32 %v9615, 4294901760
    %v10050 = vsub.f32 %v9615, %v10049
    %10051 = vmatmul.mubr.f32.gmra.mrb[0].mxu0 %v10050
    %v10052 = vpop.f32.mrb[0].mxu0
    %v10053 = vadd.f32 %v9917, %v10052
    %v10054 = vpop.f32.mrb[0].mxu0
    %10055 = vmatprep.mubr.f32.mxu0 0.0
    %v10056 = vand.u32 %v9618, 4294901760
    %v10057 = vsub.f32 %v9618, %v10056
    %10058 = vmatmul.mubr.f32.gmra.mrb[0].mxu0 %v10057
    %v10059 = vpop.f32.mrb[0].mxu0
    %v10060 = vadd.f32 %v9923, %v10059
    %v10061 = vpop.f32.mrb[0].mxu0
    %10062 = vdwg.mxu0
    %10063 = vmatprep.subr.mxu0 0.0
    %v10064 = vand.u32 %v8798, 4294901760
    %10065 = vmatpush1.msra.mxu0 %v10064
    %10066 = vmatprep.subr.mxu0 0.0
    %v10067 = vand.u32 %v8799, 4294901760
    %10068 = vmatpush1.msra.mxu0 %v10067
    %10069 = vmatprep.subr.mxu0 0.0
    %v10070 = vand.u32 %v8800, 4294901760
    %10071 = vmatpush1.msra.mxu0 %v10070
    %10072 = vmatprep.subr.mxu0 0.0
    %v10073 = vand.u32 %v8801, 4294901760
    %10074 = vmatpush1.msra.mxu0 %v10073
    %10075 = vmatprep.subr.mxu0 0.0
    %v10076 = vand.u32 %v8802, 4294901760
    %10077 = vmatpush1.msra.mxu0 %v10076
    %10078 = vmatprep.subr.mxu0 0.0
    %v10079 = vand.u32 %v8803, 4294901760
    %10080 = vmatpush1.msra.mxu0 %v10079
    %10081 = vmatprep.subr.mxu0 0.0
    %v10082 = vand.u32 %v8804, 4294901760
    %10083 = vmatpush1.msra.mxu0 %v10082
    %10084 = vmatprep.subr.mxu0 0.0
    %v10085 = vand.u32 %v8805, 4294901760
    %10086 = vmatpush1.msra.mxu0 %v10085
    %10087 = vmatprep.subr.mxu0 0.0
    %10088 = vmatpush1.msra.mxu0 0.0
    %10089 = vmatprep.subr.mxu0 0.0
    %10090 = vmatpush1.msra.mxu0 0.0
    %10091 = vmatprep.subr.mxu0 0.0
    %10092 = vmatpush1.msra.mxu0 0.0
    %10093 = vmatprep.subr.mxu0 0.0
    %10094 = vmatpush1.msra.mxu0 0.0
    %10095 = vmatprep.subr.mxu0 0.0
    %10096 = vmatpush1.msra.mxu0 0.0
    %10097 = vmatprep.subr.mxu0 0.0
    %10098 = vmatpush1.msra.mxu0 0.0
    %10099 = vmatprep.subr.mxu0 0.0
    %10100 = vmatpush1.msra.mxu0 0.0
    %10101 = vmatprep.subr.mxu0 0.0
    %10102 = vmatpush1.msra.mxu0 0.0
    %10103 = vmatprep.subr.mxu0 0.0
    %10104 = vmatpush1.msra.mxu0 0.0
    %10105 = vmatprep.subr.mxu0 0.0
    %10106 = vmatpush1.msra.mxu0 0.0
    %10107 = vmatprep.subr.mxu0 0.0
    %10108 = vmatpush1.msra.mxu0 0.0
    %10109 = vmatprep.subr.mxu0 0.0
    %10110 = vmatpush1.msra.mxu0 0.0
    %10111 = vmatprep.subr.mxu0 0.0
    %10112 = vmatpush1.msra.mxu0 0.0
    %10113 = vmatprep.subr.mxu0 0.0
    %10114 = vmatpush1.msra.mxu0 0.0
    %10115 = vmatprep.subr.mxu0 0.0
    %10116 = vmatpush1.msra.mxu0 0.0
    %10117 = vmatprep.subr.mxu0 0.0
    %10118 = vmatpush1.msra.mxu0 0.0
    %10119 = vmatprep.subr.mxu0 0.0
    %10120 = vmatpush1.msra.mxu0 0.0
    %10121 = vmatprep.subr.mxu0 0.0
    %10122 = vmatpush1.msra.mxu0 0.0
    %10123 = vmatprep.subr.mxu0 0.0
    %10124 = vmatpush1.msra.mxu0 0.0
    %10125 = vmatprep.subr.mxu0 0.0
    %10126 = vmatpush1.msra.mxu0 0.0
    %10127 = vmatprep.subr.mxu0 0.0
    %10128 = vmatpush1.msra.mxu0 0.0
    %10129 = vmatprep.subr.mxu0 0.0
    %10130 = vmatpush1.msra.mxu0 0.0
    %10131 = vmatprep.subr.mxu0 0.0
    %10132 = vmatpush1.msra.mxu0 0.0
    %10133 = vmatprep.subr.mxu0 0.0
    %10134 = vmatpush1.msra.mxu0 0.0
    %10135 = vmatprep.mubr.f32.mxu0 0.0
    %v10136 = vand.u32 %v9597, 4294901760
    %v10137 = vsub.f32 %v9597, %v10136
    %v10138 = vand.u32 %v10137, 4294901760
    %10139 = vmatmul.mubr.f32.gmra.mrb[0].mxu0 %v10138
    %v10140 = vpop.f32.mrb[0].mxu0
    %v10141 = vadd.f32 %v10011, %v10140
    %v10142 = vpop.f32.mrb[0].mxu0
    %10143 = vmatprep.mubr.f32.mxu0 0.0
    %v10144 = vand.u32 %v9600, 4294901760
    %v10145 = vsub.f32 %v9600, %v10144
    %v10146 = vand.u32 %v10145, 4294901760
    %10147 = vmatmul.mubr.f32.gmra.mrb[0].mxu0 %v10146
    %v10148 = vpop.f32.mrb[0].mxu0
    %v10149 = vadd.f32 %v10018, %v10148
    %v10150 = vpop.f32.mrb[0].mxu0
    %10151 = vmatprep.mubr.f32.mxu0 0.0
    %v10152 = vand.u32 %v9603, 4294901760
    %v10153 = vsub.f32 %v9603, %v10152
    %v10154 = vand.u32 %v10153, 4294901760
    %10155 = vmatmul.mubr.f32.gmra.mrb[0].mxu0 %v10154
    %v10156 = vpop.f32.mrb[0].mxu0
    %v10157 = vadd.f32 %v10025, %v10156
    %v10158 = vpop.f32.mrb[0].mxu0
    %10159 = vmatprep.mubr.f32.mxu0 0.0
    %v10160 = vand.u32 %v9606, 4294901760
    %v10161 = vsub.f32 %v9606, %v10160
    %v10162 = vand.u32 %v10161, 4294901760
    %10163 = vmatmul.mubr.f32.gmra.mrb[0].mxu0 %v10162
    %v10164 = vpop.f32.mrb[0].mxu0
    %v10165 = vadd.f32 %v10032, %v10164
    %v10166 = vpop.f32.mrb[0].mxu0
    %10167 = vmatprep.mubr.f32.mxu0 0.0
    %v10168 = vand.u32 %v9609, 4294901760
    %v10169 = vsub.f32 %v9609, %v10168
    %v10170 = vand.u32 %v10169, 4294901760
    %10171 = vmatmul.mubr.f32.gmra.mrb[0].mxu0 %v10170
    %v10172 = vpop.f32.mrb[0].mxu0
    %v10173 = vadd.f32 %v10039, %v10172
    %v10174 = vpop.f32.mrb[0].mxu0
    %10175 = vmatprep.mubr.f32.mxu0 0.0
    %v10176 = vand.u32 %v9612, 4294901760
    %v10177 = vsub.f32 %v9612, %v10176
    %v10178 = vand.u32 %v10177, 4294901760
    %10179 = vmatmul.mubr.f32.gmra.mrb[0].mxu0 %v10178
    %v10180 = vpop.f32.mrb[0].mxu0
    %v10181 = vadd.f32 %v10046, %v10180
    %v10182 = vpop.f32.mrb[0].mxu0
    %10183 = vmatprep.mubr.f32.mxu0 0.0
    %v10184 = vand.u32 %v9615, 4294901760
    %v10185 = vsub.f32 %v9615, %v10184
    %v10186 = vand.u32 %v10185, 4294901760
    %10187 = vmatmul.mubr.f32.gmra.mrb[0].mxu0 %v10186
    %v10188 = vpop.f32.mrb[0].mxu0
    %v10189 = vadd.f32 %v10053, %v10188
    %v10190 = vpop.f32.mrb[0].mxu0
    %10191 = vmatprep.mubr.f32.mxu0 0.0
    %v10192 = vand.u32 %v9618, 4294901760
    %v10193 = vsub.f32 %v9618, %v10192
    %v10194 = vand.u32 %v10193, 4294901760
    %10195 = vmatmul.mubr.f32.gmra.mrb[0].mxu0 %v10194
    %v10196 = vpop.f32.mrb[0].mxu0
    %v10197 = vadd.f32 %v10060, %v10196
    %v10198 = vpop.f32.mrb[0].mxu0
    %10199 = vdwg.mxu0
    %10200 = vmatprep.subr.mxu0 0.0
    %v10201 = vand.u32 %v8798, 4294901760
    %v10202 = vsub.f32 %v8798, %v10201
    %v10203 = vand.u32 %v10202, 4294901760
    %10204 = vmatpush1.msra.mxu0 %v10203
    %10205 = vmatprep.subr.mxu0 0.0
    %v10206 = vand.u32 %v8799, 4294901760
    %v10207 = vsub.f32 %v8799, %v10206
    %v10208 = vand.u32 %v10207, 4294901760
    %10209 = vmatpush1.msra.mxu0 %v10208
    %10210 = vmatprep.subr.mxu0 0.0
    %v10211 = vand.u32 %v8800, 4294901760
    %v10212 = vsub.f32 %v8800, %v10211
    %v10213 = vand.u32 %v10212, 4294901760
    %10214 = vmatpush1.msra.mxu0 %v10213
    %10215 = vmatprep.subr.mxu0 0.0
    %v10216 = vand.u32 %v8801, 4294901760
    %v10217 = vsub.f32 %v8801, %v10216
    %v10218 = vand.u32 %v10217, 4294901760
    %10219 = vmatpush1.msra.mxu0 %v10218
    %10220 = vmatprep.subr.mxu0 0.0
    %v10221 = vand.u32 %v8802, 4294901760
    %v10222 = vsub.f32 %v8802, %v10221
    %v10223 = vand.u32 %v10222, 4294901760
    %10224 = vmatpush1.msra.mxu0 %v10223
    %10225 = vmatprep.subr.mxu0 0.0
    %v10226 = vand.u32 %v8803, 4294901760
    %v10227 = vsub.f32 %v8803, %v10226
    %v10228 = vand.u32 %v10227, 4294901760
    %10229 = vmatpush1.msra.mxu0 %v10228
    %10230 = vmatprep.subr.mxu0 0.0
    %v10231 = vand.u32 %v8804, 4294901760
    %v10232 = vsub.f32 %v8804, %v10231
    %v10233 = vand.u32 %v10232, 4294901760
    %10234 = vmatpush1.msra.mxu0 %v10233
    %10235 = vmatprep.subr.mxu0 0.0
    %v10236 = vand.u32 %v8805, 4294901760
    %v10237 = vsub.f32 %v8805, %v10236
    %v10238 = vand.u32 %v10237, 4294901760
    %10239 = vmatpush1.msra.mxu0 %v10238
    %10240 = vmatprep.subr.mxu0 0.0
    %10241 = vmatpush1.msra.mxu0 0.0
    %10242 = vmatprep.subr.mxu0 0.0
    %10243 = vmatpush1.msra.mxu0 0.0
    %10244 = vmatprep.subr.mxu0 0.0
    %10245 = vmatpush1.msra.mxu0 0.0
    %10246 = vmatprep.subr.mxu0 0.0
    %10247 = vmatpush1.msra.mxu0 0.0
    %10248 = vmatprep.subr.mxu0 0.0
    %10249 = vmatpush1.msra.mxu0 0.0
    %10250 = vmatprep.subr.mxu0 0.0
    %10251 = vmatpush1.msra.mxu0 0.0
    %10252 = vmatprep.subr.mxu0 0.0
    %10253 = vmatpush1.msra.mxu0 0.0
    %10254 = vmatprep.subr.mxu0 0.0
    %10255 = vmatpush1.msra.mxu0 0.0
    %10256 = vmatprep.subr.mxu0 0.0
    %10257 = vmatpush1.msra.mxu0 0.0
    %10258 = vmatprep.subr.mxu0 0.0
    %10259 = vmatpush1.msra.mxu0 0.0
    %10260 = vmatprep.subr.mxu0 0.0
    %10261 = vmatpush1.msra.mxu0 0.0
    %10262 = vmatprep.subr.mxu0 0.0
    %10263 = vmatpush1.msra.mxu0 0.0
    %10264 = vmatprep.subr.mxu0 0.0
    %10265 = vmatpush1.msra.mxu0 0.0
    %10266 = vmatprep.subr.mxu0 0.0
    %10267 = vmatpush1.msra.mxu0 0.0
    %10268 = vmatprep.subr.mxu0 0.0
    %10269 = vmatpush1.msra.mxu0 0.0
    %10270 = vmatprep.subr.mxu0 0.0
    %10271 = vmatpush1.msra.mxu0 0.0
    %10272 = vmatprep.subr.mxu0 0.0
    %10273 = vmatpush1.msra.mxu0 0.0
    %10274 = vmatprep.subr.mxu0 0.0
    %10275 = vmatpush1.msra.mxu0 0.0
    %10276 = vmatprep.subr.mxu0 0.0
    %10277 = vmatpush1.msra.mxu0 0.0
    %10278 = vmatprep.subr.mxu0 0.0
    %10279 = vmatpush1.msra.mxu0 0.0
    %10280 = vmatprep.subr.mxu0 0.0
    %10281 = vmatpush1.msra.mxu0 0.0
    %10282 = vmatprep.subr.mxu0 0.0
    %10283 = vmatpush1.msra.mxu0 0.0
    %10284 = vmatprep.subr.mxu0 0.0
    %10285 = vmatpush1.msra.mxu0 0.0
    %10286 = vmatprep.subr.mxu0 0.0
    %10287 = vmatpush1.msra.mxu0 0.0
    %10288 = vmatprep.mubr.f32.mxu0 0.0
    %v10289 = vand.u32 %v9597, 4294901760
    %10290 = vmatmul.mubr.f32.gmra.mrb[0].mxu0 %v10289
    %v10291 = vpop.f32.mrb[0].mxu0
    %v10292 = vadd.f32 %v10141, %v10291
    %v10293 = vpop.f32.mrb[0].mxu0
    %10294 = vmatprep.mubr.f32.mxu0 0.0
    %v10295 = vand.u32 %v9600, 4294901760
    %10296 = vmatmul.mubr.f32.gmra.mrb[0].mxu0 %v10295
    %v10297 = vpop.f32.mrb[0].mxu0
    %v10298 = vadd.f32 %v10149, %v10297
    %v10299 = vpop.f32.mrb[0].mxu0
    %10300 = vmatprep.mubr.f32.mxu0 0.0
    %v10301 = vand.u32 %v9603, 4294901760
    %10302 = vmatmul.mubr.f32.gmra.mrb[0].mxu0 %v10301
    %v10303 = vpop.f32.mrb[0].mxu0
    %v10304 = vadd.f32 %v10157, %v10303
    %v10305 = vpop.f32.mrb[0].mxu0
    %10306 = vmatprep.mubr.f32.mxu0 0.0
    %v10307 = vand.u32 %v9606, 4294901760
    %10308 = vmatmul.mubr.f32.gmra.mrb[0].mxu0 %v10307
    %v10309 = vpop.f32.mrb[0].mxu0
    %v10310 = vadd.f32 %v10165, %v10309
    %v10311 = vpop.f32.mrb[0].mxu0
    %10312 = vmatprep.mubr.f32.mxu0 0.0
    %v10313 = vand.u32 %v9609, 4294901760
    %10314 = vmatmul.mubr.f32.gmra.mrb[0].mxu0 %v10313
    %v10315 = vpop.f32.mrb[0].mxu0
    %v10316 = vadd.f32 %v10173, %v10315
    %v10317 = vpop.f32.mrb[0].mxu0
    %10318 = vmatprep.mubr.f32.mxu0 0.0
    %v10319 = vand.u32 %v9612, 4294901760
    %10320 = vmatmul.mubr.f32.gmra.mrb[0].mxu0 %v10319
    %v10321 = vpop.f32.mrb[0].mxu0
    %v10322 = vadd.f32 %v10181, %v10321
    %v10323 = vpop.f32.mrb[0].mxu0
    %10324 = vmatprep.mubr.f32.mxu0 0.0
    %v10325 = vand.u32 %v9615, 4294901760
    %10326 = vmatmul.mubr.f32.gmra.mrb[0].mxu0 %v10325
    %v10327 = vpop.f32.mrb[0].mxu0
    %v10328 = vadd.f32 %v10189, %v10327
    %v10329 = vpop.f32.mrb[0].mxu0
    %10330 = vmatprep.mubr.f32.mxu0 0.0
    %v10331 = vand.u32 %v9618, 4294901760
    %10332 = vmatmul.mubr.f32.gmra.mrb[0].mxu0 %v10331
    %v10333 = vpop.f32.mrb[0].mxu0
    %v10334 = vadd.f32 %v10197, %v10333
    %v10335 = vpop.f32.mrb[0].mxu0
    %10336 = vdwg.mxu0
    %10337 = vmatprep.subr.mxu0 0.0
    %v10338 = vand.u32 %v8798, 4294901760
    %10339 = vmatpush1.msra.mxu0 %v10338
    %10340 = vmatprep.subr.mxu0 0.0
    %v10341 = vand.u32 %v8799, 4294901760
    %10342 = vmatpush1.msra.mxu0 %v10341
    %10343 = vmatprep.subr.mxu0 0.0
    %v10344 = vand.u32 %v8800, 4294901760
    %10345 = vmatpush1.msra.mxu0 %v10344
    %10346 = vmatprep.subr.mxu0 0.0
    %v10347 = vand.u32 %v8801, 4294901760
    %10348 = vmatpush1.msra.mxu0 %v10347
    %10349 = vmatprep.subr.mxu0 0.0
    %v10350 = vand.u32 %v8802, 4294901760
    %10351 = vmatpush1.msra.mxu0 %v10350
    %10352 = vmatprep.subr.mxu0 0.0
    %v10353 = vand.u32 %v8803, 4294901760
    %10354 = vmatpush1.msra.mxu0 %v10353
    %10355 = vmatprep.subr.mxu0 0.0
    %v10356 = vand.u32 %v8804, 4294901760
    %10357 = vmatpush1.msra.mxu0 %v10356
    %10358 = vmatprep.subr.mxu0 0.0
    %v10359 = vand.u32 %v8805, 4294901760
    %10360 = vmatpush1.msra.mxu0 %v10359
    %10361 = vmatprep.subr.mxu0 0.0
    %10362 = vmatpush1.msra.mxu0 0.0
    %10363 = vmatprep.subr.mxu0 0.0
    %10364 = vmatpush1.msra.mxu0 0.0
    %10365 = vmatprep.subr.mxu0 0.0
    %10366 = vmatpush1.msra.mxu0 0.0
    %10367 = vmatprep.subr.mxu0 0.0
    %10368 = vmatpush1.msra.mxu0 0.0
    %10369 = vmatprep.subr.mxu0 0.0
    %10370 = vmatpush1.msra.mxu0 0.0
    %10371 = vmatprep.subr.mxu0 0.0
    %10372 = vmatpush1.msra.mxu0 0.0
    %10373 = vmatprep.subr.mxu0 0.0
    %10374 = vmatpush1.msra.mxu0 0.0
    %10375 = vmatprep.subr.mxu0 0.0
    %10376 = vmatpush1.msra.mxu0 0.0
    %10377 = vmatprep.subr.mxu0 0.0
    %10378 = vmatpush1.msra.mxu0 0.0
    %10379 = vmatprep.subr.mxu0 0.0
    %10380 = vmatpush1.msra.mxu0 0.0
    %10381 = vmatprep.subr.mxu0 0.0
    %10382 = vmatpush1.msra.mxu0 0.0
    %10383 = vmatprep.subr.mxu0 0.0
    %10384 = vmatpush1.msra.mxu0 0.0
    %10385 = vmatprep.subr.mxu0 0.0
    %10386 = vmatpush1.msra.mxu0 0.0
    %10387 = vmatprep.subr.mxu0 0.0
    %10388 = vmatpush1.msra.mxu0 0.0
    %10389 = vmatprep.subr.mxu0 0.0
    %10390 = vmatpush1.msra.mxu0 0.0
    %10391 = vmatprep.subr.mxu0 0.0
    %10392 = vmatpush1.msra.mxu0 0.0
    %10393 = vmatprep.subr.mxu0 0.0
    %10394 = vmatpush1.msra.mxu0 0.0
    %10395 = vmatprep.subr.mxu0 0.0
    %10396 = vmatpush1.msra.mxu0 0.0
    %10397 = vmatprep.subr.mxu0 0.0
    %10398 = vmatpush1.msra.mxu0 0.0
    %10399 = vmatprep.subr.mxu0 0.0
    %10400 = vmatpush1.msra.mxu0 0.0
    %10401 = vmatprep.subr.mxu0 0.0
    %10402 = vmatpush1.msra.mxu0 0.0
    %10403 = vmatprep.subr.mxu0 0.0
    %10404 = vmatpush1.msra.mxu0 0.0
    %10405 = vmatprep.subr.mxu0 0.0
    %10406 = vmatpush1.msra.mxu0 0.0
    %10407 = vmatprep.subr.mxu0 0.0
    %10408 = vmatpush1.msra.mxu0 0.0
    %10409 = vmatprep.mubr.f32.mxu0 0.0
    %v10410 = vand.u32 %v9597, 4294901760
    %10411 = vmatmul.mubr.f32.gmra.mrb[0].mxu0 %v10410
    %v10412 = vpop.f32.mrb[0].mxu0
    %v10413 = vadd.f32 %v10292, %v10412
    %v10414 = vpop.f32.mrb[0].mxu0
    %10415 = vmatprep.mubr.f32.mxu0 0.0
    %v10416 = vand.u32 %v9600, 4294901760
    %10417 = vmatmul.mubr.f32.gmra.mrb[0].mxu0 %v10416
    %v10418 = vpop.f32.mrb[0].mxu0
    %v10419 = vadd.f32 %v10298, %v10418
    %v10420 = vpop.f32.mrb[0].mxu0
    %10421 = vmatprep.mubr.f32.mxu0 0.0
    %v10422 = vand.u32 %v9603, 4294901760
    %10423 = vmatmul.mubr.f32.gmra.mrb[0].mxu0 %v10422
    %v10424 = vpop.f32.mrb[0].mxu0
    %v10425 = vadd.f32 %v10304, %v10424
    %v10426 = vpop.f32.mrb[0].mxu0
    %10427 = vmatprep.mubr.f32.mxu0 0.0
    %v10428 = vand.u32 %v9606, 4294901760
    %10429 = vmatmul.mubr.f32.gmra.mrb[0].mxu0 %v10428
    %v10430 = vpop.f32.mrb[0].mxu0
    %v10431 = vadd.f32 %v10310, %v10430
    %v10432 = vpop.f32.mrb[0].mxu0
    %10433 = vmatprep.mubr.f32.mxu0 0.0
    %v10434 = vand.u32 %v9609, 4294901760
    %10435 = vmatmul.mubr.f32.gmra.mrb[0].mxu0 %v10434
    %v10436 = vpop.f32.mrb[0].mxu0
    %v10437 = vadd.f32 %v10316, %v10436
    %v10438 = vpop.f32.mrb[0].mxu0
    %10439 = vmatprep.mubr.f32.mxu0 0.0
    %v10440 = vand.u32 %v9612, 4294901760
    %10441 = vmatmul.mubr.f32.gmra.mrb[0].mxu0 %v10440
    %v10442 = vpop.f32.mrb[0].mxu0
    %v10443 = vadd.f32 %v10322, %v10442
    %v10444 = vpop.f32.mrb[0].mxu0
    %10445 = vmatprep.mubr.f32.mxu0 0.0
    %v10446 = vand.u32 %v9615, 4294901760
    %10447 = vmatmul.mubr.f32.gmra.mrb[0].mxu0 %v10446
    %v10448 = vpop.f32.mrb[0].mxu0
    %v10449 = vadd.f32 %v10328, %v10448
    %v10450 = vpop.f32.mrb[0].mxu0
    %10451 = vmatprep.mubr.f32.mxu0 0.0
    %v10452 = vand.u32 %v9618, 4294901760
    %10453 = vmatmul.mubr.f32.gmra.mrb[0].mxu0 %v10452
    %v10454 = vpop.f32.mrb[0].mxu0
    %v10455 = vadd.f32 %v10334, %v10454
    %v10456 = vpop.f32.mrb[0].mxu0
    %10457 = vdwg.mxu0
    %v10458 = vld [vmem:[%s7] sm:$0x1]
    %v10459 = vld [vmem:[%s8] sm:$0x1]
    %v10460 = vsel %vm1907, %v10413, 0.0
    %10461 = vadd.xlane.f32.xlu0 %v10460
    %v10462 = vpop.xlane.xlu0 %10461
    %v10463 = vsel %vm1907, %v10419, 0.0
    %10464 = vadd.xlane.f32.xlu0 %v10463
    %v10465 = vpop.xlane.xlu0 %10464
    %v10466 = vsel %vm1907, %v10425, 0.0
    %10467 = vadd.xlane.f32.xlu0 %v10466
    %v10468 = vpop.xlane.xlu0 %10467
    %v10469 = vsel %vm1907, %v10431, 0.0
    %10470 = vadd.xlane.f32.xlu0 %v10469
    %v10471 = vpop.xlane.xlu0 %10470
    %v10472 = vsel %vm1907, %v10437, 0.0
    %10473 = vadd.xlane.f32.xlu0 %v10472
    %v10474 = vpop.xlane.xlu0 %10473
    %v10475 = vsel %vm1907, %v10443, 0.0
    %10476 = vadd.xlane.f32.xlu0 %v10475
    %v10477 = vpop.xlane.xlu0 %10476
    %v10478 = vsel %vm1907, %v10449, 0.0
    %10479 = vadd.xlane.f32.xlu0 %v10478
    %v10480 = vpop.xlane.xlu0 %10479
    %v10481 = vsel %vm1907, %v10455, 0.0
    %10482 = vadd.xlane.f32.xlu0 %v10481
    %v10483 = vpop.xlane.xlu0 %10482
    %v10484 = vmul.f32 %v10462, %v8689
    %v10485 = vmul.f32 %v10465, %v8689
    %v10486 = vmul.f32 %v10468, %v8689
    %v10487 = vmul.f32 %v10471, %v8689
    %v10488 = vmul.f32 %v10474, %v8689
    %v10489 = vmul.f32 %v10477, %v8689
    %v10490 = vmul.f32 %v10480, %v8689
    %v10491 = vmul.f32 %v10483, %v8689
    %v10492 = vsub.f32 %v10413, %v10484
    %v10493 = vsub.f32 %v10419, %v10485
    %v10494 = vsub.f32 %v10425, %v10486
    %v10495 = vsub.f32 %v10431, %v10487
    %v10496 = vsub.f32 %v10437, %v10488
    %v10497 = vsub.f32 %v10443, %v10489
    %v10498 = vsub.f32 %v10449, %v10490
    %v10499 = vsub.f32 %v10455, %v10491
    %v10500 = vmul.f32 %v10492, %v10492
    %v10501 = vmul.f32 %v10493, %v10493
    %v10502 = vmul.f32 %v10494, %v10494
    %v10503 = vmul.f32 %v10495, %v10495
    %v10504 = vmul.f32 %v10496, %v10496
    %v10505 = vmul.f32 %v10497, %v10497
    %v10506 = vmul.f32 %v10498, %v10498
    %v10507 = vmul.f32 %v10499, %v10499
    %v10508 = vsel %vm1907, %v10500, 0.0
    %10509 = vadd.xlane.f32.xlu0 %v10508
    %v10510 = vpop.xlane.xlu0 %10509
    %v10511 = vsel %vm1907, %v10501, 0.0
    %10512 = vadd.xlane.f32.xlu0 %v10511
    %v10513 = vpop.xlane.xlu0 %10512
    %v10514 = vsel %vm1907, %v10502, 0.0
    %10515 = vadd.xlane.f32.xlu0 %v10514
    %v10516 = vpop.xlane.xlu0 %10515
    %v10517 = vsel %vm1907, %v10503, 0.0
    %10518 = vadd.xlane.f32.xlu0 %v10517
    %v10519 = vpop.xlane.xlu0 %10518
    %v10520 = vsel %vm1907, %v10504, 0.0
    %10521 = vadd.xlane.f32.xlu0 %v10520
    %v10522 = vpop.xlane.xlu0 %10521
    %v10523 = vsel %vm1907, %v10505, 0.0
    %10524 = vadd.xlane.f32.xlu0 %v10523
    %v10525 = vpop.xlane.xlu0 %10524
    %v10526 = vsel %vm1907, %v10506, 0.0
    %10527 = vadd.xlane.f32.xlu0 %v10526
    %v10528 = vpop.xlane.xlu0 %10527
    %v10529 = vsel %vm1907, %v10507, 0.0
    %10530 = vadd.xlane.f32.xlu0 %v10529
    %v10531 = vpop.xlane.xlu0 %10530
    %v10532 = vmul.f32 %v10510, %v8689
    %v10533 = vmul.f32 %v10513, %v8689
    %v10534 = vmul.f32 %v10516, %v8689
    %v10535 = vmul.f32 %v10519, %v8689
    %v10536 = vmul.f32 %v10522, %v8689
    %v10537 = vmul.f32 %v10525, %v8689
    %v10538 = vmul.f32 %v10528, %v8689
    %v10539 = vmul.f32 %v10531, %v8689
    %v10540 = vadd.f32 %v10532, 1e-05
    %v10541 = vadd.f32 %v10533, 1e-05
    %v10542 = vadd.f32 %v10534, 1e-05
    %v10543 = vadd.f32 %v10535, 1e-05
    %v10544 = vadd.f32 %v10536, 1e-05
    %v10545 = vadd.f32 %v10537, 1e-05
    %v10546 = vadd.f32 %v10538, 1e-05
    %v10547 = vadd.f32 %v10539, 1e-05
    %v10548 = vrsqrt.pop %v10540
    %v10549 = vrsqrt.pop %v10541
    %v10550 = vrsqrt.pop %v10542
    %v10551 = vrsqrt.pop %v10543
    %v10552 = vrsqrt.pop %v10544
    %v10553 = vrsqrt.pop %v10545
    %v10554 = vrsqrt.pop %v10546
    %v10555 = vrsqrt.pop %v10547
    %v10556 = vmul.f32 %v10492, %v10548
    %v10557 = vmul.f32 %v10493, %v10549
    %v10558 = vmul.f32 %v10494, %v10550
    %v10559 = vmul.f32 %v10495, %v10551
    %v10560 = vmul.f32 %v10496, %v10552
    %v10561 = vmul.f32 %v10497, %v10553
    %v10562 = vmul.f32 %v10498, %v10554
    %v10563 = vmul.f32 %v10499, %v10555
    %v10565 = vlaneseq
    %v10566 = vshrl.u32 %v10565, 7
    %v10567 = vsub.s32 0, %v10566
    %v10568 = vrot.slane %v10458, %v10567
    %v10570 = vmul.f32 %v10556, %v10568
    %v10571 = vmul.f32 %v10557, %v10568
    %v10572 = vmul.f32 %v10558, %v10568
    %v10573 = vmul.f32 %v10559, %v10568
    %v10574 = vmul.f32 %v10560, %v10568
    %v10575 = vmul.f32 %v10561, %v10568
    %v10576 = vmul.f32 %v10562, %v10568
    %v10577 = vmul.f32 %v10563, %v10568
    %v10579 = vlaneseq
    %v10580 = vshrl.u32 %v10579, 7
    %v10581 = vsub.s32 0, %v10580
    %v10582 = vrot.slane %v10459, %v10581
    %v10584 = vadd.f32 %v10570, %v10582
    %v10585 = vadd.f32 %v10571, %v10582
    %v10586 = vadd.f32 %v10572, %v10582
    %v10587 = vadd.f32 %v10573, %v10582
    %v10588 = vadd.f32 %v10574, %v10582
    %v10589 = vadd.f32 %v10575, %v10582
    %v10590 = vadd.f32 %v10576, %v10582
    %v10591 = vadd.f32 %v10577, %v10582
    %10592 = vst.msk [vmem:[#allocation7] sm:$0xff] %vm1907, %v10584
    %10593 = vst.msk [vmem:[#allocation7 + $0x8] sm:$0xff] %vm1907, %v10585
    %10594 = vst.msk [vmem:[#allocation7 + $0x10] sm:$0xff] %vm1907, %v10586
    %10595 = vst.msk [vmem:[#allocation7 + $0x18] sm:$0xff] %vm1907, %v10587
    %10596 = vst.msk [vmem:[#allocation7 + $0x20] sm:$0xff] %vm1907, %v10588
    %10597 = vst.msk [vmem:[#allocation7 + $0x28] sm:$0xff] %vm1907, %v10589
    %10598 = vst.msk [vmem:[#allocation7 + $0x30] sm:$0xff] %vm1907, %v10590
    %10599 = vst.msk [vmem:[#allocation7 + $0x38] sm:$0xff] %vm1907, %v10591
    // Predicated region
    $region46: #{tpu_custom_call.1} parent=1 // pred_check
      _
    $region47: #{tpu_custom_call.1} parent=1 // pred_check_branch
      %10601 = sbr.rel (0) target = $region49
    $region48: #{tpu_custom_call.1} parent=1 // pred_region
      %s10603 = ssub.s32 1024, 1024
      %10604 = vsyncadd [#allocation4], %s10603
      %s10605 = sshll.u32 [#allocation7], 4
      %s10606 = int_to_ptr.vmem [resolvable:$true] %s10605
      %10611 = dma.vmem_to_hbm [thread:$0]  %s10606, 1024, %s9, [#allocation4], 128, 128, 8
    $region49: #{tpu_custom_call.1} parent=1 // pred_fallthru
      _
    // Predicated region
    $region50: #{tpu_custom_call.1} parent=1 // pred_check
      _
    $region51: #{tpu_custom_call.1} parent=1 // pred_check_branch
      %10613 = sbr.rel (0) target = $region53
    $region52: #{tpu_custom_call.1} parent=1 // pred_region
      %10614 = dma.done [#allocation4], 1024
    $region53: #{tpu_custom_call.1} parent=1 // pred_fallthru
      _
    %10615 = vsyncpa [#allocation3], 1
    %10616 = vsyncpa [#allocation6], 1
    %10617 = vsyncpa [#allocation4], 1

</llo_original>
